<compile_context>
chip_gen: v5e
topology: v5e:2x2
jax: 0.10.0
libtpu: 0.0.40
codegen_flags: <defaults>
</compile_context>

<pallas_src>
import functools

import jax
import jax.numpy as jnp
import numpy as np
from jax import lax
from jax.experimental import pallas as pl
from jax.experimental.pallas import tpu as pltpu

VOCAB = 1000
EMB_DIM = 128     # embedding_dim
HID_DIM = 256     # hidden_dim
SUBLANE = 8       # TPU sublane granule


def lstm_fused_kernel(emb_ref, wih_ref, whh_ref, b_ref, wdec_ref, bdec_ref,
                      out_ref, gx_ref, hs_ref, *, seq, bp):
    """Fused LSTM + decoder forward. Single grid step.

    emb_ref : (seq*bp, E)   embedded tokens, time-major, batch padded to bp
    wih_ref : (E, 4H)       W_ih^T
    whh_ref : (H, 4H)       W_hh^T
    b_ref   : (1, 4H)       b_ih + b_hh
    wdec_ref: (H, E)        W_dec^T
    bdec_ref: (1, E)        b_dec
    out_ref : (seq*bp, E)   decoded output
    gx_ref  : (seq*bp, 4H)  scratch: precomputed input projection (all timesteps)
    hs_ref  : (seq*bp, H)   scratch: stacked hidden states
    """
    H = whh_ref.shape[0]

    # ---- Phase 1: batched input projection for ALL timesteps (M = seq*bp). ----
    gx_ref[...] = (
        jnp.dot(emb_ref[...], wih_ref[...], preferred_element_type=jnp.float32)
        + b_ref[...]
    )

    # ---- Phase 2: sequential recurrence — only h @ W_hh^T per timestep. ----
    def step(t, carry):
        h, c = carry
        row = pl.multiple_of(t * bp, SUBLANE)            # bp is a multiple of 8
        gates = gx_ref[pl.ds(row, bp), :] + jnp.dot(
            h, whh_ref[...], preferred_element_type=jnp.float32)   # (bp, 4H)

        # Full-tile nonlinearities, slice afterwards (slices are 128-lane aligned).
        sig = jax.nn.sigmoid(gates)
        tnh = jnp.tanh(gates)
        i_g = sig[:, 0:H]            # PyTorch gate order: i, f, g, o
        f_g = sig[:, H:2 * H]
        g_g = tnh[:, 2 * H:3 * H]
        o_g = sig[:, 3 * H:4 * H]

        c_new = f_g * c + i_g * g_g
        h_new = o_g * jnp.tanh(c_new)
        hs_ref[pl.ds(row, bp), :] = h_new                # 8-aligned dense store
        return h_new, c_new

    h0 = jnp.zeros((bp, H), jnp.float32)
    c0 = jnp.zeros((bp, H), jnp.float32)
    lax.fori_loop(0, seq, step, (h0, c0), unroll=True)   # short, static trip count

    # ---- Phase 3: batched decoder Linear, one lane/sublane-dense store. ----
    out_ref[...] = (
        jnp.dot(hs_ref[...], wdec_ref[...], preferred_element_type=jnp.float32)
        + bdec_ref[...]
    ).astype(out_ref.dtype)


def prepare_params(params):
    """One-time weight prep (transposes / bias fusion) outside the per-call path."""
    E, H = EMB_DIM, HID_DIM
    return {
        "embedding": params["embedding"],
        "w_ih_t": jnp.transpose(params["w_ih"]),                   # (E, 4H)
        "w_hh_t": jnp.transpose(params["w_hh"]),                   # (H, 4H)
        "bias": (params["b_ih"] + params["b_hh"]).reshape(1, 4 * H),
        "w_dec_t": jnp.transpose(params["w_dec"]),                 # (H, E)
        "b_dec": params["b_dec"].reshape(1, E),
    }


def neural_symbolic_forward(x_ids, prep):
    """x_ids: (seq, batch) int32 token ids. Returns (seq, batch, EMB_DIM) float32."""
    seq, batch = x_ids.shape
    E, H = EMB_DIM, HID_DIM
    bp = ((batch + SUBLANE - 1) // SUBLANE) * SUBLANE   # pad batch to sublane granule

    # Glue: embedding gather (data-dependent) + pad batch + flatten to (seq*bp, E).
    embedded = jnp.take(prep["embedding"], x_ids, axis=0)          # (seq, batch, E)
    if bp != batch:
        embedded = jnp.pad(embedded, ((0, 0), (0, bp - batch), (0, 0)))
    emb_flat = embedded.reshape(seq * bp, E)

    kernel = functools.partial(lstm_fused_kernel, seq=seq, bp=bp)

    out_flat = pl.pallas_call(
        kernel,
        out_shape=jax.ShapeDtypeStruct((seq * bp, E), jnp.float32),
        grid_spec=pltpu.PrefetchScalarGridSpec(
            num_scalar_prefetch=0,
            grid=(1,),                                     # whole sequence resident
            in_specs=[
                pl.BlockSpec((seq * bp, E), lambda i: (0, 0)),   # embedded (flat)
                pl.BlockSpec((E, 4 * H), lambda i: (0, 0)),      # W_ih^T
                pl.BlockSpec((H, 4 * H), lambda i: (0, 0)),      # W_hh^T
                pl.BlockSpec((1, 4 * H), lambda i: (0, 0)),      # fused bias
                pl.BlockSpec((H, E), lambda i: (0, 0)),          # W_dec^T
                pl.BlockSpec((1, E), lambda i: (0, 0)),          # b_dec
            ],
            out_specs=pl.BlockSpec((seq * bp, E), lambda i: (0, 0)),
            scratch_shapes=[
                pltpu.VMEM((seq * bp, 4 * H), jnp.float32),      # gx (input proj)
                pltpu.VMEM((seq * bp, H), jnp.float32),          # stacked hidden states
            ],
        ),
        compiler_params=pltpu.CompilerParams(
            dimension_semantics=("arbitrary",),            # recurrence => sequential
        ),
    )(emb_flat, prep["w_ih_t"], prep["w_hh_t"], prep["bias"],
      prep["w_dec_t"], prep["b_dec"])

    out = out_flat.reshape(seq, bp, E)
    return out[:, :batch, :]


def reference_forward(x_ids, params):
    """Pure-JAX reference of the PyTorch forward pass."""
    E, H = EMB_DIM, HID_DIM
    embedded = jnp.take(params["embedding"], x_ids, axis=0)
    b = params["b_ih"] + params["b_hh"]

    def step(carry, x_t):
        h, c = carry
        gates = x_t @ params["w_ih"].T + h @ params["w_hh"].T + b
        i_g = jax.nn.sigmoid(gates[:, 0:H])
        f_g = jax.nn.sigmoid(gates[:, H:2 * H])
        g_g = jnp.tanh(gates[:, 2 * H:3 * H])
        o_g = jax.nn.sigmoid(gates[:, 3 * H:4 * H])
        c_new = f_g * c + i_g * g_g
        h_new = o_g * jnp.tanh(c_new)
        return (h_new, c_new), h_new

    batch = x_ids.shape[1]
    h0 = jnp.zeros((batch, H), jnp.float32)
    c0 = jnp.zeros((batch, H), jnp.float32)
    _, hs = lax.scan(step, (h0, c0), embedded)
    return hs @ params["w_dec"].T + params["b_dec"]


def init_params(key):
    """Deterministic synthetic parameters matching PyTorch shapes."""
    E, H = EMB_DIM, HID_DIM
    ks = jax.random.split(key, 7)
    k_lstm = 1.0 / np.sqrt(H)
    k_lin = 1.0 / np.sqrt(H)
    return {
        "embedding": jax.random.normal(ks[0], (VOCAB, E), jnp.float32),
        "w_ih": jax.random.uniform(ks[1], (4 * H, E), jnp.float32, -k_lstm, k_lstm),
        "w_hh": jax.random.uniform(ks[2], (4 * H, H), jnp.float32, -k_lstm, k_lstm),
        "b_ih": jax.random.uniform(ks[3], (4 * H,), jnp.float32, -k_lstm, k_lstm),
        "b_hh": jax.random.uniform(ks[4], (4 * H,), jnp.float32, -k_lstm, k_lstm),
        "w_dec": jax.random.uniform(ks[5], (E, H), jnp.float32, -k_lin, k_lin),
        "b_dec": jax.random.uniform(ks[6], (E,), jnp.float32, -k_lin, k_lin),
    }


if __name__ == "__main__":
    key = jax.random.PRNGKey(0)
    k_param, k_ids = jax.random.split(key)

    params = init_params(k_param)
    prep = prepare_params(params)          # one-time weight prep (outside per-call path)

    seq, batch = 8, 2
    x_ids = jax.random.randint(k_ids, (seq, batch), 0, VOCAB, dtype=jnp.int32)

    fwd = jax.jit(neural_symbolic_forward)
    out = jax.block_until_ready(fwd(x_ids, prep))

    ref = jax.block_until_ready(reference_forward(x_ids, params))
    np.testing.assert_allclose(np.asarray(out), np.asarray(ref), rtol=1e-5, atol=1e-5)

    assert out.shape == (seq, batch, EMB_DIM)
    print("KERNEL_OK")
</pallas_src>

<mosaic_0001>
module attributes {stable_mosaic.version = 11 : i64} {
  func.func @lstm_fused_kernel(%arg0: i32, %arg1: memref<64x128xf32, #tpu.memory_space<vmem>>, %arg2: memref<128x1024xf32, #tpu.memory_space<vmem>>, %arg3: memref<256x1024xf32, #tpu.memory_space<vmem>>, %arg4: memref<1x1024xf32, #tpu.memory_space<vmem>>, %arg5: memref<256x128xf32, #tpu.memory_space<vmem>>, %arg6: memref<1x128xf32, #tpu.memory_space<vmem>>, %arg7: memref<64x128xf32, #tpu.memory_space<vmem>>, %arg8: memref<64x1024xf32, #tpu.memory_space<vmem>>, %arg9: memref<64x256xf32, #tpu.memory_space<vmem>>) attributes {dimension_semantics = [#tpu.dimension_semantics<arbitrary>], iteration_bounds = array<i64: 1>, scalar_prefetch = 0 : i64, scratch_operands = 2 : i64, tpu.core_type = #tpu.core_type<tc>, window_params = [{pipeline_mode = #tpu.pipeline_mode<synchronous>, transform_indices = @transform_0, window_bounds = array<i64: 64, 128>}, {pipeline_mode = #tpu.pipeline_mode<synchronous>, transform_indices = @transform_1, window_bounds = array<i64: 128, 1024>}, {pipeline_mode = #tpu.pipeline_mode<synchronous>, transform_indices = @transform_2, window_bounds = array<i64: 256, 1024>}, {pipeline_mode = #tpu.pipeline_mode<synchronous>, transform_indices = @transform_3, window_bounds = array<i64: 1, 1024>}, {pipeline_mode = #tpu.pipeline_mode<synchronous>, transform_indices = @transform_4, window_bounds = array<i64: 256, 128>}, {pipeline_mode = #tpu.pipeline_mode<synchronous>, transform_indices = @transform_5, window_bounds = array<i64: 1, 128>}, {pipeline_mode = #tpu.pipeline_mode<synchronous>, transform_indices = @transform_6, window_bounds = array<i64: 64, 128>}]} {
    %c0 = arith.constant 0 : index
    %c0_0 = arith.constant 0 : index
    %0 = vector.load %arg1[%c0, %c0_0] : memref<64x128xf32, #tpu.memory_space<vmem>>, vector<64x128xf32>
    %c0_1 = arith.constant 0 : index
    %c0_2 = arith.constant 0 : index
    %1 = vector.load %arg2[%c0_1, %c0_2] : memref<128x1024xf32, #tpu.memory_space<vmem>>, vector<128x1024xf32>
    %cst = arith.constant dense<0.000000e+00> : vector<64x1024xf32>
    %2 = tpu.matmul %0, %1, %cst {dimension_numbers = #tpu.dot_dimension_numbers<[1], [0], [0], [1], [0, 0, 1, 1], [], []>} : vector<64x128xf32>, vector<128x1024xf32>, vector<64x1024xf32> -> vector<64x1024xf32>
    %c0_3 = arith.constant 0 : index
    %c0_4 = arith.constant 0 : index
    %3 = vector.load %arg4[%c0_3, %c0_4] : memref<1x1024xf32, #tpu.memory_space<vmem>>, vector<1x1024xf32>
    %4 = vector.broadcast %3 : vector<1x1024xf32> to vector<64x1024xf32>
    %5 = arith.addf %2, %4 : vector<64x1024xf32>
    %c0_5 = arith.constant 0 : index
    %c0_6 = arith.constant 0 : index
    %6 = vector.load %arg8[%c0_5, %c0_6] : memref<64x1024xf32, #tpu.memory_space<vmem>>, vector<64x1024xf32>
    tpu.vector_store %arg8[%c0_5, %c0_6], %5 {strides = array<i32>} : memref<64x1024xf32, #tpu.memory_space<vmem>>, vector<64x1024xf32>,
    %cst_7 = arith.constant 0.000000e+00 : f32
    %7 = vector.broadcast %cst_7 : f32 to vector<8x256xf32>
    %cst_8 = arith.constant 0.000000e+00 : f32
    %8 = vector.broadcast %cst_8 : f32 to vector<8x256xf32>
    %c0_i32 = arith.constant 0 : i32
    %c8_i32 = arith.constant 8 : i32
    %9 = arith.muli %c0_i32, %c8_i32 : i32
    %10 = tpu.assume_multiple %9, 8 : i32
    %11 = arith.index_cast %10 : i32 to index
    %c0_9 = arith.constant 0 : index
    %12 = vector.load %arg8[%11, %c0_9] : memref<64x1024xf32, #tpu.memory_space<vmem>>, vector<8x1024xf32>
    %c0_10 = arith.constant 0 : index
    %c0_11 = arith.constant 0 : index
    %13 = vector.load %arg3[%c0_10, %c0_11] : memref<256x1024xf32, #tpu.memory_space<vmem>>, vector<256x1024xf32>
    %cst_12 = arith.constant dense<0.000000e+00> : vector<8x1024xf32>
    %14 = tpu.matmul %7, %13, %cst_12 {dimension_numbers = #tpu.dot_dimension_numbers<[1], [0], [0], [1], [0, 0, 1, 1], [], []>} : vector<8x256xf32>, vector<256x1024xf32>, vector<8x1024xf32> -> vector<8x1024xf32>
    %15 = arith.addf %12, %14 : vector<8x1024xf32>
    %16 = arith.negf %15 : vector<8x1024xf32>
    %17 = math.exp %16 : vector<8x1024xf32>
    %cst_13 = arith.constant 1.000000e+00 : f32
    %18 = vector.broadcast %cst_13 : f32 to vector<8x1024xf32>
    %19 = arith.addf %18, %17 : vector<8x1024xf32>
    %20 = arith.divf %18, %19 : vector<8x1024xf32>
    %21 = math.tanh %15 : vector<8x1024xf32>
    %22 = vector.extract_strided_slice %20 {offsets = [0, 0], sizes = [8, 256], strides = [1, 1]} : vector<8x1024xf32> to vector<8x256xf32>
    %23 = vector.extract_strided_slice %20 {offsets = [0, 256], sizes = [8, 256], strides = [1, 1]} : vector<8x1024xf32> to vector<8x256xf32>
    %24 = vector.extract_strided_slice %21 {offsets = [0, 512], sizes = [8, 256], strides = [1, 1]} : vector<8x1024xf32> to vector<8x256xf32>
    %25 = vector.extract_strided_slice %20 {offsets = [0, 768], sizes = [8, 256], strides = [1, 1]} : vector<8x1024xf32> to vector<8x256xf32>
    %26 = arith.mulf %23, %8 : vector<8x256xf32>
    %27 = arith.mulf %22, %24 : vector<8x256xf32>
    %28 = arith.addf %26, %27 : vector<8x256xf32>
    %29 = math.tanh %28 : vector<8x256xf32>
    %30 = arith.mulf %25, %29 : vector<8x256xf32>
    %31 = arith.index_cast %10 : i32 to index
    %c0_14 = arith.constant 0 : index
    %32 = vector.load %arg9[%31, %c0_14] : memref<64x256xf32, #tpu.memory_space<vmem>>, vector<8x256xf32>
    tpu.vector_store %arg9[%31, %c0_14], %30 {strides = array<i32>} : memref<64x256xf32, #tpu.memory_space<vmem>>, vector<8x256xf32>,
    %c1_i32 = arith.constant 1 : i32
    %c8_i32_15 = arith.constant 8 : i32
    %33 = arith.muli %c1_i32, %c8_i32_15 : i32
    %34 = tpu.assume_multiple %33, 8 : i32
    %35 = arith.index_cast %34 : i32 to index
    %c0_16 = arith.constant 0 : index
    %36 = vector.load %arg8[%35, %c0_16] : memref<64x1024xf32, #tpu.memory_space<vmem>>, vector<8x1024xf32>
    %c0_17 = arith.constant 0 : index
    %c0_18 = arith.constant 0 : index
    %37 = vector.load %arg3[%c0_17, %c0_18] : memref<256x1024xf32, #tpu.memory_space<vmem>>, vector<256x1024xf32>
    %cst_19 = arith.constant dense<0.000000e+00> : vector<8x1024xf32>
    %38 = tpu.matmul %30, %37, %cst_19 {dimension_numbers = #tpu.dot_dimension_numbers<[1], [0], [0], [1], [0, 0, 1, 1], [], []>} : vector<8x256xf32>, vector<256x1024xf32>, vector<8x1024xf32> -> vector<8x1024xf32>
    %39 = arith.addf %36, %38 : vector<8x1024xf32>
    %40 = arith.negf %39 : vector<8x1024xf32>
    %41 = math.exp %40 : vector<8x1024xf32>
    %cst_20 = arith.constant 1.000000e+00 : f32
    %42 = vector.broadcast %cst_20 : f32 to vector<8x1024xf32>
    %43 = arith.addf %42, %41 : vector<8x1024xf32>
    %44 = arith.divf %42, %43 : vector<8x1024xf32>
    %45 = math.tanh %39 : vector<8x1024xf32>
    %46 = vector.extract_strided_slice %44 {offsets = [0, 0], sizes = [8, 256], strides = [1, 1]} : vector<8x1024xf32> to vector<8x256xf32>
    %47 = vector.extract_strided_slice %44 {offsets = [0, 256], sizes = [8, 256], strides = [1, 1]} : vector<8x1024xf32> to vector<8x256xf32>
    %48 = vector.extract_strided_slice %45 {offsets = [0, 512], sizes = [8, 256], strides = [1, 1]} : vector<8x1024xf32> to vector<8x256xf32>
    %49 = vector.extract_strided_slice %44 {offsets = [0, 768], sizes = [8, 256], strides = [1, 1]} : vector<8x1024xf32> to vector<8x256xf32>
    %50 = arith.mulf %47, %28 : vector<8x256xf32>
    %51 = arith.mulf %46, %48 : vector<8x256xf32>
    %52 = arith.addf %50, %51 : vector<8x256xf32>
    %53 = math.tanh %52 : vector<8x256xf32>
    %54 = arith.mulf %49, %53 : vector<8x256xf32>
    %55 = arith.index_cast %34 : i32 to index
    %c0_21 = arith.constant 0 : index
    %56 = vector.load %arg9[%55, %c0_21] : memref<64x256xf32, #tpu.memory_space<vmem>>, vector<8x256xf32>
    tpu.vector_store %arg9[%55, %c0_21], %54 {strides = array<i32>} : memref<64x256xf32, #tpu.memory_space<vmem>>, vector<8x256xf32>,
    %c2_i32 = arith.constant 2 : i32
    %c8_i32_22 = arith.constant 8 : i32
    %57 = arith.muli %c2_i32, %c8_i32_22 : i32
    %58 = tpu.assume_multiple %57, 8 : i32
    %59 = arith.index_cast %58 : i32 to index
    %c0_23 = arith.constant 0 : index
    %60 = vector.load %arg8[%59, %c0_23] : memref<64x1024xf32, #tpu.memory_space<vmem>>, vector<8x1024xf32>
    %c0_24 = arith.constant 0 : index
    %c0_25 = arith.constant 0 : index
    %61 = vector.load %arg3[%c0_24, %c0_25] : memref<256x1024xf32, #tpu.memory_space<vmem>>, vector<256x1024xf32>
    %cst_26 = arith.constant dense<0.000000e+00> : vector<8x1024xf32>
    %62 = tpu.matmul %54, %61, %cst_26 {dimension_numbers = #tpu.dot_dimension_numbers<[1], [0], [0], [1], [0, 0, 1, 1], [], []>} : vector<8x256xf32>, vector<256x1024xf32>, vector<8x1024xf32> -> vector<8x1024xf32>
    %63 = arith.addf %60, %62 : vector<8x1024xf32>
    %64 = arith.negf %63 : vector<8x1024xf32>
    %65 = math.exp %64 : vector<8x1024xf32>
    %cst_27 = arith.constant 1.000000e+00 : f32
    %66 = vector.broadcast %cst_27 : f32 to vector<8x1024xf32>
    %67 = arith.addf %66, %65 : vector<8x1024xf32>
    %68 = arith.divf %66, %67 : vector<8x1024xf32>
    %69 = math.tanh %63 : vector<8x1024xf32>
    %70 = vector.extract_strided_slice %68 {offsets = [0, 0], sizes = [8, 256], strides = [1, 1]} : vector<8x1024xf32> to vector<8x256xf32>
    %71 = vector.extract_strided_slice %68 {offsets = [0, 256], sizes = [8, 256], strides = [1, 1]} : vector<8x1024xf32> to vector<8x256xf32>
    %72 = vector.extract_strided_slice %69 {offsets = [0, 512], sizes = [8, 256], strides = [1, 1]} : vector<8x1024xf32> to vector<8x256xf32>
    %73 = vector.extract_strided_slice %68 {offsets = [0, 768], sizes = [8, 256], strides = [1, 1]} : vector<8x1024xf32> to vector<8x256xf32>
    %74 = arith.mulf %71, %52 : vector<8x256xf32>
    %75 = arith.mulf %70, %72 : vector<8x256xf32>
    %76 = arith.addf %74, %75 : vector<8x256xf32>
    %77 = math.tanh %76 : vector<8x256xf32>
    %78 = arith.mulf %73, %77 : vector<8x256xf32>
    %79 = arith.index_cast %58 : i32 to index
    %c0_28 = arith.constant 0 : index
    %80 = vector.load %arg9[%79, %c0_28] : memref<64x256xf32, #tpu.memory_space<vmem>>, vector<8x256xf32>
    tpu.vector_store %arg9[%79, %c0_28], %78 {strides = array<i32>} : memref<64x256xf32, #tpu.memory_space<vmem>>, vector<8x256xf32>,
    %c3_i32 = arith.constant 3 : i32
    %c8_i32_29 = arith.constant 8 : i32
    %81 = arith.muli %c3_i32, %c8_i32_29 : i32
    %82 = tpu.assume_multiple %81, 8 : i32
    %83 = arith.index_cast %82 : i32 to index
    %c0_30 = arith.constant 0 : index
    %84 = vector.load %arg8[%83, %c0_30] : memref<64x1024xf32, #tpu.memory_space<vmem>>, vector<8x1024xf32>
    %c0_31 = arith.constant 0 : index
    %c0_32 = arith.constant 0 : index
    %85 = vector.load %arg3[%c0_31, %c0_32] : memref<256x1024xf32, #tpu.memory_space<vmem>>, vector<256x1024xf32>
    %cst_33 = arith.constant dense<0.000000e+00> : vector<8x1024xf32>
    %86 = tpu.matmul %78, %85, %cst_33 {dimension_numbers = #tpu.dot_dimension_numbers<[1], [0], [0], [1], [0, 0, 1, 1], [], []>} : vector<8x256xf32>, vector<256x1024xf32>, vector<8x1024xf32> -> vector<8x1024xf32>
    %87 = arith.addf %84, %86 : vector<8x1024xf32>
    %88 = arith.negf %87 : vector<8x1024xf32>
    %89 = math.exp %88 : vector<8x1024xf32>
    %cst_34 = arith.constant 1.000000e+00 : f32
    %90 = vector.broadcast %cst_34 : f32 to vector<8x1024xf32>
    %91 = arith.addf %90, %89 : vector<8x1024xf32>
    %92 = arith.divf %90, %91 : vector<8x1024xf32>
    %93 = math.tanh %87 : vector<8x1024xf32>
    %94 = vector.extract_strided_slice %92 {offsets = [0, 0], sizes = [8, 256], strides = [1, 1]} : vector<8x1024xf32> to vector<8x256xf32>
    %95 = vector.extract_strided_slice %92 {offsets = [0, 256], sizes = [8, 256], strides = [1, 1]} : vector<8x1024xf32> to vector<8x256xf32>
    %96 = vector.extract_strided_slice %93 {offsets = [0, 512], sizes = [8, 256], strides = [1, 1]} : vector<8x1024xf32> to vector<8x256xf32>
    %97 = vector.extract_strided_slice %92 {offsets = [0, 768], sizes = [8, 256], strides = [1, 1]} : vector<8x1024xf32> to vector<8x256xf32>
    %98 = arith.mulf %95, %76 : vector<8x256xf32>
    %99 = arith.mulf %94, %96 : vector<8x256xf32>
    %100 = arith.addf %98, %99 : vector<8x256xf32>
    %101 = math.tanh %100 : vector<8x256xf32>
    %102 = arith.mulf %97, %101 : vector<8x256xf32>
    %103 = arith.index_cast %82 : i32 to index
    %c0_35 = arith.constant 0 : index
    %104 = vector.load %arg9[%103, %c0_35] : memref<64x256xf32, #tpu.memory_space<vmem>>, vector<8x256xf32>
    tpu.vector_store %arg9[%103, %c0_35], %102 {strides = array<i32>} : memref<64x256xf32, #tpu.memory_space<vmem>>, vector<8x256xf32>,
    %c4_i32 = arith.constant 4 : i32
    %c8_i32_36 = arith.constant 8 : i32
    %105 = arith.muli %c4_i32, %c8_i32_36 : i32
    %106 = tpu.assume_multiple %105, 8 : i32
    %107 = arith.index_cast %106 : i32 to index
    %c0_37 = arith.constant 0 : index
    %108 = vector.load %arg8[%107, %c0_37] : memref<64x1024xf32, #tpu.memory_space<vmem>>, vector<8x1024xf32>
    %c0_38 = arith.constant 0 : index
    %c0_39 = arith.constant 0 : index
    %109 = vector.load %arg3[%c0_38, %c0_39] : memref<256x1024xf32, #tpu.memory_space<vmem>>, vector<256x1024xf32>
    %cst_40 = arith.constant dense<0.000000e+00> : vector<8x1024xf32>
    %110 = tpu.matmul %102, %109, %cst_40 {dimension_numbers = #tpu.dot_dimension_numbers<[1], [0], [0], [1], [0, 0, 1, 1], [], []>} : vector<8x256xf32>, vector<256x1024xf32>, vector<8x1024xf32> -> vector<8x1024xf32>
    %111 = arith.addf %108, %110 : vector<8x1024xf32>
    %112 = arith.negf %111 : vector<8x1024xf32>
    %113 = math.exp %112 : vector<8x1024xf32>
    %cst_41 = arith.constant 1.000000e+00 : f32
    %114 = vector.broadcast %cst_41 : f32 to vector<8x1024xf32>
    %115 = arith.addf %114, %113 : vector<8x1024xf32>
    %116 = arith.divf %114, %115 : vector<8x1024xf32>
    %117 = math.tanh %111 : vector<8x1024xf32>
    %118 = vector.extract_strided_slice %116 {offsets = [0, 0], sizes = [8, 256], strides = [1, 1]} : vector<8x1024xf32> to vector<8x256xf32>
    %119 = vector.extract_strided_slice %116 {offsets = [0, 256], sizes = [8, 256], strides = [1, 1]} : vector<8x1024xf32> to vector<8x256xf32>
    %120 = vector.extract_strided_slice %117 {offsets = [0, 512], sizes = [8, 256], strides = [1, 1]} : vector<8x1024xf32> to vector<8x256xf32>
    %121 = vector.extract_strided_slice %116 {offsets = [0, 768], sizes = [8, 256], strides = [1, 1]} : vector<8x1024xf32> to vector<8x256xf32>
    %122 = arith.mulf %119, %100 : vector<8x256xf32>
    %123 = arith.mulf %118, %120 : vector<8x256xf32>
    %124 = arith.addf %122, %123 : vector<8x256xf32>
    %125 = math.tanh %124 : vector<8x256xf32>
    %126 = arith.mulf %121, %125 : vector<8x256xf32>
    %127 = arith.index_cast %106 : i32 to index
    %c0_42 = arith.constant 0 : index
    %128 = vector.load %arg9[%127, %c0_42] : memref<64x256xf32, #tpu.memory_space<vmem>>, vector<8x256xf32>
    tpu.vector_store %arg9[%127, %c0_42], %126 {strides = array<i32>} : memref<64x256xf32, #tpu.memory_space<vmem>>, vector<8x256xf32>,
    %c5_i32 = arith.constant 5 : i32
    %c8_i32_43 = arith.constant 8 : i32
    %129 = arith.muli %c5_i32, %c8_i32_43 : i32
    %130 = tpu.assume_multiple %129, 8 : i32
    %131 = arith.index_cast %130 : i32 to index
    %c0_44 = arith.constant 0 : index
    %132 = vector.load %arg8[%131, %c0_44] : memref<64x1024xf32, #tpu.memory_space<vmem>>, vector<8x1024xf32>
    %c0_45 = arith.constant 0 : index
    %c0_46 = arith.constant 0 : index
    %133 = vector.load %arg3[%c0_45, %c0_46] : memref<256x1024xf32, #tpu.memory_space<vmem>>, vector<256x1024xf32>
    %cst_47 = arith.constant dense<0.000000e+00> : vector<8x1024xf32>
    %134 = tpu.matmul %126, %133, %cst_47 {dimension_numbers = #tpu.dot_dimension_numbers<[1], [0], [0], [1], [0, 0, 1, 1], [], []>} : vector<8x256xf32>, vector<256x1024xf32>, vector<8x1024xf32> -> vector<8x1024xf32>
    %135 = arith.addf %132, %134 : vector<8x1024xf32>
    %136 = arith.negf %135 : vector<8x1024xf32>
    %137 = math.exp %136 : vector<8x1024xf32>
    %cst_48 = arith.constant 1.000000e+00 : f32
    %138 = vector.broadcast %cst_48 : f32 to vector<8x1024xf32>
    %139 = arith.addf %138, %137 : vector<8x1024xf32>
    %140 = arith.divf %138, %139 : vector<8x1024xf32>
    %141 = math.tanh %135 : vector<8x1024xf32>
    %142 = vector.extract_strided_slice %140 {offsets = [0, 0], sizes = [8, 256], strides = [1, 1]} : vector<8x1024xf32> to vector<8x256xf32>
    %143 = vector.extract_strided_slice %140 {offsets = [0, 256], sizes = [8, 256], strides = [1, 1]} : vector<8x1024xf32> to vector<8x256xf32>
    %144 = vector.extract_strided_slice %141 {offsets = [0, 512], sizes = [8, 256], strides = [1, 1]} : vector<8x1024xf32> to vector<8x256xf32>
    %145 = vector.extract_strided_slice %140 {offsets = [0, 768], sizes = [8, 256], strides = [1, 1]} : vector<8x1024xf32> to vector<8x256xf32>
    %146 = arith.mulf %143, %124 : vector<8x256xf32>
    %147 = arith.mulf %142, %144 : vector<8x256xf32>
    %148 = arith.addf %146, %147 : vector<8x256xf32>
    %149 = math.tanh %148 : vector<8x256xf32>
    %150 = arith.mulf %145, %149 : vector<8x256xf32>
    %151 = arith.index_cast %130 : i32 to index
    %c0_49 = arith.constant 0 : index
    %152 = vector.load %arg9[%151, %c0_49] : memref<64x256xf32, #tpu.memory_space<vmem>>, vector<8x256xf32>
    tpu.vector_store %arg9[%151, %c0_49], %150 {strides = array<i32>} : memref<64x256xf32, #tpu.memory_space<vmem>>, vector<8x256xf32>,
    %c6_i32 = arith.constant 6 : i32
    %c8_i32_50 = arith.constant 8 : i32
    %153 = arith.muli %c6_i32, %c8_i32_50 : i32
    %154 = tpu.assume_multiple %153, 8 : i32
    %155 = arith.index_cast %154 : i32 to index
    %c0_51 = arith.constant 0 : index
    %156 = vector.load %arg8[%155, %c0_51] : memref<64x1024xf32, #tpu.memory_space<vmem>>, vector<8x1024xf32>
    %c0_52 = arith.constant 0 : index
    %c0_53 = arith.constant 0 : index
    %157 = vector.load %arg3[%c0_52, %c0_53] : memref<256x1024xf32, #tpu.memory_space<vmem>>, vector<256x1024xf32>
    %cst_54 = arith.constant dense<0.000000e+00> : vector<8x1024xf32>
    %158 = tpu.matmul %150, %157, %cst_54 {dimension_numbers = #tpu.dot_dimension_numbers<[1], [0], [0], [1], [0, 0, 1, 1], [], []>} : vector<8x256xf32>, vector<256x1024xf32>, vector<8x1024xf32> -> vector<8x1024xf32>
    %159 = arith.addf %156, %158 : vector<8x1024xf32>
    %160 = arith.negf %159 : vector<8x1024xf32>
    %161 = math.exp %160 : vector<8x1024xf32>
    %cst_55 = arith.constant 1.000000e+00 : f32
    %162 = vector.broadcast %cst_55 : f32 to vector<8x1024xf32>
    %163 = arith.addf %162, %161 : vector<8x1024xf32>
    %164 = arith.divf %162, %163 : vector<8x1024xf32>
    %165 = math.tanh %159 : vector<8x1024xf32>
    %166 = vector.extract_strided_slice %164 {offsets = [0, 0], sizes = [8, 256], strides = [1, 1]} : vector<8x1024xf32> to vector<8x256xf32>
    %167 = vector.extract_strided_slice %164 {offsets = [0, 256], sizes = [8, 256], strides = [1, 1]} : vector<8x1024xf32> to vector<8x256xf32>
    %168 = vector.extract_strided_slice %165 {offsets = [0, 512], sizes = [8, 256], strides = [1, 1]} : vector<8x1024xf32> to vector<8x256xf32>
    %169 = vector.extract_strided_slice %164 {offsets = [0, 768], sizes = [8, 256], strides = [1, 1]} : vector<8x1024xf32> to vector<8x256xf32>
    %170 = arith.mulf %167, %148 : vector<8x256xf32>
    %171 = arith.mulf %166, %168 : vector<8x256xf32>
    %172 = arith.addf %170, %171 : vector<8x256xf32>
    %173 = math.tanh %172 : vector<8x256xf32>
    %174 = arith.mulf %169, %173 : vector<8x256xf32>
    %175 = arith.index_cast %154 : i32 to index
    %c0_56 = arith.constant 0 : index
    %176 = vector.load %arg9[%175, %c0_56] : memref<64x256xf32, #tpu.memory_space<vmem>>, vector<8x256xf32>
    tpu.vector_store %arg9[%175, %c0_56], %174 {strides = array<i32>} : memref<64x256xf32, #tpu.memory_space<vmem>>, vector<8x256xf32>,
    %c7_i32 = arith.constant 7 : i32
    %c8_i32_57 = arith.constant 8 : i32
    %177 = arith.muli %c7_i32, %c8_i32_57 : i32
    %178 = tpu.assume_multiple %177, 8 : i32
    %179 = arith.index_cast %178 : i32 to index
    %c0_58 = arith.constant 0 : index
    %180 = vector.load %arg8[%179, %c0_58] : memref<64x1024xf32, #tpu.memory_space<vmem>>, vector<8x1024xf32>
    %c0_59 = arith.constant 0 : index
    %c0_60 = arith.constant 0 : index
    %181 = vector.load %arg3[%c0_59, %c0_60] : memref<256x1024xf32, #tpu.memory_space<vmem>>, vector<256x1024xf32>
    %cst_61 = arith.constant dense<0.000000e+00> : vector<8x1024xf32>
    %182 = tpu.matmul %174, %181, %cst_61 {dimension_numbers = #tpu.dot_dimension_numbers<[1], [0], [0], [1], [0, 0, 1, 1], [], []>} : vector<8x256xf32>, vector<256x1024xf32>, vector<8x1024xf32> -> vector<8x1024xf32>
    %183 = arith.addf %180, %182 : vector<8x1024xf32>
    %184 = arith.negf %183 : vector<8x1024xf32>
    %185 = math.exp %184 : vector<8x1024xf32>
    %cst_62 = arith.constant 1.000000e+00 : f32
    %186 = vector.broadcast %cst_62 : f32 to vector<8x1024xf32>
    %187 = arith.addf %186, %185 : vector<8x1024xf32>
    %188 = arith.divf %186, %187 : vector<8x1024xf32>
    %189 = math.tanh %183 : vector<8x1024xf32>
    %190 = vector.extract_strided_slice %188 {offsets = [0, 0], sizes = [8, 256], strides = [1, 1]} : vector<8x1024xf32> to vector<8x256xf32>
    %191 = vector.extract_strided_slice %188 {offsets = [0, 256], sizes = [8, 256], strides = [1, 1]} : vector<8x1024xf32> to vector<8x256xf32>
    %192 = vector.extract_strided_slice %189 {offsets = [0, 512], sizes = [8, 256], strides = [1, 1]} : vector<8x1024xf32> to vector<8x256xf32>
    %193 = vector.extract_strided_slice %188 {offsets = [0, 768], sizes = [8, 256], strides = [1, 1]} : vector<8x1024xf32> to vector<8x256xf32>
    %194 = arith.mulf %191, %172 : vector<8x256xf32>
    %195 = arith.mulf %190, %192 : vector<8x256xf32>
    %196 = arith.addf %194, %195 : vector<8x256xf32>
    %197 = math.tanh %196 : vector<8x256xf32>
    %198 = arith.mulf %193, %197 : vector<8x256xf32>
    %199 = arith.index_cast %178 : i32 to index
    %c0_63 = arith.constant 0 : index
    %200 = vector.load %arg9[%199, %c0_63] : memref<64x256xf32, #tpu.memory_space<vmem>>, vector<8x256xf32>
    tpu.vector_store %arg9[%199, %c0_63], %198 {strides = array<i32>} : memref<64x256xf32, #tpu.memory_space<vmem>>, vector<8x256xf32>,
    %c8_i32_64 = arith.constant 8 : i32
    %c0_65 = arith.constant 0 : index
    %c0_66 = arith.constant 0 : index
    %201 = vector.load %arg9[%c0_65, %c0_66] : memref<64x256xf32, #tpu.memory_space<vmem>>, vector<64x256xf32>
    %c0_67 = arith.constant 0 : index
    %c0_68 = arith.constant 0 : index
    %202 = vector.load %arg5[%c0_67, %c0_68] : memref<256x128xf32, #tpu.memory_space<vmem>>, vector<256x128xf32>
    %cst_69 = arith.constant dense<0.000000e+00> : vector<64x128xf32>
    %203 = tpu.matmul %201, %202, %cst_69 {dimension_numbers = #tpu.dot_dimension_numbers<[1], [0], [0], [1], [0, 0, 1, 1], [], []>} : vector<64x256xf32>, vector<256x128xf32>, vector<64x128xf32> -> vector<64x128xf32>
    %c0_70 = arith.constant 0 : index
    %c0_71 = arith.constant 0 : index
    %204 = vector.load %arg6[%c0_70, %c0_71] : memref<1x128xf32, #tpu.memory_space<vmem>>, vector<1x128xf32>
    %205 = vector.broadcast %204 : vector<1x128xf32> to vector<64x128xf32>
    %206 = arith.addf %203, %205 : vector<64x128xf32>
    %c0_72 = arith.constant 0 : index
    %c0_73 = arith.constant 0 : index
    %207 = vector.load %arg7[%c0_72, %c0_73] : memref<64x128xf32, #tpu.memory_space<vmem>>, vector<64x128xf32>
    tpu.vector_store %arg7[%c0_72, %c0_73], %206 {strides = array<i32>} : memref<64x128xf32, #tpu.memory_space<vmem>>, vector<64x128xf32>,
    return
  }
  func.func @transform_0(%arg0: i32) -> (i32, i32) {
    %c0_i32 = arith.constant 0 : i32
    %c0_i32_0 = arith.constant 0 : i32
    %c0_i32_1 = arith.constant 0 : i32
    return %c0_i32, %c0_i32_0 : i32, i32
  }
  func.func @transform_1(%arg0: i32) -> (i32, i32) {
    %c0_i32 = arith.constant 0 : i32
    %c0_i32_0 = arith.constant 0 : i32
    %c0_i32_1 = arith.constant 0 : i32
    return %c0_i32, %c0_i32_0 : i32, i32
  }
  func.func @transform_2(%arg0: i32) -> (i32, i32) {
    %c0_i32 = arith.constant 0 : i32
    %c0_i32_0 = arith.constant 0 : i32
    %c0_i32_1 = arith.constant 0 : i32
    return %c0_i32, %c0_i32_0 : i32, i32
  }
  func.func @transform_3(%arg0: i32) -> (i32, i32) {
    %c0_i32 = arith.constant 0 : i32
    %c0_i32_0 = arith.constant 0 : i32
    %c0_i32_1 = arith.constant 0 : i32
    return %c0_i32, %c0_i32_0 : i32, i32
  }
  func.func @transform_4(%arg0: i32) -> (i32, i32) {
    %c0_i32 = arith.constant 0 : i32
    %c0_i32_0 = arith.constant 0 : i32
    %c0_i32_1 = arith.constant 0 : i32
    return %c0_i32, %c0_i32_0 : i32, i32
  }
  func.func @transform_5(%arg0: i32) -> (i32, i32) {
    %c0_i32 = arith.constant 0 : i32
    %c0_i32_0 = arith.constant 0 : i32
    %c0_i32_1 = arith.constant 0 : i32
    return %c0_i32, %c0_i32_0 : i32, i32
  }
  func.func @transform_6(%arg0: i32) -> (i32, i32) {
    %c0_i32 = arith.constant 0 : i32
    %c0_i32_0 = arith.constant 0 : i32
    %c0_i32_1 = arith.constant 0 : i32
    return %c0_i32, %c0_i32_0 : i32, i32
  }
}

</mosaic_0001>

<llo_original>
// kernel: neural_symbolic_forward.1
$region0: #{neural_symbolic_forward.1}
  #allocation0 [shape = 'u32[]', space=smem, size = 0x4, offset = 0x4, fixed_abs, tag = 'smem constant byte address 0x4 - core index']
  #allocation1 [shape = 'u32[72,128]{1,0:T(1,128)}', space=vmem, size = 0x9000, scoped, tag = 'internal scratch']
  #allocation2 [shape = 'f32[64,1024]{1,0:T(8,128)}', space=vmem, size = 0x40000, scoped, tag = 'scratch operand']
  #allocation3 [shape = 'f32[64,256]{1,0:T(8,128)}', space=vmem, size = 0x10000, scoped, tag = 'scratch operand']
  %s0 = inlined_call_operand.vmem [shape: f32[64,128], index: 0, kind: input, shape index: {}]
  %s1 = inlined_call_operand.hbm [shape: f32[128,1024], index: 1, kind: input, shape index: {}]
  %s2 = inlined_call_operand.hbm [shape: f32[256,1024], index: 2, kind: input, shape index: {}]
  %s3 = inlined_call_operand.vmem [shape: f32[1,1024], index: 3, kind: input, shape index: {}]
  %s4 = inlined_call_operand.vmem [shape: f32[256,128], index: 4, kind: input, shape index: {}]
  %s5 = inlined_call_operand.vmem [shape: f32[1,128], index: 5, kind: input, shape index: {}]
  %s6 = inlined_call_operand.vmem [shape: f32[64,128], index: 6, kind: output, shape index: {}]
  %s7 = sld [smem:[#allocation0]]
  $region42: #{neural_symbolic_forward.1} parent=0
    _
  %s9 = ssub.s32 1, %s7
  %s10 = scalar_select 0, %s9, %s7
  $region1: #{neural_symbolic_forward.1} parent=0
    #allocation4 [shape = 'u8[524288]{0}', space=vmem, size = 0x80000, scoped, tag = 'input window, operand 1, single buffered']
    #allocation5 [shape = 's32[1]{0}', space=sflag, size = 0x4, scoped, tag = 'scoped memory for neural_symbolic_forward.1']
    #allocation6 [shape = 'u8[1048576]{0}', space=vmem, size = 0x100000, scoped, tag = 'input window, operand 2, single buffered']
    #allocation7 [shape = 's32[1]{0}', space=sflag, size = 0x4, scoped, tag = 'scoped memory for neural_symbolic_forward.1']
    %11 = vsyncpa [#allocation5], 0
    %12 = vsyncpa [#allocation7], 0
    // Predicated region
    $region2: #{neural_symbolic_forward.1} parent=1 // pred_check
      _
    $region3: #{neural_symbolic_forward.1} parent=1 // pred_check_branch
      %14 = sbr.rel (0) target = $region5
    $region4: #{neural_symbolic_forward.1} parent=1 // pred_region
      _
    $region5: #{neural_symbolic_forward.1} parent=1 // pred_fallthru
      _
    // Predicated region
    $region6: #{neural_symbolic_forward.1} parent=1 // pred_check
      _
    $region7: #{neural_symbolic_forward.1} parent=1 // pred_check_branch
      %16 = sbr.rel (0) target = $region9
    $region8: #{neural_symbolic_forward.1} parent=1 // pred_region
      %18 = vsyncadd [#allocation5], 0
      %s19 = sshll.u32 %s1, 4
      %s20 = int_to_ptr.hbm [resolvable:$true] %s19
      %s21 = sshll.u32 [#allocation4], 4
      %s22 = int_to_ptr.vmem [resolvable:$true] %s21
      %27 = dma.hbm_to_vmem [thread:$0]  %s20, 16384, %s22, [#allocation5], 1024, 1024, 64
    $region9: #{neural_symbolic_forward.1} parent=1 // pred_fallthru
      _
    // Predicated region
    $region10: #{neural_symbolic_forward.1} parent=1 // pred_check
      _
    $region11: #{neural_symbolic_forward.1} parent=1 // pred_check_branch
      %29 = sbr.rel (0) target = $region13
    $region12: #{neural_symbolic_forward.1} parent=1 // pred_region
      %31 = vsyncadd [#allocation7], 0
      %s32 = sshll.u32 %s2, 4
      %s33 = int_to_ptr.hbm [resolvable:$true] %s32
      %s34 = sshll.u32 [#allocation6], 4
      %s35 = int_to_ptr.vmem [resolvable:$true] %s34
      %40 = dma.hbm_to_vmem [thread:$0]  %s33, 32768, %s35, [#allocation7], 1024, 1024, 64
    $region13: #{neural_symbolic_forward.1} parent=1 // pred_fallthru
      _
    // Predicated region
    $region14: #{neural_symbolic_forward.1} parent=1 // pred_check
      _
    $region15: #{neural_symbolic_forward.1} parent=1 // pred_check_branch
      %42 = sbr.rel (0) target = $region17
    $region16: #{neural_symbolic_forward.1} parent=1 // pred_region
      _
    $region17: #{neural_symbolic_forward.1} parent=1 // pred_fallthru
      _
    // Predicated region
    $region18: #{neural_symbolic_forward.1} parent=1 // pred_check
      _
    $region19: #{neural_symbolic_forward.1} parent=1 // pred_check_branch
      %44 = sbr.rel (0) target = $region21
    $region20: #{neural_symbolic_forward.1} parent=1 // pred_region
      _
    $region21: #{neural_symbolic_forward.1} parent=1 // pred_fallthru
      _
    // Predicated region
    $region22: #{neural_symbolic_forward.1} parent=1 // pred_check
      _
    $region23: #{neural_symbolic_forward.1} parent=1 // pred_check_branch
      %46 = sbr.rel (0) target = $region25
    $region24: #{neural_symbolic_forward.1} parent=1 // pred_region
      _
    $region25: #{neural_symbolic_forward.1} parent=1 // pred_fallthru
      _
    // Predicated region
    $region26: #{neural_symbolic_forward.1} parent=1 // pred_check
      _
    $region27: #{neural_symbolic_forward.1} parent=1 // pred_check_branch
      %48 = sbr.rel (0) target = $region29
    $region28: #{neural_symbolic_forward.1} parent=1 // pred_region
      %50 = dma.done [#allocation5], 16384
    $region29: #{neural_symbolic_forward.1} parent=1 // pred_fallthru
      _
    // Predicated region
    $region30: #{neural_symbolic_forward.1} parent=1 // pred_check
      _
    $region31: #{neural_symbolic_forward.1} parent=1 // pred_check_branch
      %52 = sbr.rel (0) target = $region33
    $region32: #{neural_symbolic_forward.1} parent=1 // pred_region
      %54 = dma.done [#allocation7], 32768
    $region33: #{neural_symbolic_forward.1} parent=1 // pred_fallthru
      _
    %v55 = vld [vmem:[%s0] sm:$0xff]
    %v56 = vld [vmem:[%s0 + $0x8] sm:$0xff]
    %v57 = vld [vmem:[%s0 + $0x10] sm:$0xff]
    %v58 = vld [vmem:[%s0 + $0x18] sm:$0xff]
    %v59 = vld [vmem:[%s0 + $0x20] sm:$0xff]
    %v60 = vld [vmem:[%s0 + $0x28] sm:$0xff]
    %v61 = vld [vmem:[%s0 + $0x30] sm:$0xff]
    %v62 = vld [vmem:[%s0 + $0x38] sm:$0xff]
    %v63 = vld [vmem:[#allocation4] sm:$0xff]
    %v64 = vld [vmem:[#allocation4 + $0x8] sm:$0xff]
    %v65 = vld [vmem:[#allocation4 + $0x10] sm:$0xff]
    %v66 = vld [vmem:[#allocation4 + $0x18] sm:$0xff]
    %v67 = vld [vmem:[#allocation4 + $0x20] sm:$0xff]
    %v68 = vld [vmem:[#allocation4 + $0x28] sm:$0xff]
    %v69 = vld [vmem:[#allocation4 + $0x30] sm:$0xff]
    %v70 = vld [vmem:[#allocation4 + $0x38] sm:$0xff]
    %v71 = vld [vmem:[#allocation4 + $0x40] sm:$0xff]
    %v72 = vld [vmem:[#allocation4 + $0x48] sm:$0xff]
    %v73 = vld [vmem:[#allocation4 + $0x50] sm:$0xff]
    %v74 = vld [vmem:[#allocation4 + $0x58] sm:$0xff]
    %v75 = vld [vmem:[#allocation4 + $0x60] sm:$0xff]
    %v76 = vld [vmem:[#allocation4 + $0x68] sm:$0xff]
    %v77 = vld [vmem:[#allocation4 + $0x70] sm:$0xff]
    %v78 = vld [vmem:[#allocation4 + $0x78] sm:$0xff]
    %v79 = vld [vmem:[#allocation4 + $0x80] sm:$0xff]
    %v80 = vld [vmem:[#allocation4 + $0x88] sm:$0xff]
    %v81 = vld [vmem:[#allocation4 + $0x90] sm:$0xff]
    %v82 = vld [vmem:[#allocation4 + $0x98] sm:$0xff]
    %v83 = vld [vmem:[#allocation4 + $0xa0] sm:$0xff]
    %v84 = vld [vmem:[#allocation4 + $0xa8] sm:$0xff]
    %v85 = vld [vmem:[#allocation4 + $0xb0] sm:$0xff]
    %v86 = vld [vmem:[#allocation4 + $0xb8] sm:$0xff]
    %v87 = vld [vmem:[#allocation4 + $0xc0] sm:$0xff]
    %v88 = vld [vmem:[#allocation4 + $0xc8] sm:$0xff]
    %v89 = vld [vmem:[#allocation4 + $0xd0] sm:$0xff]
    %v90 = vld [vmem:[#allocation4 + $0xd8] sm:$0xff]
    %v91 = vld [vmem:[#allocation4 + $0xe0] sm:$0xff]
    %v92 = vld [vmem:[#allocation4 + $0xe8] sm:$0xff]
    %v93 = vld [vmem:[#allocation4 + $0xf0] sm:$0xff]
    %v94 = vld [vmem:[#allocation4 + $0xf8] sm:$0xff]
    %v95 = vld [vmem:[#allocation4 + $0x100] sm:$0xff]
    %v96 = vld [vmem:[#allocation4 + $0x108] sm:$0xff]
    %v97 = vld [vmem:[#allocation4 + $0x110] sm:$0xff]
    %v98 = vld [vmem:[#allocation4 + $0x118] sm:$0xff]
    %v99 = vld [vmem:[#allocation4 + $0x120] sm:$0xff]
    %v100 = vld [vmem:[#allocation4 + $0x128] sm:$0xff]
    %v101 = vld [vmem:[#allocation4 + $0x130] sm:$0xff]
    %v102 = vld [vmem:[#allocation4 + $0x138] sm:$0xff]
    %v103 = vld [vmem:[#allocation4 + $0x140] sm:$0xff]
    %v104 = vld [vmem:[#allocation4 + $0x148] sm:$0xff]
    %v105 = vld [vmem:[#allocation4 + $0x150] sm:$0xff]
    %v106 = vld [vmem:[#allocation4 + $0x158] sm:$0xff]
    %v107 = vld [vmem:[#allocation4 + $0x160] sm:$0xff]
    %v108 = vld [vmem:[#allocation4 + $0x168] sm:$0xff]
    %v109 = vld [vmem:[#allocation4 + $0x170] sm:$0xff]
    %v110 = vld [vmem:[#allocation4 + $0x178] sm:$0xff]
    %v111 = vld [vmem:[#allocation4 + $0x180] sm:$0xff]
    %v112 = vld [vmem:[#allocation4 + $0x188] sm:$0xff]
    %v113 = vld [vmem:[#allocation4 + $0x190] sm:$0xff]
    %v114 = vld [vmem:[#allocation4 + $0x198] sm:$0xff]
    %v115 = vld [vmem:[#allocation4 + $0x1a0] sm:$0xff]
    %v116 = vld [vmem:[#allocation4 + $0x1a8] sm:$0xff]
    %v117 = vld [vmem:[#allocation4 + $0x1b0] sm:$0xff]
    %v118 = vld [vmem:[#allocation4 + $0x1b8] sm:$0xff]
    %v119 = vld [vmem:[#allocation4 + $0x1c0] sm:$0xff]
    %v120 = vld [vmem:[#allocation4 + $0x1c8] sm:$0xff]
    %v121 = vld [vmem:[#allocation4 + $0x1d0] sm:$0xff]
    %v122 = vld [vmem:[#allocation4 + $0x1d8] sm:$0xff]
    %v123 = vld [vmem:[#allocation4 + $0x1e0] sm:$0xff]
    %v124 = vld [vmem:[#allocation4 + $0x1e8] sm:$0xff]
    %v125 = vld [vmem:[#allocation4 + $0x1f0] sm:$0xff]
    %v126 = vld [vmem:[#allocation4 + $0x1f8] sm:$0xff]
    %v127 = vld [vmem:[#allocation4 + $0x200] sm:$0xff]
    %v128 = vld [vmem:[#allocation4 + $0x208] sm:$0xff]
    %v129 = vld [vmem:[#allocation4 + $0x210] sm:$0xff]
    %v130 = vld [vmem:[#allocation4 + $0x218] sm:$0xff]
    %v131 = vld [vmem:[#allocation4 + $0x220] sm:$0xff]
    %v132 = vld [vmem:[#allocation4 + $0x228] sm:$0xff]
    %v133 = vld [vmem:[#allocation4 + $0x230] sm:$0xff]
    %v134 = vld [vmem:[#allocation4 + $0x238] sm:$0xff]
    %v135 = vld [vmem:[#allocation4 + $0x240] sm:$0xff]
    %v136 = vld [vmem:[#allocation4 + $0x248] sm:$0xff]
    %v137 = vld [vmem:[#allocation4 + $0x250] sm:$0xff]
    %v138 = vld [vmem:[#allocation4 + $0x258] sm:$0xff]
    %v139 = vld [vmem:[#allocation4 + $0x260] sm:$0xff]
    %v140 = vld [vmem:[#allocation4 + $0x268] sm:$0xff]
    %v141 = vld [vmem:[#allocation4 + $0x270] sm:$0xff]
    %v142 = vld [vmem:[#allocation4 + $0x278] sm:$0xff]
    %v143 = vld [vmem:[#allocation4 + $0x280] sm:$0xff]
    %v144 = vld [vmem:[#allocation4 + $0x288] sm:$0xff]
    %v145 = vld [vmem:[#allocation4 + $0x290] sm:$0xff]
    %v146 = vld [vmem:[#allocation4 + $0x298] sm:$0xff]
    %v147 = vld [vmem:[#allocation4 + $0x2a0] sm:$0xff]
    %v148 = vld [vmem:[#allocation4 + $0x2a8] sm:$0xff]
    %v149 = vld [vmem:[#allocation4 + $0x2b0] sm:$0xff]
    %v150 = vld [vmem:[#allocation4 + $0x2b8] sm:$0xff]
    %v151 = vld [vmem:[#allocation4 + $0x2c0] sm:$0xff]
    %v152 = vld [vmem:[#allocation4 + $0x2c8] sm:$0xff]
    %v153 = vld [vmem:[#allocation4 + $0x2d0] sm:$0xff]
    %v154 = vld [vmem:[#allocation4 + $0x2d8] sm:$0xff]
    %v155 = vld [vmem:[#allocation4 + $0x2e0] sm:$0xff]
    %v156 = vld [vmem:[#allocation4 + $0x2e8] sm:$0xff]
    %v157 = vld [vmem:[#allocation4 + $0x2f0] sm:$0xff]
    %v158 = vld [vmem:[#allocation4 + $0x2f8] sm:$0xff]
    %v159 = vld [vmem:[#allocation4 + $0x300] sm:$0xff]
    %v160 = vld [vmem:[#allocation4 + $0x308] sm:$0xff]
    %v161 = vld [vmem:[#allocation4 + $0x310] sm:$0xff]
    %v162 = vld [vmem:[#allocation4 + $0x318] sm:$0xff]
    %v163 = vld [vmem:[#allocation4 + $0x320] sm:$0xff]
    %v164 = vld [vmem:[#allocation4 + $0x328] sm:$0xff]
    %v165 = vld [vmem:[#allocation4 + $0x330] sm:$0xff]
    %v166 = vld [vmem:[#allocation4 + $0x338] sm:$0xff]
    %v167 = vld [vmem:[#allocation4 + $0x340] sm:$0xff]
    %v168 = vld [vmem:[#allocation4 + $0x348] sm:$0xff]
    %v169 = vld [vmem:[#allocation4 + $0x350] sm:$0xff]
    %v170 = vld [vmem:[#allocation4 + $0x358] sm:$0xff]
    %v171 = vld [vmem:[#allocation4 + $0x360] sm:$0xff]
    %v172 = vld [vmem:[#allocation4 + $0x368] sm:$0xff]
    %v173 = vld [vmem:[#allocation4 + $0x370] sm:$0xff]
    %v174 = vld [vmem:[#allocation4 + $0x378] sm:$0xff]
    %v175 = vld [vmem:[#allocation4 + $0x380] sm:$0xff]
    %v176 = vld [vmem:[#allocation4 + $0x388] sm:$0xff]
    %v177 = vld [vmem:[#allocation4 + $0x390] sm:$0xff]
    %v178 = vld [vmem:[#allocation4 + $0x398] sm:$0xff]
    %v179 = vld [vmem:[#allocation4 + $0x3a0] sm:$0xff]
    %v180 = vld [vmem:[#allocation4 + $0x3a8] sm:$0xff]
    %v181 = vld [vmem:[#allocation4 + $0x3b0] sm:$0xff]
    %v182 = vld [vmem:[#allocation4 + $0x3b8] sm:$0xff]
    %v183 = vld [vmem:[#allocation4 + $0x3c0] sm:$0xff]
    %v184 = vld [vmem:[#allocation4 + $0x3c8] sm:$0xff]
    %v185 = vld [vmem:[#allocation4 + $0x3d0] sm:$0xff]
    %v186 = vld [vmem:[#allocation4 + $0x3d8] sm:$0xff]
    %v187 = vld [vmem:[#allocation4 + $0x3e0] sm:$0xff]
    %v188 = vld [vmem:[#allocation4 + $0x3e8] sm:$0xff]
    %v189 = vld [vmem:[#allocation4 + $0x3f0] sm:$0xff]
    %v190 = vld [vmem:[#allocation4 + $0x3f8] sm:$0xff]
    %v191 = vld [vmem:[%s3] sm:$0xff]
    %v193 = vperm.slane %v191, 0
    %v194 = vperm.slane %v191, 1
    %v195 = vperm.slane %v191, 2
    %v196 = vperm.slane %v191, 3
    %v197 = vperm.slane %v191, 4
    %v198 = vperm.slane %v191, 5
    %v199 = vperm.slane %v191, 6
    %v200 = vperm.slane %v191, 7
    %209 = vmatpush.msra.mxu0 %v183
    %210 = vmatpush.msra.mxu0 %v175
    %211 = vmatpush.msra.mxu0 %v167
    %212 = vmatpush.msra.mxu0 %v159
    %213 = vmatpush.msra.mxu0 %v151
    %214 = vmatpush.msra.mxu0 %v143
    %215 = vmatpush.msra.mxu0 %v135
    %216 = vmatpush.msra.mxu0 %v127
    %217 = vmatpush.msra.mxu0 %v119
    %218 = vmatpush.msra.mxu0 %v111
    %219 = vmatpush.msra.mxu0 %v103
    %220 = vmatpush.msra.mxu0 %v95
    %221 = vmatpush.msra.mxu0 %v87
    %222 = vmatpush.msra.mxu0 %v79
    %223 = vmatpush.msra.mxu0 %v71
    %224 = vmatpush.msra.mxu0 %v63
    %225 = vmatmul.f32.gmra.mxu0 %v55
    %v226 = vpop.f32.mrf.mxu0
    %v227 = vadd.f32 %v193, %v226
    %228 = vmatmul.f32.gmra.mxu0 %v56
    %v229 = vpop.f32.mrf.mxu0
    %v230 = vadd.f32 %v193, %v229
    %231 = vmatmul.f32.gmra.mxu0 %v57
    %v232 = vpop.f32.mrf.mxu0
    %v233 = vadd.f32 %v193, %v232
    %234 = vmatmul.f32.gmra.mxu0 %v58
    %v235 = vpop.f32.mrf.mxu0
    %v236 = vadd.f32 %v193, %v235
    %237 = vmatmul.f32.gmra.mxu0 %v59
    %v238 = vpop.f32.mrf.mxu0
    %v239 = vadd.f32 %v193, %v238
    %240 = vmatmul.f32.gmra.mxu0 %v60
    %v241 = vpop.f32.mrf.mxu0
    %v242 = vadd.f32 %v193, %v241
    %243 = vmatmul.f32.gmra.mxu0 %v61
    %v244 = vpop.f32.mrf.mxu0
    %v245 = vadd.f32 %v193, %v244
    %246 = vmatmul.f32.gmra.mxu0 %v62
    %v247 = vpop.f32.mrf.mxu0
    %v248 = vadd.f32 %v193, %v247
    %249 = vdwg.mxu0
    %250 = vmatpush.msra.mxu0 %v184
    %251 = vmatpush.msra.mxu0 %v176
    %252 = vmatpush.msra.mxu0 %v168
    %253 = vmatpush.msra.mxu0 %v160
    %254 = vmatpush.msra.mxu0 %v152
    %255 = vmatpush.msra.mxu0 %v144
    %256 = vmatpush.msra.mxu0 %v136
    %257 = vmatpush.msra.mxu0 %v128
    %258 = vmatpush.msra.mxu0 %v120
    %259 = vmatpush.msra.mxu0 %v112
    %260 = vmatpush.msra.mxu0 %v104
    %261 = vmatpush.msra.mxu0 %v96
    %262 = vmatpush.msra.mxu0 %v88
    %263 = vmatpush.msra.mxu0 %v80
    %264 = vmatpush.msra.mxu0 %v72
    %265 = vmatpush.msra.mxu0 %v64
    %266 = vmatmul.f32.gmra.mxu0 %v55
    %v267 = vpop.f32.mrf.mxu0
    %v268 = vadd.f32 %v194, %v267
    %269 = vmatmul.f32.gmra.mxu0 %v56
    %v270 = vpop.f32.mrf.mxu0
    %v271 = vadd.f32 %v194, %v270
    %272 = vmatmul.f32.gmra.mxu0 %v57
    %v273 = vpop.f32.mrf.mxu0
    %v274 = vadd.f32 %v194, %v273
    %275 = vmatmul.f32.gmra.mxu0 %v58
    %v276 = vpop.f32.mrf.mxu0
    %v277 = vadd.f32 %v194, %v276
    %278 = vmatmul.f32.gmra.mxu0 %v59
    %v279 = vpop.f32.mrf.mxu0
    %v280 = vadd.f32 %v194, %v279
    %281 = vmatmul.f32.gmra.mxu0 %v60
    %v282 = vpop.f32.mrf.mxu0
    %v283 = vadd.f32 %v194, %v282
    %284 = vmatmul.f32.gmra.mxu0 %v61
    %v285 = vpop.f32.mrf.mxu0
    %v286 = vadd.f32 %v194, %v285
    %287 = vmatmul.f32.gmra.mxu0 %v62
    %v288 = vpop.f32.mrf.mxu0
    %v289 = vadd.f32 %v194, %v288
    %290 = vdwg.mxu0
    %291 = vmatpush.msra.mxu0 %v185
    %292 = vmatpush.msra.mxu0 %v177
    %293 = vmatpush.msra.mxu0 %v169
    %294 = vmatpush.msra.mxu0 %v161
    %295 = vmatpush.msra.mxu0 %v153
    %296 = vmatpush.msra.mxu0 %v145
    %297 = vmatpush.msra.mxu0 %v137
    %298 = vmatpush.msra.mxu0 %v129
    %299 = vmatpush.msra.mxu0 %v121
    %300 = vmatpush.msra.mxu0 %v113
    %301 = vmatpush.msra.mxu0 %v105
    %302 = vmatpush.msra.mxu0 %v97
    %303 = vmatpush.msra.mxu0 %v89
    %304 = vmatpush.msra.mxu0 %v81
    %305 = vmatpush.msra.mxu0 %v73
    %306 = vmatpush.msra.mxu0 %v65
    %307 = vmatmul.f32.gmra.mxu0 %v55
    %v308 = vpop.f32.mrf.mxu0
    %v309 = vadd.f32 %v195, %v308
    %310 = vmatmul.f32.gmra.mxu0 %v56
    %v311 = vpop.f32.mrf.mxu0
    %v312 = vadd.f32 %v195, %v311
    %313 = vmatmul.f32.gmra.mxu0 %v57
    %v314 = vpop.f32.mrf.mxu0
    %v315 = vadd.f32 %v195, %v314
    %316 = vmatmul.f32.gmra.mxu0 %v58
    %v317 = vpop.f32.mrf.mxu0
    %v318 = vadd.f32 %v195, %v317
    %319 = vmatmul.f32.gmra.mxu0 %v59
    %v320 = vpop.f32.mrf.mxu0
    %v321 = vadd.f32 %v195, %v320
    %322 = vmatmul.f32.gmra.mxu0 %v60
    %v323 = vpop.f32.mrf.mxu0
    %v324 = vadd.f32 %v195, %v323
    %325 = vmatmul.f32.gmra.mxu0 %v61
    %v326 = vpop.f32.mrf.mxu0
    %v327 = vadd.f32 %v195, %v326
    %328 = vmatmul.f32.gmra.mxu0 %v62
    %v329 = vpop.f32.mrf.mxu0
    %v330 = vadd.f32 %v195, %v329
    %331 = vdwg.mxu0
    %332 = vmatpush.msra.mxu0 %v186
    %333 = vmatpush.msra.mxu0 %v178
    %334 = vmatpush.msra.mxu0 %v170
    %335 = vmatpush.msra.mxu0 %v162
    %336 = vmatpush.msra.mxu0 %v154
    %337 = vmatpush.msra.mxu0 %v146
    %338 = vmatpush.msra.mxu0 %v138
    %339 = vmatpush.msra.mxu0 %v130
    %340 = vmatpush.msra.mxu0 %v122
    %341 = vmatpush.msra.mxu0 %v114
    %342 = vmatpush.msra.mxu0 %v106
    %343 = vmatpush.msra.mxu0 %v98
    %344 = vmatpush.msra.mxu0 %v90
    %345 = vmatpush.msra.mxu0 %v82
    %346 = vmatpush.msra.mxu0 %v74
    %347 = vmatpush.msra.mxu0 %v66
    %348 = vmatmul.f32.gmra.mxu0 %v55
    %v349 = vpop.f32.mrf.mxu0
    %v350 = vadd.f32 %v196, %v349
    %351 = vmatmul.f32.gmra.mxu0 %v56
    %v352 = vpop.f32.mrf.mxu0
    %v353 = vadd.f32 %v196, %v352
    %354 = vmatmul.f32.gmra.mxu0 %v57
    %v355 = vpop.f32.mrf.mxu0
    %v356 = vadd.f32 %v196, %v355
    %357 = vmatmul.f32.gmra.mxu0 %v58
    %v358 = vpop.f32.mrf.mxu0
    %v359 = vadd.f32 %v196, %v358
    %360 = vmatmul.f32.gmra.mxu0 %v59
    %v361 = vpop.f32.mrf.mxu0
    %v362 = vadd.f32 %v196, %v361
    %363 = vmatmul.f32.gmra.mxu0 %v60
    %v364 = vpop.f32.mrf.mxu0
    %v365 = vadd.f32 %v196, %v364
    %366 = vmatmul.f32.gmra.mxu0 %v61
    %v367 = vpop.f32.mrf.mxu0
    %v368 = vadd.f32 %v196, %v367
    %369 = vmatmul.f32.gmra.mxu0 %v62
    %v370 = vpop.f32.mrf.mxu0
    %v371 = vadd.f32 %v196, %v370
    %372 = vdwg.mxu0
    %373 = vmatpush.msra.mxu0 %v187
    %374 = vmatpush.msra.mxu0 %v179
    %375 = vmatpush.msra.mxu0 %v171
    %376 = vmatpush.msra.mxu0 %v163
    %377 = vmatpush.msra.mxu0 %v155
    %378 = vmatpush.msra.mxu0 %v147
    %379 = vmatpush.msra.mxu0 %v139
    %380 = vmatpush.msra.mxu0 %v131
    %381 = vmatpush.msra.mxu0 %v123
    %382 = vmatpush.msra.mxu0 %v115
    %383 = vmatpush.msra.mxu0 %v107
    %384 = vmatpush.msra.mxu0 %v99
    %385 = vmatpush.msra.mxu0 %v91
    %386 = vmatpush.msra.mxu0 %v83
    %387 = vmatpush.msra.mxu0 %v75
    %388 = vmatpush.msra.mxu0 %v67
    %389 = vmatmul.f32.gmra.mxu0 %v55
    %v390 = vpop.f32.mrf.mxu0
    %v391 = vadd.f32 %v197, %v390
    %392 = vmatmul.f32.gmra.mxu0 %v56
    %v393 = vpop.f32.mrf.mxu0
    %v394 = vadd.f32 %v197, %v393
    %395 = vmatmul.f32.gmra.mxu0 %v57
    %v396 = vpop.f32.mrf.mxu0
    %v397 = vadd.f32 %v197, %v396
    %398 = vmatmul.f32.gmra.mxu0 %v58
    %v399 = vpop.f32.mrf.mxu0
    %v400 = vadd.f32 %v197, %v399
    %401 = vmatmul.f32.gmra.mxu0 %v59
    %v402 = vpop.f32.mrf.mxu0
    %v403 = vadd.f32 %v197, %v402
    %404 = vmatmul.f32.gmra.mxu0 %v60
    %v405 = vpop.f32.mrf.mxu0
    %v406 = vadd.f32 %v197, %v405
    %407 = vmatmul.f32.gmra.mxu0 %v61
    %v408 = vpop.f32.mrf.mxu0
    %v409 = vadd.f32 %v197, %v408
    %410 = vmatmul.f32.gmra.mxu0 %v62
    %v411 = vpop.f32.mrf.mxu0
    %v412 = vadd.f32 %v197, %v411
    %413 = vdwg.mxu0
    %414 = vmatpush.msra.mxu0 %v188
    %415 = vmatpush.msra.mxu0 %v180
    %416 = vmatpush.msra.mxu0 %v172
    %417 = vmatpush.msra.mxu0 %v164
    %418 = vmatpush.msra.mxu0 %v156
    %419 = vmatpush.msra.mxu0 %v148
    %420 = vmatpush.msra.mxu0 %v140
    %421 = vmatpush.msra.mxu0 %v132
    %422 = vmatpush.msra.mxu0 %v124
    %423 = vmatpush.msra.mxu0 %v116
    %424 = vmatpush.msra.mxu0 %v108
    %425 = vmatpush.msra.mxu0 %v100
    %426 = vmatpush.msra.mxu0 %v92
    %427 = vmatpush.msra.mxu0 %v84
    %428 = vmatpush.msra.mxu0 %v76
    %429 = vmatpush.msra.mxu0 %v68
    %430 = vmatmul.f32.gmra.mxu0 %v55
    %v431 = vpop.f32.mrf.mxu0
    %v432 = vadd.f32 %v198, %v431
    %433 = vmatmul.f32.gmra.mxu0 %v56
    %v434 = vpop.f32.mrf.mxu0
    %v435 = vadd.f32 %v198, %v434
    %436 = vmatmul.f32.gmra.mxu0 %v57
    %v437 = vpop.f32.mrf.mxu0
    %v438 = vadd.f32 %v198, %v437
    %439 = vmatmul.f32.gmra.mxu0 %v58
    %v440 = vpop.f32.mrf.mxu0
    %v441 = vadd.f32 %v198, %v440
    %442 = vmatmul.f32.gmra.mxu0 %v59
    %v443 = vpop.f32.mrf.mxu0
    %v444 = vadd.f32 %v198, %v443
    %445 = vmatmul.f32.gmra.mxu0 %v60
    %v446 = vpop.f32.mrf.mxu0
    %v447 = vadd.f32 %v198, %v446
    %448 = vmatmul.f32.gmra.mxu0 %v61
    %v449 = vpop.f32.mrf.mxu0
    %v450 = vadd.f32 %v198, %v449
    %451 = vmatmul.f32.gmra.mxu0 %v62
    %v452 = vpop.f32.mrf.mxu0
    %v453 = vadd.f32 %v198, %v452
    %454 = vdwg.mxu0
    %455 = vmatpush.msra.mxu0 %v189
    %456 = vmatpush.msra.mxu0 %v181
    %457 = vmatpush.msra.mxu0 %v173
    %458 = vmatpush.msra.mxu0 %v165
    %459 = vmatpush.msra.mxu0 %v157
    %460 = vmatpush.msra.mxu0 %v149
    %461 = vmatpush.msra.mxu0 %v141
    %462 = vmatpush.msra.mxu0 %v133
    %463 = vmatpush.msra.mxu0 %v125
    %464 = vmatpush.msra.mxu0 %v117
    %465 = vmatpush.msra.mxu0 %v109
    %466 = vmatpush.msra.mxu0 %v101
    %467 = vmatpush.msra.mxu0 %v93
    %468 = vmatpush.msra.mxu0 %v85
    %469 = vmatpush.msra.mxu0 %v77
    %470 = vmatpush.msra.mxu0 %v69
    %471 = vmatmul.f32.gmra.mxu0 %v55
    %v472 = vpop.f32.mrf.mxu0
    %v473 = vadd.f32 %v199, %v472
    %474 = vmatmul.f32.gmra.mxu0 %v56
    %v475 = vpop.f32.mrf.mxu0
    %v476 = vadd.f32 %v199, %v475
    %477 = vmatmul.f32.gmra.mxu0 %v57
    %v478 = vpop.f32.mrf.mxu0
    %v479 = vadd.f32 %v199, %v478
    %480 = vmatmul.f32.gmra.mxu0 %v58
    %v481 = vpop.f32.mrf.mxu0
    %v482 = vadd.f32 %v199, %v481
    %483 = vmatmul.f32.gmra.mxu0 %v59
    %v484 = vpop.f32.mrf.mxu0
    %v485 = vadd.f32 %v199, %v484
    %486 = vmatmul.f32.gmra.mxu0 %v60
    %v487 = vpop.f32.mrf.mxu0
    %v488 = vadd.f32 %v199, %v487
    %489 = vmatmul.f32.gmra.mxu0 %v61
    %v490 = vpop.f32.mrf.mxu0
    %v491 = vadd.f32 %v199, %v490
    %492 = vmatmul.f32.gmra.mxu0 %v62
    %v493 = vpop.f32.mrf.mxu0
    %v494 = vadd.f32 %v199, %v493
    %495 = vdwg.mxu0
    %496 = vmatpush.msra.mxu0 %v190
    %497 = vmatpush.msra.mxu0 %v182
    %498 = vmatpush.msra.mxu0 %v174
    %499 = vmatpush.msra.mxu0 %v166
    %500 = vmatpush.msra.mxu0 %v158
    %501 = vmatpush.msra.mxu0 %v150
    %502 = vmatpush.msra.mxu0 %v142
    %503 = vmatpush.msra.mxu0 %v134
    %504 = vmatpush.msra.mxu0 %v126
    %505 = vmatpush.msra.mxu0 %v118
    %506 = vmatpush.msra.mxu0 %v110
    %507 = vmatpush.msra.mxu0 %v102
    %508 = vmatpush.msra.mxu0 %v94
    %509 = vmatpush.msra.mxu0 %v86
    %510 = vmatpush.msra.mxu0 %v78
    %511 = vmatpush.msra.mxu0 %v70
    %512 = vmatmul.f32.gmra.mxu0 %v55
    %v513 = vpop.f32.mrf.mxu0
    %v514 = vadd.f32 %v200, %v513
    %515 = vmatmul.f32.gmra.mxu0 %v56
    %v516 = vpop.f32.mrf.mxu0
    %v517 = vadd.f32 %v200, %v516
    %518 = vmatmul.f32.gmra.mxu0 %v57
    %v519 = vpop.f32.mrf.mxu0
    %v520 = vadd.f32 %v200, %v519
    %521 = vmatmul.f32.gmra.mxu0 %v58
    %v522 = vpop.f32.mrf.mxu0
    %v523 = vadd.f32 %v200, %v522
    %524 = vmatmul.f32.gmra.mxu0 %v59
    %v525 = vpop.f32.mrf.mxu0
    %v526 = vadd.f32 %v200, %v525
    %527 = vmatmul.f32.gmra.mxu0 %v60
    %v528 = vpop.f32.mrf.mxu0
    %v529 = vadd.f32 %v200, %v528
    %530 = vmatmul.f32.gmra.mxu0 %v61
    %v531 = vpop.f32.mrf.mxu0
    %v532 = vadd.f32 %v200, %v531
    %533 = vmatmul.f32.gmra.mxu0 %v62
    %v534 = vpop.f32.mrf.mxu0
    %v535 = vadd.f32 %v200, %v534
    %536 = vdwg.mxu0
    %537 = vst [vmem:[#allocation2] sm:$0xff] %v227
    %538 = vst [vmem:[#allocation2 + $0x8] sm:$0xff] %v268
    %539 = vst [vmem:[#allocation2 + $0x10] sm:$0xff] %v309
    %540 = vst [vmem:[#allocation2 + $0x18] sm:$0xff] %v350
    %541 = vst [vmem:[#allocation2 + $0x20] sm:$0xff] %v391
    %542 = vst [vmem:[#allocation2 + $0x28] sm:$0xff] %v432
    %543 = vst [vmem:[#allocation2 + $0x30] sm:$0xff] %v473
    %544 = vst [vmem:[#allocation2 + $0x38] sm:$0xff] %v514
    %545 = vst [vmem:[#allocation2 + $0x40] sm:$0xff] %v230
    %546 = vst [vmem:[#allocation2 + $0x48] sm:$0xff] %v271
    %547 = vst [vmem:[#allocation2 + $0x50] sm:$0xff] %v312
    %548 = vst [vmem:[#allocation2 + $0x58] sm:$0xff] %v353
    %549 = vst [vmem:[#allocation2 + $0x60] sm:$0xff] %v394
    %550 = vst [vmem:[#allocation2 + $0x68] sm:$0xff] %v435
    %551 = vst [vmem:[#allocation2 + $0x70] sm:$0xff] %v476
    %552 = vst [vmem:[#allocation2 + $0x78] sm:$0xff] %v517
    %553 = vst [vmem:[#allocation2 + $0x80] sm:$0xff] %v233
    %554 = vst [vmem:[#allocation2 + $0x88] sm:$0xff] %v274
    %555 = vst [vmem:[#allocation2 + $0x90] sm:$0xff] %v315
    %556 = vst [vmem:[#allocation2 + $0x98] sm:$0xff] %v356
    %557 = vst [vmem:[#allocation2 + $0xa0] sm:$0xff] %v397
    %558 = vst [vmem:[#allocation2 + $0xa8] sm:$0xff] %v438
    %559 = vst [vmem:[#allocation2 + $0xb0] sm:$0xff] %v479
    %560 = vst [vmem:[#allocation2 + $0xb8] sm:$0xff] %v520
    %561 = vst [vmem:[#allocation2 + $0xc0] sm:$0xff] %v236
    %562 = vst [vmem:[#allocation2 + $0xc8] sm:$0xff] %v277
    %563 = vst [vmem:[#allocation2 + $0xd0] sm:$0xff] %v318
    %564 = vst [vmem:[#allocation2 + $0xd8] sm:$0xff] %v359
    %565 = vst [vmem:[#allocation2 + $0xe0] sm:$0xff] %v400
    %566 = vst [vmem:[#allocation2 + $0xe8] sm:$0xff] %v441
    %567 = vst [vmem:[#allocation2 + $0xf0] sm:$0xff] %v482
    %568 = vst [vmem:[#allocation2 + $0xf8] sm:$0xff] %v523
    %569 = vst [vmem:[#allocation2 + $0x100] sm:$0xff] %v239
    %570 = vst [vmem:[#allocation2 + $0x108] sm:$0xff] %v280
    %571 = vst [vmem:[#allocation2 + $0x110] sm:$0xff] %v321
    %572 = vst [vmem:[#allocation2 + $0x118] sm:$0xff] %v362
    %573 = vst [vmem:[#allocation2 + $0x120] sm:$0xff] %v403
    %574 = vst [vmem:[#allocation2 + $0x128] sm:$0xff] %v444
    %575 = vst [vmem:[#allocation2 + $0x130] sm:$0xff] %v485
    %576 = vst [vmem:[#allocation2 + $0x138] sm:$0xff] %v526
    %577 = vst [vmem:[#allocation2 + $0x140] sm:$0xff] %v242
    %578 = vst [vmem:[#allocation2 + $0x148] sm:$0xff] %v283
    %579 = vst [vmem:[#allocation2 + $0x150] sm:$0xff] %v324
    %580 = vst [vmem:[#allocation2 + $0x158] sm:$0xff] %v365
    %581 = vst [vmem:[#allocation2 + $0x160] sm:$0xff] %v406
    %582 = vst [vmem:[#allocation2 + $0x168] sm:$0xff] %v447
    %583 = vst [vmem:[#allocation2 + $0x170] sm:$0xff] %v488
    %584 = vst [vmem:[#allocation2 + $0x178] sm:$0xff] %v529
    %585 = vst [vmem:[#allocation2 + $0x180] sm:$0xff] %v245
    %586 = vst [vmem:[#allocation2 + $0x188] sm:$0xff] %v286
    %587 = vst [vmem:[#allocation2 + $0x190] sm:$0xff] %v327
    %588 = vst [vmem:[#allocation2 + $0x198] sm:$0xff] %v368
    %589 = vst [vmem:[#allocation2 + $0x1a0] sm:$0xff] %v409
    %590 = vst [vmem:[#allocation2 + $0x1a8] sm:$0xff] %v450
    %591 = vst [vmem:[#allocation2 + $0x1b0] sm:$0xff] %v491
    %592 = vst [vmem:[#allocation2 + $0x1b8] sm:$0xff] %v532
    %593 = vst [vmem:[#allocation2 + $0x1c0] sm:$0xff] %v248
    %594 = vst [vmem:[#allocation2 + $0x1c8] sm:$0xff] %v289
    %595 = vst [vmem:[#allocation2 + $0x1d0] sm:$0xff] %v330
    %596 = vst [vmem:[#allocation2 + $0x1d8] sm:$0xff] %v371
    %597 = vst [vmem:[#allocation2 + $0x1e0] sm:$0xff] %v412
    %598 = vst [vmem:[#allocation2 + $0x1e8] sm:$0xff] %v453
    %599 = vst [vmem:[#allocation2 + $0x1f0] sm:$0xff] %v494
    %600 = vst [vmem:[#allocation2 + $0x1f8] sm:$0xff] %v535
    %s601 = smul.u32 0, 8
    %s602 = smul.addr %s601, 8
    %s603 = scalar_lea.vmem [#allocation2], %s602
    %v604 = vld [vmem:[%s603] sm:$0xff]
    %v605 = vld [vmem:[%s603 + $0x8] sm:$0xff]
    %v606 = vld [vmem:[%s603 + $0x10] sm:$0xff]
    %v607 = vld [vmem:[%s603 + $0x18] sm:$0xff]
    %v608 = vld [vmem:[%s603 + $0x20] sm:$0xff]
    %v609 = vld [vmem:[%s603 + $0x28] sm:$0xff]
    %v610 = vld [vmem:[%s603 + $0x30] sm:$0xff]
    %v611 = vld [vmem:[%s603 + $0x38] sm:$0xff]
    %v612 = vld [vmem:[#allocation6] sm:$0xff]
    %v613 = vld [vmem:[#allocation6 + $0x8] sm:$0xff]
    %v614 = vld [vmem:[#allocation6 + $0x10] sm:$0xff]
    %v615 = vld [vmem:[#allocation6 + $0x18] sm:$0xff]
    %v616 = vld [vmem:[#allocation6 + $0x20] sm:$0xff]
    %v617 = vld [vmem:[#allocation6 + $0x28] sm:$0xff]
    %v618 = vld [vmem:[#allocation6 + $0x30] sm:$0xff]
    %v619 = vld [vmem:[#allocation6 + $0x38] sm:$0xff]
    %v620 = vld [vmem:[#allocation6 + $0x40] sm:$0xff]
    %v621 = vld [vmem:[#allocation6 + $0x48] sm:$0xff]
    %v622 = vld [vmem:[#allocation6 + $0x50] sm:$0xff]
    %v623 = vld [vmem:[#allocation6 + $0x58] sm:$0xff]
    %v624 = vld [vmem:[#allocation6 + $0x60] sm:$0xff]
    %v625 = vld [vmem:[#allocation6 + $0x68] sm:$0xff]
    %v626 = vld [vmem:[#allocation6 + $0x70] sm:$0xff]
    %v627 = vld [vmem:[#allocation6 + $0x78] sm:$0xff]
    %v628 = vld [vmem:[#allocation6 + $0x80] sm:$0xff]
    %v629 = vld [vmem:[#allocation6 + $0x88] sm:$0xff]
    %v630 = vld [vmem:[#allocation6 + $0x90] sm:$0xff]
    %v631 = vld [vmem:[#allocation6 + $0x98] sm:$0xff]
    %v632 = vld [vmem:[#allocation6 + $0xa0] sm:$0xff]
    %v633 = vld [vmem:[#allocation6 + $0xa8] sm:$0xff]
    %v634 = vld [vmem:[#allocation6 + $0xb0] sm:$0xff]
    %v635 = vld [vmem:[#allocation6 + $0xb8] sm:$0xff]
    %v636 = vld [vmem:[#allocation6 + $0xc0] sm:$0xff]
    %v637 = vld [vmem:[#allocation6 + $0xc8] sm:$0xff]
    %v638 = vld [vmem:[#allocation6 + $0xd0] sm:$0xff]
    %v639 = vld [vmem:[#allocation6 + $0xd8] sm:$0xff]
    %v640 = vld [vmem:[#allocation6 + $0xe0] sm:$0xff]
    %v641 = vld [vmem:[#allocation6 + $0xe8] sm:$0xff]
    %v642 = vld [vmem:[#allocation6 + $0xf0] sm:$0xff]
    %v643 = vld [vmem:[#allocation6 + $0xf8] sm:$0xff]
    %v644 = vld [vmem:[#allocation6 + $0x100] sm:$0xff]
    %v645 = vld [vmem:[#allocation6 + $0x108] sm:$0xff]
    %v646 = vld [vmem:[#allocation6 + $0x110] sm:$0xff]
    %v647 = vld [vmem:[#allocation6 + $0x118] sm:$0xff]
    %v648 = vld [vmem:[#allocation6 + $0x120] sm:$0xff]
    %v649 = vld [vmem:[#allocation6 + $0x128] sm:$0xff]
    %v650 = vld [vmem:[#allocation6 + $0x130] sm:$0xff]
    %v651 = vld [vmem:[#allocation6 + $0x138] sm:$0xff]
    %v652 = vld [vmem:[#allocation6 + $0x140] sm:$0xff]
    %v653 = vld [vmem:[#allocation6 + $0x148] sm:$0xff]
    %v654 = vld [vmem:[#allocation6 + $0x150] sm:$0xff]
    %v655 = vld [vmem:[#allocation6 + $0x158] sm:$0xff]
    %v656 = vld [vmem:[#allocation6 + $0x160] sm:$0xff]
    %v657 = vld [vmem:[#allocation6 + $0x168] sm:$0xff]
    %v658 = vld [vmem:[#allocation6 + $0x170] sm:$0xff]
    %v659 = vld [vmem:[#allocation6 + $0x178] sm:$0xff]
    %v660 = vld [vmem:[#allocation6 + $0x180] sm:$0xff]
    %v661 = vld [vmem:[#allocation6 + $0x188] sm:$0xff]
    %v662 = vld [vmem:[#allocation6 + $0x190] sm:$0xff]
    %v663 = vld [vmem:[#allocation6 + $0x198] sm:$0xff]
    %v664 = vld [vmem:[#allocation6 + $0x1a0] sm:$0xff]
    %v665 = vld [vmem:[#allocation6 + $0x1a8] sm:$0xff]
    %v666 = vld [vmem:[#allocation6 + $0x1b0] sm:$0xff]
    %v667 = vld [vmem:[#allocation6 + $0x1b8] sm:$0xff]
    %v668 = vld [vmem:[#allocation6 + $0x1c0] sm:$0xff]
    %v669 = vld [vmem:[#allocation6 + $0x1c8] sm:$0xff]
    %v670 = vld [vmem:[#allocation6 + $0x1d0] sm:$0xff]
    %v671 = vld [vmem:[#allocation6 + $0x1d8] sm:$0xff]
    %v672 = vld [vmem:[#allocation6 + $0x1e0] sm:$0xff]
    %v673 = vld [vmem:[#allocation6 + $0x1e8] sm:$0xff]
    %v674 = vld [vmem:[#allocation6 + $0x1f0] sm:$0xff]
    %v675 = vld [vmem:[#allocation6 + $0x1f8] sm:$0xff]
    %v676 = vld [vmem:[#allocation6 + $0x200] sm:$0xff]
    %v677 = vld [vmem:[#allocation6 + $0x208] sm:$0xff]
    %v678 = vld [vmem:[#allocation6 + $0x210] sm:$0xff]
    %v679 = vld [vmem:[#allocation6 + $0x218] sm:$0xff]
    %v680 = vld [vmem:[#allocation6 + $0x220] sm:$0xff]
    %v681 = vld [vmem:[#allocation6 + $0x228] sm:$0xff]
    %v682 = vld [vmem:[#allocation6 + $0x230] sm:$0xff]
    %v683 = vld [vmem:[#allocation6 + $0x238] sm:$0xff]
    %v684 = vld [vmem:[#allocation6 + $0x240] sm:$0xff]
    %v685 = vld [vmem:[#allocation6 + $0x248] sm:$0xff]
    %v686 = vld [vmem:[#allocation6 + $0x250] sm:$0xff]
    %v687 = vld [vmem:[#allocation6 + $0x258] sm:$0xff]
    %v688 = vld [vmem:[#allocation6 + $0x260] sm:$0xff]
    %v689 = vld [vmem:[#allocation6 + $0x268] sm:$0xff]
    %v690 = vld [vmem:[#allocation6 + $0x270] sm:$0xff]
    %v691 = vld [vmem:[#allocation6 + $0x278] sm:$0xff]
    %v692 = vld [vmem:[#allocation6 + $0x280] sm:$0xff]
    %v693 = vld [vmem:[#allocation6 + $0x288] sm:$0xff]
    %v694 = vld [vmem:[#allocation6 + $0x290] sm:$0xff]
    %v695 = vld [vmem:[#allocation6 + $0x298] sm:$0xff]
    %v696 = vld [vmem:[#allocation6 + $0x2a0] sm:$0xff]
    %v697 = vld [vmem:[#allocation6 + $0x2a8] sm:$0xff]
    %v698 = vld [vmem:[#allocation6 + $0x2b0] sm:$0xff]
    %v699 = vld [vmem:[#allocation6 + $0x2b8] sm:$0xff]
    %v700 = vld [vmem:[#allocation6 + $0x2c0] sm:$0xff]
    %v701 = vld [vmem:[#allocation6 + $0x2c8] sm:$0xff]
    %v702 = vld [vmem:[#allocation6 + $0x2d0] sm:$0xff]
    %v703 = vld [vmem:[#allocation6 + $0x2d8] sm:$0xff]
    %v704 = vld [vmem:[#allocation6 + $0x2e0] sm:$0xff]
    %v705 = vld [vmem:[#allocation6 + $0x2e8] sm:$0xff]
    %v706 = vld [vmem:[#allocation6 + $0x2f0] sm:$0xff]
    %v707 = vld [vmem:[#allocation6 + $0x2f8] sm:$0xff]
    %v708 = vld [vmem:[#allocation6 + $0x300] sm:$0xff]
    %v709 = vld [vmem:[#allocation6 + $0x308] sm:$0xff]
    %v710 = vld [vmem:[#allocation6 + $0x310] sm:$0xff]
    %v711 = vld [vmem:[#allocation6 + $0x318] sm:$0xff]
    %v712 = vld [vmem:[#allocation6 + $0x320] sm:$0xff]
    %v713 = vld [vmem:[#allocation6 + $0x328] sm:$0xff]
    %v714 = vld [vmem:[#allocation6 + $0x330] sm:$0xff]
    %v715 = vld [vmem:[#allocation6 + $0x338] sm:$0xff]
    %v716 = vld [vmem:[#allocation6 + $0x340] sm:$0xff]
    %v717 = vld [vmem:[#allocation6 + $0x348] sm:$0xff]
    %v718 = vld [vmem:[#allocation6 + $0x350] sm:$0xff]
    %v719 = vld [vmem:[#allocation6 + $0x358] sm:$0xff]
    %v720 = vld [vmem:[#allocation6 + $0x360] sm:$0xff]
    %v721 = vld [vmem:[#allocation6 + $0x368] sm:$0xff]
    %v722 = vld [vmem:[#allocation6 + $0x370] sm:$0xff]
    %v723 = vld [vmem:[#allocation6 + $0x378] sm:$0xff]
    %v724 = vld [vmem:[#allocation6 + $0x380] sm:$0xff]
    %v725 = vld [vmem:[#allocation6 + $0x388] sm:$0xff]
    %v726 = vld [vmem:[#allocation6 + $0x390] sm:$0xff]
    %v727 = vld [vmem:[#allocation6 + $0x398] sm:$0xff]
    %v728 = vld [vmem:[#allocation6 + $0x3a0] sm:$0xff]
    %v729 = vld [vmem:[#allocation6 + $0x3a8] sm:$0xff]
    %v730 = vld [vmem:[#allocation6 + $0x3b0] sm:$0xff]
    %v731 = vld [vmem:[#allocation6 + $0x3b8] sm:$0xff]
    %v732 = vld [vmem:[#allocation6 + $0x3c0] sm:$0xff]
    %v733 = vld [vmem:[#allocation6 + $0x3c8] sm:$0xff]
    %v734 = vld [vmem:[#allocation6 + $0x3d0] sm:$0xff]
    %v735 = vld [vmem:[#allocation6 + $0x3d8] sm:$0xff]
    %v736 = vld [vmem:[#allocation6 + $0x3e0] sm:$0xff]
    %v737 = vld [vmem:[#allocation6 + $0x3e8] sm:$0xff]
    %v738 = vld [vmem:[#allocation6 + $0x3f0] sm:$0xff]
    %v739 = vld [vmem:[#allocation6 + $0x3f8] sm:$0xff]
    %v740 = vld [vmem:[#allocation6 + $0x400] sm:$0xff]
    %v741 = vld [vmem:[#allocation6 + $0x408] sm:$0xff]
    %v742 = vld [vmem:[#allocation6 + $0x410] sm:$0xff]
    %v743 = vld [vmem:[#allocation6 + $0x418] sm:$0xff]
    %v744 = vld [vmem:[#allocation6 + $0x420] sm:$0xff]
    %v745 = vld [vmem:[#allocation6 + $0x428] sm:$0xff]
    %v746 = vld [vmem:[#allocation6 + $0x430] sm:$0xff]
    %v747 = vld [vmem:[#allocation6 + $0x438] sm:$0xff]
    %v748 = vld [vmem:[#allocation6 + $0x440] sm:$0xff]
    %v749 = vld [vmem:[#allocation6 + $0x448] sm:$0xff]
    %v750 = vld [vmem:[#allocation6 + $0x450] sm:$0xff]
    %v751 = vld [vmem:[#allocation6 + $0x458] sm:$0xff]
    %v752 = vld [vmem:[#allocation6 + $0x460] sm:$0xff]
    %v753 = vld [vmem:[#allocation6 + $0x468] sm:$0xff]
    %v754 = vld [vmem:[#allocation6 + $0x470] sm:$0xff]
    %v755 = vld [vmem:[#allocation6 + $0x478] sm:$0xff]
    %v756 = vld [vmem:[#allocation6 + $0x480] sm:$0xff]
    %v757 = vld [vmem:[#allocation6 + $0x488] sm:$0xff]
    %v758 = vld [vmem:[#allocation6 + $0x490] sm:$0xff]
    %v759 = vld [vmem:[#allocation6 + $0x498] sm:$0xff]
    %v760 = vld [vmem:[#allocation6 + $0x4a0] sm:$0xff]
    %v761 = vld [vmem:[#allocation6 + $0x4a8] sm:$0xff]
    %v762 = vld [vmem:[#allocation6 + $0x4b0] sm:$0xff]
    %v763 = vld [vmem:[#allocation6 + $0x4b8] sm:$0xff]
    %v764 = vld [vmem:[#allocation6 + $0x4c0] sm:$0xff]
    %v765 = vld [vmem:[#allocation6 + $0x4c8] sm:$0xff]
    %v766 = vld [vmem:[#allocation6 + $0x4d0] sm:$0xff]
    %v767 = vld [vmem:[#allocation6 + $0x4d8] sm:$0xff]
    %v768 = vld [vmem:[#allocation6 + $0x4e0] sm:$0xff]
    %v769 = vld [vmem:[#allocation6 + $0x4e8] sm:$0xff]
    %v770 = vld [vmem:[#allocation6 + $0x4f0] sm:$0xff]
    %v771 = vld [vmem:[#allocation6 + $0x4f8] sm:$0xff]
    %v772 = vld [vmem:[#allocation6 + $0x500] sm:$0xff]
    %v773 = vld [vmem:[#allocation6 + $0x508] sm:$0xff]
    %v774 = vld [vmem:[#allocation6 + $0x510] sm:$0xff]
    %v775 = vld [vmem:[#allocation6 + $0x518] sm:$0xff]
    %v776 = vld [vmem:[#allocation6 + $0x520] sm:$0xff]
    %v777 = vld [vmem:[#allocation6 + $0x528] sm:$0xff]
    %v778 = vld [vmem:[#allocation6 + $0x530] sm:$0xff]
    %v779 = vld [vmem:[#allocation6 + $0x538] sm:$0xff]
    %v780 = vld [vmem:[#allocation6 + $0x540] sm:$0xff]
    %v781 = vld [vmem:[#allocation6 + $0x548] sm:$0xff]
    %v782 = vld [vmem:[#allocation6 + $0x550] sm:$0xff]
    %v783 = vld [vmem:[#allocation6 + $0x558] sm:$0xff]
    %v784 = vld [vmem:[#allocation6 + $0x560] sm:$0xff]
    %v785 = vld [vmem:[#allocation6 + $0x568] sm:$0xff]
    %v786 = vld [vmem:[#allocation6 + $0x570] sm:$0xff]
    %v787 = vld [vmem:[#allocation6 + $0x578] sm:$0xff]
    %v788 = vld [vmem:[#allocation6 + $0x580] sm:$0xff]
    %v789 = vld [vmem:[#allocation6 + $0x588] sm:$0xff]
    %v790 = vld [vmem:[#allocation6 + $0x590] sm:$0xff]
    %v791 = vld [vmem:[#allocation6 + $0x598] sm:$0xff]
    %v792 = vld [vmem:[#allocation6 + $0x5a0] sm:$0xff]
    %v793 = vld [vmem:[#allocation6 + $0x5a8] sm:$0xff]
    %v794 = vld [vmem:[#allocation6 + $0x5b0] sm:$0xff]
    %v795 = vld [vmem:[#allocation6 + $0x5b8] sm:$0xff]
    %v796 = vld [vmem:[#allocation6 + $0x5c0] sm:$0xff]
    %v797 = vld [vmem:[#allocation6 + $0x5c8] sm:$0xff]
    %v798 = vld [vmem:[#allocation6 + $0x5d0] sm:$0xff]
    %v799 = vld [vmem:[#allocation6 + $0x5d8] sm:$0xff]
    %v800 = vld [vmem:[#allocation6 + $0x5e0] sm:$0xff]
    %v801 = vld [vmem:[#allocation6 + $0x5e8] sm:$0xff]
    %v802 = vld [vmem:[#allocation6 + $0x5f0] sm:$0xff]
    %v803 = vld [vmem:[#allocation6 + $0x5f8] sm:$0xff]
    %v804 = vld [vmem:[#allocation6 + $0x600] sm:$0xff]
    %v805 = vld [vmem:[#allocation6 + $0x608] sm:$0xff]
    %v806 = vld [vmem:[#allocation6 + $0x610] sm:$0xff]
    %v807 = vld [vmem:[#allocation6 + $0x618] sm:$0xff]
    %v808 = vld [vmem:[#allocation6 + $0x620] sm:$0xff]
    %v809 = vld [vmem:[#allocation6 + $0x628] sm:$0xff]
    %v810 = vld [vmem:[#allocation6 + $0x630] sm:$0xff]
    %v811 = vld [vmem:[#allocation6 + $0x638] sm:$0xff]
    %v812 = vld [vmem:[#allocation6 + $0x640] sm:$0xff]
    %v813 = vld [vmem:[#allocation6 + $0x648] sm:$0xff]
    %v814 = vld [vmem:[#allocation6 + $0x650] sm:$0xff]
    %v815 = vld [vmem:[#allocation6 + $0x658] sm:$0xff]
    %v816 = vld [vmem:[#allocation6 + $0x660] sm:$0xff]
    %v817 = vld [vmem:[#allocation6 + $0x668] sm:$0xff]
    %v818 = vld [vmem:[#allocation6 + $0x670] sm:$0xff]
    %v819 = vld [vmem:[#allocation6 + $0x678] sm:$0xff]
    %v820 = vld [vmem:[#allocation6 + $0x680] sm:$0xff]
    %v821 = vld [vmem:[#allocation6 + $0x688] sm:$0xff]
    %v822 = vld [vmem:[#allocation6 + $0x690] sm:$0xff]
    %v823 = vld [vmem:[#allocation6 + $0x698] sm:$0xff]
    %v824 = vld [vmem:[#allocation6 + $0x6a0] sm:$0xff]
    %v825 = vld [vmem:[#allocation6 + $0x6a8] sm:$0xff]
    %v826 = vld [vmem:[#allocation6 + $0x6b0] sm:$0xff]
    %v827 = vld [vmem:[#allocation6 + $0x6b8] sm:$0xff]
    %v828 = vld [vmem:[#allocation6 + $0x6c0] sm:$0xff]
    %v829 = vld [vmem:[#allocation6 + $0x6c8] sm:$0xff]
    %v830 = vld [vmem:[#allocation6 + $0x6d0] sm:$0xff]
    %v831 = vld [vmem:[#allocation6 + $0x6d8] sm:$0xff]
    %v832 = vld [vmem:[#allocation6 + $0x6e0] sm:$0xff]
    %v833 = vld [vmem:[#allocation6 + $0x6e8] sm:$0xff]
    %v834 = vld [vmem:[#allocation6 + $0x6f0] sm:$0xff]
    %v835 = vld [vmem:[#allocation6 + $0x6f8] sm:$0xff]
    %v836 = vld [vmem:[#allocation6 + $0x700] sm:$0xff]
    %v837 = vld [vmem:[#allocation6 + $0x708] sm:$0xff]
    %v838 = vld [vmem:[#allocation6 + $0x710] sm:$0xff]
    %v839 = vld [vmem:[#allocation6 + $0x718] sm:$0xff]
    %v840 = vld [vmem:[#allocation6 + $0x720] sm:$0xff]
    %v841 = vld [vmem:[#allocation6 + $0x728] sm:$0xff]
    %v842 = vld [vmem:[#allocation6 + $0x730] sm:$0xff]
    %v843 = vld [vmem:[#allocation6 + $0x738] sm:$0xff]
    %v844 = vld [vmem:[#allocation6 + $0x740] sm:$0xff]
    %v845 = vld [vmem:[#allocation6 + $0x748] sm:$0xff]
    %v846 = vld [vmem:[#allocation6 + $0x750] sm:$0xff]
    %v847 = vld [vmem:[#allocation6 + $0x758] sm:$0xff]
    %v848 = vld [vmem:[#allocation6 + $0x760] sm:$0xff]
    %v849 = vld [vmem:[#allocation6 + $0x768] sm:$0xff]
    %v850 = vld [vmem:[#allocation6 + $0x770] sm:$0xff]
    %v851 = vld [vmem:[#allocation6 + $0x778] sm:$0xff]
    %v852 = vld [vmem:[#allocation6 + $0x780] sm:$0xff]
    %v853 = vld [vmem:[#allocation6 + $0x788] sm:$0xff]
    %v854 = vld [vmem:[#allocation6 + $0x790] sm:$0xff]
    %v855 = vld [vmem:[#allocation6 + $0x798] sm:$0xff]
    %v856 = vld [vmem:[#allocation6 + $0x7a0] sm:$0xff]
    %v857 = vld [vmem:[#allocation6 + $0x7a8] sm:$0xff]
    %v858 = vld [vmem:[#allocation6 + $0x7b0] sm:$0xff]
    %v859 = vld [vmem:[#allocation6 + $0x7b8] sm:$0xff]
    %v860 = vld [vmem:[#allocation6 + $0x7c0] sm:$0xff]
    %v861 = vld [vmem:[#allocation6 + $0x7c8] sm:$0xff]
    %v862 = vld [vmem:[#allocation6 + $0x7d0] sm:$0xff]
    %v863 = vld [vmem:[#allocation6 + $0x7d8] sm:$0xff]
    %v864 = vld [vmem:[#allocation6 + $0x7e0] sm:$0xff]
    %v865 = vld [vmem:[#allocation6 + $0x7e8] sm:$0xff]
    %v866 = vld [vmem:[#allocation6 + $0x7f0] sm:$0xff]
    %v867 = vld [vmem:[#allocation6 + $0x7f8] sm:$0xff]
    %868 = vmatpush.msra.mxu0 %v732
    %869 = vmatpush.msra.mxu0 %v724
    %870 = vmatpush.msra.mxu0 %v716
    %871 = vmatpush.msra.mxu0 %v708
    %872 = vmatpush.msra.mxu0 %v700
    %873 = vmatpush.msra.mxu0 %v692
    %874 = vmatpush.msra.mxu0 %v684
    %875 = vmatpush.msra.mxu0 %v676
    %876 = vmatpush.msra.mxu0 %v668
    %877 = vmatpush.msra.mxu0 %v660
    %878 = vmatpush.msra.mxu0 %v652
    %879 = vmatpush.msra.mxu0 %v644
    %880 = vmatpush.msra.mxu0 %v636
    %881 = vmatpush.msra.mxu0 %v628
    %882 = vmatpush.msra.mxu0 %v620
    %883 = vmatpush.msra.mxu0 %v612
    %884 = vmatmul.f32.gmra.mxu0 0.0
    %v885 = vpop.f32.mrf.mxu0
    %v886 = vadd.f32 0.0, %v885
    %887 = vdwg.mxu0
    %888 = vmatpush.msra.mxu0 %v860
    %889 = vmatpush.msra.mxu0 %v852
    %890 = vmatpush.msra.mxu0 %v844
    %891 = vmatpush.msra.mxu0 %v836
    %892 = vmatpush.msra.mxu0 %v828
    %893 = vmatpush.msra.mxu0 %v820
    %894 = vmatpush.msra.mxu0 %v812
    %895 = vmatpush.msra.mxu0 %v804
    %896 = vmatpush.msra.mxu0 %v796
    %897 = vmatpush.msra.mxu0 %v788
    %898 = vmatpush.msra.mxu0 %v780
    %899 = vmatpush.msra.mxu0 %v772
    %900 = vmatpush.msra.mxu0 %v764
    %901 = vmatpush.msra.mxu0 %v756
    %902 = vmatpush.msra.mxu0 %v748
    %903 = vmatpush.msra.mxu0 %v740
    %904 = vmatmul.f32.gmra.mxu0 0.0
    %v905 = vpop.f32.mrf.mxu0
    %v906 = vadd.f32 %v886, %v905
    %907 = vdwg.mxu0
    %908 = vmatpush.msra.mxu0 %v733
    %909 = vmatpush.msra.mxu0 %v725
    %910 = vmatpush.msra.mxu0 %v717
    %911 = vmatpush.msra.mxu0 %v709
    %912 = vmatpush.msra.mxu0 %v701
    %913 = vmatpush.msra.mxu0 %v693
    %914 = vmatpush.msra.mxu0 %v685
    %915 = vmatpush.msra.mxu0 %v677
    %916 = vmatpush.msra.mxu0 %v669
    %917 = vmatpush.msra.mxu0 %v661
    %918 = vmatpush.msra.mxu0 %v653
    %919 = vmatpush.msra.mxu0 %v645
    %920 = vmatpush.msra.mxu0 %v637
    %921 = vmatpush.msra.mxu0 %v629
    %922 = vmatpush.msra.mxu0 %v621
    %923 = vmatpush.msra.mxu0 %v613
    %924 = vmatmul.f32.gmra.mxu0 0.0
    %v925 = vpop.f32.mrf.mxu0
    %v926 = vadd.f32 0.0, %v925
    %927 = vdwg.mxu0
    %928 = vmatpush.msra.mxu0 %v861
    %929 = vmatpush.msra.mxu0 %v853
    %930 = vmatpush.msra.mxu0 %v845
    %931 = vmatpush.msra.mxu0 %v837
    %932 = vmatpush.msra.mxu0 %v829
    %933 = vmatpush.msra.mxu0 %v821
    %934 = vmatpush.msra.mxu0 %v813
    %935 = vmatpush.msra.mxu0 %v805
    %936 = vmatpush.msra.mxu0 %v797
    %937 = vmatpush.msra.mxu0 %v789
    %938 = vmatpush.msra.mxu0 %v781
    %939 = vmatpush.msra.mxu0 %v773
    %940 = vmatpush.msra.mxu0 %v765
    %941 = vmatpush.msra.mxu0 %v757
    %942 = vmatpush.msra.mxu0 %v749
    %943 = vmatpush.msra.mxu0 %v741
    %944 = vmatmul.f32.gmra.mxu0 0.0
    %v945 = vpop.f32.mrf.mxu0
    %v946 = vadd.f32 %v926, %v945
    %947 = vdwg.mxu0
    %948 = vmatpush.msra.mxu0 %v734
    %949 = vmatpush.msra.mxu0 %v726
    %950 = vmatpush.msra.mxu0 %v718
    %951 = vmatpush.msra.mxu0 %v710
    %952 = vmatpush.msra.mxu0 %v702
    %953 = vmatpush.msra.mxu0 %v694
    %954 = vmatpush.msra.mxu0 %v686
    %955 = vmatpush.msra.mxu0 %v678
    %956 = vmatpush.msra.mxu0 %v670
    %957 = vmatpush.msra.mxu0 %v662
    %958 = vmatpush.msra.mxu0 %v654
    %959 = vmatpush.msra.mxu0 %v646
    %960 = vmatpush.msra.mxu0 %v638
    %961 = vmatpush.msra.mxu0 %v630
    %962 = vmatpush.msra.mxu0 %v622
    %963 = vmatpush.msra.mxu0 %v614
    %964 = vmatmul.f32.gmra.mxu0 0.0
    %v965 = vpop.f32.mrf.mxu0
    %v966 = vadd.f32 0.0, %v965
    %967 = vdwg.mxu0
    %968 = vmatpush.msra.mxu0 %v862
    %969 = vmatpush.msra.mxu0 %v854
    %970 = vmatpush.msra.mxu0 %v846
    %971 = vmatpush.msra.mxu0 %v838
    %972 = vmatpush.msra.mxu0 %v830
    %973 = vmatpush.msra.mxu0 %v822
    %974 = vmatpush.msra.mxu0 %v814
    %975 = vmatpush.msra.mxu0 %v806
    %976 = vmatpush.msra.mxu0 %v798
    %977 = vmatpush.msra.mxu0 %v790
    %978 = vmatpush.msra.mxu0 %v782
    %979 = vmatpush.msra.mxu0 %v774
    %980 = vmatpush.msra.mxu0 %v766
    %981 = vmatpush.msra.mxu0 %v758
    %982 = vmatpush.msra.mxu0 %v750
    %983 = vmatpush.msra.mxu0 %v742
    %984 = vmatmul.f32.gmra.mxu0 0.0
    %v985 = vpop.f32.mrf.mxu0
    %v986 = vadd.f32 %v966, %v985
    %987 = vdwg.mxu0
    %988 = vmatpush.msra.mxu0 %v735
    %989 = vmatpush.msra.mxu0 %v727
    %990 = vmatpush.msra.mxu0 %v719
    %991 = vmatpush.msra.mxu0 %v711
    %992 = vmatpush.msra.mxu0 %v703
    %993 = vmatpush.msra.mxu0 %v695
    %994 = vmatpush.msra.mxu0 %v687
    %995 = vmatpush.msra.mxu0 %v679
    %996 = vmatpush.msra.mxu0 %v671
    %997 = vmatpush.msra.mxu0 %v663
    %998 = vmatpush.msra.mxu0 %v655
    %999 = vmatpush.msra.mxu0 %v647
    %1000 = vmatpush.msra.mxu0 %v639
    %1001 = vmatpush.msra.mxu0 %v631
    %1002 = vmatpush.msra.mxu0 %v623
    %1003 = vmatpush.msra.mxu0 %v615
    %1004 = vmatmul.f32.gmra.mxu0 0.0
    %v1005 = vpop.f32.mrf.mxu0
    %v1006 = vadd.f32 0.0, %v1005
    %1007 = vdwg.mxu0
    %1008 = vmatpush.msra.mxu0 %v863
    %1009 = vmatpush.msra.mxu0 %v855
    %1010 = vmatpush.msra.mxu0 %v847
    %1011 = vmatpush.msra.mxu0 %v839
    %1012 = vmatpush.msra.mxu0 %v831
    %1013 = vmatpush.msra.mxu0 %v823
    %1014 = vmatpush.msra.mxu0 %v815
    %1015 = vmatpush.msra.mxu0 %v807
    %1016 = vmatpush.msra.mxu0 %v799
    %1017 = vmatpush.msra.mxu0 %v791
    %1018 = vmatpush.msra.mxu0 %v783
    %1019 = vmatpush.msra.mxu0 %v775
    %1020 = vmatpush.msra.mxu0 %v767
    %1021 = vmatpush.msra.mxu0 %v759
    %1022 = vmatpush.msra.mxu0 %v751
    %1023 = vmatpush.msra.mxu0 %v743
    %1024 = vmatmul.f32.gmra.mxu0 0.0
    %v1025 = vpop.f32.mrf.mxu0
    %v1026 = vadd.f32 %v1006, %v1025
    %1027 = vdwg.mxu0
    %1028 = vmatpush.msra.mxu0 %v736
    %1029 = vmatpush.msra.mxu0 %v728
    %1030 = vmatpush.msra.mxu0 %v720
    %1031 = vmatpush.msra.mxu0 %v712
    %1032 = vmatpush.msra.mxu0 %v704
    %1033 = vmatpush.msra.mxu0 %v696
    %1034 = vmatpush.msra.mxu0 %v688
    %1035 = vmatpush.msra.mxu0 %v680
    %1036 = vmatpush.msra.mxu0 %v672
    %1037 = vmatpush.msra.mxu0 %v664
    %1038 = vmatpush.msra.mxu0 %v656
    %1039 = vmatpush.msra.mxu0 %v648
    %1040 = vmatpush.msra.mxu0 %v640
    %1041 = vmatpush.msra.mxu0 %v632
    %1042 = vmatpush.msra.mxu0 %v624
    %1043 = vmatpush.msra.mxu0 %v616
    %1044 = vmatmul.f32.gmra.mxu0 0.0
    %v1045 = vpop.f32.mrf.mxu0
    %v1046 = vadd.f32 0.0, %v1045
    %1047 = vdwg.mxu0
    %1048 = vmatpush.msra.mxu0 %v864
    %1049 = vmatpush.msra.mxu0 %v856
    %1050 = vmatpush.msra.mxu0 %v848
    %1051 = vmatpush.msra.mxu0 %v840
    %1052 = vmatpush.msra.mxu0 %v832
    %1053 = vmatpush.msra.mxu0 %v824
    %1054 = vmatpush.msra.mxu0 %v816
    %1055 = vmatpush.msra.mxu0 %v808
    %1056 = vmatpush.msra.mxu0 %v800
    %1057 = vmatpush.msra.mxu0 %v792
    %1058 = vmatpush.msra.mxu0 %v784
    %1059 = vmatpush.msra.mxu0 %v776
    %1060 = vmatpush.msra.mxu0 %v768
    %1061 = vmatpush.msra.mxu0 %v760
    %1062 = vmatpush.msra.mxu0 %v752
    %1063 = vmatpush.msra.mxu0 %v744
    %1064 = vmatmul.f32.gmra.mxu0 0.0
    %v1065 = vpop.f32.mrf.mxu0
    %v1066 = vadd.f32 %v1046, %v1065
    %1067 = vdwg.mxu0
    %1068 = vmatpush.msra.mxu0 %v737
    %1069 = vmatpush.msra.mxu0 %v729
    %1070 = vmatpush.msra.mxu0 %v721
    %1071 = vmatpush.msra.mxu0 %v713
    %1072 = vmatpush.msra.mxu0 %v705
    %1073 = vmatpush.msra.mxu0 %v697
    %1074 = vmatpush.msra.mxu0 %v689
    %1075 = vmatpush.msra.mxu0 %v681
    %1076 = vmatpush.msra.mxu0 %v673
    %1077 = vmatpush.msra.mxu0 %v665
    %1078 = vmatpush.msra.mxu0 %v657
    %1079 = vmatpush.msra.mxu0 %v649
    %1080 = vmatpush.msra.mxu0 %v641
    %1081 = vmatpush.msra.mxu0 %v633
    %1082 = vmatpush.msra.mxu0 %v625
    %1083 = vmatpush.msra.mxu0 %v617
    %1084 = vmatmul.f32.gmra.mxu0 0.0
    %v1085 = vpop.f32.mrf.mxu0
    %v1086 = vadd.f32 0.0, %v1085
    %1087 = vdwg.mxu0
    %1088 = vmatpush.msra.mxu0 %v865
    %1089 = vmatpush.msra.mxu0 %v857
    %1090 = vmatpush.msra.mxu0 %v849
    %1091 = vmatpush.msra.mxu0 %v841
    %1092 = vmatpush.msra.mxu0 %v833
    %1093 = vmatpush.msra.mxu0 %v825
    %1094 = vmatpush.msra.mxu0 %v817
    %1095 = vmatpush.msra.mxu0 %v809
    %1096 = vmatpush.msra.mxu0 %v801
    %1097 = vmatpush.msra.mxu0 %v793
    %1098 = vmatpush.msra.mxu0 %v785
    %1099 = vmatpush.msra.mxu0 %v777
    %1100 = vmatpush.msra.mxu0 %v769
    %1101 = vmatpush.msra.mxu0 %v761
    %1102 = vmatpush.msra.mxu0 %v753
    %1103 = vmatpush.msra.mxu0 %v745
    %1104 = vmatmul.f32.gmra.mxu0 0.0
    %v1105 = vpop.f32.mrf.mxu0
    %v1106 = vadd.f32 %v1086, %v1105
    %1107 = vdwg.mxu0
    %1108 = vmatpush.msra.mxu0 %v738
    %1109 = vmatpush.msra.mxu0 %v730
    %1110 = vmatpush.msra.mxu0 %v722
    %1111 = vmatpush.msra.mxu0 %v714
    %1112 = vmatpush.msra.mxu0 %v706
    %1113 = vmatpush.msra.mxu0 %v698
    %1114 = vmatpush.msra.mxu0 %v690
    %1115 = vmatpush.msra.mxu0 %v682
    %1116 = vmatpush.msra.mxu0 %v674
    %1117 = vmatpush.msra.mxu0 %v666
    %1118 = vmatpush.msra.mxu0 %v658
    %1119 = vmatpush.msra.mxu0 %v650
    %1120 = vmatpush.msra.mxu0 %v642
    %1121 = vmatpush.msra.mxu0 %v634
    %1122 = vmatpush.msra.mxu0 %v626
    %1123 = vmatpush.msra.mxu0 %v618
    %1124 = vmatmul.f32.gmra.mxu0 0.0
    %v1125 = vpop.f32.mrf.mxu0
    %v1126 = vadd.f32 0.0, %v1125
    %1127 = vdwg.mxu0
    %1128 = vmatpush.msra.mxu0 %v866
    %1129 = vmatpush.msra.mxu0 %v858
    %1130 = vmatpush.msra.mxu0 %v850
    %1131 = vmatpush.msra.mxu0 %v842
    %1132 = vmatpush.msra.mxu0 %v834
    %1133 = vmatpush.msra.mxu0 %v826
    %1134 = vmatpush.msra.mxu0 %v818
    %1135 = vmatpush.msra.mxu0 %v810
    %1136 = vmatpush.msra.mxu0 %v802
    %1137 = vmatpush.msra.mxu0 %v794
    %1138 = vmatpush.msra.mxu0 %v786
    %1139 = vmatpush.msra.mxu0 %v778
    %1140 = vmatpush.msra.mxu0 %v770
    %1141 = vmatpush.msra.mxu0 %v762
    %1142 = vmatpush.msra.mxu0 %v754
    %1143 = vmatpush.msra.mxu0 %v746
    %1144 = vmatmul.f32.gmra.mxu0 0.0
    %v1145 = vpop.f32.mrf.mxu0
    %v1146 = vadd.f32 %v1126, %v1145
    %1147 = vdwg.mxu0
    %1148 = vmatpush.msra.mxu0 %v739
    %1149 = vmatpush.msra.mxu0 %v731
    %1150 = vmatpush.msra.mxu0 %v723
    %1151 = vmatpush.msra.mxu0 %v715
    %1152 = vmatpush.msra.mxu0 %v707
    %1153 = vmatpush.msra.mxu0 %v699
    %1154 = vmatpush.msra.mxu0 %v691
    %1155 = vmatpush.msra.mxu0 %v683
    %1156 = vmatpush.msra.mxu0 %v675
    %1157 = vmatpush.msra.mxu0 %v667
    %1158 = vmatpush.msra.mxu0 %v659
    %1159 = vmatpush.msra.mxu0 %v651
    %1160 = vmatpush.msra.mxu0 %v643
    %1161 = vmatpush.msra.mxu0 %v635
    %1162 = vmatpush.msra.mxu0 %v627
    %1163 = vmatpush.msra.mxu0 %v619
    %1164 = vmatmul.f32.gmra.mxu0 0.0
    %v1165 = vpop.f32.mrf.mxu0
    %v1166 = vadd.f32 0.0, %v1165
    %1167 = vdwg.mxu0
    %1168 = vmatpush.msra.mxu0 %v867
    %1169 = vmatpush.msra.mxu0 %v859
    %1170 = vmatpush.msra.mxu0 %v851
    %1171 = vmatpush.msra.mxu0 %v843
    %1172 = vmatpush.msra.mxu0 %v835
    %1173 = vmatpush.msra.mxu0 %v827
    %1174 = vmatpush.msra.mxu0 %v819
    %1175 = vmatpush.msra.mxu0 %v811
    %1176 = vmatpush.msra.mxu0 %v803
    %1177 = vmatpush.msra.mxu0 %v795
    %1178 = vmatpush.msra.mxu0 %v787
    %1179 = vmatpush.msra.mxu0 %v779
    %1180 = vmatpush.msra.mxu0 %v771
    %1181 = vmatpush.msra.mxu0 %v763
    %1182 = vmatpush.msra.mxu0 %v755
    %1183 = vmatpush.msra.mxu0 %v747
    %1184 = vmatmul.f32.gmra.mxu0 0.0
    %v1185 = vpop.f32.mrf.mxu0
    %v1186 = vadd.f32 %v1166, %v1185
    %1187 = vdwg.mxu0
    %v1188 = vadd.f32 %v604, %v906
    %v1189 = vadd.f32 %v605, %v946
    %v1190 = vadd.f32 %v606, %v986
    %v1191 = vadd.f32 %v607, %v1026
    %v1192 = vadd.f32 %v608, %v1066
    %v1193 = vadd.f32 %v609, %v1106
    %v1194 = vadd.f32 %v610, %v1146
    %v1195 = vadd.f32 %v611, %v1186
    %v1196 = vxor.u32 %v1188, 2147483648
    %v1197 = vxor.u32 %v1189, 2147483648
    %v1198 = vxor.u32 %v1190, 2147483648
    %v1199 = vxor.u32 %v1191, 2147483648
    %v1200 = vxor.u32 %v1194, 2147483648
    %v1201 = vxor.u32 %v1195, 2147483648
    %v1202 = vmul.f32 %v1196, 1.442695
    %v1203 = vpow.pop %v1202
    %v1204 = vmul.f32 %v1197, 1.442695
    %v1205 = vpow.pop %v1204
    %v1206 = vmul.f32 %v1198, 1.442695
    %v1207 = vpow.pop %v1206
    %v1208 = vmul.f32 %v1199, 1.442695
    %v1209 = vpow.pop %v1208
    %v1210 = vmul.f32 %v1200, 1.442695
    %v1211 = vpow.pop %v1210
    %v1212 = vmul.f32 %v1201, 1.442695
    %v1213 = vpow.pop %v1212
    %v1214 = vadd.f32 %v1203, 1.0
    %v1215 = vadd.f32 %v1205, 1.0
    %v1216 = vadd.f32 %v1207, 1.0
    %v1217 = vadd.f32 %v1209, 1.0
    %v1218 = vadd.f32 %v1211, 1.0
    %v1219 = vadd.f32 %v1213, 1.0
    %v1220 = vrcp.pop %v1214
    %v1221 = vmul.f32 %v1214, %v1220
    %v1222 = vsub.f32 1.0, %v1221
    %v1223 = vmul.f32 %v1220, %v1222
    %v1224 = vadd.f32 %v1220, %v1223
    %vm1225 = vweird.f32 %v1214
    %vm1226 = vweird.f32 %v1220
    %vm1227 = vmor %vm1225, %vm1226
    %v1228 = vsel %vm1227, %v1220, %v1224
    %v1229 = vand.u32 2147483647, %v1214
    %vm1230 = vcmp.eq.f32.partialorder %v1229, 8.507059e+37
    %v1231 = vand.u32 %v1214, 2147483648
    %v1232 = vor.u32 1.1754944e-38, %v1231
    %v1233 = vsel %vm1230, %v1232, %v1228
    %v1234 = vmul.f32 1.0, %v1233
    %v1235 = vrcp.pop %v1215
    %v1236 = vmul.f32 %v1215, %v1235
    %v1237 = vsub.f32 1.0, %v1236
    %v1238 = vmul.f32 %v1235, %v1237
    %v1239 = vadd.f32 %v1235, %v1238
    %vm1240 = vweird.f32 %v1215
    %vm1241 = vweird.f32 %v1235
    %vm1242 = vmor %vm1240, %vm1241
    %v1243 = vsel %vm1242, %v1235, %v1239
    %v1244 = vand.u32 2147483647, %v1215
    %vm1245 = vcmp.eq.f32.partialorder %v1244, 8.507059e+37
    %v1246 = vand.u32 %v1215, 2147483648
    %v1247 = vor.u32 1.1754944e-38, %v1246
    %v1248 = vsel %vm1245, %v1247, %v1243
    %v1249 = vmul.f32 1.0, %v1248
    %v1250 = vrcp.pop %v1216
    %v1251 = vmul.f32 %v1216, %v1250
    %v1252 = vsub.f32 1.0, %v1251
    %v1253 = vmul.f32 %v1250, %v1252
    %v1254 = vadd.f32 %v1250, %v1253
    %vm1255 = vweird.f32 %v1216
    %vm1256 = vweird.f32 %v1250
    %vm1257 = vmor %vm1255, %vm1256
    %v1258 = vsel %vm1257, %v1250, %v1254
    %v1259 = vand.u32 2147483647, %v1216
    %vm1260 = vcmp.eq.f32.partialorder %v1259, 8.507059e+37
    %v1261 = vand.u32 %v1216, 2147483648
    %v1262 = vor.u32 1.1754944e-38, %v1261
    %v1263 = vsel %vm1260, %v1262, %v1258
    %v1264 = vmul.f32 1.0, %v1263
    %v1265 = vrcp.pop %v1217
    %v1266 = vmul.f32 %v1217, %v1265
    %v1267 = vsub.f32 1.0, %v1266
    %v1268 = vmul.f32 %v1265, %v1267
    %v1269 = vadd.f32 %v1265, %v1268
    %vm1270 = vweird.f32 %v1217
    %vm1271 = vweird.f32 %v1265
    %vm1272 = vmor %vm1270, %vm1271
    %v1273 = vsel %vm1272, %v1265, %v1269
    %v1274 = vand.u32 2147483647, %v1217
    %vm1275 = vcmp.eq.f32.partialorder %v1274, 8.507059e+37
    %v1276 = vand.u32 %v1217, 2147483648
    %v1277 = vor.u32 1.1754944e-38, %v1276
    %v1278 = vsel %vm1275, %v1277, %v1273
    %v1279 = vmul.f32 1.0, %v1278
    %v1280 = vrcp.pop %v1218
    %v1281 = vmul.f32 %v1218, %v1280
    %v1282 = vsub.f32 1.0, %v1281
    %v1283 = vmul.f32 %v1280, %v1282
    %v1284 = vadd.f32 %v1280, %v1283
    %vm1285 = vweird.f32 %v1218
    %vm1286 = vweird.f32 %v1280
    %vm1287 = vmor %vm1285, %vm1286
    %v1288 = vsel %vm1287, %v1280, %v1284
    %v1289 = vand.u32 2147483647, %v1218
    %vm1290 = vcmp.eq.f32.partialorder %v1289, 8.507059e+37
    %v1291 = vand.u32 %v1218, 2147483648
    %v1292 = vor.u32 1.1754944e-38, %v1291
    %v1293 = vsel %vm1290, %v1292, %v1288
    %v1294 = vmul.f32 1.0, %v1293
    %v1295 = vrcp.pop %v1219
    %v1296 = vmul.f32 %v1219, %v1295
    %v1297 = vsub.f32 1.0, %v1296
    %v1298 = vmul.f32 %v1295, %v1297
    %v1299 = vadd.f32 %v1295, %v1298
    %vm1300 = vweird.f32 %v1219
    %vm1301 = vweird.f32 %v1295
    %vm1302 = vmor %vm1300, %vm1301
    %v1303 = vsel %vm1302, %v1295, %v1299
    %v1304 = vand.u32 2147483647, %v1219
    %vm1305 = vcmp.eq.f32.partialorder %v1304, 8.507059e+37
    %v1306 = vand.u32 %v1219, 2147483648
    %v1307 = vor.u32 1.1754944e-38, %v1306
    %v1308 = vsel %vm1305, %v1307, %v1303
    %v1309 = vmul.f32 1.0, %v1308
    %v1310 = vtanh.pop %v1192
    %v1311 = vtanh.pop %v1193
    %v1312 = vmul.f32 %v1264, 0.0
    %v1313 = vmul.f32 %v1279, 0.0
    %v1314 = vmul.f32 %v1234, %v1310
    %v1315 = vmul.f32 %v1249, %v1311
    %v1316 = vadd.f32 %v1312, %v1314
    %v1317 = vadd.f32 %v1313, %v1315
    %v1318 = vtanh.pop %v1316
    %v1319 = vtanh.pop %v1317
    %v1320 = vmul.f32 %v1294, %v1318
    %v1321 = vmul.f32 %v1309, %v1319
    %s1322 = smul.u32 0, 2
    %s1323 = smul.addr %s1322, 8
    %s1324 = scalar_lea.vmem [#allocation3], %s1323
    %1325 = vst [vmem:[%s1324] sm:$0xff] %v1320
    %1326 = vst [vmem:[%s1324 + $0x8] sm:$0xff] %v1321
    %s1327 = smul.u32 1, 8
    %s1328 = smul.addr %s1327, 8
    %s1329 = scalar_lea.vmem [#allocation2], %s1328
    %v1330 = vld [vmem:[%s1329] sm:$0xff]
    %v1331 = vld [vmem:[%s1329 + $0x8] sm:$0xff]
    %v1332 = vld [vmem:[%s1329 + $0x10] sm:$0xff]
    %v1333 = vld [vmem:[%s1329 + $0x18] sm:$0xff]
    %v1334 = vld [vmem:[%s1329 + $0x20] sm:$0xff]
    %v1335 = vld [vmem:[%s1329 + $0x28] sm:$0xff]
    %v1336 = vld [vmem:[%s1329 + $0x30] sm:$0xff]
    %v1337 = vld [vmem:[%s1329 + $0x38] sm:$0xff]
    %v1338 = vld [vmem:[#allocation6] sm:$0xff]
    %v1339 = vld [vmem:[#allocation6 + $0x8] sm:$0xff]
    %v1340 = vld [vmem:[#allocation6 + $0x10] sm:$0xff]
    %v1341 = vld [vmem:[#allocation6 + $0x18] sm:$0xff]
    %v1342 = vld [vmem:[#allocation6 + $0x20] sm:$0xff]
    %v1343 = vld [vmem:[#allocation6 + $0x28] sm:$0xff]
    %v1344 = vld [vmem:[#allocation6 + $0x30] sm:$0xff]
    %v1345 = vld [vmem:[#allocation6 + $0x38] sm:$0xff]
    %v1346 = vld [vmem:[#allocation6 + $0x40] sm:$0xff]
    %v1347 = vld [vmem:[#allocation6 + $0x48] sm:$0xff]
    %v1348 = vld [vmem:[#allocation6 + $0x50] sm:$0xff]
    %v1349 = vld [vmem:[#allocation6 + $0x58] sm:$0xff]
    %v1350 = vld [vmem:[#allocation6 + $0x60] sm:$0xff]
    %v1351 = vld [vmem:[#allocation6 + $0x68] sm:$0xff]
    %v1352 = vld [vmem:[#allocation6 + $0x70] sm:$0xff]
    %v1353 = vld [vmem:[#allocation6 + $0x78] sm:$0xff]
    %v1354 = vld [vmem:[#allocation6 + $0x80] sm:$0xff]
    %v1355 = vld [vmem:[#allocation6 + $0x88] sm:$0xff]
    %v1356 = vld [vmem:[#allocation6 + $0x90] sm:$0xff]
    %v1357 = vld [vmem:[#allocation6 + $0x98] sm:$0xff]
    %v1358 = vld [vmem:[#allocation6 + $0xa0] sm:$0xff]
    %v1359 = vld [vmem:[#allocation6 + $0xa8] sm:$0xff]
    %v1360 = vld [vmem:[#allocation6 + $0xb0] sm:$0xff]
    %v1361 = vld [vmem:[#allocation6 + $0xb8] sm:$0xff]
    %v1362 = vld [vmem:[#allocation6 + $0xc0] sm:$0xff]
    %v1363 = vld [vmem:[#allocation6 + $0xc8] sm:$0xff]
    %v1364 = vld [vmem:[#allocation6 + $0xd0] sm:$0xff]
    %v1365 = vld [vmem:[#allocation6 + $0xd8] sm:$0xff]
    %v1366 = vld [vmem:[#allocation6 + $0xe0] sm:$0xff]
    %v1367 = vld [vmem:[#allocation6 + $0xe8] sm:$0xff]
    %v1368 = vld [vmem:[#allocation6 + $0xf0] sm:$0xff]
    %v1369 = vld [vmem:[#allocation6 + $0xf8] sm:$0xff]
    %v1370 = vld [vmem:[#allocation6 + $0x100] sm:$0xff]
    %v1371 = vld [vmem:[#allocation6 + $0x108] sm:$0xff]
    %v1372 = vld [vmem:[#allocation6 + $0x110] sm:$0xff]
    %v1373 = vld [vmem:[#allocation6 + $0x118] sm:$0xff]
    %v1374 = vld [vmem:[#allocation6 + $0x120] sm:$0xff]
    %v1375 = vld [vmem:[#allocation6 + $0x128] sm:$0xff]
    %v1376 = vld [vmem:[#allocation6 + $0x130] sm:$0xff]
    %v1377 = vld [vmem:[#allocation6 + $0x138] sm:$0xff]
    %v1378 = vld [vmem:[#allocation6 + $0x140] sm:$0xff]
    %v1379 = vld [vmem:[#allocation6 + $0x148] sm:$0xff]
    %v1380 = vld [vmem:[#allocation6 + $0x150] sm:$0xff]
    %v1381 = vld [vmem:[#allocation6 + $0x158] sm:$0xff]
    %v1382 = vld [vmem:[#allocation6 + $0x160] sm:$0xff]
    %v1383 = vld [vmem:[#allocation6 + $0x168] sm:$0xff]
    %v1384 = vld [vmem:[#allocation6 + $0x170] sm:$0xff]
    %v1385 = vld [vmem:[#allocation6 + $0x178] sm:$0xff]
    %v1386 = vld [vmem:[#allocation6 + $0x180] sm:$0xff]
    %v1387 = vld [vmem:[#allocation6 + $0x188] sm:$0xff]
    %v1388 = vld [vmem:[#allocation6 + $0x190] sm:$0xff]
    %v1389 = vld [vmem:[#allocation6 + $0x198] sm:$0xff]
    %v1390 = vld [vmem:[#allocation6 + $0x1a0] sm:$0xff]
    %v1391 = vld [vmem:[#allocation6 + $0x1a8] sm:$0xff]
    %v1392 = vld [vmem:[#allocation6 + $0x1b0] sm:$0xff]
    %v1393 = vld [vmem:[#allocation6 + $0x1b8] sm:$0xff]
    %v1394 = vld [vmem:[#allocation6 + $0x1c0] sm:$0xff]
    %v1395 = vld [vmem:[#allocation6 + $0x1c8] sm:$0xff]
    %v1396 = vld [vmem:[#allocation6 + $0x1d0] sm:$0xff]
    %v1397 = vld [vmem:[#allocation6 + $0x1d8] sm:$0xff]
    %v1398 = vld [vmem:[#allocation6 + $0x1e0] sm:$0xff]
    %v1399 = vld [vmem:[#allocation6 + $0x1e8] sm:$0xff]
    %v1400 = vld [vmem:[#allocation6 + $0x1f0] sm:$0xff]
    %v1401 = vld [vmem:[#allocation6 + $0x1f8] sm:$0xff]
    %v1402 = vld [vmem:[#allocation6 + $0x200] sm:$0xff]
    %v1403 = vld [vmem:[#allocation6 + $0x208] sm:$0xff]
    %v1404 = vld [vmem:[#allocation6 + $0x210] sm:$0xff]
    %v1405 = vld [vmem:[#allocation6 + $0x218] sm:$0xff]
    %v1406 = vld [vmem:[#allocation6 + $0x220] sm:$0xff]
    %v1407 = vld [vmem:[#allocation6 + $0x228] sm:$0xff]
    %v1408 = vld [vmem:[#allocation6 + $0x230] sm:$0xff]
    %v1409 = vld [vmem:[#allocation6 + $0x238] sm:$0xff]
    %v1410 = vld [vmem:[#allocation6 + $0x240] sm:$0xff]
    %v1411 = vld [vmem:[#allocation6 + $0x248] sm:$0xff]
    %v1412 = vld [vmem:[#allocation6 + $0x250] sm:$0xff]
    %v1413 = vld [vmem:[#allocation6 + $0x258] sm:$0xff]
    %v1414 = vld [vmem:[#allocation6 + $0x260] sm:$0xff]
    %v1415 = vld [vmem:[#allocation6 + $0x268] sm:$0xff]
    %v1416 = vld [vmem:[#allocation6 + $0x270] sm:$0xff]
    %v1417 = vld [vmem:[#allocation6 + $0x278] sm:$0xff]
    %v1418 = vld [vmem:[#allocation6 + $0x280] sm:$0xff]
    %v1419 = vld [vmem:[#allocation6 + $0x288] sm:$0xff]
    %v1420 = vld [vmem:[#allocation6 + $0x290] sm:$0xff]
    %v1421 = vld [vmem:[#allocation6 + $0x298] sm:$0xff]
    %v1422 = vld [vmem:[#allocation6 + $0x2a0] sm:$0xff]
    %v1423 = vld [vmem:[#allocation6 + $0x2a8] sm:$0xff]
    %v1424 = vld [vmem:[#allocation6 + $0x2b0] sm:$0xff]
    %v1425 = vld [vmem:[#allocation6 + $0x2b8] sm:$0xff]
    %v1426 = vld [vmem:[#allocation6 + $0x2c0] sm:$0xff]
    %v1427 = vld [vmem:[#allocation6 + $0x2c8] sm:$0xff]
    %v1428 = vld [vmem:[#allocation6 + $0x2d0] sm:$0xff]
    %v1429 = vld [vmem:[#allocation6 + $0x2d8] sm:$0xff]
    %v1430 = vld [vmem:[#allocation6 + $0x2e0] sm:$0xff]
    %v1431 = vld [vmem:[#allocation6 + $0x2e8] sm:$0xff]
    %v1432 = vld [vmem:[#allocation6 + $0x2f0] sm:$0xff]
    %v1433 = vld [vmem:[#allocation6 + $0x2f8] sm:$0xff]
    %v1434 = vld [vmem:[#allocation6 + $0x300] sm:$0xff]
    %v1435 = vld [vmem:[#allocation6 + $0x308] sm:$0xff]
    %v1436 = vld [vmem:[#allocation6 + $0x310] sm:$0xff]
    %v1437 = vld [vmem:[#allocation6 + $0x318] sm:$0xff]
    %v1438 = vld [vmem:[#allocation6 + $0x320] sm:$0xff]
    %v1439 = vld [vmem:[#allocation6 + $0x328] sm:$0xff]
    %v1440 = vld [vmem:[#allocation6 + $0x330] sm:$0xff]
    %v1441 = vld [vmem:[#allocation6 + $0x338] sm:$0xff]
    %v1442 = vld [vmem:[#allocation6 + $0x340] sm:$0xff]
    %v1443 = vld [vmem:[#allocation6 + $0x348] sm:$0xff]
    %v1444 = vld [vmem:[#allocation6 + $0x350] sm:$0xff]
    %v1445 = vld [vmem:[#allocation6 + $0x358] sm:$0xff]
    %v1446 = vld [vmem:[#allocation6 + $0x360] sm:$0xff]
    %v1447 = vld [vmem:[#allocation6 + $0x368] sm:$0xff]
    %v1448 = vld [vmem:[#allocation6 + $0x370] sm:$0xff]
    %v1449 = vld [vmem:[#allocation6 + $0x378] sm:$0xff]
    %v1450 = vld [vmem:[#allocation6 + $0x380] sm:$0xff]
    %v1451 = vld [vmem:[#allocation6 + $0x388] sm:$0xff]
    %v1452 = vld [vmem:[#allocation6 + $0x390] sm:$0xff]
    %v1453 = vld [vmem:[#allocation6 + $0x398] sm:$0xff]
    %v1454 = vld [vmem:[#allocation6 + $0x3a0] sm:$0xff]
    %v1455 = vld [vmem:[#allocation6 + $0x3a8] sm:$0xff]
    %v1456 = vld [vmem:[#allocation6 + $0x3b0] sm:$0xff]
    %v1457 = vld [vmem:[#allocation6 + $0x3b8] sm:$0xff]
    %v1458 = vld [vmem:[#allocation6 + $0x3c0] sm:$0xff]
    %v1459 = vld [vmem:[#allocation6 + $0x3c8] sm:$0xff]
    %v1460 = vld [vmem:[#allocation6 + $0x3d0] sm:$0xff]
    %v1461 = vld [vmem:[#allocation6 + $0x3d8] sm:$0xff]
    %v1462 = vld [vmem:[#allocation6 + $0x3e0] sm:$0xff]
    %v1463 = vld [vmem:[#allocation6 + $0x3e8] sm:$0xff]
    %v1464 = vld [vmem:[#allocation6 + $0x3f0] sm:$0xff]
    %v1465 = vld [vmem:[#allocation6 + $0x3f8] sm:$0xff]
    %v1466 = vld [vmem:[#allocation6 + $0x400] sm:$0xff]
    %v1467 = vld [vmem:[#allocation6 + $0x408] sm:$0xff]
    %v1468 = vld [vmem:[#allocation6 + $0x410] sm:$0xff]
    %v1469 = vld [vmem:[#allocation6 + $0x418] sm:$0xff]
    %v1470 = vld [vmem:[#allocation6 + $0x420] sm:$0xff]
    %v1471 = vld [vmem:[#allocation6 + $0x428] sm:$0xff]
    %v1472 = vld [vmem:[#allocation6 + $0x430] sm:$0xff]
    %v1473 = vld [vmem:[#allocation6 + $0x438] sm:$0xff]
    %v1474 = vld [vmem:[#allocation6 + $0x440] sm:$0xff]
    %v1475 = vld [vmem:[#allocation6 + $0x448] sm:$0xff]
    %v1476 = vld [vmem:[#allocation6 + $0x450] sm:$0xff]
    %v1477 = vld [vmem:[#allocation6 + $0x458] sm:$0xff]
    %v1478 = vld [vmem:[#allocation6 + $0x460] sm:$0xff]
    %v1479 = vld [vmem:[#allocation6 + $0x468] sm:$0xff]
    %v1480 = vld [vmem:[#allocation6 + $0x470] sm:$0xff]
    %v1481 = vld [vmem:[#allocation6 + $0x478] sm:$0xff]
    %v1482 = vld [vmem:[#allocation6 + $0x480] sm:$0xff]
    %v1483 = vld [vmem:[#allocation6 + $0x488] sm:$0xff]
    %v1484 = vld [vmem:[#allocation6 + $0x490] sm:$0xff]
    %v1485 = vld [vmem:[#allocation6 + $0x498] sm:$0xff]
    %v1486 = vld [vmem:[#allocation6 + $0x4a0] sm:$0xff]
    %v1487 = vld [vmem:[#allocation6 + $0x4a8] sm:$0xff]
    %v1488 = vld [vmem:[#allocation6 + $0x4b0] sm:$0xff]
    %v1489 = vld [vmem:[#allocation6 + $0x4b8] sm:$0xff]
    %v1490 = vld [vmem:[#allocation6 + $0x4c0] sm:$0xff]
    %v1491 = vld [vmem:[#allocation6 + $0x4c8] sm:$0xff]
    %v1492 = vld [vmem:[#allocation6 + $0x4d0] sm:$0xff]
    %v1493 = vld [vmem:[#allocation6 + $0x4d8] sm:$0xff]
    %v1494 = vld [vmem:[#allocation6 + $0x4e0] sm:$0xff]
    %v1495 = vld [vmem:[#allocation6 + $0x4e8] sm:$0xff]
    %v1496 = vld [vmem:[#allocation6 + $0x4f0] sm:$0xff]
    %v1497 = vld [vmem:[#allocation6 + $0x4f8] sm:$0xff]
    %v1498 = vld [vmem:[#allocation6 + $0x500] sm:$0xff]
    %v1499 = vld [vmem:[#allocation6 + $0x508] sm:$0xff]
    %v1500 = vld [vmem:[#allocation6 + $0x510] sm:$0xff]
    %v1501 = vld [vmem:[#allocation6 + $0x518] sm:$0xff]
    %v1502 = vld [vmem:[#allocation6 + $0x520] sm:$0xff]
    %v1503 = vld [vmem:[#allocation6 + $0x528] sm:$0xff]
    %v1504 = vld [vmem:[#allocation6 + $0x530] sm:$0xff]
    %v1505 = vld [vmem:[#allocation6 + $0x538] sm:$0xff]
    %v1506 = vld [vmem:[#allocation6 + $0x540] sm:$0xff]
    %v1507 = vld [vmem:[#allocation6 + $0x548] sm:$0xff]
    %v1508 = vld [vmem:[#allocation6 + $0x550] sm:$0xff]
    %v1509 = vld [vmem:[#allocation6 + $0x558] sm:$0xff]
    %v1510 = vld [vmem:[#allocation6 + $0x560] sm:$0xff]
    %v1511 = vld [vmem:[#allocation6 + $0x568] sm:$0xff]
    %v1512 = vld [vmem:[#allocation6 + $0x570] sm:$0xff]
    %v1513 = vld [vmem:[#allocation6 + $0x578] sm:$0xff]
    %v1514 = vld [vmem:[#allocation6 + $0x580] sm:$0xff]
    %v1515 = vld [vmem:[#allocation6 + $0x588] sm:$0xff]
    %v1516 = vld [vmem:[#allocation6 + $0x590] sm:$0xff]
    %v1517 = vld [vmem:[#allocation6 + $0x598] sm:$0xff]
    %v1518 = vld [vmem:[#allocation6 + $0x5a0] sm:$0xff]
    %v1519 = vld [vmem:[#allocation6 + $0x5a8] sm:$0xff]
    %v1520 = vld [vmem:[#allocation6 + $0x5b0] sm:$0xff]
    %v1521 = vld [vmem:[#allocation6 + $0x5b8] sm:$0xff]
    %v1522 = vld [vmem:[#allocation6 + $0x5c0] sm:$0xff]
    %v1523 = vld [vmem:[#allocation6 + $0x5c8] sm:$0xff]
    %v1524 = vld [vmem:[#allocation6 + $0x5d0] sm:$0xff]
    %v1525 = vld [vmem:[#allocation6 + $0x5d8] sm:$0xff]
    %v1526 = vld [vmem:[#allocation6 + $0x5e0] sm:$0xff]
    %v1527 = vld [vmem:[#allocation6 + $0x5e8] sm:$0xff]
    %v1528 = vld [vmem:[#allocation6 + $0x5f0] sm:$0xff]
    %v1529 = vld [vmem:[#allocation6 + $0x5f8] sm:$0xff]
    %v1530 = vld [vmem:[#allocation6 + $0x600] sm:$0xff]
    %v1531 = vld [vmem:[#allocation6 + $0x608] sm:$0xff]
    %v1532 = vld [vmem:[#allocation6 + $0x610] sm:$0xff]
    %v1533 = vld [vmem:[#allocation6 + $0x618] sm:$0xff]
    %v1534 = vld [vmem:[#allocation6 + $0x620] sm:$0xff]
    %v1535 = vld [vmem:[#allocation6 + $0x628] sm:$0xff]
    %v1536 = vld [vmem:[#allocation6 + $0x630] sm:$0xff]
    %v1537 = vld [vmem:[#allocation6 + $0x638] sm:$0xff]
    %v1538 = vld [vmem:[#allocation6 + $0x640] sm:$0xff]
    %v1539 = vld [vmem:[#allocation6 + $0x648] sm:$0xff]
    %v1540 = vld [vmem:[#allocation6 + $0x650] sm:$0xff]
    %v1541 = vld [vmem:[#allocation6 + $0x658] sm:$0xff]
    %v1542 = vld [vmem:[#allocation6 + $0x660] sm:$0xff]
    %v1543 = vld [vmem:[#allocation6 + $0x668] sm:$0xff]
    %v1544 = vld [vmem:[#allocation6 + $0x670] sm:$0xff]
    %v1545 = vld [vmem:[#allocation6 + $0x678] sm:$0xff]
    %v1546 = vld [vmem:[#allocation6 + $0x680] sm:$0xff]
    %v1547 = vld [vmem:[#allocation6 + $0x688] sm:$0xff]
    %v1548 = vld [vmem:[#allocation6 + $0x690] sm:$0xff]
    %v1549 = vld [vmem:[#allocation6 + $0x698] sm:$0xff]
    %v1550 = vld [vmem:[#allocation6 + $0x6a0] sm:$0xff]
    %v1551 = vld [vmem:[#allocation6 + $0x6a8] sm:$0xff]
    %v1552 = vld [vmem:[#allocation6 + $0x6b0] sm:$0xff]
    %v1553 = vld [vmem:[#allocation6 + $0x6b8] sm:$0xff]
    %v1554 = vld [vmem:[#allocation6 + $0x6c0] sm:$0xff]
    %v1555 = vld [vmem:[#allocation6 + $0x6c8] sm:$0xff]
    %v1556 = vld [vmem:[#allocation6 + $0x6d0] sm:$0xff]
    %v1557 = vld [vmem:[#allocation6 + $0x6d8] sm:$0xff]
    %v1558 = vld [vmem:[#allocation6 + $0x6e0] sm:$0xff]
    %v1559 = vld [vmem:[#allocation6 + $0x6e8] sm:$0xff]
    %v1560 = vld [vmem:[#allocation6 + $0x6f0] sm:$0xff]
    %v1561 = vld [vmem:[#allocation6 + $0x6f8] sm:$0xff]
    %v1562 = vld [vmem:[#allocation6 + $0x700] sm:$0xff]
    %v1563 = vld [vmem:[#allocation6 + $0x708] sm:$0xff]
    %v1564 = vld [vmem:[#allocation6 + $0x710] sm:$0xff]
    %v1565 = vld [vmem:[#allocation6 + $0x718] sm:$0xff]
    %v1566 = vld [vmem:[#allocation6 + $0x720] sm:$0xff]
    %v1567 = vld [vmem:[#allocation6 + $0x728] sm:$0xff]
    %v1568 = vld [vmem:[#allocation6 + $0x730] sm:$0xff]
    %v1569 = vld [vmem:[#allocation6 + $0x738] sm:$0xff]
    %v1570 = vld [vmem:[#allocation6 + $0x740] sm:$0xff]
    %v1571 = vld [vmem:[#allocation6 + $0x748] sm:$0xff]
    %v1572 = vld [vmem:[#allocation6 + $0x750] sm:$0xff]
    %v1573 = vld [vmem:[#allocation6 + $0x758] sm:$0xff]
    %v1574 = vld [vmem:[#allocation6 + $0x760] sm:$0xff]
    %v1575 = vld [vmem:[#allocation6 + $0x768] sm:$0xff]
    %v1576 = vld [vmem:[#allocation6 + $0x770] sm:$0xff]
    %v1577 = vld [vmem:[#allocation6 + $0x778] sm:$0xff]
    %v1578 = vld [vmem:[#allocation6 + $0x780] sm:$0xff]
    %v1579 = vld [vmem:[#allocation6 + $0x788] sm:$0xff]
    %v1580 = vld [vmem:[#allocation6 + $0x790] sm:$0xff]
    %v1581 = vld [vmem:[#allocation6 + $0x798] sm:$0xff]
    %v1582 = vld [vmem:[#allocation6 + $0x7a0] sm:$0xff]
    %v1583 = vld [vmem:[#allocation6 + $0x7a8] sm:$0xff]
    %v1584 = vld [vmem:[#allocation6 + $0x7b0] sm:$0xff]
    %v1585 = vld [vmem:[#allocation6 + $0x7b8] sm:$0xff]
    %v1586 = vld [vmem:[#allocation6 + $0x7c0] sm:$0xff]
    %v1587 = vld [vmem:[#allocation6 + $0x7c8] sm:$0xff]
    %v1588 = vld [vmem:[#allocation6 + $0x7d0] sm:$0xff]
    %v1589 = vld [vmem:[#allocation6 + $0x7d8] sm:$0xff]
    %v1590 = vld [vmem:[#allocation6 + $0x7e0] sm:$0xff]
    %v1591 = vld [vmem:[#allocation6 + $0x7e8] sm:$0xff]
    %v1592 = vld [vmem:[#allocation6 + $0x7f0] sm:$0xff]
    %v1593 = vld [vmem:[#allocation6 + $0x7f8] sm:$0xff]
    %1594 = vmatpush.msra.mxu0 %v1458
    %1595 = vmatpush.msra.mxu0 %v1450
    %1596 = vmatpush.msra.mxu0 %v1442
    %1597 = vmatpush.msra.mxu0 %v1434
    %1598 = vmatpush.msra.mxu0 %v1426
    %1599 = vmatpush.msra.mxu0 %v1418
    %1600 = vmatpush.msra.mxu0 %v1410
    %1601 = vmatpush.msra.mxu0 %v1402
    %1602 = vmatpush.msra.mxu0 %v1394
    %1603 = vmatpush.msra.mxu0 %v1386
    %1604 = vmatpush.msra.mxu0 %v1378
    %1605 = vmatpush.msra.mxu0 %v1370
    %1606 = vmatpush.msra.mxu0 %v1362
    %1607 = vmatpush.msra.mxu0 %v1354
    %1608 = vmatpush.msra.mxu0 %v1346
    %1609 = vmatpush.msra.mxu0 %v1338
    %1610 = vmatmul.f32.gmra.mxu0 %v1320
    %v1611 = vpop.f32.mrf.mxu0
    %v1612 = vadd.f32 0.0, %v1611
    %1613 = vdwg.mxu0
    %1614 = vmatpush.msra.mxu0 %v1586
    %1615 = vmatpush.msra.mxu0 %v1578
    %1616 = vmatpush.msra.mxu0 %v1570
    %1617 = vmatpush.msra.mxu0 %v1562
    %1618 = vmatpush.msra.mxu0 %v1554
    %1619 = vmatpush.msra.mxu0 %v1546
    %1620 = vmatpush.msra.mxu0 %v1538
    %1621 = vmatpush.msra.mxu0 %v1530
    %1622 = vmatpush.msra.mxu0 %v1522
    %1623 = vmatpush.msra.mxu0 %v1514
    %1624 = vmatpush.msra.mxu0 %v1506
    %1625 = vmatpush.msra.mxu0 %v1498
    %1626 = vmatpush.msra.mxu0 %v1490
    %1627 = vmatpush.msra.mxu0 %v1482
    %1628 = vmatpush.msra.mxu0 %v1474
    %1629 = vmatpush.msra.mxu0 %v1466
    %1630 = vmatmul.f32.gmra.mxu0 %v1321
    %v1631 = vpop.f32.mrf.mxu0
    %v1632 = vadd.f32 %v1612, %v1631
    %1633 = vdwg.mxu0
    %1634 = vmatpush.msra.mxu0 %v1459
    %1635 = vmatpush.msra.mxu0 %v1451
    %1636 = vmatpush.msra.mxu0 %v1443
    %1637 = vmatpush.msra.mxu0 %v1435
    %1638 = vmatpush.msra.mxu0 %v1427
    %1639 = vmatpush.msra.mxu0 %v1419
    %1640 = vmatpush.msra.mxu0 %v1411
    %1641 = vmatpush.msra.mxu0 %v1403
    %1642 = vmatpush.msra.mxu0 %v1395
    %1643 = vmatpush.msra.mxu0 %v1387
    %1644 = vmatpush.msra.mxu0 %v1379
    %1645 = vmatpush.msra.mxu0 %v1371
    %1646 = vmatpush.msra.mxu0 %v1363
    %1647 = vmatpush.msra.mxu0 %v1355
    %1648 = vmatpush.msra.mxu0 %v1347
    %1649 = vmatpush.msra.mxu0 %v1339
    %1650 = vmatmul.f32.gmra.mxu0 %v1320
    %v1651 = vpop.f32.mrf.mxu0
    %v1652 = vadd.f32 0.0, %v1651
    %1653 = vdwg.mxu0
    %1654 = vmatpush.msra.mxu0 %v1587
    %1655 = vmatpush.msra.mxu0 %v1579
    %1656 = vmatpush.msra.mxu0 %v1571
    %1657 = vmatpush.msra.mxu0 %v1563
    %1658 = vmatpush.msra.mxu0 %v1555
    %1659 = vmatpush.msra.mxu0 %v1547
    %1660 = vmatpush.msra.mxu0 %v1539
    %1661 = vmatpush.msra.mxu0 %v1531
    %1662 = vmatpush.msra.mxu0 %v1523
    %1663 = vmatpush.msra.mxu0 %v1515
    %1664 = vmatpush.msra.mxu0 %v1507
    %1665 = vmatpush.msra.mxu0 %v1499
    %1666 = vmatpush.msra.mxu0 %v1491
    %1667 = vmatpush.msra.mxu0 %v1483
    %1668 = vmatpush.msra.mxu0 %v1475
    %1669 = vmatpush.msra.mxu0 %v1467
    %1670 = vmatmul.f32.gmra.mxu0 %v1321
    %v1671 = vpop.f32.mrf.mxu0
    %v1672 = vadd.f32 %v1652, %v1671
    %1673 = vdwg.mxu0
    %1674 = vmatpush.msra.mxu0 %v1460
    %1675 = vmatpush.msra.mxu0 %v1452
    %1676 = vmatpush.msra.mxu0 %v1444
    %1677 = vmatpush.msra.mxu0 %v1436
    %1678 = vmatpush.msra.mxu0 %v1428
    %1679 = vmatpush.msra.mxu0 %v1420
    %1680 = vmatpush.msra.mxu0 %v1412
    %1681 = vmatpush.msra.mxu0 %v1404
    %1682 = vmatpush.msra.mxu0 %v1396
    %1683 = vmatpush.msra.mxu0 %v1388
    %1684 = vmatpush.msra.mxu0 %v1380
    %1685 = vmatpush.msra.mxu0 %v1372
    %1686 = vmatpush.msra.mxu0 %v1364
    %1687 = vmatpush.msra.mxu0 %v1356
    %1688 = vmatpush.msra.mxu0 %v1348
    %1689 = vmatpush.msra.mxu0 %v1340
    %1690 = vmatmul.f32.gmra.mxu0 %v1320
    %v1691 = vpop.f32.mrf.mxu0
    %v1692 = vadd.f32 0.0, %v1691
    %1693 = vdwg.mxu0
    %1694 = vmatpush.msra.mxu0 %v1588
    %1695 = vmatpush.msra.mxu0 %v1580
    %1696 = vmatpush.msra.mxu0 %v1572
    %1697 = vmatpush.msra.mxu0 %v1564
    %1698 = vmatpush.msra.mxu0 %v1556
    %1699 = vmatpush.msra.mxu0 %v1548
    %1700 = vmatpush.msra.mxu0 %v1540
    %1701 = vmatpush.msra.mxu0 %v1532
    %1702 = vmatpush.msra.mxu0 %v1524
    %1703 = vmatpush.msra.mxu0 %v1516
    %1704 = vmatpush.msra.mxu0 %v1508
    %1705 = vmatpush.msra.mxu0 %v1500
    %1706 = vmatpush.msra.mxu0 %v1492
    %1707 = vmatpush.msra.mxu0 %v1484
    %1708 = vmatpush.msra.mxu0 %v1476
    %1709 = vmatpush.msra.mxu0 %v1468
    %1710 = vmatmul.f32.gmra.mxu0 %v1321
    %v1711 = vpop.f32.mrf.mxu0
    %v1712 = vadd.f32 %v1692, %v1711
    %1713 = vdwg.mxu0
    %1714 = vmatpush.msra.mxu0 %v1461
    %1715 = vmatpush.msra.mxu0 %v1453
    %1716 = vmatpush.msra.mxu0 %v1445
    %1717 = vmatpush.msra.mxu0 %v1437
    %1718 = vmatpush.msra.mxu0 %v1429
    %1719 = vmatpush.msra.mxu0 %v1421
    %1720 = vmatpush.msra.mxu0 %v1413
    %1721 = vmatpush.msra.mxu0 %v1405
    %1722 = vmatpush.msra.mxu0 %v1397
    %1723 = vmatpush.msra.mxu0 %v1389
    %1724 = vmatpush.msra.mxu0 %v1381
    %1725 = vmatpush.msra.mxu0 %v1373
    %1726 = vmatpush.msra.mxu0 %v1365
    %1727 = vmatpush.msra.mxu0 %v1357
    %1728 = vmatpush.msra.mxu0 %v1349
    %1729 = vmatpush.msra.mxu0 %v1341
    %1730 = vmatmul.f32.gmra.mxu0 %v1320
    %v1731 = vpop.f32.mrf.mxu0
    %v1732 = vadd.f32 0.0, %v1731
    %1733 = vdwg.mxu0
    %1734 = vmatpush.msra.mxu0 %v1589
    %1735 = vmatpush.msra.mxu0 %v1581
    %1736 = vmatpush.msra.mxu0 %v1573
    %1737 = vmatpush.msra.mxu0 %v1565
    %1738 = vmatpush.msra.mxu0 %v1557
    %1739 = vmatpush.msra.mxu0 %v1549
    %1740 = vmatpush.msra.mxu0 %v1541
    %1741 = vmatpush.msra.mxu0 %v1533
    %1742 = vmatpush.msra.mxu0 %v1525
    %1743 = vmatpush.msra.mxu0 %v1517
    %1744 = vmatpush.msra.mxu0 %v1509
    %1745 = vmatpush.msra.mxu0 %v1501
    %1746 = vmatpush.msra.mxu0 %v1493
    %1747 = vmatpush.msra.mxu0 %v1485
    %1748 = vmatpush.msra.mxu0 %v1477
    %1749 = vmatpush.msra.mxu0 %v1469
    %1750 = vmatmul.f32.gmra.mxu0 %v1321
    %v1751 = vpop.f32.mrf.mxu0
    %v1752 = vadd.f32 %v1732, %v1751
    %1753 = vdwg.mxu0
    %1754 = vmatpush.msra.mxu0 %v1462
    %1755 = vmatpush.msra.mxu0 %v1454
    %1756 = vmatpush.msra.mxu0 %v1446
    %1757 = vmatpush.msra.mxu0 %v1438
    %1758 = vmatpush.msra.mxu0 %v1430
    %1759 = vmatpush.msra.mxu0 %v1422
    %1760 = vmatpush.msra.mxu0 %v1414
    %1761 = vmatpush.msra.mxu0 %v1406
    %1762 = vmatpush.msra.mxu0 %v1398
    %1763 = vmatpush.msra.mxu0 %v1390
    %1764 = vmatpush.msra.mxu0 %v1382
    %1765 = vmatpush.msra.mxu0 %v1374
    %1766 = vmatpush.msra.mxu0 %v1366
    %1767 = vmatpush.msra.mxu0 %v1358
    %1768 = vmatpush.msra.mxu0 %v1350
    %1769 = vmatpush.msra.mxu0 %v1342
    %1770 = vmatmul.f32.gmra.mxu0 %v1320
    %v1771 = vpop.f32.mrf.mxu0
    %v1772 = vadd.f32 0.0, %v1771
    %1773 = vdwg.mxu0
    %1774 = vmatpush.msra.mxu0 %v1590
    %1775 = vmatpush.msra.mxu0 %v1582
    %1776 = vmatpush.msra.mxu0 %v1574
    %1777 = vmatpush.msra.mxu0 %v1566
    %1778 = vmatpush.msra.mxu0 %v1558
    %1779 = vmatpush.msra.mxu0 %v1550
    %1780 = vmatpush.msra.mxu0 %v1542
    %1781 = vmatpush.msra.mxu0 %v1534
    %1782 = vmatpush.msra.mxu0 %v1526
    %1783 = vmatpush.msra.mxu0 %v1518
    %1784 = vmatpush.msra.mxu0 %v1510
    %1785 = vmatpush.msra.mxu0 %v1502
    %1786 = vmatpush.msra.mxu0 %v1494
    %1787 = vmatpush.msra.mxu0 %v1486
    %1788 = vmatpush.msra.mxu0 %v1478
    %1789 = vmatpush.msra.mxu0 %v1470
    %1790 = vmatmul.f32.gmra.mxu0 %v1321
    %v1791 = vpop.f32.mrf.mxu0
    %v1792 = vadd.f32 %v1772, %v1791
    %1793 = vdwg.mxu0
    %1794 = vmatpush.msra.mxu0 %v1463
    %1795 = vmatpush.msra.mxu0 %v1455
    %1796 = vmatpush.msra.mxu0 %v1447
    %1797 = vmatpush.msra.mxu0 %v1439
    %1798 = vmatpush.msra.mxu0 %v1431
    %1799 = vmatpush.msra.mxu0 %v1423
    %1800 = vmatpush.msra.mxu0 %v1415
    %1801 = vmatpush.msra.mxu0 %v1407
    %1802 = vmatpush.msra.mxu0 %v1399
    %1803 = vmatpush.msra.mxu0 %v1391
    %1804 = vmatpush.msra.mxu0 %v1383
    %1805 = vmatpush.msra.mxu0 %v1375
    %1806 = vmatpush.msra.mxu0 %v1367
    %1807 = vmatpush.msra.mxu0 %v1359
    %1808 = vmatpush.msra.mxu0 %v1351
    %1809 = vmatpush.msra.mxu0 %v1343
    %1810 = vmatmul.f32.gmra.mxu0 %v1320
    %v1811 = vpop.f32.mrf.mxu0
    %v1812 = vadd.f32 0.0, %v1811
    %1813 = vdwg.mxu0
    %1814 = vmatpush.msra.mxu0 %v1591
    %1815 = vmatpush.msra.mxu0 %v1583
    %1816 = vmatpush.msra.mxu0 %v1575
    %1817 = vmatpush.msra.mxu0 %v1567
    %1818 = vmatpush.msra.mxu0 %v1559
    %1819 = vmatpush.msra.mxu0 %v1551
    %1820 = vmatpush.msra.mxu0 %v1543
    %1821 = vmatpush.msra.mxu0 %v1535
    %1822 = vmatpush.msra.mxu0 %v1527
    %1823 = vmatpush.msra.mxu0 %v1519
    %1824 = vmatpush.msra.mxu0 %v1511
    %1825 = vmatpush.msra.mxu0 %v1503
    %1826 = vmatpush.msra.mxu0 %v1495
    %1827 = vmatpush.msra.mxu0 %v1487
    %1828 = vmatpush.msra.mxu0 %v1479
    %1829 = vmatpush.msra.mxu0 %v1471
    %1830 = vmatmul.f32.gmra.mxu0 %v1321
    %v1831 = vpop.f32.mrf.mxu0
    %v1832 = vadd.f32 %v1812, %v1831
    %1833 = vdwg.mxu0
    %1834 = vmatpush.msra.mxu0 %v1464
    %1835 = vmatpush.msra.mxu0 %v1456
    %1836 = vmatpush.msra.mxu0 %v1448
    %1837 = vmatpush.msra.mxu0 %v1440
    %1838 = vmatpush.msra.mxu0 %v1432
    %1839 = vmatpush.msra.mxu0 %v1424
    %1840 = vmatpush.msra.mxu0 %v1416
    %1841 = vmatpush.msra.mxu0 %v1408
    %1842 = vmatpush.msra.mxu0 %v1400
    %1843 = vmatpush.msra.mxu0 %v1392
    %1844 = vmatpush.msra.mxu0 %v1384
    %1845 = vmatpush.msra.mxu0 %v1376
    %1846 = vmatpush.msra.mxu0 %v1368
    %1847 = vmatpush.msra.mxu0 %v1360
    %1848 = vmatpush.msra.mxu0 %v1352
    %1849 = vmatpush.msra.mxu0 %v1344
    %1850 = vmatmul.f32.gmra.mxu0 %v1320
    %v1851 = vpop.f32.mrf.mxu0
    %v1852 = vadd.f32 0.0, %v1851
    %1853 = vdwg.mxu0
    %1854 = vmatpush.msra.mxu0 %v1592
    %1855 = vmatpush.msra.mxu0 %v1584
    %1856 = vmatpush.msra.mxu0 %v1576
    %1857 = vmatpush.msra.mxu0 %v1568
    %1858 = vmatpush.msra.mxu0 %v1560
    %1859 = vmatpush.msra.mxu0 %v1552
    %1860 = vmatpush.msra.mxu0 %v1544
    %1861 = vmatpush.msra.mxu0 %v1536
    %1862 = vmatpush.msra.mxu0 %v1528
    %1863 = vmatpush.msra.mxu0 %v1520
    %1864 = vmatpush.msra.mxu0 %v1512
    %1865 = vmatpush.msra.mxu0 %v1504
    %1866 = vmatpush.msra.mxu0 %v1496
    %1867 = vmatpush.msra.mxu0 %v1488
    %1868 = vmatpush.msra.mxu0 %v1480
    %1869 = vmatpush.msra.mxu0 %v1472
    %1870 = vmatmul.f32.gmra.mxu0 %v1321
    %v1871 = vpop.f32.mrf.mxu0
    %v1872 = vadd.f32 %v1852, %v1871
    %1873 = vdwg.mxu0
    %1874 = vmatpush.msra.mxu0 %v1465
    %1875 = vmatpush.msra.mxu0 %v1457
    %1876 = vmatpush.msra.mxu0 %v1449
    %1877 = vmatpush.msra.mxu0 %v1441
    %1878 = vmatpush.msra.mxu0 %v1433
    %1879 = vmatpush.msra.mxu0 %v1425
    %1880 = vmatpush.msra.mxu0 %v1417
    %1881 = vmatpush.msra.mxu0 %v1409
    %1882 = vmatpush.msra.mxu0 %v1401
    %1883 = vmatpush.msra.mxu0 %v1393
    %1884 = vmatpush.msra.mxu0 %v1385
    %1885 = vmatpush.msra.mxu0 %v1377
    %1886 = vmatpush.msra.mxu0 %v1369
    %1887 = vmatpush.msra.mxu0 %v1361
    %1888 = vmatpush.msra.mxu0 %v1353
    %1889 = vmatpush.msra.mxu0 %v1345
    %1890 = vmatmul.f32.gmra.mxu0 %v1320
    %v1891 = vpop.f32.mrf.mxu0
    %v1892 = vadd.f32 0.0, %v1891
    %1893 = vdwg.mxu0
    %1894 = vmatpush.msra.mxu0 %v1593
    %1895 = vmatpush.msra.mxu0 %v1585
    %1896 = vmatpush.msra.mxu0 %v1577
    %1897 = vmatpush.msra.mxu0 %v1569
    %1898 = vmatpush.msra.mxu0 %v1561
    %1899 = vmatpush.msra.mxu0 %v1553
    %1900 = vmatpush.msra.mxu0 %v1545
    %1901 = vmatpush.msra.mxu0 %v1537
    %1902 = vmatpush.msra.mxu0 %v1529
    %1903 = vmatpush.msra.mxu0 %v1521
    %1904 = vmatpush.msra.mxu0 %v1513
    %1905 = vmatpush.msra.mxu0 %v1505
    %1906 = vmatpush.msra.mxu0 %v1497
    %1907 = vmatpush.msra.mxu0 %v1489
    %1908 = vmatpush.msra.mxu0 %v1481
    %1909 = vmatpush.msra.mxu0 %v1473
    %1910 = vmatmul.f32.gmra.mxu0 %v1321
    %v1911 = vpop.f32.mrf.mxu0
    %v1912 = vadd.f32 %v1892, %v1911
    %1913 = vdwg.mxu0
    %v1914 = vadd.f32 %v1330, %v1632
    %v1915 = vadd.f32 %v1331, %v1672
    %v1916 = vadd.f32 %v1332, %v1712
    %v1917 = vadd.f32 %v1333, %v1752
    %v1918 = vadd.f32 %v1334, %v1792
    %v1919 = vadd.f32 %v1335, %v1832
    %v1920 = vadd.f32 %v1336, %v1872
    %v1921 = vadd.f32 %v1337, %v1912
    %v1922 = vxor.u32 %v1914, 2147483648
    %v1923 = vxor.u32 %v1915, 2147483648
    %v1924 = vxor.u32 %v1916, 2147483648
    %v1925 = vxor.u32 %v1917, 2147483648
    %v1926 = vxor.u32 %v1920, 2147483648
    %v1927 = vxor.u32 %v1921, 2147483648
    %v1928 = vmul.f32 %v1922, 1.442695
    %v1929 = vpow.pop %v1928
    %v1930 = vmul.f32 %v1923, 1.442695
    %v1931 = vpow.pop %v1930
    %v1932 = vmul.f32 %v1924, 1.442695
    %v1933 = vpow.pop %v1932
    %v1934 = vmul.f32 %v1925, 1.442695
    %v1935 = vpow.pop %v1934
    %v1936 = vmul.f32 %v1926, 1.442695
    %v1937 = vpow.pop %v1936
    %v1938 = vmul.f32 %v1927, 1.442695
    %v1939 = vpow.pop %v1938
    %v1940 = vadd.f32 %v1929, 1.0
    %v1941 = vadd.f32 %v1931, 1.0
    %v1942 = vadd.f32 %v1933, 1.0
    %v1943 = vadd.f32 %v1935, 1.0
    %v1944 = vadd.f32 %v1937, 1.0
    %v1945 = vadd.f32 %v1939, 1.0
    %v1946 = vrcp.pop %v1940
    %v1947 = vmul.f32 %v1940, %v1946
    %v1948 = vsub.f32 1.0, %v1947
    %v1949 = vmul.f32 %v1946, %v1948
    %v1950 = vadd.f32 %v1946, %v1949
    %vm1951 = vweird.f32 %v1940
    %vm1952 = vweird.f32 %v1946
    %vm1953 = vmor %vm1951, %vm1952
    %v1954 = vsel %vm1953, %v1946, %v1950
    %v1955 = vand.u32 2147483647, %v1940
    %vm1956 = vcmp.eq.f32.partialorder %v1955, 8.507059e+37
    %v1957 = vand.u32 %v1940, 2147483648
    %v1958 = vor.u32 1.1754944e-38, %v1957
    %v1959 = vsel %vm1956, %v1958, %v1954
    %v1960 = vmul.f32 1.0, %v1959
    %v1961 = vrcp.pop %v1941
    %v1962 = vmul.f32 %v1941, %v1961
    %v1963 = vsub.f32 1.0, %v1962
    %v1964 = vmul.f32 %v1961, %v1963
    %v1965 = vadd.f32 %v1961, %v1964
    %vm1966 = vweird.f32 %v1941
    %vm1967 = vweird.f32 %v1961
    %vm1968 = vmor %vm1966, %vm1967
    %v1969 = vsel %vm1968, %v1961, %v1965
    %v1970 = vand.u32 2147483647, %v1941
    %vm1971 = vcmp.eq.f32.partialorder %v1970, 8.507059e+37
    %v1972 = vand.u32 %v1941, 2147483648
    %v1973 = vor.u32 1.1754944e-38, %v1972
    %v1974 = vsel %vm1971, %v1973, %v1969
    %v1975 = vmul.f32 1.0, %v1974
    %v1976 = vrcp.pop %v1942
    %v1977 = vmul.f32 %v1942, %v1976
    %v1978 = vsub.f32 1.0, %v1977
    %v1979 = vmul.f32 %v1976, %v1978
    %v1980 = vadd.f32 %v1976, %v1979
    %vm1981 = vweird.f32 %v1942
    %vm1982 = vweird.f32 %v1976
    %vm1983 = vmor %vm1981, %vm1982
    %v1984 = vsel %vm1983, %v1976, %v1980
    %v1985 = vand.u32 2147483647, %v1942
    %vm1986 = vcmp.eq.f32.partialorder %v1985, 8.507059e+37
    %v1987 = vand.u32 %v1942, 2147483648
    %v1988 = vor.u32 1.1754944e-38, %v1987
    %v1989 = vsel %vm1986, %v1988, %v1984
    %v1990 = vmul.f32 1.0, %v1989
    %v1991 = vrcp.pop %v1943
    %v1992 = vmul.f32 %v1943, %v1991
    %v1993 = vsub.f32 1.0, %v1992
    %v1994 = vmul.f32 %v1991, %v1993
    %v1995 = vadd.f32 %v1991, %v1994
    %vm1996 = vweird.f32 %v1943
    %vm1997 = vweird.f32 %v1991
    %vm1998 = vmor %vm1996, %vm1997
    %v1999 = vsel %vm1998, %v1991, %v1995
    %v2000 = vand.u32 2147483647, %v1943
    %vm2001 = vcmp.eq.f32.partialorder %v2000, 8.507059e+37
    %v2002 = vand.u32 %v1943, 2147483648
    %v2003 = vor.u32 1.1754944e-38, %v2002
    %v2004 = vsel %vm2001, %v2003, %v1999
    %v2005 = vmul.f32 1.0, %v2004
    %v2006 = vrcp.pop %v1944
    %v2007 = vmul.f32 %v1944, %v2006
    %v2008 = vsub.f32 1.0, %v2007
    %v2009 = vmul.f32 %v2006, %v2008
    %v2010 = vadd.f32 %v2006, %v2009
    %vm2011 = vweird.f32 %v1944
    %vm2012 = vweird.f32 %v2006
    %vm2013 = vmor %vm2011, %vm2012
    %v2014 = vsel %vm2013, %v2006, %v2010
    %v2015 = vand.u32 2147483647, %v1944
    %vm2016 = vcmp.eq.f32.partialorder %v2015, 8.507059e+37
    %v2017 = vand.u32 %v1944, 2147483648
    %v2018 = vor.u32 1.1754944e-38, %v2017
    %v2019 = vsel %vm2016, %v2018, %v2014
    %v2020 = vmul.f32 1.0, %v2019
    %v2021 = vrcp.pop %v1945
    %v2022 = vmul.f32 %v1945, %v2021
    %v2023 = vsub.f32 1.0, %v2022
    %v2024 = vmul.f32 %v2021, %v2023
    %v2025 = vadd.f32 %v2021, %v2024
    %vm2026 = vweird.f32 %v1945
    %vm2027 = vweird.f32 %v2021
    %vm2028 = vmor %vm2026, %vm2027
    %v2029 = vsel %vm2028, %v2021, %v2025
    %v2030 = vand.u32 2147483647, %v1945
    %vm2031 = vcmp.eq.f32.partialorder %v2030, 8.507059e+37
    %v2032 = vand.u32 %v1945, 2147483648
    %v2033 = vor.u32 1.1754944e-38, %v2032
    %v2034 = vsel %vm2031, %v2033, %v2029
    %v2035 = vmul.f32 1.0, %v2034
    %v2036 = vtanh.pop %v1918
    %v2037 = vtanh.pop %v1919
    %v2038 = vmul.f32 %v1990, %v1316
    %v2039 = vmul.f32 %v2005, %v1317
    %v2040 = vmul.f32 %v1960, %v2036
    %v2041 = vmul.f32 %v1975, %v2037
    %v2042 = vadd.f32 %v2038, %v2040
    %v2043 = vadd.f32 %v2039, %v2041
    %v2044 = vtanh.pop %v2042
    %v2045 = vtanh.pop %v2043
    %v2046 = vmul.f32 %v2020, %v2044
    %v2047 = vmul.f32 %v2035, %v2045
    %s2048 = smul.u32 1, 2
    %s2049 = smul.addr %s2048, 8
    %s2050 = scalar_lea.vmem [#allocation3], %s2049
    %2051 = vst [vmem:[%s2050] sm:$0xff] %v2046
    %2052 = vst [vmem:[%s2050 + $0x8] sm:$0xff] %v2047
    %s2053 = smul.u32 2, 8
    %s2054 = smul.addr %s2053, 8
    %s2055 = scalar_lea.vmem [#allocation2], %s2054
    %v2056 = vld [vmem:[%s2055] sm:$0xff]
    %v2057 = vld [vmem:[%s2055 + $0x8] sm:$0xff]
    %v2058 = vld [vmem:[%s2055 + $0x10] sm:$0xff]
    %v2059 = vld [vmem:[%s2055 + $0x18] sm:$0xff]
    %v2060 = vld [vmem:[%s2055 + $0x20] sm:$0xff]
    %v2061 = vld [vmem:[%s2055 + $0x28] sm:$0xff]
    %v2062 = vld [vmem:[%s2055 + $0x30] sm:$0xff]
    %v2063 = vld [vmem:[%s2055 + $0x38] sm:$0xff]
    %v2064 = vld [vmem:[#allocation6] sm:$0xff]
    %v2065 = vld [vmem:[#allocation6 + $0x8] sm:$0xff]
    %v2066 = vld [vmem:[#allocation6 + $0x10] sm:$0xff]
    %v2067 = vld [vmem:[#allocation6 + $0x18] sm:$0xff]
    %v2068 = vld [vmem:[#allocation6 + $0x20] sm:$0xff]
    %v2069 = vld [vmem:[#allocation6 + $0x28] sm:$0xff]
    %v2070 = vld [vmem:[#allocation6 + $0x30] sm:$0xff]
    %v2071 = vld [vmem:[#allocation6 + $0x38] sm:$0xff]
    %v2072 = vld [vmem:[#allocation6 + $0x40] sm:$0xff]
    %v2073 = vld [vmem:[#allocation6 + $0x48] sm:$0xff]
    %v2074 = vld [vmem:[#allocation6 + $0x50] sm:$0xff]
    %v2075 = vld [vmem:[#allocation6 + $0x58] sm:$0xff]
    %v2076 = vld [vmem:[#allocation6 + $0x60] sm:$0xff]
    %v2077 = vld [vmem:[#allocation6 + $0x68] sm:$0xff]
    %v2078 = vld [vmem:[#allocation6 + $0x70] sm:$0xff]
    %v2079 = vld [vmem:[#allocation6 + $0x78] sm:$0xff]
    %v2080 = vld [vmem:[#allocation6 + $0x80] sm:$0xff]
    %v2081 = vld [vmem:[#allocation6 + $0x88] sm:$0xff]
    %v2082 = vld [vmem:[#allocation6 + $0x90] sm:$0xff]
    %v2083 = vld [vmem:[#allocation6 + $0x98] sm:$0xff]
    %v2084 = vld [vmem:[#allocation6 + $0xa0] sm:$0xff]
    %v2085 = vld [vmem:[#allocation6 + $0xa8] sm:$0xff]
    %v2086 = vld [vmem:[#allocation6 + $0xb0] sm:$0xff]
    %v2087 = vld [vmem:[#allocation6 + $0xb8] sm:$0xff]
    %v2088 = vld [vmem:[#allocation6 + $0xc0] sm:$0xff]
    %v2089 = vld [vmem:[#allocation6 + $0xc8] sm:$0xff]
    %v2090 = vld [vmem:[#allocation6 + $0xd0] sm:$0xff]
    %v2091 = vld [vmem:[#allocation6 + $0xd8] sm:$0xff]
    %v2092 = vld [vmem:[#allocation6 + $0xe0] sm:$0xff]
    %v2093 = vld [vmem:[#allocation6 + $0xe8] sm:$0xff]
    %v2094 = vld [vmem:[#allocation6 + $0xf0] sm:$0xff]
    %v2095 = vld [vmem:[#allocation6 + $0xf8] sm:$0xff]
    %v2096 = vld [vmem:[#allocation6 + $0x100] sm:$0xff]
    %v2097 = vld [vmem:[#allocation6 + $0x108] sm:$0xff]
    %v2098 = vld [vmem:[#allocation6 + $0x110] sm:$0xff]
    %v2099 = vld [vmem:[#allocation6 + $0x118] sm:$0xff]
    %v2100 = vld [vmem:[#allocation6 + $0x120] sm:$0xff]
    %v2101 = vld [vmem:[#allocation6 + $0x128] sm:$0xff]
    %v2102 = vld [vmem:[#allocation6 + $0x130] sm:$0xff]
    %v2103 = vld [vmem:[#allocation6 + $0x138] sm:$0xff]
    %v2104 = vld [vmem:[#allocation6 + $0x140] sm:$0xff]
    %v2105 = vld [vmem:[#allocation6 + $0x148] sm:$0xff]
    %v2106 = vld [vmem:[#allocation6 + $0x150] sm:$0xff]
    %v2107 = vld [vmem:[#allocation6 + $0x158] sm:$0xff]
    %v2108 = vld [vmem:[#allocation6 + $0x160] sm:$0xff]
    %v2109 = vld [vmem:[#allocation6 + $0x168] sm:$0xff]
    %v2110 = vld [vmem:[#allocation6 + $0x170] sm:$0xff]
    %v2111 = vld [vmem:[#allocation6 + $0x178] sm:$0xff]
    %v2112 = vld [vmem:[#allocation6 + $0x180] sm:$0xff]
    %v2113 = vld [vmem:[#allocation6 + $0x188] sm:$0xff]
    %v2114 = vld [vmem:[#allocation6 + $0x190] sm:$0xff]
    %v2115 = vld [vmem:[#allocation6 + $0x198] sm:$0xff]
    %v2116 = vld [vmem:[#allocation6 + $0x1a0] sm:$0xff]
    %v2117 = vld [vmem:[#allocation6 + $0x1a8] sm:$0xff]
    %v2118 = vld [vmem:[#allocation6 + $0x1b0] sm:$0xff]
    %v2119 = vld [vmem:[#allocation6 + $0x1b8] sm:$0xff]
    %v2120 = vld [vmem:[#allocation6 + $0x1c0] sm:$0xff]
    %v2121 = vld [vmem:[#allocation6 + $0x1c8] sm:$0xff]
    %v2122 = vld [vmem:[#allocation6 + $0x1d0] sm:$0xff]
    %v2123 = vld [vmem:[#allocation6 + $0x1d8] sm:$0xff]
    %v2124 = vld [vmem:[#allocation6 + $0x1e0] sm:$0xff]
    %v2125 = vld [vmem:[#allocation6 + $0x1e8] sm:$0xff]
    %v2126 = vld [vmem:[#allocation6 + $0x1f0] sm:$0xff]
    %v2127 = vld [vmem:[#allocation6 + $0x1f8] sm:$0xff]
    %v2128 = vld [vmem:[#allocation6 + $0x200] sm:$0xff]
    %v2129 = vld [vmem:[#allocation6 + $0x208] sm:$0xff]
    %v2130 = vld [vmem:[#allocation6 + $0x210] sm:$0xff]
    %v2131 = vld [vmem:[#allocation6 + $0x218] sm:$0xff]
    %v2132 = vld [vmem:[#allocation6 + $0x220] sm:$0xff]
    %v2133 = vld [vmem:[#allocation6 + $0x228] sm:$0xff]
    %v2134 = vld [vmem:[#allocation6 + $0x230] sm:$0xff]
    %v2135 = vld [vmem:[#allocation6 + $0x238] sm:$0xff]
    %v2136 = vld [vmem:[#allocation6 + $0x240] sm:$0xff]
    %v2137 = vld [vmem:[#allocation6 + $0x248] sm:$0xff]
    %v2138 = vld [vmem:[#allocation6 + $0x250] sm:$0xff]
    %v2139 = vld [vmem:[#allocation6 + $0x258] sm:$0xff]
    %v2140 = vld [vmem:[#allocation6 + $0x260] sm:$0xff]
    %v2141 = vld [vmem:[#allocation6 + $0x268] sm:$0xff]
    %v2142 = vld [vmem:[#allocation6 + $0x270] sm:$0xff]
    %v2143 = vld [vmem:[#allocation6 + $0x278] sm:$0xff]
    %v2144 = vld [vmem:[#allocation6 + $0x280] sm:$0xff]
    %v2145 = vld [vmem:[#allocation6 + $0x288] sm:$0xff]
    %v2146 = vld [vmem:[#allocation6 + $0x290] sm:$0xff]
    %v2147 = vld [vmem:[#allocation6 + $0x298] sm:$0xff]
    %v2148 = vld [vmem:[#allocation6 + $0x2a0] sm:$0xff]
    %v2149 = vld [vmem:[#allocation6 + $0x2a8] sm:$0xff]
    %v2150 = vld [vmem:[#allocation6 + $0x2b0] sm:$0xff]
    %v2151 = vld [vmem:[#allocation6 + $0x2b8] sm:$0xff]
    %v2152 = vld [vmem:[#allocation6 + $0x2c0] sm:$0xff]
    %v2153 = vld [vmem:[#allocation6 + $0x2c8] sm:$0xff]
    %v2154 = vld [vmem:[#allocation6 + $0x2d0] sm:$0xff]
    %v2155 = vld [vmem:[#allocation6 + $0x2d8] sm:$0xff]
    %v2156 = vld [vmem:[#allocation6 + $0x2e0] sm:$0xff]
    %v2157 = vld [vmem:[#allocation6 + $0x2e8] sm:$0xff]
    %v2158 = vld [vmem:[#allocation6 + $0x2f0] sm:$0xff]
    %v2159 = vld [vmem:[#allocation6 + $0x2f8] sm:$0xff]
    %v2160 = vld [vmem:[#allocation6 + $0x300] sm:$0xff]
    %v2161 = vld [vmem:[#allocation6 + $0x308] sm:$0xff]
    %v2162 = vld [vmem:[#allocation6 + $0x310] sm:$0xff]
    %v2163 = vld [vmem:[#allocation6 + $0x318] sm:$0xff]
    %v2164 = vld [vmem:[#allocation6 + $0x320] sm:$0xff]
    %v2165 = vld [vmem:[#allocation6 + $0x328] sm:$0xff]
    %v2166 = vld [vmem:[#allocation6 + $0x330] sm:$0xff]
    %v2167 = vld [vmem:[#allocation6 + $0x338] sm:$0xff]
    %v2168 = vld [vmem:[#allocation6 + $0x340] sm:$0xff]
    %v2169 = vld [vmem:[#allocation6 + $0x348] sm:$0xff]
    %v2170 = vld [vmem:[#allocation6 + $0x350] sm:$0xff]
    %v2171 = vld [vmem:[#allocation6 + $0x358] sm:$0xff]
    %v2172 = vld [vmem:[#allocation6 + $0x360] sm:$0xff]
    %v2173 = vld [vmem:[#allocation6 + $0x368] sm:$0xff]
    %v2174 = vld [vmem:[#allocation6 + $0x370] sm:$0xff]
    %v2175 = vld [vmem:[#allocation6 + $0x378] sm:$0xff]
    %v2176 = vld [vmem:[#allocation6 + $0x380] sm:$0xff]
    %v2177 = vld [vmem:[#allocation6 + $0x388] sm:$0xff]
    %v2178 = vld [vmem:[#allocation6 + $0x390] sm:$0xff]
    %v2179 = vld [vmem:[#allocation6 + $0x398] sm:$0xff]
    %v2180 = vld [vmem:[#allocation6 + $0x3a0] sm:$0xff]
    %v2181 = vld [vmem:[#allocation6 + $0x3a8] sm:$0xff]
    %v2182 = vld [vmem:[#allocation6 + $0x3b0] sm:$0xff]
    %v2183 = vld [vmem:[#allocation6 + $0x3b8] sm:$0xff]
    %v2184 = vld [vmem:[#allocation6 + $0x3c0] sm:$0xff]
    %v2185 = vld [vmem:[#allocation6 + $0x3c8] sm:$0xff]
    %v2186 = vld [vmem:[#allocation6 + $0x3d0] sm:$0xff]
    %v2187 = vld [vmem:[#allocation6 + $0x3d8] sm:$0xff]
    %v2188 = vld [vmem:[#allocation6 + $0x3e0] sm:$0xff]
    %v2189 = vld [vmem:[#allocation6 + $0x3e8] sm:$0xff]
    %v2190 = vld [vmem:[#allocation6 + $0x3f0] sm:$0xff]
    %v2191 = vld [vmem:[#allocation6 + $0x3f8] sm:$0xff]
    %v2192 = vld [vmem:[#allocation6 + $0x400] sm:$0xff]
    %v2193 = vld [vmem:[#allocation6 + $0x408] sm:$0xff]
    %v2194 = vld [vmem:[#allocation6 + $0x410] sm:$0xff]
    %v2195 = vld [vmem:[#allocation6 + $0x418] sm:$0xff]
    %v2196 = vld [vmem:[#allocation6 + $0x420] sm:$0xff]
    %v2197 = vld [vmem:[#allocation6 + $0x428] sm:$0xff]
    %v2198 = vld [vmem:[#allocation6 + $0x430] sm:$0xff]
    %v2199 = vld [vmem:[#allocation6 + $0x438] sm:$0xff]
    %v2200 = vld [vmem:[#allocation6 + $0x440] sm:$0xff]
    %v2201 = vld [vmem:[#allocation6 + $0x448] sm:$0xff]
    %v2202 = vld [vmem:[#allocation6 + $0x450] sm:$0xff]
    %v2203 = vld [vmem:[#allocation6 + $0x458] sm:$0xff]
    %v2204 = vld [vmem:[#allocation6 + $0x460] sm:$0xff]
    %v2205 = vld [vmem:[#allocation6 + $0x468] sm:$0xff]
    %v2206 = vld [vmem:[#allocation6 + $0x470] sm:$0xff]
    %v2207 = vld [vmem:[#allocation6 + $0x478] sm:$0xff]
    %v2208 = vld [vmem:[#allocation6 + $0x480] sm:$0xff]
    %v2209 = vld [vmem:[#allocation6 + $0x488] sm:$0xff]
    %v2210 = vld [vmem:[#allocation6 + $0x490] sm:$0xff]
    %v2211 = vld [vmem:[#allocation6 + $0x498] sm:$0xff]
    %v2212 = vld [vmem:[#allocation6 + $0x4a0] sm:$0xff]
    %v2213 = vld [vmem:[#allocation6 + $0x4a8] sm:$0xff]
    %v2214 = vld [vmem:[#allocation6 + $0x4b0] sm:$0xff]
    %v2215 = vld [vmem:[#allocation6 + $0x4b8] sm:$0xff]
    %v2216 = vld [vmem:[#allocation6 + $0x4c0] sm:$0xff]
    %v2217 = vld [vmem:[#allocation6 + $0x4c8] sm:$0xff]
    %v2218 = vld [vmem:[#allocation6 + $0x4d0] sm:$0xff]
    %v2219 = vld [vmem:[#allocation6 + $0x4d8] sm:$0xff]
    %v2220 = vld [vmem:[#allocation6 + $0x4e0] sm:$0xff]
    %v2221 = vld [vmem:[#allocation6 + $0x4e8] sm:$0xff]
    %v2222 = vld [vmem:[#allocation6 + $0x4f0] sm:$0xff]
    %v2223 = vld [vmem:[#allocation6 + $0x4f8] sm:$0xff]
    %v2224 = vld [vmem:[#allocation6 + $0x500] sm:$0xff]
    %v2225 = vld [vmem:[#allocation6 + $0x508] sm:$0xff]
    %v2226 = vld [vmem:[#allocation6 + $0x510] sm:$0xff]
    %v2227 = vld [vmem:[#allocation6 + $0x518] sm:$0xff]
    %v2228 = vld [vmem:[#allocation6 + $0x520] sm:$0xff]
    %v2229 = vld [vmem:[#allocation6 + $0x528] sm:$0xff]
    %v2230 = vld [vmem:[#allocation6 + $0x530] sm:$0xff]
    %v2231 = vld [vmem:[#allocation6 + $0x538] sm:$0xff]
    %v2232 = vld [vmem:[#allocation6 + $0x540] sm:$0xff]
    %v2233 = vld [vmem:[#allocation6 + $0x548] sm:$0xff]
    %v2234 = vld [vmem:[#allocation6 + $0x550] sm:$0xff]
    %v2235 = vld [vmem:[#allocation6 + $0x558] sm:$0xff]
    %v2236 = vld [vmem:[#allocation6 + $0x560] sm:$0xff]
    %v2237 = vld [vmem:[#allocation6 + $0x568] sm:$0xff]
    %v2238 = vld [vmem:[#allocation6 + $0x570] sm:$0xff]
    %v2239 = vld [vmem:[#allocation6 + $0x578] sm:$0xff]
    %v2240 = vld [vmem:[#allocation6 + $0x580] sm:$0xff]
    %v2241 = vld [vmem:[#allocation6 + $0x588] sm:$0xff]
    %v2242 = vld [vmem:[#allocation6 + $0x590] sm:$0xff]
    %v2243 = vld [vmem:[#allocation6 + $0x598] sm:$0xff]
    %v2244 = vld [vmem:[#allocation6 + $0x5a0] sm:$0xff]
    %v2245 = vld [vmem:[#allocation6 + $0x5a8] sm:$0xff]
    %v2246 = vld [vmem:[#allocation6 + $0x5b0] sm:$0xff]
    %v2247 = vld [vmem:[#allocation6 + $0x5b8] sm:$0xff]
    %v2248 = vld [vmem:[#allocation6 + $0x5c0] sm:$0xff]
    %v2249 = vld [vmem:[#allocation6 + $0x5c8] sm:$0xff]
    %v2250 = vld [vmem:[#allocation6 + $0x5d0] sm:$0xff]
    %v2251 = vld [vmem:[#allocation6 + $0x5d8] sm:$0xff]
    %v2252 = vld [vmem:[#allocation6 + $0x5e0] sm:$0xff]
    %v2253 = vld [vmem:[#allocation6 + $0x5e8] sm:$0xff]
    %v2254 = vld [vmem:[#allocation6 + $0x5f0] sm:$0xff]
    %v2255 = vld [vmem:[#allocation6 + $0x5f8] sm:$0xff]
    %v2256 = vld [vmem:[#allocation6 + $0x600] sm:$0xff]
    %v2257 = vld [vmem:[#allocation6 + $0x608] sm:$0xff]
    %v2258 = vld [vmem:[#allocation6 + $0x610] sm:$0xff]
    %v2259 = vld [vmem:[#allocation6 + $0x618] sm:$0xff]
    %v2260 = vld [vmem:[#allocation6 + $0x620] sm:$0xff]
    %v2261 = vld [vmem:[#allocation6 + $0x628] sm:$0xff]
    %v2262 = vld [vmem:[#allocation6 + $0x630] sm:$0xff]
    %v2263 = vld [vmem:[#allocation6 + $0x638] sm:$0xff]
    %v2264 = vld [vmem:[#allocation6 + $0x640] sm:$0xff]
    %v2265 = vld [vmem:[#allocation6 + $0x648] sm:$0xff]
    %v2266 = vld [vmem:[#allocation6 + $0x650] sm:$0xff]
    %v2267 = vld [vmem:[#allocation6 + $0x658] sm:$0xff]
    %v2268 = vld [vmem:[#allocation6 + $0x660] sm:$0xff]
    %v2269 = vld [vmem:[#allocation6 + $0x668] sm:$0xff]
    %v2270 = vld [vmem:[#allocation6 + $0x670] sm:$0xff]
    %v2271 = vld [vmem:[#allocation6 + $0x678] sm:$0xff]
    %v2272 = vld [vmem:[#allocation6 + $0x680] sm:$0xff]
    %v2273 = vld [vmem:[#allocation6 + $0x688] sm:$0xff]
    %v2274 = vld [vmem:[#allocation6 + $0x690] sm:$0xff]
    %v2275 = vld [vmem:[#allocation6 + $0x698] sm:$0xff]
    %v2276 = vld [vmem:[#allocation6 + $0x6a0] sm:$0xff]
    %v2277 = vld [vmem:[#allocation6 + $0x6a8] sm:$0xff]
    %v2278 = vld [vmem:[#allocation6 + $0x6b0] sm:$0xff]
    %v2279 = vld [vmem:[#allocation6 + $0x6b8] sm:$0xff]
    %v2280 = vld [vmem:[#allocation6 + $0x6c0] sm:$0xff]
    %v2281 = vld [vmem:[#allocation6 + $0x6c8] sm:$0xff]
    %v2282 = vld [vmem:[#allocation6 + $0x6d0] sm:$0xff]
    %v2283 = vld [vmem:[#allocation6 + $0x6d8] sm:$0xff]
    %v2284 = vld [vmem:[#allocation6 + $0x6e0] sm:$0xff]
    %v2285 = vld [vmem:[#allocation6 + $0x6e8] sm:$0xff]
    %v2286 = vld [vmem:[#allocation6 + $0x6f0] sm:$0xff]
    %v2287 = vld [vmem:[#allocation6 + $0x6f8] sm:$0xff]
    %v2288 = vld [vmem:[#allocation6 + $0x700] sm:$0xff]
    %v2289 = vld [vmem:[#allocation6 + $0x708] sm:$0xff]
    %v2290 = vld [vmem:[#allocation6 + $0x710] sm:$0xff]
    %v2291 = vld [vmem:[#allocation6 + $0x718] sm:$0xff]
    %v2292 = vld [vmem:[#allocation6 + $0x720] sm:$0xff]
    %v2293 = vld [vmem:[#allocation6 + $0x728] sm:$0xff]
    %v2294 = vld [vmem:[#allocation6 + $0x730] sm:$0xff]
    %v2295 = vld [vmem:[#allocation6 + $0x738] sm:$0xff]
    %v2296 = vld [vmem:[#allocation6 + $0x740] sm:$0xff]
    %v2297 = vld [vmem:[#allocation6 + $0x748] sm:$0xff]
    %v2298 = vld [vmem:[#allocation6 + $0x750] sm:$0xff]
    %v2299 = vld [vmem:[#allocation6 + $0x758] sm:$0xff]
    %v2300 = vld [vmem:[#allocation6 + $0x760] sm:$0xff]
    %v2301 = vld [vmem:[#allocation6 + $0x768] sm:$0xff]
    %v2302 = vld [vmem:[#allocation6 + $0x770] sm:$0xff]
    %v2303 = vld [vmem:[#allocation6 + $0x778] sm:$0xff]
    %v2304 = vld [vmem:[#allocation6 + $0x780] sm:$0xff]
    %v2305 = vld [vmem:[#allocation6 + $0x788] sm:$0xff]
    %v2306 = vld [vmem:[#allocation6 + $0x790] sm:$0xff]
    %v2307 = vld [vmem:[#allocation6 + $0x798] sm:$0xff]
    %v2308 = vld [vmem:[#allocation6 + $0x7a0] sm:$0xff]
    %v2309 = vld [vmem:[#allocation6 + $0x7a8] sm:$0xff]
    %v2310 = vld [vmem:[#allocation6 + $0x7b0] sm:$0xff]
    %v2311 = vld [vmem:[#allocation6 + $0x7b8] sm:$0xff]
    %v2312 = vld [vmem:[#allocation6 + $0x7c0] sm:$0xff]
    %v2313 = vld [vmem:[#allocation6 + $0x7c8] sm:$0xff]
    %v2314 = vld [vmem:[#allocation6 + $0x7d0] sm:$0xff]
    %v2315 = vld [vmem:[#allocation6 + $0x7d8] sm:$0xff]
    %v2316 = vld [vmem:[#allocation6 + $0x7e0] sm:$0xff]
    %v2317 = vld [vmem:[#allocation6 + $0x7e8] sm:$0xff]
    %v2318 = vld [vmem:[#allocation6 + $0x7f0] sm:$0xff]
    %v2319 = vld [vmem:[#allocation6 + $0x7f8] sm:$0xff]
    %2320 = vmatpush.msra.mxu0 %v2184
    %2321 = vmatpush.msra.mxu0 %v2176
    %2322 = vmatpush.msra.mxu0 %v2168
    %2323 = vmatpush.msra.mxu0 %v2160
    %2324 = vmatpush.msra.mxu0 %v2152
    %2325 = vmatpush.msra.mxu0 %v2144
    %2326 = vmatpush.msra.mxu0 %v2136
    %2327 = vmatpush.msra.mxu0 %v2128
    %2328 = vmatpush.msra.mxu0 %v2120
    %2329 = vmatpush.msra.mxu0 %v2112
    %2330 = vmatpush.msra.mxu0 %v2104
    %2331 = vmatpush.msra.mxu0 %v2096
    %2332 = vmatpush.msra.mxu0 %v2088
    %2333 = vmatpush.msra.mxu0 %v2080
    %2334 = vmatpush.msra.mxu0 %v2072
    %2335 = vmatpush.msra.mxu0 %v2064
    %2336 = vmatmul.f32.gmra.mxu0 %v2046
    %v2337 = vpop.f32.mrf.mxu0
    %v2338 = vadd.f32 0.0, %v2337
    %2339 = vdwg.mxu0
    %2340 = vmatpush.msra.mxu0 %v2312
    %2341 = vmatpush.msra.mxu0 %v2304
    %2342 = vmatpush.msra.mxu0 %v2296
    %2343 = vmatpush.msra.mxu0 %v2288
    %2344 = vmatpush.msra.mxu0 %v2280
    %2345 = vmatpush.msra.mxu0 %v2272
    %2346 = vmatpush.msra.mxu0 %v2264
    %2347 = vmatpush.msra.mxu0 %v2256
    %2348 = vmatpush.msra.mxu0 %v2248
    %2349 = vmatpush.msra.mxu0 %v2240
    %2350 = vmatpush.msra.mxu0 %v2232
    %2351 = vmatpush.msra.mxu0 %v2224
    %2352 = vmatpush.msra.mxu0 %v2216
    %2353 = vmatpush.msra.mxu0 %v2208
    %2354 = vmatpush.msra.mxu0 %v2200
    %2355 = vmatpush.msra.mxu0 %v2192
    %2356 = vmatmul.f32.gmra.mxu0 %v2047
    %v2357 = vpop.f32.mrf.mxu0
    %v2358 = vadd.f32 %v2338, %v2357
    %2359 = vdwg.mxu0
    %2360 = vmatpush.msra.mxu0 %v2185
    %2361 = vmatpush.msra.mxu0 %v2177
    %2362 = vmatpush.msra.mxu0 %v2169
    %2363 = vmatpush.msra.mxu0 %v2161
    %2364 = vmatpush.msra.mxu0 %v2153
    %2365 = vmatpush.msra.mxu0 %v2145
    %2366 = vmatpush.msra.mxu0 %v2137
    %2367 = vmatpush.msra.mxu0 %v2129
    %2368 = vmatpush.msra.mxu0 %v2121
    %2369 = vmatpush.msra.mxu0 %v2113
    %2370 = vmatpush.msra.mxu0 %v2105
    %2371 = vmatpush.msra.mxu0 %v2097
    %2372 = vmatpush.msra.mxu0 %v2089
    %2373 = vmatpush.msra.mxu0 %v2081
    %2374 = vmatpush.msra.mxu0 %v2073
    %2375 = vmatpush.msra.mxu0 %v2065
    %2376 = vmatmul.f32.gmra.mxu0 %v2046
    %v2377 = vpop.f32.mrf.mxu0
    %v2378 = vadd.f32 0.0, %v2377
    %2379 = vdwg.mxu0
    %2380 = vmatpush.msra.mxu0 %v2313
    %2381 = vmatpush.msra.mxu0 %v2305
    %2382 = vmatpush.msra.mxu0 %v2297
    %2383 = vmatpush.msra.mxu0 %v2289
    %2384 = vmatpush.msra.mxu0 %v2281
    %2385 = vmatpush.msra.mxu0 %v2273
    %2386 = vmatpush.msra.mxu0 %v2265
    %2387 = vmatpush.msra.mxu0 %v2257
    %2388 = vmatpush.msra.mxu0 %v2249
    %2389 = vmatpush.msra.mxu0 %v2241
    %2390 = vmatpush.msra.mxu0 %v2233
    %2391 = vmatpush.msra.mxu0 %v2225
    %2392 = vmatpush.msra.mxu0 %v2217
    %2393 = vmatpush.msra.mxu0 %v2209
    %2394 = vmatpush.msra.mxu0 %v2201
    %2395 = vmatpush.msra.mxu0 %v2193
    %2396 = vmatmul.f32.gmra.mxu0 %v2047
    %v2397 = vpop.f32.mrf.mxu0
    %v2398 = vadd.f32 %v2378, %v2397
    %2399 = vdwg.mxu0
    %2400 = vmatpush.msra.mxu0 %v2186
    %2401 = vmatpush.msra.mxu0 %v2178
    %2402 = vmatpush.msra.mxu0 %v2170
    %2403 = vmatpush.msra.mxu0 %v2162
    %2404 = vmatpush.msra.mxu0 %v2154
    %2405 = vmatpush.msra.mxu0 %v2146
    %2406 = vmatpush.msra.mxu0 %v2138
    %2407 = vmatpush.msra.mxu0 %v2130
    %2408 = vmatpush.msra.mxu0 %v2122
    %2409 = vmatpush.msra.mxu0 %v2114
    %2410 = vmatpush.msra.mxu0 %v2106
    %2411 = vmatpush.msra.mxu0 %v2098
    %2412 = vmatpush.msra.mxu0 %v2090
    %2413 = vmatpush.msra.mxu0 %v2082
    %2414 = vmatpush.msra.mxu0 %v2074
    %2415 = vmatpush.msra.mxu0 %v2066
    %2416 = vmatmul.f32.gmra.mxu0 %v2046
    %v2417 = vpop.f32.mrf.mxu0
    %v2418 = vadd.f32 0.0, %v2417
    %2419 = vdwg.mxu0
    %2420 = vmatpush.msra.mxu0 %v2314
    %2421 = vmatpush.msra.mxu0 %v2306
    %2422 = vmatpush.msra.mxu0 %v2298
    %2423 = vmatpush.msra.mxu0 %v2290
    %2424 = vmatpush.msra.mxu0 %v2282
    %2425 = vmatpush.msra.mxu0 %v2274
    %2426 = vmatpush.msra.mxu0 %v2266
    %2427 = vmatpush.msra.mxu0 %v2258
    %2428 = vmatpush.msra.mxu0 %v2250
    %2429 = vmatpush.msra.mxu0 %v2242
    %2430 = vmatpush.msra.mxu0 %v2234
    %2431 = vmatpush.msra.mxu0 %v2226
    %2432 = vmatpush.msra.mxu0 %v2218
    %2433 = vmatpush.msra.mxu0 %v2210
    %2434 = vmatpush.msra.mxu0 %v2202
    %2435 = vmatpush.msra.mxu0 %v2194
    %2436 = vmatmul.f32.gmra.mxu0 %v2047
    %v2437 = vpop.f32.mrf.mxu0
    %v2438 = vadd.f32 %v2418, %v2437
    %2439 = vdwg.mxu0
    %2440 = vmatpush.msra.mxu0 %v2187
    %2441 = vmatpush.msra.mxu0 %v2179
    %2442 = vmatpush.msra.mxu0 %v2171
    %2443 = vmatpush.msra.mxu0 %v2163
    %2444 = vmatpush.msra.mxu0 %v2155
    %2445 = vmatpush.msra.mxu0 %v2147
    %2446 = vmatpush.msra.mxu0 %v2139
    %2447 = vmatpush.msra.mxu0 %v2131
    %2448 = vmatpush.msra.mxu0 %v2123
    %2449 = vmatpush.msra.mxu0 %v2115
    %2450 = vmatpush.msra.mxu0 %v2107
    %2451 = vmatpush.msra.mxu0 %v2099
    %2452 = vmatpush.msra.mxu0 %v2091
    %2453 = vmatpush.msra.mxu0 %v2083
    %2454 = vmatpush.msra.mxu0 %v2075
    %2455 = vmatpush.msra.mxu0 %v2067
    %2456 = vmatmul.f32.gmra.mxu0 %v2046
    %v2457 = vpop.f32.mrf.mxu0
    %v2458 = vadd.f32 0.0, %v2457
    %2459 = vdwg.mxu0
    %2460 = vmatpush.msra.mxu0 %v2315
    %2461 = vmatpush.msra.mxu0 %v2307
    %2462 = vmatpush.msra.mxu0 %v2299
    %2463 = vmatpush.msra.mxu0 %v2291
    %2464 = vmatpush.msra.mxu0 %v2283
    %2465 = vmatpush.msra.mxu0 %v2275
    %2466 = vmatpush.msra.mxu0 %v2267
    %2467 = vmatpush.msra.mxu0 %v2259
    %2468 = vmatpush.msra.mxu0 %v2251
    %2469 = vmatpush.msra.mxu0 %v2243
    %2470 = vmatpush.msra.mxu0 %v2235
    %2471 = vmatpush.msra.mxu0 %v2227
    %2472 = vmatpush.msra.mxu0 %v2219
    %2473 = vmatpush.msra.mxu0 %v2211
    %2474 = vmatpush.msra.mxu0 %v2203
    %2475 = vmatpush.msra.mxu0 %v2195
    %2476 = vmatmul.f32.gmra.mxu0 %v2047
    %v2477 = vpop.f32.mrf.mxu0
    %v2478 = vadd.f32 %v2458, %v2477
    %2479 = vdwg.mxu0
    %2480 = vmatpush.msra.mxu0 %v2188
    %2481 = vmatpush.msra.mxu0 %v2180
    %2482 = vmatpush.msra.mxu0 %v2172
    %2483 = vmatpush.msra.mxu0 %v2164
    %2484 = vmatpush.msra.mxu0 %v2156
    %2485 = vmatpush.msra.mxu0 %v2148
    %2486 = vmatpush.msra.mxu0 %v2140
    %2487 = vmatpush.msra.mxu0 %v2132
    %2488 = vmatpush.msra.mxu0 %v2124
    %2489 = vmatpush.msra.mxu0 %v2116
    %2490 = vmatpush.msra.mxu0 %v2108
    %2491 = vmatpush.msra.mxu0 %v2100
    %2492 = vmatpush.msra.mxu0 %v2092
    %2493 = vmatpush.msra.mxu0 %v2084
    %2494 = vmatpush.msra.mxu0 %v2076
    %2495 = vmatpush.msra.mxu0 %v2068
    %2496 = vmatmul.f32.gmra.mxu0 %v2046
    %v2497 = vpop.f32.mrf.mxu0
    %v2498 = vadd.f32 0.0, %v2497
    %2499 = vdwg.mxu0
    %2500 = vmatpush.msra.mxu0 %v2316
    %2501 = vmatpush.msra.mxu0 %v2308
    %2502 = vmatpush.msra.mxu0 %v2300
    %2503 = vmatpush.msra.mxu0 %v2292
    %2504 = vmatpush.msra.mxu0 %v2284
    %2505 = vmatpush.msra.mxu0 %v2276
    %2506 = vmatpush.msra.mxu0 %v2268
    %2507 = vmatpush.msra.mxu0 %v2260
    %2508 = vmatpush.msra.mxu0 %v2252
    %2509 = vmatpush.msra.mxu0 %v2244
    %2510 = vmatpush.msra.mxu0 %v2236
    %2511 = vmatpush.msra.mxu0 %v2228
    %2512 = vmatpush.msra.mxu0 %v2220
    %2513 = vmatpush.msra.mxu0 %v2212
    %2514 = vmatpush.msra.mxu0 %v2204
    %2515 = vmatpush.msra.mxu0 %v2196
    %2516 = vmatmul.f32.gmra.mxu0 %v2047
    %v2517 = vpop.f32.mrf.mxu0
    %v2518 = vadd.f32 %v2498, %v2517
    %2519 = vdwg.mxu0
    %2520 = vmatpush.msra.mxu0 %v2189
    %2521 = vmatpush.msra.mxu0 %v2181
    %2522 = vmatpush.msra.mxu0 %v2173
    %2523 = vmatpush.msra.mxu0 %v2165
    %2524 = vmatpush.msra.mxu0 %v2157
    %2525 = vmatpush.msra.mxu0 %v2149
    %2526 = vmatpush.msra.mxu0 %v2141
    %2527 = vmatpush.msra.mxu0 %v2133
    %2528 = vmatpush.msra.mxu0 %v2125
    %2529 = vmatpush.msra.mxu0 %v2117
    %2530 = vmatpush.msra.mxu0 %v2109
    %2531 = vmatpush.msra.mxu0 %v2101
    %2532 = vmatpush.msra.mxu0 %v2093
    %2533 = vmatpush.msra.mxu0 %v2085
    %2534 = vmatpush.msra.mxu0 %v2077
    %2535 = vmatpush.msra.mxu0 %v2069
    %2536 = vmatmul.f32.gmra.mxu0 %v2046
    %v2537 = vpop.f32.mrf.mxu0
    %v2538 = vadd.f32 0.0, %v2537
    %2539 = vdwg.mxu0
    %2540 = vmatpush.msra.mxu0 %v2317
    %2541 = vmatpush.msra.mxu0 %v2309
    %2542 = vmatpush.msra.mxu0 %v2301
    %2543 = vmatpush.msra.mxu0 %v2293
    %2544 = vmatpush.msra.mxu0 %v2285
    %2545 = vmatpush.msra.mxu0 %v2277
    %2546 = vmatpush.msra.mxu0 %v2269
    %2547 = vmatpush.msra.mxu0 %v2261
    %2548 = vmatpush.msra.mxu0 %v2253
    %2549 = vmatpush.msra.mxu0 %v2245
    %2550 = vmatpush.msra.mxu0 %v2237
    %2551 = vmatpush.msra.mxu0 %v2229
    %2552 = vmatpush.msra.mxu0 %v2221
    %2553 = vmatpush.msra.mxu0 %v2213
    %2554 = vmatpush.msra.mxu0 %v2205
    %2555 = vmatpush.msra.mxu0 %v2197
    %2556 = vmatmul.f32.gmra.mxu0 %v2047
    %v2557 = vpop.f32.mrf.mxu0
    %v2558 = vadd.f32 %v2538, %v2557
    %2559 = vdwg.mxu0
    %2560 = vmatpush.msra.mxu0 %v2190
    %2561 = vmatpush.msra.mxu0 %v2182
    %2562 = vmatpush.msra.mxu0 %v2174
    %2563 = vmatpush.msra.mxu0 %v2166
    %2564 = vmatpush.msra.mxu0 %v2158
    %2565 = vmatpush.msra.mxu0 %v2150
    %2566 = vmatpush.msra.mxu0 %v2142
    %2567 = vmatpush.msra.mxu0 %v2134
    %2568 = vmatpush.msra.mxu0 %v2126
    %2569 = vmatpush.msra.mxu0 %v2118
    %2570 = vmatpush.msra.mxu0 %v2110
    %2571 = vmatpush.msra.mxu0 %v2102
    %2572 = vmatpush.msra.mxu0 %v2094
    %2573 = vmatpush.msra.mxu0 %v2086
    %2574 = vmatpush.msra.mxu0 %v2078
    %2575 = vmatpush.msra.mxu0 %v2070
    %2576 = vmatmul.f32.gmra.mxu0 %v2046
    %v2577 = vpop.f32.mrf.mxu0
    %v2578 = vadd.f32 0.0, %v2577
    %2579 = vdwg.mxu0
    %2580 = vmatpush.msra.mxu0 %v2318
    %2581 = vmatpush.msra.mxu0 %v2310
    %2582 = vmatpush.msra.mxu0 %v2302
    %2583 = vmatpush.msra.mxu0 %v2294
    %2584 = vmatpush.msra.mxu0 %v2286
    %2585 = vmatpush.msra.mxu0 %v2278
    %2586 = vmatpush.msra.mxu0 %v2270
    %2587 = vmatpush.msra.mxu0 %v2262
    %2588 = vmatpush.msra.mxu0 %v2254
    %2589 = vmatpush.msra.mxu0 %v2246
    %2590 = vmatpush.msra.mxu0 %v2238
    %2591 = vmatpush.msra.mxu0 %v2230
    %2592 = vmatpush.msra.mxu0 %v2222
    %2593 = vmatpush.msra.mxu0 %v2214
    %2594 = vmatpush.msra.mxu0 %v2206
    %2595 = vmatpush.msra.mxu0 %v2198
    %2596 = vmatmul.f32.gmra.mxu0 %v2047
    %v2597 = vpop.f32.mrf.mxu0
    %v2598 = vadd.f32 %v2578, %v2597
    %2599 = vdwg.mxu0
    %2600 = vmatpush.msra.mxu0 %v2191
    %2601 = vmatpush.msra.mxu0 %v2183
    %2602 = vmatpush.msra.mxu0 %v2175
    %2603 = vmatpush.msra.mxu0 %v2167
    %2604 = vmatpush.msra.mxu0 %v2159
    %2605 = vmatpush.msra.mxu0 %v2151
    %2606 = vmatpush.msra.mxu0 %v2143
    %2607 = vmatpush.msra.mxu0 %v2135
    %2608 = vmatpush.msra.mxu0 %v2127
    %2609 = vmatpush.msra.mxu0 %v2119
    %2610 = vmatpush.msra.mxu0 %v2111
    %2611 = vmatpush.msra.mxu0 %v2103
    %2612 = vmatpush.msra.mxu0 %v2095
    %2613 = vmatpush.msra.mxu0 %v2087
    %2614 = vmatpush.msra.mxu0 %v2079
    %2615 = vmatpush.msra.mxu0 %v2071
    %2616 = vmatmul.f32.gmra.mxu0 %v2046
    %v2617 = vpop.f32.mrf.mxu0
    %v2618 = vadd.f32 0.0, %v2617
    %2619 = vdwg.mxu0
    %2620 = vmatpush.msra.mxu0 %v2319
    %2621 = vmatpush.msra.mxu0 %v2311
    %2622 = vmatpush.msra.mxu0 %v2303
    %2623 = vmatpush.msra.mxu0 %v2295
    %2624 = vmatpush.msra.mxu0 %v2287
    %2625 = vmatpush.msra.mxu0 %v2279
    %2626 = vmatpush.msra.mxu0 %v2271
    %2627 = vmatpush.msra.mxu0 %v2263
    %2628 = vmatpush.msra.mxu0 %v2255
    %2629 = vmatpush.msra.mxu0 %v2247
    %2630 = vmatpush.msra.mxu0 %v2239
    %2631 = vmatpush.msra.mxu0 %v2231
    %2632 = vmatpush.msra.mxu0 %v2223
    %2633 = vmatpush.msra.mxu0 %v2215
    %2634 = vmatpush.msra.mxu0 %v2207
    %2635 = vmatpush.msra.mxu0 %v2199
    %2636 = vmatmul.f32.gmra.mxu0 %v2047
    %v2637 = vpop.f32.mrf.mxu0
    %v2638 = vadd.f32 %v2618, %v2637
    %2639 = vdwg.mxu0
    %v2640 = vadd.f32 %v2056, %v2358
    %v2641 = vadd.f32 %v2057, %v2398
    %v2642 = vadd.f32 %v2058, %v2438
    %v2643 = vadd.f32 %v2059, %v2478
    %v2644 = vadd.f32 %v2060, %v2518
    %v2645 = vadd.f32 %v2061, %v2558
    %v2646 = vadd.f32 %v2062, %v2598
    %v2647 = vadd.f32 %v2063, %v2638
    %v2648 = vxor.u32 %v2640, 2147483648
    %v2649 = vxor.u32 %v2641, 2147483648
    %v2650 = vxor.u32 %v2642, 2147483648
    %v2651 = vxor.u32 %v2643, 2147483648
    %v2652 = vxor.u32 %v2646, 2147483648
    %v2653 = vxor.u32 %v2647, 2147483648
    %v2654 = vmul.f32 %v2648, 1.442695
    %v2655 = vpow.pop %v2654
    %v2656 = vmul.f32 %v2649, 1.442695
    %v2657 = vpow.pop %v2656
    %v2658 = vmul.f32 %v2650, 1.442695
    %v2659 = vpow.pop %v2658
    %v2660 = vmul.f32 %v2651, 1.442695
    %v2661 = vpow.pop %v2660
    %v2662 = vmul.f32 %v2652, 1.442695
    %v2663 = vpow.pop %v2662
    %v2664 = vmul.f32 %v2653, 1.442695
    %v2665 = vpow.pop %v2664
    %v2666 = vadd.f32 %v2655, 1.0
    %v2667 = vadd.f32 %v2657, 1.0
    %v2668 = vadd.f32 %v2659, 1.0
    %v2669 = vadd.f32 %v2661, 1.0
    %v2670 = vadd.f32 %v2663, 1.0
    %v2671 = vadd.f32 %v2665, 1.0
    %v2672 = vrcp.pop %v2666
    %v2673 = vmul.f32 %v2666, %v2672
    %v2674 = vsub.f32 1.0, %v2673
    %v2675 = vmul.f32 %v2672, %v2674
    %v2676 = vadd.f32 %v2672, %v2675
    %vm2677 = vweird.f32 %v2666
    %vm2678 = vweird.f32 %v2672
    %vm2679 = vmor %vm2677, %vm2678
    %v2680 = vsel %vm2679, %v2672, %v2676
    %v2681 = vand.u32 2147483647, %v2666
    %vm2682 = vcmp.eq.f32.partialorder %v2681, 8.507059e+37
    %v2683 = vand.u32 %v2666, 2147483648
    %v2684 = vor.u32 1.1754944e-38, %v2683
    %v2685 = vsel %vm2682, %v2684, %v2680
    %v2686 = vmul.f32 1.0, %v2685
    %v2687 = vrcp.pop %v2667
    %v2688 = vmul.f32 %v2667, %v2687
    %v2689 = vsub.f32 1.0, %v2688
    %v2690 = vmul.f32 %v2687, %v2689
    %v2691 = vadd.f32 %v2687, %v2690
    %vm2692 = vweird.f32 %v2667
    %vm2693 = vweird.f32 %v2687
    %vm2694 = vmor %vm2692, %vm2693
    %v2695 = vsel %vm2694, %v2687, %v2691
    %v2696 = vand.u32 2147483647, %v2667
    %vm2697 = vcmp.eq.f32.partialorder %v2696, 8.507059e+37
    %v2698 = vand.u32 %v2667, 2147483648
    %v2699 = vor.u32 1.1754944e-38, %v2698
    %v2700 = vsel %vm2697, %v2699, %v2695
    %v2701 = vmul.f32 1.0, %v2700
    %v2702 = vrcp.pop %v2668
    %v2703 = vmul.f32 %v2668, %v2702
    %v2704 = vsub.f32 1.0, %v2703
    %v2705 = vmul.f32 %v2702, %v2704
    %v2706 = vadd.f32 %v2702, %v2705
    %vm2707 = vweird.f32 %v2668
    %vm2708 = vweird.f32 %v2702
    %vm2709 = vmor %vm2707, %vm2708
    %v2710 = vsel %vm2709, %v2702, %v2706
    %v2711 = vand.u32 2147483647, %v2668
    %vm2712 = vcmp.eq.f32.partialorder %v2711, 8.507059e+37
    %v2713 = vand.u32 %v2668, 2147483648
    %v2714 = vor.u32 1.1754944e-38, %v2713
    %v2715 = vsel %vm2712, %v2714, %v2710
    %v2716 = vmul.f32 1.0, %v2715
    %v2717 = vrcp.pop %v2669
    %v2718 = vmul.f32 %v2669, %v2717
    %v2719 = vsub.f32 1.0, %v2718
    %v2720 = vmul.f32 %v2717, %v2719
    %v2721 = vadd.f32 %v2717, %v2720
    %vm2722 = vweird.f32 %v2669
    %vm2723 = vweird.f32 %v2717
    %vm2724 = vmor %vm2722, %vm2723
    %v2725 = vsel %vm2724, %v2717, %v2721
    %v2726 = vand.u32 2147483647, %v2669
    %vm2727 = vcmp.eq.f32.partialorder %v2726, 8.507059e+37
    %v2728 = vand.u32 %v2669, 2147483648
    %v2729 = vor.u32 1.1754944e-38, %v2728
    %v2730 = vsel %vm2727, %v2729, %v2725
    %v2731 = vmul.f32 1.0, %v2730
    %v2732 = vrcp.pop %v2670
    %v2733 = vmul.f32 %v2670, %v2732
    %v2734 = vsub.f32 1.0, %v2733
    %v2735 = vmul.f32 %v2732, %v2734
    %v2736 = vadd.f32 %v2732, %v2735
    %vm2737 = vweird.f32 %v2670
    %vm2738 = vweird.f32 %v2732
    %vm2739 = vmor %vm2737, %vm2738
    %v2740 = vsel %vm2739, %v2732, %v2736
    %v2741 = vand.u32 2147483647, %v2670
    %vm2742 = vcmp.eq.f32.partialorder %v2741, 8.507059e+37
    %v2743 = vand.u32 %v2670, 2147483648
    %v2744 = vor.u32 1.1754944e-38, %v2743
    %v2745 = vsel %vm2742, %v2744, %v2740
    %v2746 = vmul.f32 1.0, %v2745
    %v2747 = vrcp.pop %v2671
    %v2748 = vmul.f32 %v2671, %v2747
    %v2749 = vsub.f32 1.0, %v2748
    %v2750 = vmul.f32 %v2747, %v2749
    %v2751 = vadd.f32 %v2747, %v2750
    %vm2752 = vweird.f32 %v2671
    %vm2753 = vweird.f32 %v2747
    %vm2754 = vmor %vm2752, %vm2753
    %v2755 = vsel %vm2754, %v2747, %v2751
    %v2756 = vand.u32 2147483647, %v2671
    %vm2757 = vcmp.eq.f32.partialorder %v2756, 8.507059e+37
    %v2758 = vand.u32 %v2671, 2147483648
    %v2759 = vor.u32 1.1754944e-38, %v2758
    %v2760 = vsel %vm2757, %v2759, %v2755
    %v2761 = vmul.f32 1.0, %v2760
    %v2762 = vtanh.pop %v2644
    %v2763 = vtanh.pop %v2645
    %v2764 = vmul.f32 %v2716, %v2042
    %v2765 = vmul.f32 %v2731, %v2043
    %v2766 = vmul.f32 %v2686, %v2762
    %v2767 = vmul.f32 %v2701, %v2763
    %v2768 = vadd.f32 %v2764, %v2766
    %v2769 = vadd.f32 %v2765, %v2767
    %v2770 = vtanh.pop %v2768
    %v2771 = vtanh.pop %v2769
    %v2772 = vmul.f32 %v2746, %v2770
    %v2773 = vmul.f32 %v2761, %v2771
    %s2774 = smul.u32 2, 2
    %s2775 = smul.addr %s2774, 8
    %s2776 = scalar_lea.vmem [#allocation3], %s2775
    %2777 = vst [vmem:[%s2776] sm:$0xff] %v2772
    %2778 = vst [vmem:[%s2776 + $0x8] sm:$0xff] %v2773
    %s2779 = smul.u32 3, 8
    %s2780 = smul.addr %s2779, 8
    %s2781 = scalar_lea.vmem [#allocation2], %s2780
    %v2782 = vld [vmem:[%s2781] sm:$0xff]
    %v2783 = vld [vmem:[%s2781 + $0x8] sm:$0xff]
    %v2784 = vld [vmem:[%s2781 + $0x10] sm:$0xff]
    %v2785 = vld [vmem:[%s2781 + $0x18] sm:$0xff]
    %v2786 = vld [vmem:[%s2781 + $0x20] sm:$0xff]
    %v2787 = vld [vmem:[%s2781 + $0x28] sm:$0xff]
    %v2788 = vld [vmem:[%s2781 + $0x30] sm:$0xff]
    %v2789 = vld [vmem:[%s2781 + $0x38] sm:$0xff]
    %v2790 = vld [vmem:[#allocation6] sm:$0xff]
    %v2791 = vld [vmem:[#allocation6 + $0x8] sm:$0xff]
    %v2792 = vld [vmem:[#allocation6 + $0x10] sm:$0xff]
    %v2793 = vld [vmem:[#allocation6 + $0x18] sm:$0xff]
    %v2794 = vld [vmem:[#allocation6 + $0x20] sm:$0xff]
    %v2795 = vld [vmem:[#allocation6 + $0x28] sm:$0xff]
    %v2796 = vld [vmem:[#allocation6 + $0x30] sm:$0xff]
    %v2797 = vld [vmem:[#allocation6 + $0x38] sm:$0xff]
    %v2798 = vld [vmem:[#allocation6 + $0x40] sm:$0xff]
    %v2799 = vld [vmem:[#allocation6 + $0x48] sm:$0xff]
    %v2800 = vld [vmem:[#allocation6 + $0x50] sm:$0xff]
    %v2801 = vld [vmem:[#allocation6 + $0x58] sm:$0xff]
    %v2802 = vld [vmem:[#allocation6 + $0x60] sm:$0xff]
    %v2803 = vld [vmem:[#allocation6 + $0x68] sm:$0xff]
    %v2804 = vld [vmem:[#allocation6 + $0x70] sm:$0xff]
    %v2805 = vld [vmem:[#allocation6 + $0x78] sm:$0xff]
    %v2806 = vld [vmem:[#allocation6 + $0x80] sm:$0xff]
    %v2807 = vld [vmem:[#allocation6 + $0x88] sm:$0xff]
    %v2808 = vld [vmem:[#allocation6 + $0x90] sm:$0xff]
    %v2809 = vld [vmem:[#allocation6 + $0x98] sm:$0xff]
    %v2810 = vld [vmem:[#allocation6 + $0xa0] sm:$0xff]
    %v2811 = vld [vmem:[#allocation6 + $0xa8] sm:$0xff]
    %v2812 = vld [vmem:[#allocation6 + $0xb0] sm:$0xff]
    %v2813 = vld [vmem:[#allocation6 + $0xb8] sm:$0xff]
    %v2814 = vld [vmem:[#allocation6 + $0xc0] sm:$0xff]
    %v2815 = vld [vmem:[#allocation6 + $0xc8] sm:$0xff]
    %v2816 = vld [vmem:[#allocation6 + $0xd0] sm:$0xff]
    %v2817 = vld [vmem:[#allocation6 + $0xd8] sm:$0xff]
    %v2818 = vld [vmem:[#allocation6 + $0xe0] sm:$0xff]
    %v2819 = vld [vmem:[#allocation6 + $0xe8] sm:$0xff]
    %v2820 = vld [vmem:[#allocation6 + $0xf0] sm:$0xff]
    %v2821 = vld [vmem:[#allocation6 + $0xf8] sm:$0xff]
    %v2822 = vld [vmem:[#allocation6 + $0x100] sm:$0xff]
    %v2823 = vld [vmem:[#allocation6 + $0x108] sm:$0xff]
    %v2824 = vld [vmem:[#allocation6 + $0x110] sm:$0xff]
    %v2825 = vld [vmem:[#allocation6 + $0x118] sm:$0xff]
    %v2826 = vld [vmem:[#allocation6 + $0x120] sm:$0xff]
    %v2827 = vld [vmem:[#allocation6 + $0x128] sm:$0xff]
    %v2828 = vld [vmem:[#allocation6 + $0x130] sm:$0xff]
    %v2829 = vld [vmem:[#allocation6 + $0x138] sm:$0xff]
    %v2830 = vld [vmem:[#allocation6 + $0x140] sm:$0xff]
    %v2831 = vld [vmem:[#allocation6 + $0x148] sm:$0xff]
    %v2832 = vld [vmem:[#allocation6 + $0x150] sm:$0xff]
    %v2833 = vld [vmem:[#allocation6 + $0x158] sm:$0xff]
    %v2834 = vld [vmem:[#allocation6 + $0x160] sm:$0xff]
    %v2835 = vld [vmem:[#allocation6 + $0x168] sm:$0xff]
    %v2836 = vld [vmem:[#allocation6 + $0x170] sm:$0xff]
    %v2837 = vld [vmem:[#allocation6 + $0x178] sm:$0xff]
    %v2838 = vld [vmem:[#allocation6 + $0x180] sm:$0xff]
    %v2839 = vld [vmem:[#allocation6 + $0x188] sm:$0xff]
    %v2840 = vld [vmem:[#allocation6 + $0x190] sm:$0xff]
    %v2841 = vld [vmem:[#allocation6 + $0x198] sm:$0xff]
    %v2842 = vld [vmem:[#allocation6 + $0x1a0] sm:$0xff]
    %v2843 = vld [vmem:[#allocation6 + $0x1a8] sm:$0xff]
    %v2844 = vld [vmem:[#allocation6 + $0x1b0] sm:$0xff]
    %v2845 = vld [vmem:[#allocation6 + $0x1b8] sm:$0xff]
    %v2846 = vld [vmem:[#allocation6 + $0x1c0] sm:$0xff]
    %v2847 = vld [vmem:[#allocation6 + $0x1c8] sm:$0xff]
    %v2848 = vld [vmem:[#allocation6 + $0x1d0] sm:$0xff]
    %v2849 = vld [vmem:[#allocation6 + $0x1d8] sm:$0xff]
    %v2850 = vld [vmem:[#allocation6 + $0x1e0] sm:$0xff]
    %v2851 = vld [vmem:[#allocation6 + $0x1e8] sm:$0xff]
    %v2852 = vld [vmem:[#allocation6 + $0x1f0] sm:$0xff]
    %v2853 = vld [vmem:[#allocation6 + $0x1f8] sm:$0xff]
    %v2854 = vld [vmem:[#allocation6 + $0x200] sm:$0xff]
    %v2855 = vld [vmem:[#allocation6 + $0x208] sm:$0xff]
    %v2856 = vld [vmem:[#allocation6 + $0x210] sm:$0xff]
    %v2857 = vld [vmem:[#allocation6 + $0x218] sm:$0xff]
    %v2858 = vld [vmem:[#allocation6 + $0x220] sm:$0xff]
    %v2859 = vld [vmem:[#allocation6 + $0x228] sm:$0xff]
    %v2860 = vld [vmem:[#allocation6 + $0x230] sm:$0xff]
    %v2861 = vld [vmem:[#allocation6 + $0x238] sm:$0xff]
    %v2862 = vld [vmem:[#allocation6 + $0x240] sm:$0xff]
    %v2863 = vld [vmem:[#allocation6 + $0x248] sm:$0xff]
    %v2864 = vld [vmem:[#allocation6 + $0x250] sm:$0xff]
    %v2865 = vld [vmem:[#allocation6 + $0x258] sm:$0xff]
    %v2866 = vld [vmem:[#allocation6 + $0x260] sm:$0xff]
    %v2867 = vld [vmem:[#allocation6 + $0x268] sm:$0xff]
    %v2868 = vld [vmem:[#allocation6 + $0x270] sm:$0xff]
    %v2869 = vld [vmem:[#allocation6 + $0x278] sm:$0xff]
    %v2870 = vld [vmem:[#allocation6 + $0x280] sm:$0xff]
    %v2871 = vld [vmem:[#allocation6 + $0x288] sm:$0xff]
    %v2872 = vld [vmem:[#allocation6 + $0x290] sm:$0xff]
    %v2873 = vld [vmem:[#allocation6 + $0x298] sm:$0xff]
    %v2874 = vld [vmem:[#allocation6 + $0x2a0] sm:$0xff]
    %v2875 = vld [vmem:[#allocation6 + $0x2a8] sm:$0xff]
    %v2876 = vld [vmem:[#allocation6 + $0x2b0] sm:$0xff]
    %v2877 = vld [vmem:[#allocation6 + $0x2b8] sm:$0xff]
    %v2878 = vld [vmem:[#allocation6 + $0x2c0] sm:$0xff]
    %v2879 = vld [vmem:[#allocation6 + $0x2c8] sm:$0xff]
    %v2880 = vld [vmem:[#allocation6 + $0x2d0] sm:$0xff]
    %v2881 = vld [vmem:[#allocation6 + $0x2d8] sm:$0xff]
    %v2882 = vld [vmem:[#allocation6 + $0x2e0] sm:$0xff]
    %v2883 = vld [vmem:[#allocation6 + $0x2e8] sm:$0xff]
    %v2884 = vld [vmem:[#allocation6 + $0x2f0] sm:$0xff]
    %v2885 = vld [vmem:[#allocation6 + $0x2f8] sm:$0xff]
    %v2886 = vld [vmem:[#allocation6 + $0x300] sm:$0xff]
    %v2887 = vld [vmem:[#allocation6 + $0x308] sm:$0xff]
    %v2888 = vld [vmem:[#allocation6 + $0x310] sm:$0xff]
    %v2889 = vld [vmem:[#allocation6 + $0x318] sm:$0xff]
    %v2890 = vld [vmem:[#allocation6 + $0x320] sm:$0xff]
    %v2891 = vld [vmem:[#allocation6 + $0x328] sm:$0xff]
    %v2892 = vld [vmem:[#allocation6 + $0x330] sm:$0xff]
    %v2893 = vld [vmem:[#allocation6 + $0x338] sm:$0xff]
    %v2894 = vld [vmem:[#allocation6 + $0x340] sm:$0xff]
    %v2895 = vld [vmem:[#allocation6 + $0x348] sm:$0xff]
    %v2896 = vld [vmem:[#allocation6 + $0x350] sm:$0xff]
    %v2897 = vld [vmem:[#allocation6 + $0x358] sm:$0xff]
    %v2898 = vld [vmem:[#allocation6 + $0x360] sm:$0xff]
    %v2899 = vld [vmem:[#allocation6 + $0x368] sm:$0xff]
    %v2900 = vld [vmem:[#allocation6 + $0x370] sm:$0xff]
    %v2901 = vld [vmem:[#allocation6 + $0x378] sm:$0xff]
    %v2902 = vld [vmem:[#allocation6 + $0x380] sm:$0xff]
    %v2903 = vld [vmem:[#allocation6 + $0x388] sm:$0xff]
    %v2904 = vld [vmem:[#allocation6 + $0x390] sm:$0xff]
    %v2905 = vld [vmem:[#allocation6 + $0x398] sm:$0xff]
    %v2906 = vld [vmem:[#allocation6 + $0x3a0] sm:$0xff]
    %v2907 = vld [vmem:[#allocation6 + $0x3a8] sm:$0xff]
    %v2908 = vld [vmem:[#allocation6 + $0x3b0] sm:$0xff]
    %v2909 = vld [vmem:[#allocation6 + $0x3b8] sm:$0xff]
    %v2910 = vld [vmem:[#allocation6 + $0x3c0] sm:$0xff]
    %v2911 = vld [vmem:[#allocation6 + $0x3c8] sm:$0xff]
    %v2912 = vld [vmem:[#allocation6 + $0x3d0] sm:$0xff]
    %v2913 = vld [vmem:[#allocation6 + $0x3d8] sm:$0xff]
    %v2914 = vld [vmem:[#allocation6 + $0x3e0] sm:$0xff]
    %v2915 = vld [vmem:[#allocation6 + $0x3e8] sm:$0xff]
    %v2916 = vld [vmem:[#allocation6 + $0x3f0] sm:$0xff]
    %v2917 = vld [vmem:[#allocation6 + $0x3f8] sm:$0xff]
    %v2918 = vld [vmem:[#allocation6 + $0x400] sm:$0xff]
    %v2919 = vld [vmem:[#allocation6 + $0x408] sm:$0xff]
    %v2920 = vld [vmem:[#allocation6 + $0x410] sm:$0xff]
    %v2921 = vld [vmem:[#allocation6 + $0x418] sm:$0xff]
    %v2922 = vld [vmem:[#allocation6 + $0x420] sm:$0xff]
    %v2923 = vld [vmem:[#allocation6 + $0x428] sm:$0xff]
    %v2924 = vld [vmem:[#allocation6 + $0x430] sm:$0xff]
    %v2925 = vld [vmem:[#allocation6 + $0x438] sm:$0xff]
    %v2926 = vld [vmem:[#allocation6 + $0x440] sm:$0xff]
    %v2927 = vld [vmem:[#allocation6 + $0x448] sm:$0xff]
    %v2928 = vld [vmem:[#allocation6 + $0x450] sm:$0xff]
    %v2929 = vld [vmem:[#allocation6 + $0x458] sm:$0xff]
    %v2930 = vld [vmem:[#allocation6 + $0x460] sm:$0xff]
    %v2931 = vld [vmem:[#allocation6 + $0x468] sm:$0xff]
    %v2932 = vld [vmem:[#allocation6 + $0x470] sm:$0xff]
    %v2933 = vld [vmem:[#allocation6 + $0x478] sm:$0xff]
    %v2934 = vld [vmem:[#allocation6 + $0x480] sm:$0xff]
    %v2935 = vld [vmem:[#allocation6 + $0x488] sm:$0xff]
    %v2936 = vld [vmem:[#allocation6 + $0x490] sm:$0xff]
    %v2937 = vld [vmem:[#allocation6 + $0x498] sm:$0xff]
    %v2938 = vld [vmem:[#allocation6 + $0x4a0] sm:$0xff]
    %v2939 = vld [vmem:[#allocation6 + $0x4a8] sm:$0xff]
    %v2940 = vld [vmem:[#allocation6 + $0x4b0] sm:$0xff]
    %v2941 = vld [vmem:[#allocation6 + $0x4b8] sm:$0xff]
    %v2942 = vld [vmem:[#allocation6 + $0x4c0] sm:$0xff]
    %v2943 = vld [vmem:[#allocation6 + $0x4c8] sm:$0xff]
    %v2944 = vld [vmem:[#allocation6 + $0x4d0] sm:$0xff]
    %v2945 = vld [vmem:[#allocation6 + $0x4d8] sm:$0xff]
    %v2946 = vld [vmem:[#allocation6 + $0x4e0] sm:$0xff]
    %v2947 = vld [vmem:[#allocation6 + $0x4e8] sm:$0xff]
    %v2948 = vld [vmem:[#allocation6 + $0x4f0] sm:$0xff]
    %v2949 = vld [vmem:[#allocation6 + $0x4f8] sm:$0xff]
    %v2950 = vld [vmem:[#allocation6 + $0x500] sm:$0xff]
    %v2951 = vld [vmem:[#allocation6 + $0x508] sm:$0xff]
    %v2952 = vld [vmem:[#allocation6 + $0x510] sm:$0xff]
    %v2953 = vld [vmem:[#allocation6 + $0x518] sm:$0xff]
    %v2954 = vld [vmem:[#allocation6 + $0x520] sm:$0xff]
    %v2955 = vld [vmem:[#allocation6 + $0x528] sm:$0xff]
    %v2956 = vld [vmem:[#allocation6 + $0x530] sm:$0xff]
    %v2957 = vld [vmem:[#allocation6 + $0x538] sm:$0xff]
    %v2958 = vld [vmem:[#allocation6 + $0x540] sm:$0xff]
    %v2959 = vld [vmem:[#allocation6 + $0x548] sm:$0xff]
    %v2960 = vld [vmem:[#allocation6 + $0x550] sm:$0xff]
    %v2961 = vld [vmem:[#allocation6 + $0x558] sm:$0xff]
    %v2962 = vld [vmem:[#allocation6 + $0x560] sm:$0xff]
    %v2963 = vld [vmem:[#allocation6 + $0x568] sm:$0xff]
    %v2964 = vld [vmem:[#allocation6 + $0x570] sm:$0xff]
    %v2965 = vld [vmem:[#allocation6 + $0x578] sm:$0xff]
    %v2966 = vld [vmem:[#allocation6 + $0x580] sm:$0xff]
    %v2967 = vld [vmem:[#allocation6 + $0x588] sm:$0xff]
    %v2968 = vld [vmem:[#allocation6 + $0x590] sm:$0xff]
    %v2969 = vld [vmem:[#allocation6 + $0x598] sm:$0xff]
    %v2970 = vld [vmem:[#allocation6 + $0x5a0] sm:$0xff]
    %v2971 = vld [vmem:[#allocation6 + $0x5a8] sm:$0xff]
    %v2972 = vld [vmem:[#allocation6 + $0x5b0] sm:$0xff]
    %v2973 = vld [vmem:[#allocation6 + $0x5b8] sm:$0xff]
    %v2974 = vld [vmem:[#allocation6 + $0x5c0] sm:$0xff]
    %v2975 = vld [vmem:[#allocation6 + $0x5c8] sm:$0xff]
    %v2976 = vld [vmem:[#allocation6 + $0x5d0] sm:$0xff]
    %v2977 = vld [vmem:[#allocation6 + $0x5d8] sm:$0xff]
    %v2978 = vld [vmem:[#allocation6 + $0x5e0] sm:$0xff]
    %v2979 = vld [vmem:[#allocation6 + $0x5e8] sm:$0xff]
    %v2980 = vld [vmem:[#allocation6 + $0x5f0] sm:$0xff]
    %v2981 = vld [vmem:[#allocation6 + $0x5f8] sm:$0xff]
    %v2982 = vld [vmem:[#allocation6 + $0x600] sm:$0xff]
    %v2983 = vld [vmem:[#allocation6 + $0x608] sm:$0xff]
    %v2984 = vld [vmem:[#allocation6 + $0x610] sm:$0xff]
    %v2985 = vld [vmem:[#allocation6 + $0x618] sm:$0xff]
    %v2986 = vld [vmem:[#allocation6 + $0x620] sm:$0xff]
    %v2987 = vld [vmem:[#allocation6 + $0x628] sm:$0xff]
    %v2988 = vld [vmem:[#allocation6 + $0x630] sm:$0xff]
    %v2989 = vld [vmem:[#allocation6 + $0x638] sm:$0xff]
    %v2990 = vld [vmem:[#allocation6 + $0x640] sm:$0xff]
    %v2991 = vld [vmem:[#allocation6 + $0x648] sm:$0xff]
    %v2992 = vld [vmem:[#allocation6 + $0x650] sm:$0xff]
    %v2993 = vld [vmem:[#allocation6 + $0x658] sm:$0xff]
    %v2994 = vld [vmem:[#allocation6 + $0x660] sm:$0xff]
    %v2995 = vld [vmem:[#allocation6 + $0x668] sm:$0xff]
    %v2996 = vld [vmem:[#allocation6 + $0x670] sm:$0xff]
    %v2997 = vld [vmem:[#allocation6 + $0x678] sm:$0xff]
    %v2998 = vld [vmem:[#allocation6 + $0x680] sm:$0xff]
    %v2999 = vld [vmem:[#allocation6 + $0x688] sm:$0xff]
    %v3000 = vld [vmem:[#allocation6 + $0x690] sm:$0xff]
    %v3001 = vld [vmem:[#allocation6 + $0x698] sm:$0xff]
    %v3002 = vld [vmem:[#allocation6 + $0x6a0] sm:$0xff]
    %v3003 = vld [vmem:[#allocation6 + $0x6a8] sm:$0xff]
    %v3004 = vld [vmem:[#allocation6 + $0x6b0] sm:$0xff]
    %v3005 = vld [vmem:[#allocation6 + $0x6b8] sm:$0xff]
    %v3006 = vld [vmem:[#allocation6 + $0x6c0] sm:$0xff]
    %v3007 = vld [vmem:[#allocation6 + $0x6c8] sm:$0xff]
    %v3008 = vld [vmem:[#allocation6 + $0x6d0] sm:$0xff]
    %v3009 = vld [vmem:[#allocation6 + $0x6d8] sm:$0xff]
    %v3010 = vld [vmem:[#allocation6 + $0x6e0] sm:$0xff]
    %v3011 = vld [vmem:[#allocation6 + $0x6e8] sm:$0xff]
    %v3012 = vld [vmem:[#allocation6 + $0x6f0] sm:$0xff]
    %v3013 = vld [vmem:[#allocation6 + $0x6f8] sm:$0xff]
    %v3014 = vld [vmem:[#allocation6 + $0x700] sm:$0xff]
    %v3015 = vld [vmem:[#allocation6 + $0x708] sm:$0xff]
    %v3016 = vld [vmem:[#allocation6 + $0x710] sm:$0xff]
    %v3017 = vld [vmem:[#allocation6 + $0x718] sm:$0xff]
    %v3018 = vld [vmem:[#allocation6 + $0x720] sm:$0xff]
    %v3019 = vld [vmem:[#allocation6 + $0x728] sm:$0xff]
    %v3020 = vld [vmem:[#allocation6 + $0x730] sm:$0xff]
    %v3021 = vld [vmem:[#allocation6 + $0x738] sm:$0xff]
    %v3022 = vld [vmem:[#allocation6 + $0x740] sm:$0xff]
    %v3023 = vld [vmem:[#allocation6 + $0x748] sm:$0xff]
    %v3024 = vld [vmem:[#allocation6 + $0x750] sm:$0xff]
    %v3025 = vld [vmem:[#allocation6 + $0x758] sm:$0xff]
    %v3026 = vld [vmem:[#allocation6 + $0x760] sm:$0xff]
    %v3027 = vld [vmem:[#allocation6 + $0x768] sm:$0xff]
    %v3028 = vld [vmem:[#allocation6 + $0x770] sm:$0xff]
    %v3029 = vld [vmem:[#allocation6 + $0x778] sm:$0xff]
    %v3030 = vld [vmem:[#allocation6 + $0x780] sm:$0xff]
    %v3031 = vld [vmem:[#allocation6 + $0x788] sm:$0xff]
    %v3032 = vld [vmem:[#allocation6 + $0x790] sm:$0xff]
    %v3033 = vld [vmem:[#allocation6 + $0x798] sm:$0xff]
    %v3034 = vld [vmem:[#allocation6 + $0x7a0] sm:$0xff]
    %v3035 = vld [vmem:[#allocation6 + $0x7a8] sm:$0xff]
    %v3036 = vld [vmem:[#allocation6 + $0x7b0] sm:$0xff]
    %v3037 = vld [vmem:[#allocation6 + $0x7b8] sm:$0xff]
    %v3038 = vld [vmem:[#allocation6 + $0x7c0] sm:$0xff]
    %v3039 = vld [vmem:[#allocation6 + $0x7c8] sm:$0xff]
    %v3040 = vld [vmem:[#allocation6 + $0x7d0] sm:$0xff]
    %v3041 = vld [vmem:[#allocation6 + $0x7d8] sm:$0xff]
    %v3042 = vld [vmem:[#allocation6 + $0x7e0] sm:$0xff]
    %v3043 = vld [vmem:[#allocation6 + $0x7e8] sm:$0xff]
    %v3044 = vld [vmem:[#allocation6 + $0x7f0] sm:$0xff]
    %v3045 = vld [vmem:[#allocation6 + $0x7f8] sm:$0xff]
    %3046 = vmatpush.msra.mxu0 %v2910
    %3047 = vmatpush.msra.mxu0 %v2902
    %3048 = vmatpush.msra.mxu0 %v2894
    %3049 = vmatpush.msra.mxu0 %v2886
    %3050 = vmatpush.msra.mxu0 %v2878
    %3051 = vmatpush.msra.mxu0 %v2870
    %3052 = vmatpush.msra.mxu0 %v2862
    %3053 = vmatpush.msra.mxu0 %v2854
    %3054 = vmatpush.msra.mxu0 %v2846
    %3055 = vmatpush.msra.mxu0 %v2838
    %3056 = vmatpush.msra.mxu0 %v2830
    %3057 = vmatpush.msra.mxu0 %v2822
    %3058 = vmatpush.msra.mxu0 %v2814
    %3059 = vmatpush.msra.mxu0 %v2806
    %3060 = vmatpush.msra.mxu0 %v2798
    %3061 = vmatpush.msra.mxu0 %v2790
    %3062 = vmatmul.f32.gmra.mxu0 %v2772
    %v3063 = vpop.f32.mrf.mxu0
    %v3064 = vadd.f32 0.0, %v3063
    %3065 = vdwg.mxu0
    %3066 = vmatpush.msra.mxu0 %v3038
    %3067 = vmatpush.msra.mxu0 %v3030
    %3068 = vmatpush.msra.mxu0 %v3022
    %3069 = vmatpush.msra.mxu0 %v3014
    %3070 = vmatpush.msra.mxu0 %v3006
    %3071 = vmatpush.msra.mxu0 %v2998
    %3072 = vmatpush.msra.mxu0 %v2990
    %3073 = vmatpush.msra.mxu0 %v2982
    %3074 = vmatpush.msra.mxu0 %v2974
    %3075 = vmatpush.msra.mxu0 %v2966
    %3076 = vmatpush.msra.mxu0 %v2958
    %3077 = vmatpush.msra.mxu0 %v2950
    %3078 = vmatpush.msra.mxu0 %v2942
    %3079 = vmatpush.msra.mxu0 %v2934
    %3080 = vmatpush.msra.mxu0 %v2926
    %3081 = vmatpush.msra.mxu0 %v2918
    %3082 = vmatmul.f32.gmra.mxu0 %v2773
    %v3083 = vpop.f32.mrf.mxu0
    %v3084 = vadd.f32 %v3064, %v3083
    %3085 = vdwg.mxu0
    %3086 = vmatpush.msra.mxu0 %v2911
    %3087 = vmatpush.msra.mxu0 %v2903
    %3088 = vmatpush.msra.mxu0 %v2895
    %3089 = vmatpush.msra.mxu0 %v2887
    %3090 = vmatpush.msra.mxu0 %v2879
    %3091 = vmatpush.msra.mxu0 %v2871
    %3092 = vmatpush.msra.mxu0 %v2863
    %3093 = vmatpush.msra.mxu0 %v2855
    %3094 = vmatpush.msra.mxu0 %v2847
    %3095 = vmatpush.msra.mxu0 %v2839
    %3096 = vmatpush.msra.mxu0 %v2831
    %3097 = vmatpush.msra.mxu0 %v2823
    %3098 = vmatpush.msra.mxu0 %v2815
    %3099 = vmatpush.msra.mxu0 %v2807
    %3100 = vmatpush.msra.mxu0 %v2799
    %3101 = vmatpush.msra.mxu0 %v2791
    %3102 = vmatmul.f32.gmra.mxu0 %v2772
    %v3103 = vpop.f32.mrf.mxu0
    %v3104 = vadd.f32 0.0, %v3103
    %3105 = vdwg.mxu0
    %3106 = vmatpush.msra.mxu0 %v3039
    %3107 = vmatpush.msra.mxu0 %v3031
    %3108 = vmatpush.msra.mxu0 %v3023
    %3109 = vmatpush.msra.mxu0 %v3015
    %3110 = vmatpush.msra.mxu0 %v3007
    %3111 = vmatpush.msra.mxu0 %v2999
    %3112 = vmatpush.msra.mxu0 %v2991
    %3113 = vmatpush.msra.mxu0 %v2983
    %3114 = vmatpush.msra.mxu0 %v2975
    %3115 = vmatpush.msra.mxu0 %v2967
    %3116 = vmatpush.msra.mxu0 %v2959
    %3117 = vmatpush.msra.mxu0 %v2951
    %3118 = vmatpush.msra.mxu0 %v2943
    %3119 = vmatpush.msra.mxu0 %v2935
    %3120 = vmatpush.msra.mxu0 %v2927
    %3121 = vmatpush.msra.mxu0 %v2919
    %3122 = vmatmul.f32.gmra.mxu0 %v2773
    %v3123 = vpop.f32.mrf.mxu0
    %v3124 = vadd.f32 %v3104, %v3123
    %3125 = vdwg.mxu0
    %3126 = vmatpush.msra.mxu0 %v2912
    %3127 = vmatpush.msra.mxu0 %v2904
    %3128 = vmatpush.msra.mxu0 %v2896
    %3129 = vmatpush.msra.mxu0 %v2888
    %3130 = vmatpush.msra.mxu0 %v2880
    %3131 = vmatpush.msra.mxu0 %v2872
    %3132 = vmatpush.msra.mxu0 %v2864
    %3133 = vmatpush.msra.mxu0 %v2856
    %3134 = vmatpush.msra.mxu0 %v2848
    %3135 = vmatpush.msra.mxu0 %v2840
    %3136 = vmatpush.msra.mxu0 %v2832
    %3137 = vmatpush.msra.mxu0 %v2824
    %3138 = vmatpush.msra.mxu0 %v2816
    %3139 = vmatpush.msra.mxu0 %v2808
    %3140 = vmatpush.msra.mxu0 %v2800
    %3141 = vmatpush.msra.mxu0 %v2792
    %3142 = vmatmul.f32.gmra.mxu0 %v2772
    %v3143 = vpop.f32.mrf.mxu0
    %v3144 = vadd.f32 0.0, %v3143
    %3145 = vdwg.mxu0
    %3146 = vmatpush.msra.mxu0 %v3040
    %3147 = vmatpush.msra.mxu0 %v3032
    %3148 = vmatpush.msra.mxu0 %v3024
    %3149 = vmatpush.msra.mxu0 %v3016
    %3150 = vmatpush.msra.mxu0 %v3008
    %3151 = vmatpush.msra.mxu0 %v3000
    %3152 = vmatpush.msra.mxu0 %v2992
    %3153 = vmatpush.msra.mxu0 %v2984
    %3154 = vmatpush.msra.mxu0 %v2976
    %3155 = vmatpush.msra.mxu0 %v2968
    %3156 = vmatpush.msra.mxu0 %v2960
    %3157 = vmatpush.msra.mxu0 %v2952
    %3158 = vmatpush.msra.mxu0 %v2944
    %3159 = vmatpush.msra.mxu0 %v2936
    %3160 = vmatpush.msra.mxu0 %v2928
    %3161 = vmatpush.msra.mxu0 %v2920
    %3162 = vmatmul.f32.gmra.mxu0 %v2773
    %v3163 = vpop.f32.mrf.mxu0
    %v3164 = vadd.f32 %v3144, %v3163
    %3165 = vdwg.mxu0
    %3166 = vmatpush.msra.mxu0 %v2913
    %3167 = vmatpush.msra.mxu0 %v2905
    %3168 = vmatpush.msra.mxu0 %v2897
    %3169 = vmatpush.msra.mxu0 %v2889
    %3170 = vmatpush.msra.mxu0 %v2881
    %3171 = vmatpush.msra.mxu0 %v2873
    %3172 = vmatpush.msra.mxu0 %v2865
    %3173 = vmatpush.msra.mxu0 %v2857
    %3174 = vmatpush.msra.mxu0 %v2849
    %3175 = vmatpush.msra.mxu0 %v2841
    %3176 = vmatpush.msra.mxu0 %v2833
    %3177 = vmatpush.msra.mxu0 %v2825
    %3178 = vmatpush.msra.mxu0 %v2817
    %3179 = vmatpush.msra.mxu0 %v2809
    %3180 = vmatpush.msra.mxu0 %v2801
    %3181 = vmatpush.msra.mxu0 %v2793
    %3182 = vmatmul.f32.gmra.mxu0 %v2772
    %v3183 = vpop.f32.mrf.mxu0
    %v3184 = vadd.f32 0.0, %v3183
    %3185 = vdwg.mxu0
    %3186 = vmatpush.msra.mxu0 %v3041
    %3187 = vmatpush.msra.mxu0 %v3033
    %3188 = vmatpush.msra.mxu0 %v3025
    %3189 = vmatpush.msra.mxu0 %v3017
    %3190 = vmatpush.msra.mxu0 %v3009
    %3191 = vmatpush.msra.mxu0 %v3001
    %3192 = vmatpush.msra.mxu0 %v2993
    %3193 = vmatpush.msra.mxu0 %v2985
    %3194 = vmatpush.msra.mxu0 %v2977
    %3195 = vmatpush.msra.mxu0 %v2969
    %3196 = vmatpush.msra.mxu0 %v2961
    %3197 = vmatpush.msra.mxu0 %v2953
    %3198 = vmatpush.msra.mxu0 %v2945
    %3199 = vmatpush.msra.mxu0 %v2937
    %3200 = vmatpush.msra.mxu0 %v2929
    %3201 = vmatpush.msra.mxu0 %v2921
    %3202 = vmatmul.f32.gmra.mxu0 %v2773
    %v3203 = vpop.f32.mrf.mxu0
    %v3204 = vadd.f32 %v3184, %v3203
    %3205 = vdwg.mxu0
    %3206 = vmatpush.msra.mxu0 %v2914
    %3207 = vmatpush.msra.mxu0 %v2906
    %3208 = vmatpush.msra.mxu0 %v2898
    %3209 = vmatpush.msra.mxu0 %v2890
    %3210 = vmatpush.msra.mxu0 %v2882
    %3211 = vmatpush.msra.mxu0 %v2874
    %3212 = vmatpush.msra.mxu0 %v2866
    %3213 = vmatpush.msra.mxu0 %v2858
    %3214 = vmatpush.msra.mxu0 %v2850
    %3215 = vmatpush.msra.mxu0 %v2842
    %3216 = vmatpush.msra.mxu0 %v2834
    %3217 = vmatpush.msra.mxu0 %v2826
    %3218 = vmatpush.msra.mxu0 %v2818
    %3219 = vmatpush.msra.mxu0 %v2810
    %3220 = vmatpush.msra.mxu0 %v2802
    %3221 = vmatpush.msra.mxu0 %v2794
    %3222 = vmatmul.f32.gmra.mxu0 %v2772
    %v3223 = vpop.f32.mrf.mxu0
    %v3224 = vadd.f32 0.0, %v3223
    %3225 = vdwg.mxu0
    %3226 = vmatpush.msra.mxu0 %v3042
    %3227 = vmatpush.msra.mxu0 %v3034
    %3228 = vmatpush.msra.mxu0 %v3026
    %3229 = vmatpush.msra.mxu0 %v3018
    %3230 = vmatpush.msra.mxu0 %v3010
    %3231 = vmatpush.msra.mxu0 %v3002
    %3232 = vmatpush.msra.mxu0 %v2994
    %3233 = vmatpush.msra.mxu0 %v2986
    %3234 = vmatpush.msra.mxu0 %v2978
    %3235 = vmatpush.msra.mxu0 %v2970
    %3236 = vmatpush.msra.mxu0 %v2962
    %3237 = vmatpush.msra.mxu0 %v2954
    %3238 = vmatpush.msra.mxu0 %v2946
    %3239 = vmatpush.msra.mxu0 %v2938
    %3240 = vmatpush.msra.mxu0 %v2930
    %3241 = vmatpush.msra.mxu0 %v2922
    %3242 = vmatmul.f32.gmra.mxu0 %v2773
    %v3243 = vpop.f32.mrf.mxu0
    %v3244 = vadd.f32 %v3224, %v3243
    %3245 = vdwg.mxu0
    %3246 = vmatpush.msra.mxu0 %v2915
    %3247 = vmatpush.msra.mxu0 %v2907
    %3248 = vmatpush.msra.mxu0 %v2899
    %3249 = vmatpush.msra.mxu0 %v2891
    %3250 = vmatpush.msra.mxu0 %v2883
    %3251 = vmatpush.msra.mxu0 %v2875
    %3252 = vmatpush.msra.mxu0 %v2867
    %3253 = vmatpush.msra.mxu0 %v2859
    %3254 = vmatpush.msra.mxu0 %v2851
    %3255 = vmatpush.msra.mxu0 %v2843
    %3256 = vmatpush.msra.mxu0 %v2835
    %3257 = vmatpush.msra.mxu0 %v2827
    %3258 = vmatpush.msra.mxu0 %v2819
    %3259 = vmatpush.msra.mxu0 %v2811
    %3260 = vmatpush.msra.mxu0 %v2803
    %3261 = vmatpush.msra.mxu0 %v2795
    %3262 = vmatmul.f32.gmra.mxu0 %v2772
    %v3263 = vpop.f32.mrf.mxu0
    %v3264 = vadd.f32 0.0, %v3263
    %3265 = vdwg.mxu0
    %3266 = vmatpush.msra.mxu0 %v3043
    %3267 = vmatpush.msra.mxu0 %v3035
    %3268 = vmatpush.msra.mxu0 %v3027
    %3269 = vmatpush.msra.mxu0 %v3019
    %3270 = vmatpush.msra.mxu0 %v3011
    %3271 = vmatpush.msra.mxu0 %v3003
    %3272 = vmatpush.msra.mxu0 %v2995
    %3273 = vmatpush.msra.mxu0 %v2987
    %3274 = vmatpush.msra.mxu0 %v2979
    %3275 = vmatpush.msra.mxu0 %v2971
    %3276 = vmatpush.msra.mxu0 %v2963
    %3277 = vmatpush.msra.mxu0 %v2955
    %3278 = vmatpush.msra.mxu0 %v2947
    %3279 = vmatpush.msra.mxu0 %v2939
    %3280 = vmatpush.msra.mxu0 %v2931
    %3281 = vmatpush.msra.mxu0 %v2923
    %3282 = vmatmul.f32.gmra.mxu0 %v2773
    %v3283 = vpop.f32.mrf.mxu0
    %v3284 = vadd.f32 %v3264, %v3283
    %3285 = vdwg.mxu0
    %3286 = vmatpush.msra.mxu0 %v2916
    %3287 = vmatpush.msra.mxu0 %v2908
    %3288 = vmatpush.msra.mxu0 %v2900
    %3289 = vmatpush.msra.mxu0 %v2892
    %3290 = vmatpush.msra.mxu0 %v2884
    %3291 = vmatpush.msra.mxu0 %v2876
    %3292 = vmatpush.msra.mxu0 %v2868
    %3293 = vmatpush.msra.mxu0 %v2860
    %3294 = vmatpush.msra.mxu0 %v2852
    %3295 = vmatpush.msra.mxu0 %v2844
    %3296 = vmatpush.msra.mxu0 %v2836
    %3297 = vmatpush.msra.mxu0 %v2828
    %3298 = vmatpush.msra.mxu0 %v2820
    %3299 = vmatpush.msra.mxu0 %v2812
    %3300 = vmatpush.msra.mxu0 %v2804
    %3301 = vmatpush.msra.mxu0 %v2796
    %3302 = vmatmul.f32.gmra.mxu0 %v2772
    %v3303 = vpop.f32.mrf.mxu0
    %v3304 = vadd.f32 0.0, %v3303
    %3305 = vdwg.mxu0
    %3306 = vmatpush.msra.mxu0 %v3044
    %3307 = vmatpush.msra.mxu0 %v3036
    %3308 = vmatpush.msra.mxu0 %v3028
    %3309 = vmatpush.msra.mxu0 %v3020
    %3310 = vmatpush.msra.mxu0 %v3012
    %3311 = vmatpush.msra.mxu0 %v3004
    %3312 = vmatpush.msra.mxu0 %v2996
    %3313 = vmatpush.msra.mxu0 %v2988
    %3314 = vmatpush.msra.mxu0 %v2980
    %3315 = vmatpush.msra.mxu0 %v2972
    %3316 = vmatpush.msra.mxu0 %v2964
    %3317 = vmatpush.msra.mxu0 %v2956
    %3318 = vmatpush.msra.mxu0 %v2948
    %3319 = vmatpush.msra.mxu0 %v2940
    %3320 = vmatpush.msra.mxu0 %v2932
    %3321 = vmatpush.msra.mxu0 %v2924
    %3322 = vmatmul.f32.gmra.mxu0 %v2773
    %v3323 = vpop.f32.mrf.mxu0
    %v3324 = vadd.f32 %v3304, %v3323
    %3325 = vdwg.mxu0
    %3326 = vmatpush.msra.mxu0 %v2917
    %3327 = vmatpush.msra.mxu0 %v2909
    %3328 = vmatpush.msra.mxu0 %v2901
    %3329 = vmatpush.msra.mxu0 %v2893
    %3330 = vmatpush.msra.mxu0 %v2885
    %3331 = vmatpush.msra.mxu0 %v2877
    %3332 = vmatpush.msra.mxu0 %v2869
    %3333 = vmatpush.msra.mxu0 %v2861
    %3334 = vmatpush.msra.mxu0 %v2853
    %3335 = vmatpush.msra.mxu0 %v2845
    %3336 = vmatpush.msra.mxu0 %v2837
    %3337 = vmatpush.msra.mxu0 %v2829
    %3338 = vmatpush.msra.mxu0 %v2821
    %3339 = vmatpush.msra.mxu0 %v2813
    %3340 = vmatpush.msra.mxu0 %v2805
    %3341 = vmatpush.msra.mxu0 %v2797
    %3342 = vmatmul.f32.gmra.mxu0 %v2772
    %v3343 = vpop.f32.mrf.mxu0
    %v3344 = vadd.f32 0.0, %v3343
    %3345 = vdwg.mxu0
    %3346 = vmatpush.msra.mxu0 %v3045
    %3347 = vmatpush.msra.mxu0 %v3037
    %3348 = vmatpush.msra.mxu0 %v3029
    %3349 = vmatpush.msra.mxu0 %v3021
    %3350 = vmatpush.msra.mxu0 %v3013
    %3351 = vmatpush.msra.mxu0 %v3005
    %3352 = vmatpush.msra.mxu0 %v2997
    %3353 = vmatpush.msra.mxu0 %v2989
    %3354 = vmatpush.msra.mxu0 %v2981
    %3355 = vmatpush.msra.mxu0 %v2973
    %3356 = vmatpush.msra.mxu0 %v2965
    %3357 = vmatpush.msra.mxu0 %v2957
    %3358 = vmatpush.msra.mxu0 %v2949
    %3359 = vmatpush.msra.mxu0 %v2941
    %3360 = vmatpush.msra.mxu0 %v2933
    %3361 = vmatpush.msra.mxu0 %v2925
    %3362 = vmatmul.f32.gmra.mxu0 %v2773
    %v3363 = vpop.f32.mrf.mxu0
    %v3364 = vadd.f32 %v3344, %v3363
    %3365 = vdwg.mxu0
    %v3366 = vadd.f32 %v2782, %v3084
    %v3367 = vadd.f32 %v2783, %v3124
    %v3368 = vadd.f32 %v2784, %v3164
    %v3369 = vadd.f32 %v2785, %v3204
    %v3370 = vadd.f32 %v2786, %v3244
    %v3371 = vadd.f32 %v2787, %v3284
    %v3372 = vadd.f32 %v2788, %v3324
    %v3373 = vadd.f32 %v2789, %v3364
    %v3374 = vxor.u32 %v3366, 2147483648
    %v3375 = vxor.u32 %v3367, 2147483648
    %v3376 = vxor.u32 %v3368, 2147483648
    %v3377 = vxor.u32 %v3369, 2147483648
    %v3378 = vxor.u32 %v3372, 2147483648
    %v3379 = vxor.u32 %v3373, 2147483648
    %v3380 = vmul.f32 %v3374, 1.442695
    %v3381 = vpow.pop %v3380
    %v3382 = vmul.f32 %v3375, 1.442695
    %v3383 = vpow.pop %v3382
    %v3384 = vmul.f32 %v3376, 1.442695
    %v3385 = vpow.pop %v3384
    %v3386 = vmul.f32 %v3377, 1.442695
    %v3387 = vpow.pop %v3386
    %v3388 = vmul.f32 %v3378, 1.442695
    %v3389 = vpow.pop %v3388
    %v3390 = vmul.f32 %v3379, 1.442695
    %v3391 = vpow.pop %v3390
    %v3392 = vadd.f32 %v3381, 1.0
    %v3393 = vadd.f32 %v3383, 1.0
    %v3394 = vadd.f32 %v3385, 1.0
    %v3395 = vadd.f32 %v3387, 1.0
    %v3396 = vadd.f32 %v3389, 1.0
    %v3397 = vadd.f32 %v3391, 1.0
    %v3398 = vrcp.pop %v3392
    %v3399 = vmul.f32 %v3392, %v3398
    %v3400 = vsub.f32 1.0, %v3399
    %v3401 = vmul.f32 %v3398, %v3400
    %v3402 = vadd.f32 %v3398, %v3401
    %vm3403 = vweird.f32 %v3392
    %vm3404 = vweird.f32 %v3398
    %vm3405 = vmor %vm3403, %vm3404
    %v3406 = vsel %vm3405, %v3398, %v3402
    %v3407 = vand.u32 2147483647, %v3392
    %vm3408 = vcmp.eq.f32.partialorder %v3407, 8.507059e+37
    %v3409 = vand.u32 %v3392, 2147483648
    %v3410 = vor.u32 1.1754944e-38, %v3409
    %v3411 = vsel %vm3408, %v3410, %v3406
    %v3412 = vmul.f32 1.0, %v3411
    %v3413 = vrcp.pop %v3393
    %v3414 = vmul.f32 %v3393, %v3413
    %v3415 = vsub.f32 1.0, %v3414
    %v3416 = vmul.f32 %v3413, %v3415
    %v3417 = vadd.f32 %v3413, %v3416
    %vm3418 = vweird.f32 %v3393
    %vm3419 = vweird.f32 %v3413
    %vm3420 = vmor %vm3418, %vm3419
    %v3421 = vsel %vm3420, %v3413, %v3417
    %v3422 = vand.u32 2147483647, %v3393
    %vm3423 = vcmp.eq.f32.partialorder %v3422, 8.507059e+37
    %v3424 = vand.u32 %v3393, 2147483648
    %v3425 = vor.u32 1.1754944e-38, %v3424
    %v3426 = vsel %vm3423, %v3425, %v3421
    %v3427 = vmul.f32 1.0, %v3426
    %v3428 = vrcp.pop %v3394
    %v3429 = vmul.f32 %v3394, %v3428
    %v3430 = vsub.f32 1.0, %v3429
    %v3431 = vmul.f32 %v3428, %v3430
    %v3432 = vadd.f32 %v3428, %v3431
    %vm3433 = vweird.f32 %v3394
    %vm3434 = vweird.f32 %v3428
    %vm3435 = vmor %vm3433, %vm3434
    %v3436 = vsel %vm3435, %v3428, %v3432
    %v3437 = vand.u32 2147483647, %v3394
    %vm3438 = vcmp.eq.f32.partialorder %v3437, 8.507059e+37
    %v3439 = vand.u32 %v3394, 2147483648
    %v3440 = vor.u32 1.1754944e-38, %v3439
    %v3441 = vsel %vm3438, %v3440, %v3436
    %v3442 = vmul.f32 1.0, %v3441
    %v3443 = vrcp.pop %v3395
    %v3444 = vmul.f32 %v3395, %v3443
    %v3445 = vsub.f32 1.0, %v3444
    %v3446 = vmul.f32 %v3443, %v3445
    %v3447 = vadd.f32 %v3443, %v3446
    %vm3448 = vweird.f32 %v3395
    %vm3449 = vweird.f32 %v3443
    %vm3450 = vmor %vm3448, %vm3449
    %v3451 = vsel %vm3450, %v3443, %v3447
    %v3452 = vand.u32 2147483647, %v3395
    %vm3453 = vcmp.eq.f32.partialorder %v3452, 8.507059e+37
    %v3454 = vand.u32 %v3395, 2147483648
    %v3455 = vor.u32 1.1754944e-38, %v3454
    %v3456 = vsel %vm3453, %v3455, %v3451
    %v3457 = vmul.f32 1.0, %v3456
    %v3458 = vrcp.pop %v3396
    %v3459 = vmul.f32 %v3396, %v3458
    %v3460 = vsub.f32 1.0, %v3459
    %v3461 = vmul.f32 %v3458, %v3460
    %v3462 = vadd.f32 %v3458, %v3461
    %vm3463 = vweird.f32 %v3396
    %vm3464 = vweird.f32 %v3458
    %vm3465 = vmor %vm3463, %vm3464
    %v3466 = vsel %vm3465, %v3458, %v3462
    %v3467 = vand.u32 2147483647, %v3396
    %vm3468 = vcmp.eq.f32.partialorder %v3467, 8.507059e+37
    %v3469 = vand.u32 %v3396, 2147483648
    %v3470 = vor.u32 1.1754944e-38, %v3469
    %v3471 = vsel %vm3468, %v3470, %v3466
    %v3472 = vmul.f32 1.0, %v3471
    %v3473 = vrcp.pop %v3397
    %v3474 = vmul.f32 %v3397, %v3473
    %v3475 = vsub.f32 1.0, %v3474
    %v3476 = vmul.f32 %v3473, %v3475
    %v3477 = vadd.f32 %v3473, %v3476
    %vm3478 = vweird.f32 %v3397
    %vm3479 = vweird.f32 %v3473
    %vm3480 = vmor %vm3478, %vm3479
    %v3481 = vsel %vm3480, %v3473, %v3477
    %v3482 = vand.u32 2147483647, %v3397
    %vm3483 = vcmp.eq.f32.partialorder %v3482, 8.507059e+37
    %v3484 = vand.u32 %v3397, 2147483648
    %v3485 = vor.u32 1.1754944e-38, %v3484
    %v3486 = vsel %vm3483, %v3485, %v3481
    %v3487 = vmul.f32 1.0, %v3486
    %v3488 = vtanh.pop %v3370
    %v3489 = vtanh.pop %v3371
    %v3490 = vmul.f32 %v3442, %v2768
    %v3491 = vmul.f32 %v3457, %v2769
    %v3492 = vmul.f32 %v3412, %v3488
    %v3493 = vmul.f32 %v3427, %v3489
    %v3494 = vadd.f32 %v3490, %v3492
    %v3495 = vadd.f32 %v3491, %v3493
    %v3496 = vtanh.pop %v3494
    %v3497 = vtanh.pop %v3495
    %v3498 = vmul.f32 %v3472, %v3496
    %v3499 = vmul.f32 %v3487, %v3497
    %s3500 = smul.u32 3, 2
    %s3501 = smul.addr %s3500, 8
    %s3502 = scalar_lea.vmem [#allocation3], %s3501
    %3503 = vst [vmem:[%s3502] sm:$0xff] %v3498
    %3504 = vst [vmem:[%s3502 + $0x8] sm:$0xff] %v3499
    %s3505 = smul.u32 4, 8
    %s3506 = smul.addr %s3505, 8
    %s3507 = scalar_lea.vmem [#allocation2], %s3506
    %v3508 = vld [vmem:[%s3507] sm:$0xff]
    %v3509 = vld [vmem:[%s3507 + $0x8] sm:$0xff]
    %v3510 = vld [vmem:[%s3507 + $0x10] sm:$0xff]
    %v3511 = vld [vmem:[%s3507 + $0x18] sm:$0xff]
    %v3512 = vld [vmem:[%s3507 + $0x20] sm:$0xff]
    %v3513 = vld [vmem:[%s3507 + $0x28] sm:$0xff]
    %v3514 = vld [vmem:[%s3507 + $0x30] sm:$0xff]
    %v3515 = vld [vmem:[%s3507 + $0x38] sm:$0xff]
    %v3516 = vld [vmem:[#allocation6] sm:$0xff]
    %v3517 = vld [vmem:[#allocation6 + $0x8] sm:$0xff]
    %v3518 = vld [vmem:[#allocation6 + $0x10] sm:$0xff]
    %v3519 = vld [vmem:[#allocation6 + $0x18] sm:$0xff]
    %v3520 = vld [vmem:[#allocation6 + $0x20] sm:$0xff]
    %v3521 = vld [vmem:[#allocation6 + $0x28] sm:$0xff]
    %v3522 = vld [vmem:[#allocation6 + $0x30] sm:$0xff]
    %v3523 = vld [vmem:[#allocation6 + $0x38] sm:$0xff]
    %v3524 = vld [vmem:[#allocation6 + $0x40] sm:$0xff]
    %v3525 = vld [vmem:[#allocation6 + $0x48] sm:$0xff]
    %v3526 = vld [vmem:[#allocation6 + $0x50] sm:$0xff]
    %v3527 = vld [vmem:[#allocation6 + $0x58] sm:$0xff]
    %v3528 = vld [vmem:[#allocation6 + $0x60] sm:$0xff]
    %v3529 = vld [vmem:[#allocation6 + $0x68] sm:$0xff]
    %v3530 = vld [vmem:[#allocation6 + $0x70] sm:$0xff]
    %v3531 = vld [vmem:[#allocation6 + $0x78] sm:$0xff]
    %v3532 = vld [vmem:[#allocation6 + $0x80] sm:$0xff]
    %v3533 = vld [vmem:[#allocation6 + $0x88] sm:$0xff]
    %v3534 = vld [vmem:[#allocation6 + $0x90] sm:$0xff]
    %v3535 = vld [vmem:[#allocation6 + $0x98] sm:$0xff]
    %v3536 = vld [vmem:[#allocation6 + $0xa0] sm:$0xff]
    %v3537 = vld [vmem:[#allocation6 + $0xa8] sm:$0xff]
    %v3538 = vld [vmem:[#allocation6 + $0xb0] sm:$0xff]
    %v3539 = vld [vmem:[#allocation6 + $0xb8] sm:$0xff]
    %v3540 = vld [vmem:[#allocation6 + $0xc0] sm:$0xff]
    %v3541 = vld [vmem:[#allocation6 + $0xc8] sm:$0xff]
    %v3542 = vld [vmem:[#allocation6 + $0xd0] sm:$0xff]
    %v3543 = vld [vmem:[#allocation6 + $0xd8] sm:$0xff]
    %v3544 = vld [vmem:[#allocation6 + $0xe0] sm:$0xff]
    %v3545 = vld [vmem:[#allocation6 + $0xe8] sm:$0xff]
    %v3546 = vld [vmem:[#allocation6 + $0xf0] sm:$0xff]
    %v3547 = vld [vmem:[#allocation6 + $0xf8] sm:$0xff]
    %v3548 = vld [vmem:[#allocation6 + $0x100] sm:$0xff]
    %v3549 = vld [vmem:[#allocation6 + $0x108] sm:$0xff]
    %v3550 = vld [vmem:[#allocation6 + $0x110] sm:$0xff]
    %v3551 = vld [vmem:[#allocation6 + $0x118] sm:$0xff]
    %v3552 = vld [vmem:[#allocation6 + $0x120] sm:$0xff]
    %v3553 = vld [vmem:[#allocation6 + $0x128] sm:$0xff]
    %v3554 = vld [vmem:[#allocation6 + $0x130] sm:$0xff]
    %v3555 = vld [vmem:[#allocation6 + $0x138] sm:$0xff]
    %v3556 = vld [vmem:[#allocation6 + $0x140] sm:$0xff]
    %v3557 = vld [vmem:[#allocation6 + $0x148] sm:$0xff]
    %v3558 = vld [vmem:[#allocation6 + $0x150] sm:$0xff]
    %v3559 = vld [vmem:[#allocation6 + $0x158] sm:$0xff]
    %v3560 = vld [vmem:[#allocation6 + $0x160] sm:$0xff]
    %v3561 = vld [vmem:[#allocation6 + $0x168] sm:$0xff]
    %v3562 = vld [vmem:[#allocation6 + $0x170] sm:$0xff]
    %v3563 = vld [vmem:[#allocation6 + $0x178] sm:$0xff]
    %v3564 = vld [vmem:[#allocation6 + $0x180] sm:$0xff]
    %v3565 = vld [vmem:[#allocation6 + $0x188] sm:$0xff]
    %v3566 = vld [vmem:[#allocation6 + $0x190] sm:$0xff]
    %v3567 = vld [vmem:[#allocation6 + $0x198] sm:$0xff]
    %v3568 = vld [vmem:[#allocation6 + $0x1a0] sm:$0xff]
    %v3569 = vld [vmem:[#allocation6 + $0x1a8] sm:$0xff]
    %v3570 = vld [vmem:[#allocation6 + $0x1b0] sm:$0xff]
    %v3571 = vld [vmem:[#allocation6 + $0x1b8] sm:$0xff]
    %v3572 = vld [vmem:[#allocation6 + $0x1c0] sm:$0xff]
    %v3573 = vld [vmem:[#allocation6 + $0x1c8] sm:$0xff]
    %v3574 = vld [vmem:[#allocation6 + $0x1d0] sm:$0xff]
    %v3575 = vld [vmem:[#allocation6 + $0x1d8] sm:$0xff]
    %v3576 = vld [vmem:[#allocation6 + $0x1e0] sm:$0xff]
    %v3577 = vld [vmem:[#allocation6 + $0x1e8] sm:$0xff]
    %v3578 = vld [vmem:[#allocation6 + $0x1f0] sm:$0xff]
    %v3579 = vld [vmem:[#allocation6 + $0x1f8] sm:$0xff]
    %v3580 = vld [vmem:[#allocation6 + $0x200] sm:$0xff]
    %v3581 = vld [vmem:[#allocation6 + $0x208] sm:$0xff]
    %v3582 = vld [vmem:[#allocation6 + $0x210] sm:$0xff]
    %v3583 = vld [vmem:[#allocation6 + $0x218] sm:$0xff]
    %v3584 = vld [vmem:[#allocation6 + $0x220] sm:$0xff]
    %v3585 = vld [vmem:[#allocation6 + $0x228] sm:$0xff]
    %v3586 = vld [vmem:[#allocation6 + $0x230] sm:$0xff]
    %v3587 = vld [vmem:[#allocation6 + $0x238] sm:$0xff]
    %v3588 = vld [vmem:[#allocation6 + $0x240] sm:$0xff]
    %v3589 = vld [vmem:[#allocation6 + $0x248] sm:$0xff]
    %v3590 = vld [vmem:[#allocation6 + $0x250] sm:$0xff]
    %v3591 = vld [vmem:[#allocation6 + $0x258] sm:$0xff]
    %v3592 = vld [vmem:[#allocation6 + $0x260] sm:$0xff]
    %v3593 = vld [vmem:[#allocation6 + $0x268] sm:$0xff]
    %v3594 = vld [vmem:[#allocation6 + $0x270] sm:$0xff]
    %v3595 = vld [vmem:[#allocation6 + $0x278] sm:$0xff]
    %v3596 = vld [vmem:[#allocation6 + $0x280] sm:$0xff]
    %v3597 = vld [vmem:[#allocation6 + $0x288] sm:$0xff]
    %v3598 = vld [vmem:[#allocation6 + $0x290] sm:$0xff]
    %v3599 = vld [vmem:[#allocation6 + $0x298] sm:$0xff]
    %v3600 = vld [vmem:[#allocation6 + $0x2a0] sm:$0xff]
    %v3601 = vld [vmem:[#allocation6 + $0x2a8] sm:$0xff]
    %v3602 = vld [vmem:[#allocation6 + $0x2b0] sm:$0xff]
    %v3603 = vld [vmem:[#allocation6 + $0x2b8] sm:$0xff]
    %v3604 = vld [vmem:[#allocation6 + $0x2c0] sm:$0xff]
    %v3605 = vld [vmem:[#allocation6 + $0x2c8] sm:$0xff]
    %v3606 = vld [vmem:[#allocation6 + $0x2d0] sm:$0xff]
    %v3607 = vld [vmem:[#allocation6 + $0x2d8] sm:$0xff]
    %v3608 = vld [vmem:[#allocation6 + $0x2e0] sm:$0xff]
    %v3609 = vld [vmem:[#allocation6 + $0x2e8] sm:$0xff]
    %v3610 = vld [vmem:[#allocation6 + $0x2f0] sm:$0xff]
    %v3611 = vld [vmem:[#allocation6 + $0x2f8] sm:$0xff]
    %v3612 = vld [vmem:[#allocation6 + $0x300] sm:$0xff]
    %v3613 = vld [vmem:[#allocation6 + $0x308] sm:$0xff]
    %v3614 = vld [vmem:[#allocation6 + $0x310] sm:$0xff]
    %v3615 = vld [vmem:[#allocation6 + $0x318] sm:$0xff]
    %v3616 = vld [vmem:[#allocation6 + $0x320] sm:$0xff]
    %v3617 = vld [vmem:[#allocation6 + $0x328] sm:$0xff]
    %v3618 = vld [vmem:[#allocation6 + $0x330] sm:$0xff]
    %v3619 = vld [vmem:[#allocation6 + $0x338] sm:$0xff]
    %v3620 = vld [vmem:[#allocation6 + $0x340] sm:$0xff]
    %v3621 = vld [vmem:[#allocation6 + $0x348] sm:$0xff]
    %v3622 = vld [vmem:[#allocation6 + $0x350] sm:$0xff]
    %v3623 = vld [vmem:[#allocation6 + $0x358] sm:$0xff]
    %v3624 = vld [vmem:[#allocation6 + $0x360] sm:$0xff]
    %v3625 = vld [vmem:[#allocation6 + $0x368] sm:$0xff]
    %v3626 = vld [vmem:[#allocation6 + $0x370] sm:$0xff]
    %v3627 = vld [vmem:[#allocation6 + $0x378] sm:$0xff]
    %v3628 = vld [vmem:[#allocation6 + $0x380] sm:$0xff]
    %v3629 = vld [vmem:[#allocation6 + $0x388] sm:$0xff]
    %v3630 = vld [vmem:[#allocation6 + $0x390] sm:$0xff]
    %v3631 = vld [vmem:[#allocation6 + $0x398] sm:$0xff]
    %v3632 = vld [vmem:[#allocation6 + $0x3a0] sm:$0xff]
    %v3633 = vld [vmem:[#allocation6 + $0x3a8] sm:$0xff]
    %v3634 = vld [vmem:[#allocation6 + $0x3b0] sm:$0xff]
    %v3635 = vld [vmem:[#allocation6 + $0x3b8] sm:$0xff]
    %v3636 = vld [vmem:[#allocation6 + $0x3c0] sm:$0xff]
    %v3637 = vld [vmem:[#allocation6 + $0x3c8] sm:$0xff]
    %v3638 = vld [vmem:[#allocation6 + $0x3d0] sm:$0xff]
    %v3639 = vld [vmem:[#allocation6 + $0x3d8] sm:$0xff]
    %v3640 = vld [vmem:[#allocation6 + $0x3e0] sm:$0xff]
    %v3641 = vld [vmem:[#allocation6 + $0x3e8] sm:$0xff]
    %v3642 = vld [vmem:[#allocation6 + $0x3f0] sm:$0xff]
    %v3643 = vld [vmem:[#allocation6 + $0x3f8] sm:$0xff]
    %v3644 = vld [vmem:[#allocation6 + $0x400] sm:$0xff]
    %v3645 = vld [vmem:[#allocation6 + $0x408] sm:$0xff]
    %v3646 = vld [vmem:[#allocation6 + $0x410] sm:$0xff]
    %v3647 = vld [vmem:[#allocation6 + $0x418] sm:$0xff]
    %v3648 = vld [vmem:[#allocation6 + $0x420] sm:$0xff]
    %v3649 = vld [vmem:[#allocation6 + $0x428] sm:$0xff]
    %v3650 = vld [vmem:[#allocation6 + $0x430] sm:$0xff]
    %v3651 = vld [vmem:[#allocation6 + $0x438] sm:$0xff]
    %v3652 = vld [vmem:[#allocation6 + $0x440] sm:$0xff]
    %v3653 = vld [vmem:[#allocation6 + $0x448] sm:$0xff]
    %v3654 = vld [vmem:[#allocation6 + $0x450] sm:$0xff]
    %v3655 = vld [vmem:[#allocation6 + $0x458] sm:$0xff]
    %v3656 = vld [vmem:[#allocation6 + $0x460] sm:$0xff]
    %v3657 = vld [vmem:[#allocation6 + $0x468] sm:$0xff]
    %v3658 = vld [vmem:[#allocation6 + $0x470] sm:$0xff]
    %v3659 = vld [vmem:[#allocation6 + $0x478] sm:$0xff]
    %v3660 = vld [vmem:[#allocation6 + $0x480] sm:$0xff]
    %v3661 = vld [vmem:[#allocation6 + $0x488] sm:$0xff]
    %v3662 = vld [vmem:[#allocation6 + $0x490] sm:$0xff]
    %v3663 = vld [vmem:[#allocation6 + $0x498] sm:$0xff]
    %v3664 = vld [vmem:[#allocation6 + $0x4a0] sm:$0xff]
    %v3665 = vld [vmem:[#allocation6 + $0x4a8] sm:$0xff]
    %v3666 = vld [vmem:[#allocation6 + $0x4b0] sm:$0xff]
    %v3667 = vld [vmem:[#allocation6 + $0x4b8] sm:$0xff]
    %v3668 = vld [vmem:[#allocation6 + $0x4c0] sm:$0xff]
    %v3669 = vld [vmem:[#allocation6 + $0x4c8] sm:$0xff]
    %v3670 = vld [vmem:[#allocation6 + $0x4d0] sm:$0xff]
    %v3671 = vld [vmem:[#allocation6 + $0x4d8] sm:$0xff]
    %v3672 = vld [vmem:[#allocation6 + $0x4e0] sm:$0xff]
    %v3673 = vld [vmem:[#allocation6 + $0x4e8] sm:$0xff]
    %v3674 = vld [vmem:[#allocation6 + $0x4f0] sm:$0xff]
    %v3675 = vld [vmem:[#allocation6 + $0x4f8] sm:$0xff]
    %v3676 = vld [vmem:[#allocation6 + $0x500] sm:$0xff]
    %v3677 = vld [vmem:[#allocation6 + $0x508] sm:$0xff]
    %v3678 = vld [vmem:[#allocation6 + $0x510] sm:$0xff]
    %v3679 = vld [vmem:[#allocation6 + $0x518] sm:$0xff]
    %v3680 = vld [vmem:[#allocation6 + $0x520] sm:$0xff]
    %v3681 = vld [vmem:[#allocation6 + $0x528] sm:$0xff]
    %v3682 = vld [vmem:[#allocation6 + $0x530] sm:$0xff]
    %v3683 = vld [vmem:[#allocation6 + $0x538] sm:$0xff]
    %v3684 = vld [vmem:[#allocation6 + $0x540] sm:$0xff]
    %v3685 = vld [vmem:[#allocation6 + $0x548] sm:$0xff]
    %v3686 = vld [vmem:[#allocation6 + $0x550] sm:$0xff]
    %v3687 = vld [vmem:[#allocation6 + $0x558] sm:$0xff]
    %v3688 = vld [vmem:[#allocation6 + $0x560] sm:$0xff]
    %v3689 = vld [vmem:[#allocation6 + $0x568] sm:$0xff]
    %v3690 = vld [vmem:[#allocation6 + $0x570] sm:$0xff]
    %v3691 = vld [vmem:[#allocation6 + $0x578] sm:$0xff]
    %v3692 = vld [vmem:[#allocation6 + $0x580] sm:$0xff]
    %v3693 = vld [vmem:[#allocation6 + $0x588] sm:$0xff]
    %v3694 = vld [vmem:[#allocation6 + $0x590] sm:$0xff]
    %v3695 = vld [vmem:[#allocation6 + $0x598] sm:$0xff]
    %v3696 = vld [vmem:[#allocation6 + $0x5a0] sm:$0xff]
    %v3697 = vld [vmem:[#allocation6 + $0x5a8] sm:$0xff]
    %v3698 = vld [vmem:[#allocation6 + $0x5b0] sm:$0xff]
    %v3699 = vld [vmem:[#allocation6 + $0x5b8] sm:$0xff]
    %v3700 = vld [vmem:[#allocation6 + $0x5c0] sm:$0xff]
    %v3701 = vld [vmem:[#allocation6 + $0x5c8] sm:$0xff]
    %v3702 = vld [vmem:[#allocation6 + $0x5d0] sm:$0xff]
    %v3703 = vld [vmem:[#allocation6 + $0x5d8] sm:$0xff]
    %v3704 = vld [vmem:[#allocation6 + $0x5e0] sm:$0xff]
    %v3705 = vld [vmem:[#allocation6 + $0x5e8] sm:$0xff]
    %v3706 = vld [vmem:[#allocation6 + $0x5f0] sm:$0xff]
    %v3707 = vld [vmem:[#allocation6 + $0x5f8] sm:$0xff]
    %v3708 = vld [vmem:[#allocation6 + $0x600] sm:$0xff]
    %v3709 = vld [vmem:[#allocation6 + $0x608] sm:$0xff]
    %v3710 = vld [vmem:[#allocation6 + $0x610] sm:$0xff]
    %v3711 = vld [vmem:[#allocation6 + $0x618] sm:$0xff]
    %v3712 = vld [vmem:[#allocation6 + $0x620] sm:$0xff]
    %v3713 = vld [vmem:[#allocation6 + $0x628] sm:$0xff]
    %v3714 = vld [vmem:[#allocation6 + $0x630] sm:$0xff]
    %v3715 = vld [vmem:[#allocation6 + $0x638] sm:$0xff]
    %v3716 = vld [vmem:[#allocation6 + $0x640] sm:$0xff]
    %v3717 = vld [vmem:[#allocation6 + $0x648] sm:$0xff]
    %v3718 = vld [vmem:[#allocation6 + $0x650] sm:$0xff]
    %v3719 = vld [vmem:[#allocation6 + $0x658] sm:$0xff]
    %v3720 = vld [vmem:[#allocation6 + $0x660] sm:$0xff]
    %v3721 = vld [vmem:[#allocation6 + $0x668] sm:$0xff]
    %v3722 = vld [vmem:[#allocation6 + $0x670] sm:$0xff]
    %v3723 = vld [vmem:[#allocation6 + $0x678] sm:$0xff]
    %v3724 = vld [vmem:[#allocation6 + $0x680] sm:$0xff]
    %v3725 = vld [vmem:[#allocation6 + $0x688] sm:$0xff]
    %v3726 = vld [vmem:[#allocation6 + $0x690] sm:$0xff]
    %v3727 = vld [vmem:[#allocation6 + $0x698] sm:$0xff]
    %v3728 = vld [vmem:[#allocation6 + $0x6a0] sm:$0xff]
    %v3729 = vld [vmem:[#allocation6 + $0x6a8] sm:$0xff]
    %v3730 = vld [vmem:[#allocation6 + $0x6b0] sm:$0xff]
    %v3731 = vld [vmem:[#allocation6 + $0x6b8] sm:$0xff]
    %v3732 = vld [vmem:[#allocation6 + $0x6c0] sm:$0xff]
    %v3733 = vld [vmem:[#allocation6 + $0x6c8] sm:$0xff]
    %v3734 = vld [vmem:[#allocation6 + $0x6d0] sm:$0xff]
    %v3735 = vld [vmem:[#allocation6 + $0x6d8] sm:$0xff]
    %v3736 = vld [vmem:[#allocation6 + $0x6e0] sm:$0xff]
    %v3737 = vld [vmem:[#allocation6 + $0x6e8] sm:$0xff]
    %v3738 = vld [vmem:[#allocation6 + $0x6f0] sm:$0xff]
    %v3739 = vld [vmem:[#allocation6 + $0x6f8] sm:$0xff]
    %v3740 = vld [vmem:[#allocation6 + $0x700] sm:$0xff]
    %v3741 = vld [vmem:[#allocation6 + $0x708] sm:$0xff]
    %v3742 = vld [vmem:[#allocation6 + $0x710] sm:$0xff]
    %v3743 = vld [vmem:[#allocation6 + $0x718] sm:$0xff]
    %v3744 = vld [vmem:[#allocation6 + $0x720] sm:$0xff]
    %v3745 = vld [vmem:[#allocation6 + $0x728] sm:$0xff]
    %v3746 = vld [vmem:[#allocation6 + $0x730] sm:$0xff]
    %v3747 = vld [vmem:[#allocation6 + $0x738] sm:$0xff]
    %v3748 = vld [vmem:[#allocation6 + $0x740] sm:$0xff]
    %v3749 = vld [vmem:[#allocation6 + $0x748] sm:$0xff]
    %v3750 = vld [vmem:[#allocation6 + $0x750] sm:$0xff]
    %v3751 = vld [vmem:[#allocation6 + $0x758] sm:$0xff]
    %v3752 = vld [vmem:[#allocation6 + $0x760] sm:$0xff]
    %v3753 = vld [vmem:[#allocation6 + $0x768] sm:$0xff]
    %v3754 = vld [vmem:[#allocation6 + $0x770] sm:$0xff]
    %v3755 = vld [vmem:[#allocation6 + $0x778] sm:$0xff]
    %v3756 = vld [vmem:[#allocation6 + $0x780] sm:$0xff]
    %v3757 = vld [vmem:[#allocation6 + $0x788] sm:$0xff]
    %v3758 = vld [vmem:[#allocation6 + $0x790] sm:$0xff]
    %v3759 = vld [vmem:[#allocation6 + $0x798] sm:$0xff]
    %v3760 = vld [vmem:[#allocation6 + $0x7a0] sm:$0xff]
    %v3761 = vld [vmem:[#allocation6 + $0x7a8] sm:$0xff]
    %v3762 = vld [vmem:[#allocation6 + $0x7b0] sm:$0xff]
    %v3763 = vld [vmem:[#allocation6 + $0x7b8] sm:$0xff]
    %v3764 = vld [vmem:[#allocation6 + $0x7c0] sm:$0xff]
    %v3765 = vld [vmem:[#allocation6 + $0x7c8] sm:$0xff]
    %v3766 = vld [vmem:[#allocation6 + $0x7d0] sm:$0xff]
    %v3767 = vld [vmem:[#allocation6 + $0x7d8] sm:$0xff]
    %v3768 = vld [vmem:[#allocation6 + $0x7e0] sm:$0xff]
    %v3769 = vld [vmem:[#allocation6 + $0x7e8] sm:$0xff]
    %v3770 = vld [vmem:[#allocation6 + $0x7f0] sm:$0xff]
    %v3771 = vld [vmem:[#allocation6 + $0x7f8] sm:$0xff]
    %3772 = vmatpush.msra.mxu0 %v3636
    %3773 = vmatpush.msra.mxu0 %v3628
    %3774 = vmatpush.msra.mxu0 %v3620
    %3775 = vmatpush.msra.mxu0 %v3612
    %3776 = vmatpush.msra.mxu0 %v3604
    %3777 = vmatpush.msra.mxu0 %v3596
    %3778 = vmatpush.msra.mxu0 %v3588
    %3779 = vmatpush.msra.mxu0 %v3580
    %3780 = vmatpush.msra.mxu0 %v3572
    %3781 = vmatpush.msra.mxu0 %v3564
    %3782 = vmatpush.msra.mxu0 %v3556
    %3783 = vmatpush.msra.mxu0 %v3548
    %3784 = vmatpush.msra.mxu0 %v3540
    %3785 = vmatpush.msra.mxu0 %v3532
    %3786 = vmatpush.msra.mxu0 %v3524
    %3787 = vmatpush.msra.mxu0 %v3516
    %3788 = vmatmul.f32.gmra.mxu0 %v3498
    %v3789 = vpop.f32.mrf.mxu0
    %v3790 = vadd.f32 0.0, %v3789
    %3791 = vdwg.mxu0
    %3792 = vmatpush.msra.mxu0 %v3764
    %3793 = vmatpush.msra.mxu0 %v3756
    %3794 = vmatpush.msra.mxu0 %v3748
    %3795 = vmatpush.msra.mxu0 %v3740
    %3796 = vmatpush.msra.mxu0 %v3732
    %3797 = vmatpush.msra.mxu0 %v3724
    %3798 = vmatpush.msra.mxu0 %v3716
    %3799 = vmatpush.msra.mxu0 %v3708
    %3800 = vmatpush.msra.mxu0 %v3700
    %3801 = vmatpush.msra.mxu0 %v3692
    %3802 = vmatpush.msra.mxu0 %v3684
    %3803 = vmatpush.msra.mxu0 %v3676
    %3804 = vmatpush.msra.mxu0 %v3668
    %3805 = vmatpush.msra.mxu0 %v3660
    %3806 = vmatpush.msra.mxu0 %v3652
    %3807 = vmatpush.msra.mxu0 %v3644
    %3808 = vmatmul.f32.gmra.mxu0 %v3499
    %v3809 = vpop.f32.mrf.mxu0
    %v3810 = vadd.f32 %v3790, %v3809
    %3811 = vdwg.mxu0
    %3812 = vmatpush.msra.mxu0 %v3637
    %3813 = vmatpush.msra.mxu0 %v3629
    %3814 = vmatpush.msra.mxu0 %v3621
    %3815 = vmatpush.msra.mxu0 %v3613
    %3816 = vmatpush.msra.mxu0 %v3605
    %3817 = vmatpush.msra.mxu0 %v3597
    %3818 = vmatpush.msra.mxu0 %v3589
    %3819 = vmatpush.msra.mxu0 %v3581
    %3820 = vmatpush.msra.mxu0 %v3573
    %3821 = vmatpush.msra.mxu0 %v3565
    %3822 = vmatpush.msra.mxu0 %v3557
    %3823 = vmatpush.msra.mxu0 %v3549
    %3824 = vmatpush.msra.mxu0 %v3541
    %3825 = vmatpush.msra.mxu0 %v3533
    %3826 = vmatpush.msra.mxu0 %v3525
    %3827 = vmatpush.msra.mxu0 %v3517
    %3828 = vmatmul.f32.gmra.mxu0 %v3498
    %v3829 = vpop.f32.mrf.mxu0
    %v3830 = vadd.f32 0.0, %v3829
    %3831 = vdwg.mxu0
    %3832 = vmatpush.msra.mxu0 %v3765
    %3833 = vmatpush.msra.mxu0 %v3757
    %3834 = vmatpush.msra.mxu0 %v3749
    %3835 = vmatpush.msra.mxu0 %v3741
    %3836 = vmatpush.msra.mxu0 %v3733
    %3837 = vmatpush.msra.mxu0 %v3725
    %3838 = vmatpush.msra.mxu0 %v3717
    %3839 = vmatpush.msra.mxu0 %v3709
    %3840 = vmatpush.msra.mxu0 %v3701
    %3841 = vmatpush.msra.mxu0 %v3693
    %3842 = vmatpush.msra.mxu0 %v3685
    %3843 = vmatpush.msra.mxu0 %v3677
    %3844 = vmatpush.msra.mxu0 %v3669
    %3845 = vmatpush.msra.mxu0 %v3661
    %3846 = vmatpush.msra.mxu0 %v3653
    %3847 = vmatpush.msra.mxu0 %v3645
    %3848 = vmatmul.f32.gmra.mxu0 %v3499
    %v3849 = vpop.f32.mrf.mxu0
    %v3850 = vadd.f32 %v3830, %v3849
    %3851 = vdwg.mxu0
    %3852 = vmatpush.msra.mxu0 %v3638
    %3853 = vmatpush.msra.mxu0 %v3630
    %3854 = vmatpush.msra.mxu0 %v3622
    %3855 = vmatpush.msra.mxu0 %v3614
    %3856 = vmatpush.msra.mxu0 %v3606
    %3857 = vmatpush.msra.mxu0 %v3598
    %3858 = vmatpush.msra.mxu0 %v3590
    %3859 = vmatpush.msra.mxu0 %v3582
    %3860 = vmatpush.msra.mxu0 %v3574
    %3861 = vmatpush.msra.mxu0 %v3566
    %3862 = vmatpush.msra.mxu0 %v3558
    %3863 = vmatpush.msra.mxu0 %v3550
    %3864 = vmatpush.msra.mxu0 %v3542
    %3865 = vmatpush.msra.mxu0 %v3534
    %3866 = vmatpush.msra.mxu0 %v3526
    %3867 = vmatpush.msra.mxu0 %v3518
    %3868 = vmatmul.f32.gmra.mxu0 %v3498
    %v3869 = vpop.f32.mrf.mxu0
    %v3870 = vadd.f32 0.0, %v3869
    %3871 = vdwg.mxu0
    %3872 = vmatpush.msra.mxu0 %v3766
    %3873 = vmatpush.msra.mxu0 %v3758
    %3874 = vmatpush.msra.mxu0 %v3750
    %3875 = vmatpush.msra.mxu0 %v3742
    %3876 = vmatpush.msra.mxu0 %v3734
    %3877 = vmatpush.msra.mxu0 %v3726
    %3878 = vmatpush.msra.mxu0 %v3718
    %3879 = vmatpush.msra.mxu0 %v3710
    %3880 = vmatpush.msra.mxu0 %v3702
    %3881 = vmatpush.msra.mxu0 %v3694
    %3882 = vmatpush.msra.mxu0 %v3686
    %3883 = vmatpush.msra.mxu0 %v3678
    %3884 = vmatpush.msra.mxu0 %v3670
    %3885 = vmatpush.msra.mxu0 %v3662
    %3886 = vmatpush.msra.mxu0 %v3654
    %3887 = vmatpush.msra.mxu0 %v3646
    %3888 = vmatmul.f32.gmra.mxu0 %v3499
    %v3889 = vpop.f32.mrf.mxu0
    %v3890 = vadd.f32 %v3870, %v3889
    %3891 = vdwg.mxu0
    %3892 = vmatpush.msra.mxu0 %v3639
    %3893 = vmatpush.msra.mxu0 %v3631
    %3894 = vmatpush.msra.mxu0 %v3623
    %3895 = vmatpush.msra.mxu0 %v3615
    %3896 = vmatpush.msra.mxu0 %v3607
    %3897 = vmatpush.msra.mxu0 %v3599
    %3898 = vmatpush.msra.mxu0 %v3591
    %3899 = vmatpush.msra.mxu0 %v3583
    %3900 = vmatpush.msra.mxu0 %v3575
    %3901 = vmatpush.msra.mxu0 %v3567
    %3902 = vmatpush.msra.mxu0 %v3559
    %3903 = vmatpush.msra.mxu0 %v3551
    %3904 = vmatpush.msra.mxu0 %v3543
    %3905 = vmatpush.msra.mxu0 %v3535
    %3906 = vmatpush.msra.mxu0 %v3527
    %3907 = vmatpush.msra.mxu0 %v3519
    %3908 = vmatmul.f32.gmra.mxu0 %v3498
    %v3909 = vpop.f32.mrf.mxu0
    %v3910 = vadd.f32 0.0, %v3909
    %3911 = vdwg.mxu0
    %3912 = vmatpush.msra.mxu0 %v3767
    %3913 = vmatpush.msra.mxu0 %v3759
    %3914 = vmatpush.msra.mxu0 %v3751
    %3915 = vmatpush.msra.mxu0 %v3743
    %3916 = vmatpush.msra.mxu0 %v3735
    %3917 = vmatpush.msra.mxu0 %v3727
    %3918 = vmatpush.msra.mxu0 %v3719
    %3919 = vmatpush.msra.mxu0 %v3711
    %3920 = vmatpush.msra.mxu0 %v3703
    %3921 = vmatpush.msra.mxu0 %v3695
    %3922 = vmatpush.msra.mxu0 %v3687
    %3923 = vmatpush.msra.mxu0 %v3679
    %3924 = vmatpush.msra.mxu0 %v3671
    %3925 = vmatpush.msra.mxu0 %v3663
    %3926 = vmatpush.msra.mxu0 %v3655
    %3927 = vmatpush.msra.mxu0 %v3647
    %3928 = vmatmul.f32.gmra.mxu0 %v3499
    %v3929 = vpop.f32.mrf.mxu0
    %v3930 = vadd.f32 %v3910, %v3929
    %3931 = vdwg.mxu0
    %3932 = vmatpush.msra.mxu0 %v3640
    %3933 = vmatpush.msra.mxu0 %v3632
    %3934 = vmatpush.msra.mxu0 %v3624
    %3935 = vmatpush.msra.mxu0 %v3616
    %3936 = vmatpush.msra.mxu0 %v3608
    %3937 = vmatpush.msra.mxu0 %v3600
    %3938 = vmatpush.msra.mxu0 %v3592
    %3939 = vmatpush.msra.mxu0 %v3584
    %3940 = vmatpush.msra.mxu0 %v3576
    %3941 = vmatpush.msra.mxu0 %v3568
    %3942 = vmatpush.msra.mxu0 %v3560
    %3943 = vmatpush.msra.mxu0 %v3552
    %3944 = vmatpush.msra.mxu0 %v3544
    %3945 = vmatpush.msra.mxu0 %v3536
    %3946 = vmatpush.msra.mxu0 %v3528
    %3947 = vmatpush.msra.mxu0 %v3520
    %3948 = vmatmul.f32.gmra.mxu0 %v3498
    %v3949 = vpop.f32.mrf.mxu0
    %v3950 = vadd.f32 0.0, %v3949
    %3951 = vdwg.mxu0
    %3952 = vmatpush.msra.mxu0 %v3768
    %3953 = vmatpush.msra.mxu0 %v3760
    %3954 = vmatpush.msra.mxu0 %v3752
    %3955 = vmatpush.msra.mxu0 %v3744
    %3956 = vmatpush.msra.mxu0 %v3736
    %3957 = vmatpush.msra.mxu0 %v3728
    %3958 = vmatpush.msra.mxu0 %v3720
    %3959 = vmatpush.msra.mxu0 %v3712
    %3960 = vmatpush.msra.mxu0 %v3704
    %3961 = vmatpush.msra.mxu0 %v3696
    %3962 = vmatpush.msra.mxu0 %v3688
    %3963 = vmatpush.msra.mxu0 %v3680
    %3964 = vmatpush.msra.mxu0 %v3672
    %3965 = vmatpush.msra.mxu0 %v3664
    %3966 = vmatpush.msra.mxu0 %v3656
    %3967 = vmatpush.msra.mxu0 %v3648
    %3968 = vmatmul.f32.gmra.mxu0 %v3499
    %v3969 = vpop.f32.mrf.mxu0
    %v3970 = vadd.f32 %v3950, %v3969
    %3971 = vdwg.mxu0
    %3972 = vmatpush.msra.mxu0 %v3641
    %3973 = vmatpush.msra.mxu0 %v3633
    %3974 = vmatpush.msra.mxu0 %v3625
    %3975 = vmatpush.msra.mxu0 %v3617
    %3976 = vmatpush.msra.mxu0 %v3609
    %3977 = vmatpush.msra.mxu0 %v3601
    %3978 = vmatpush.msra.mxu0 %v3593
    %3979 = vmatpush.msra.mxu0 %v3585
    %3980 = vmatpush.msra.mxu0 %v3577
    %3981 = vmatpush.msra.mxu0 %v3569
    %3982 = vmatpush.msra.mxu0 %v3561
    %3983 = vmatpush.msra.mxu0 %v3553
    %3984 = vmatpush.msra.mxu0 %v3545
    %3985 = vmatpush.msra.mxu0 %v3537
    %3986 = vmatpush.msra.mxu0 %v3529
    %3987 = vmatpush.msra.mxu0 %v3521
    %3988 = vmatmul.f32.gmra.mxu0 %v3498
    %v3989 = vpop.f32.mrf.mxu0
    %v3990 = vadd.f32 0.0, %v3989
    %3991 = vdwg.mxu0
    %3992 = vmatpush.msra.mxu0 %v3769
    %3993 = vmatpush.msra.mxu0 %v3761
    %3994 = vmatpush.msra.mxu0 %v3753
    %3995 = vmatpush.msra.mxu0 %v3745
    %3996 = vmatpush.msra.mxu0 %v3737
    %3997 = vmatpush.msra.mxu0 %v3729
    %3998 = vmatpush.msra.mxu0 %v3721
    %3999 = vmatpush.msra.mxu0 %v3713
    %4000 = vmatpush.msra.mxu0 %v3705
    %4001 = vmatpush.msra.mxu0 %v3697
    %4002 = vmatpush.msra.mxu0 %v3689
    %4003 = vmatpush.msra.mxu0 %v3681
    %4004 = vmatpush.msra.mxu0 %v3673
    %4005 = vmatpush.msra.mxu0 %v3665
    %4006 = vmatpush.msra.mxu0 %v3657
    %4007 = vmatpush.msra.mxu0 %v3649
    %4008 = vmatmul.f32.gmra.mxu0 %v3499
    %v4009 = vpop.f32.mrf.mxu0
    %v4010 = vadd.f32 %v3990, %v4009
    %4011 = vdwg.mxu0
    %4012 = vmatpush.msra.mxu0 %v3642
    %4013 = vmatpush.msra.mxu0 %v3634
    %4014 = vmatpush.msra.mxu0 %v3626
    %4015 = vmatpush.msra.mxu0 %v3618
    %4016 = vmatpush.msra.mxu0 %v3610
    %4017 = vmatpush.msra.mxu0 %v3602
    %4018 = vmatpush.msra.mxu0 %v3594
    %4019 = vmatpush.msra.mxu0 %v3586
    %4020 = vmatpush.msra.mxu0 %v3578
    %4021 = vmatpush.msra.mxu0 %v3570
    %4022 = vmatpush.msra.mxu0 %v3562
    %4023 = vmatpush.msra.mxu0 %v3554
    %4024 = vmatpush.msra.mxu0 %v3546
    %4025 = vmatpush.msra.mxu0 %v3538
    %4026 = vmatpush.msra.mxu0 %v3530
    %4027 = vmatpush.msra.mxu0 %v3522
    %4028 = vmatmul.f32.gmra.mxu0 %v3498
    %v4029 = vpop.f32.mrf.mxu0
    %v4030 = vadd.f32 0.0, %v4029
    %4031 = vdwg.mxu0
    %4032 = vmatpush.msra.mxu0 %v3770
    %4033 = vmatpush.msra.mxu0 %v3762
    %4034 = vmatpush.msra.mxu0 %v3754
    %4035 = vmatpush.msra.mxu0 %v3746
    %4036 = vmatpush.msra.mxu0 %v3738
    %4037 = vmatpush.msra.mxu0 %v3730
    %4038 = vmatpush.msra.mxu0 %v3722
    %4039 = vmatpush.msra.mxu0 %v3714
    %4040 = vmatpush.msra.mxu0 %v3706
    %4041 = vmatpush.msra.mxu0 %v3698
    %4042 = vmatpush.msra.mxu0 %v3690
    %4043 = vmatpush.msra.mxu0 %v3682
    %4044 = vmatpush.msra.mxu0 %v3674
    %4045 = vmatpush.msra.mxu0 %v3666
    %4046 = vmatpush.msra.mxu0 %v3658
    %4047 = vmatpush.msra.mxu0 %v3650
    %4048 = vmatmul.f32.gmra.mxu0 %v3499
    %v4049 = vpop.f32.mrf.mxu0
    %v4050 = vadd.f32 %v4030, %v4049
    %4051 = vdwg.mxu0
    %4052 = vmatpush.msra.mxu0 %v3643
    %4053 = vmatpush.msra.mxu0 %v3635
    %4054 = vmatpush.msra.mxu0 %v3627
    %4055 = vmatpush.msra.mxu0 %v3619
    %4056 = vmatpush.msra.mxu0 %v3611
    %4057 = vmatpush.msra.mxu0 %v3603
    %4058 = vmatpush.msra.mxu0 %v3595
    %4059 = vmatpush.msra.mxu0 %v3587
    %4060 = vmatpush.msra.mxu0 %v3579
    %4061 = vmatpush.msra.mxu0 %v3571
    %4062 = vmatpush.msra.mxu0 %v3563
    %4063 = vmatpush.msra.mxu0 %v3555
    %4064 = vmatpush.msra.mxu0 %v3547
    %4065 = vmatpush.msra.mxu0 %v3539
    %4066 = vmatpush.msra.mxu0 %v3531
    %4067 = vmatpush.msra.mxu0 %v3523
    %4068 = vmatmul.f32.gmra.mxu0 %v3498
    %v4069 = vpop.f32.mrf.mxu0
    %v4070 = vadd.f32 0.0, %v4069
    %4071 = vdwg.mxu0
    %4072 = vmatpush.msra.mxu0 %v3771
    %4073 = vmatpush.msra.mxu0 %v3763
    %4074 = vmatpush.msra.mxu0 %v3755
    %4075 = vmatpush.msra.mxu0 %v3747
    %4076 = vmatpush.msra.mxu0 %v3739
    %4077 = vmatpush.msra.mxu0 %v3731
    %4078 = vmatpush.msra.mxu0 %v3723
    %4079 = vmatpush.msra.mxu0 %v3715
    %4080 = vmatpush.msra.mxu0 %v3707
    %4081 = vmatpush.msra.mxu0 %v3699
    %4082 = vmatpush.msra.mxu0 %v3691
    %4083 = vmatpush.msra.mxu0 %v3683
    %4084 = vmatpush.msra.mxu0 %v3675
    %4085 = vmatpush.msra.mxu0 %v3667
    %4086 = vmatpush.msra.mxu0 %v3659
    %4087 = vmatpush.msra.mxu0 %v3651
    %4088 = vmatmul.f32.gmra.mxu0 %v3499
    %v4089 = vpop.f32.mrf.mxu0
    %v4090 = vadd.f32 %v4070, %v4089
    %4091 = vdwg.mxu0
    %v4092 = vadd.f32 %v3508, %v3810
    %v4093 = vadd.f32 %v3509, %v3850
    %v4094 = vadd.f32 %v3510, %v3890
    %v4095 = vadd.f32 %v3511, %v3930
    %v4096 = vadd.f32 %v3512, %v3970
    %v4097 = vadd.f32 %v3513, %v4010
    %v4098 = vadd.f32 %v3514, %v4050
    %v4099 = vadd.f32 %v3515, %v4090
    %v4100 = vxor.u32 %v4092, 2147483648
    %v4101 = vxor.u32 %v4093, 2147483648
    %v4102 = vxor.u32 %v4094, 2147483648
    %v4103 = vxor.u32 %v4095, 2147483648
    %v4104 = vxor.u32 %v4098, 2147483648
    %v4105 = vxor.u32 %v4099, 2147483648
    %v4106 = vmul.f32 %v4100, 1.442695
    %v4107 = vpow.pop %v4106
    %v4108 = vmul.f32 %v4101, 1.442695
    %v4109 = vpow.pop %v4108
    %v4110 = vmul.f32 %v4102, 1.442695
    %v4111 = vpow.pop %v4110
    %v4112 = vmul.f32 %v4103, 1.442695
    %v4113 = vpow.pop %v4112
    %v4114 = vmul.f32 %v4104, 1.442695
    %v4115 = vpow.pop %v4114
    %v4116 = vmul.f32 %v4105, 1.442695
    %v4117 = vpow.pop %v4116
    %v4118 = vadd.f32 %v4107, 1.0
    %v4119 = vadd.f32 %v4109, 1.0
    %v4120 = vadd.f32 %v4111, 1.0
    %v4121 = vadd.f32 %v4113, 1.0
    %v4122 = vadd.f32 %v4115, 1.0
    %v4123 = vadd.f32 %v4117, 1.0
    %v4124 = vrcp.pop %v4118
    %v4125 = vmul.f32 %v4118, %v4124
    %v4126 = vsub.f32 1.0, %v4125
    %v4127 = vmul.f32 %v4124, %v4126
    %v4128 = vadd.f32 %v4124, %v4127
    %vm4129 = vweird.f32 %v4118
    %vm4130 = vweird.f32 %v4124
    %vm4131 = vmor %vm4129, %vm4130
    %v4132 = vsel %vm4131, %v4124, %v4128
    %v4133 = vand.u32 2147483647, %v4118
    %vm4134 = vcmp.eq.f32.partialorder %v4133, 8.507059e+37
    %v4135 = vand.u32 %v4118, 2147483648
    %v4136 = vor.u32 1.1754944e-38, %v4135
    %v4137 = vsel %vm4134, %v4136, %v4132
    %v4138 = vmul.f32 1.0, %v4137
    %v4139 = vrcp.pop %v4119
    %v4140 = vmul.f32 %v4119, %v4139
    %v4141 = vsub.f32 1.0, %v4140
    %v4142 = vmul.f32 %v4139, %v4141
    %v4143 = vadd.f32 %v4139, %v4142
    %vm4144 = vweird.f32 %v4119
    %vm4145 = vweird.f32 %v4139
    %vm4146 = vmor %vm4144, %vm4145
    %v4147 = vsel %vm4146, %v4139, %v4143
    %v4148 = vand.u32 2147483647, %v4119
    %vm4149 = vcmp.eq.f32.partialorder %v4148, 8.507059e+37
    %v4150 = vand.u32 %v4119, 2147483648
    %v4151 = vor.u32 1.1754944e-38, %v4150
    %v4152 = vsel %vm4149, %v4151, %v4147
    %v4153 = vmul.f32 1.0, %v4152
    %v4154 = vrcp.pop %v4120
    %v4155 = vmul.f32 %v4120, %v4154
    %v4156 = vsub.f32 1.0, %v4155
    %v4157 = vmul.f32 %v4154, %v4156
    %v4158 = vadd.f32 %v4154, %v4157
    %vm4159 = vweird.f32 %v4120
    %vm4160 = vweird.f32 %v4154
    %vm4161 = vmor %vm4159, %vm4160
    %v4162 = vsel %vm4161, %v4154, %v4158
    %v4163 = vand.u32 2147483647, %v4120
    %vm4164 = vcmp.eq.f32.partialorder %v4163, 8.507059e+37
    %v4165 = vand.u32 %v4120, 2147483648
    %v4166 = vor.u32 1.1754944e-38, %v4165
    %v4167 = vsel %vm4164, %v4166, %v4162
    %v4168 = vmul.f32 1.0, %v4167
    %v4169 = vrcp.pop %v4121
    %v4170 = vmul.f32 %v4121, %v4169
    %v4171 = vsub.f32 1.0, %v4170
    %v4172 = vmul.f32 %v4169, %v4171
    %v4173 = vadd.f32 %v4169, %v4172
    %vm4174 = vweird.f32 %v4121
    %vm4175 = vweird.f32 %v4169
    %vm4176 = vmor %vm4174, %vm4175
    %v4177 = vsel %vm4176, %v4169, %v4173
    %v4178 = vand.u32 2147483647, %v4121
    %vm4179 = vcmp.eq.f32.partialorder %v4178, 8.507059e+37
    %v4180 = vand.u32 %v4121, 2147483648
    %v4181 = vor.u32 1.1754944e-38, %v4180
    %v4182 = vsel %vm4179, %v4181, %v4177
    %v4183 = vmul.f32 1.0, %v4182
    %v4184 = vrcp.pop %v4122
    %v4185 = vmul.f32 %v4122, %v4184
    %v4186 = vsub.f32 1.0, %v4185
    %v4187 = vmul.f32 %v4184, %v4186
    %v4188 = vadd.f32 %v4184, %v4187
    %vm4189 = vweird.f32 %v4122
    %vm4190 = vweird.f32 %v4184
    %vm4191 = vmor %vm4189, %vm4190
    %v4192 = vsel %vm4191, %v4184, %v4188
    %v4193 = vand.u32 2147483647, %v4122
    %vm4194 = vcmp.eq.f32.partialorder %v4193, 8.507059e+37
    %v4195 = vand.u32 %v4122, 2147483648
    %v4196 = vor.u32 1.1754944e-38, %v4195
    %v4197 = vsel %vm4194, %v4196, %v4192
    %v4198 = vmul.f32 1.0, %v4197
    %v4199 = vrcp.pop %v4123
    %v4200 = vmul.f32 %v4123, %v4199
    %v4201 = vsub.f32 1.0, %v4200
    %v4202 = vmul.f32 %v4199, %v4201
    %v4203 = vadd.f32 %v4199, %v4202
    %vm4204 = vweird.f32 %v4123
    %vm4205 = vweird.f32 %v4199
    %vm4206 = vmor %vm4204, %vm4205
    %v4207 = vsel %vm4206, %v4199, %v4203
    %v4208 = vand.u32 2147483647, %v4123
    %vm4209 = vcmp.eq.f32.partialorder %v4208, 8.507059e+37
    %v4210 = vand.u32 %v4123, 2147483648
    %v4211 = vor.u32 1.1754944e-38, %v4210
    %v4212 = vsel %vm4209, %v4211, %v4207
    %v4213 = vmul.f32 1.0, %v4212
    %v4214 = vtanh.pop %v4096
    %v4215 = vtanh.pop %v4097
    %v4216 = vmul.f32 %v4168, %v3494
    %v4217 = vmul.f32 %v4183, %v3495
    %v4218 = vmul.f32 %v4138, %v4214
    %v4219 = vmul.f32 %v4153, %v4215
    %v4220 = vadd.f32 %v4216, %v4218
    %v4221 = vadd.f32 %v4217, %v4219
    %v4222 = vtanh.pop %v4220
    %v4223 = vtanh.pop %v4221
    %v4224 = vmul.f32 %v4198, %v4222
    %v4225 = vmul.f32 %v4213, %v4223
    %s4226 = smul.u32 4, 2
    %s4227 = smul.addr %s4226, 8
    %s4228 = scalar_lea.vmem [#allocation3], %s4227
    %4229 = vst [vmem:[%s4228] sm:$0xff] %v4224
    %4230 = vst [vmem:[%s4228 + $0x8] sm:$0xff] %v4225
    %s4231 = smul.u32 5, 8
    %s4232 = smul.addr %s4231, 8
    %s4233 = scalar_lea.vmem [#allocation2], %s4232
    %v4234 = vld [vmem:[%s4233] sm:$0xff]
    %v4235 = vld [vmem:[%s4233 + $0x8] sm:$0xff]
    %v4236 = vld [vmem:[%s4233 + $0x10] sm:$0xff]
    %v4237 = vld [vmem:[%s4233 + $0x18] sm:$0xff]
    %v4238 = vld [vmem:[%s4233 + $0x20] sm:$0xff]
    %v4239 = vld [vmem:[%s4233 + $0x28] sm:$0xff]
    %v4240 = vld [vmem:[%s4233 + $0x30] sm:$0xff]
    %v4241 = vld [vmem:[%s4233 + $0x38] sm:$0xff]
    %v4242 = vld [vmem:[#allocation6] sm:$0xff]
    %v4243 = vld [vmem:[#allocation6 + $0x8] sm:$0xff]
    %v4244 = vld [vmem:[#allocation6 + $0x10] sm:$0xff]
    %v4245 = vld [vmem:[#allocation6 + $0x18] sm:$0xff]
    %v4246 = vld [vmem:[#allocation6 + $0x20] sm:$0xff]
    %v4247 = vld [vmem:[#allocation6 + $0x28] sm:$0xff]
    %v4248 = vld [vmem:[#allocation6 + $0x30] sm:$0xff]
    %v4249 = vld [vmem:[#allocation6 + $0x38] sm:$0xff]
    %v4250 = vld [vmem:[#allocation6 + $0x40] sm:$0xff]
    %v4251 = vld [vmem:[#allocation6 + $0x48] sm:$0xff]
    %v4252 = vld [vmem:[#allocation6 + $0x50] sm:$0xff]
    %v4253 = vld [vmem:[#allocation6 + $0x58] sm:$0xff]
    %v4254 = vld [vmem:[#allocation6 + $0x60] sm:$0xff]
    %v4255 = vld [vmem:[#allocation6 + $0x68] sm:$0xff]
    %v4256 = vld [vmem:[#allocation6 + $0x70] sm:$0xff]
    %v4257 = vld [vmem:[#allocation6 + $0x78] sm:$0xff]
    %v4258 = vld [vmem:[#allocation6 + $0x80] sm:$0xff]
    %v4259 = vld [vmem:[#allocation6 + $0x88] sm:$0xff]
    %v4260 = vld [vmem:[#allocation6 + $0x90] sm:$0xff]
    %v4261 = vld [vmem:[#allocation6 + $0x98] sm:$0xff]
    %v4262 = vld [vmem:[#allocation6 + $0xa0] sm:$0xff]
    %v4263 = vld [vmem:[#allocation6 + $0xa8] sm:$0xff]
    %v4264 = vld [vmem:[#allocation6 + $0xb0] sm:$0xff]
    %v4265 = vld [vmem:[#allocation6 + $0xb8] sm:$0xff]
    %v4266 = vld [vmem:[#allocation6 + $0xc0] sm:$0xff]
    %v4267 = vld [vmem:[#allocation6 + $0xc8] sm:$0xff]
    %v4268 = vld [vmem:[#allocation6 + $0xd0] sm:$0xff]
    %v4269 = vld [vmem:[#allocation6 + $0xd8] sm:$0xff]
    %v4270 = vld [vmem:[#allocation6 + $0xe0] sm:$0xff]
    %v4271 = vld [vmem:[#allocation6 + $0xe8] sm:$0xff]
    %v4272 = vld [vmem:[#allocation6 + $0xf0] sm:$0xff]
    %v4273 = vld [vmem:[#allocation6 + $0xf8] sm:$0xff]
    %v4274 = vld [vmem:[#allocation6 + $0x100] sm:$0xff]
    %v4275 = vld [vmem:[#allocation6 + $0x108] sm:$0xff]
    %v4276 = vld [vmem:[#allocation6 + $0x110] sm:$0xff]
    %v4277 = vld [vmem:[#allocation6 + $0x118] sm:$0xff]
    %v4278 = vld [vmem:[#allocation6 + $0x120] sm:$0xff]
    %v4279 = vld [vmem:[#allocation6 + $0x128] sm:$0xff]
    %v4280 = vld [vmem:[#allocation6 + $0x130] sm:$0xff]
    %v4281 = vld [vmem:[#allocation6 + $0x138] sm:$0xff]
    %v4282 = vld [vmem:[#allocation6 + $0x140] sm:$0xff]
    %v4283 = vld [vmem:[#allocation6 + $0x148] sm:$0xff]
    %v4284 = vld [vmem:[#allocation6 + $0x150] sm:$0xff]
    %v4285 = vld [vmem:[#allocation6 + $0x158] sm:$0xff]
    %v4286 = vld [vmem:[#allocation6 + $0x160] sm:$0xff]
    %v4287 = vld [vmem:[#allocation6 + $0x168] sm:$0xff]
    %v4288 = vld [vmem:[#allocation6 + $0x170] sm:$0xff]
    %v4289 = vld [vmem:[#allocation6 + $0x178] sm:$0xff]
    %v4290 = vld [vmem:[#allocation6 + $0x180] sm:$0xff]
    %v4291 = vld [vmem:[#allocation6 + $0x188] sm:$0xff]
    %v4292 = vld [vmem:[#allocation6 + $0x190] sm:$0xff]
    %v4293 = vld [vmem:[#allocation6 + $0x198] sm:$0xff]
    %v4294 = vld [vmem:[#allocation6 + $0x1a0] sm:$0xff]
    %v4295 = vld [vmem:[#allocation6 + $0x1a8] sm:$0xff]
    %v4296 = vld [vmem:[#allocation6 + $0x1b0] sm:$0xff]
    %v4297 = vld [vmem:[#allocation6 + $0x1b8] sm:$0xff]
    %v4298 = vld [vmem:[#allocation6 + $0x1c0] sm:$0xff]
    %v4299 = vld [vmem:[#allocation6 + $0x1c8] sm:$0xff]
    %v4300 = vld [vmem:[#allocation6 + $0x1d0] sm:$0xff]
    %v4301 = vld [vmem:[#allocation6 + $0x1d8] sm:$0xff]
    %v4302 = vld [vmem:[#allocation6 + $0x1e0] sm:$0xff]
    %v4303 = vld [vmem:[#allocation6 + $0x1e8] sm:$0xff]
    %v4304 = vld [vmem:[#allocation6 + $0x1f0] sm:$0xff]
    %v4305 = vld [vmem:[#allocation6 + $0x1f8] sm:$0xff]
    %v4306 = vld [vmem:[#allocation6 + $0x200] sm:$0xff]
    %v4307 = vld [vmem:[#allocation6 + $0x208] sm:$0xff]
    %v4308 = vld [vmem:[#allocation6 + $0x210] sm:$0xff]
    %v4309 = vld [vmem:[#allocation6 + $0x218] sm:$0xff]
    %v4310 = vld [vmem:[#allocation6 + $0x220] sm:$0xff]
    %v4311 = vld [vmem:[#allocation6 + $0x228] sm:$0xff]
    %v4312 = vld [vmem:[#allocation6 + $0x230] sm:$0xff]
    %v4313 = vld [vmem:[#allocation6 + $0x238] sm:$0xff]
    %v4314 = vld [vmem:[#allocation6 + $0x240] sm:$0xff]
    %v4315 = vld [vmem:[#allocation6 + $0x248] sm:$0xff]
    %v4316 = vld [vmem:[#allocation6 + $0x250] sm:$0xff]
    %v4317 = vld [vmem:[#allocation6 + $0x258] sm:$0xff]
    %v4318 = vld [vmem:[#allocation6 + $0x260] sm:$0xff]
    %v4319 = vld [vmem:[#allocation6 + $0x268] sm:$0xff]
    %v4320 = vld [vmem:[#allocation6 + $0x270] sm:$0xff]
    %v4321 = vld [vmem:[#allocation6 + $0x278] sm:$0xff]
    %v4322 = vld [vmem:[#allocation6 + $0x280] sm:$0xff]
    %v4323 = vld [vmem:[#allocation6 + $0x288] sm:$0xff]
    %v4324 = vld [vmem:[#allocation6 + $0x290] sm:$0xff]
    %v4325 = vld [vmem:[#allocation6 + $0x298] sm:$0xff]
    %v4326 = vld [vmem:[#allocation6 + $0x2a0] sm:$0xff]
    %v4327 = vld [vmem:[#allocation6 + $0x2a8] sm:$0xff]
    %v4328 = vld [vmem:[#allocation6 + $0x2b0] sm:$0xff]
    %v4329 = vld [vmem:[#allocation6 + $0x2b8] sm:$0xff]
    %v4330 = vld [vmem:[#allocation6 + $0x2c0] sm:$0xff]
    %v4331 = vld [vmem:[#allocation6 + $0x2c8] sm:$0xff]
    %v4332 = vld [vmem:[#allocation6 + $0x2d0] sm:$0xff]
    %v4333 = vld [vmem:[#allocation6 + $0x2d8] sm:$0xff]
    %v4334 = vld [vmem:[#allocation6 + $0x2e0] sm:$0xff]
    %v4335 = vld [vmem:[#allocation6 + $0x2e8] sm:$0xff]
    %v4336 = vld [vmem:[#allocation6 + $0x2f0] sm:$0xff]
    %v4337 = vld [vmem:[#allocation6 + $0x2f8] sm:$0xff]
    %v4338 = vld [vmem:[#allocation6 + $0x300] sm:$0xff]
    %v4339 = vld [vmem:[#allocation6 + $0x308] sm:$0xff]
    %v4340 = vld [vmem:[#allocation6 + $0x310] sm:$0xff]
    %v4341 = vld [vmem:[#allocation6 + $0x318] sm:$0xff]
    %v4342 = vld [vmem:[#allocation6 + $0x320] sm:$0xff]
    %v4343 = vld [vmem:[#allocation6 + $0x328] sm:$0xff]
    %v4344 = vld [vmem:[#allocation6 + $0x330] sm:$0xff]
    %v4345 = vld [vmem:[#allocation6 + $0x338] sm:$0xff]
    %v4346 = vld [vmem:[#allocation6 + $0x340] sm:$0xff]
    %v4347 = vld [vmem:[#allocation6 + $0x348] sm:$0xff]
    %v4348 = vld [vmem:[#allocation6 + $0x350] sm:$0xff]
    %v4349 = vld [vmem:[#allocation6 + $0x358] sm:$0xff]
    %v4350 = vld [vmem:[#allocation6 + $0x360] sm:$0xff]
    %v4351 = vld [vmem:[#allocation6 + $0x368] sm:$0xff]
    %v4352 = vld [vmem:[#allocation6 + $0x370] sm:$0xff]
    %v4353 = vld [vmem:[#allocation6 + $0x378] sm:$0xff]
    %v4354 = vld [vmem:[#allocation6 + $0x380] sm:$0xff]
    %v4355 = vld [vmem:[#allocation6 + $0x388] sm:$0xff]
    %v4356 = vld [vmem:[#allocation6 + $0x390] sm:$0xff]
    %v4357 = vld [vmem:[#allocation6 + $0x398] sm:$0xff]
    %v4358 = vld [vmem:[#allocation6 + $0x3a0] sm:$0xff]
    %v4359 = vld [vmem:[#allocation6 + $0x3a8] sm:$0xff]
    %v4360 = vld [vmem:[#allocation6 + $0x3b0] sm:$0xff]
    %v4361 = vld [vmem:[#allocation6 + $0x3b8] sm:$0xff]
    %v4362 = vld [vmem:[#allocation6 + $0x3c0] sm:$0xff]
    %v4363 = vld [vmem:[#allocation6 + $0x3c8] sm:$0xff]
    %v4364 = vld [vmem:[#allocation6 + $0x3d0] sm:$0xff]
    %v4365 = vld [vmem:[#allocation6 + $0x3d8] sm:$0xff]
    %v4366 = vld [vmem:[#allocation6 + $0x3e0] sm:$0xff]
    %v4367 = vld [vmem:[#allocation6 + $0x3e8] sm:$0xff]
    %v4368 = vld [vmem:[#allocation6 + $0x3f0] sm:$0xff]
    %v4369 = vld [vmem:[#allocation6 + $0x3f8] sm:$0xff]
    %v4370 = vld [vmem:[#allocation6 + $0x400] sm:$0xff]
    %v4371 = vld [vmem:[#allocation6 + $0x408] sm:$0xff]
    %v4372 = vld [vmem:[#allocation6 + $0x410] sm:$0xff]
    %v4373 = vld [vmem:[#allocation6 + $0x418] sm:$0xff]
    %v4374 = vld [vmem:[#allocation6 + $0x420] sm:$0xff]
    %v4375 = vld [vmem:[#allocation6 + $0x428] sm:$0xff]
    %v4376 = vld [vmem:[#allocation6 + $0x430] sm:$0xff]
    %v4377 = vld [vmem:[#allocation6 + $0x438] sm:$0xff]
    %v4378 = vld [vmem:[#allocation6 + $0x440] sm:$0xff]
    %v4379 = vld [vmem:[#allocation6 + $0x448] sm:$0xff]
    %v4380 = vld [vmem:[#allocation6 + $0x450] sm:$0xff]
    %v4381 = vld [vmem:[#allocation6 + $0x458] sm:$0xff]
    %v4382 = vld [vmem:[#allocation6 + $0x460] sm:$0xff]
    %v4383 = vld [vmem:[#allocation6 + $0x468] sm:$0xff]
    %v4384 = vld [vmem:[#allocation6 + $0x470] sm:$0xff]
    %v4385 = vld [vmem:[#allocation6 + $0x478] sm:$0xff]
    %v4386 = vld [vmem:[#allocation6 + $0x480] sm:$0xff]
    %v4387 = vld [vmem:[#allocation6 + $0x488] sm:$0xff]
    %v4388 = vld [vmem:[#allocation6 + $0x490] sm:$0xff]
    %v4389 = vld [vmem:[#allocation6 + $0x498] sm:$0xff]
    %v4390 = vld [vmem:[#allocation6 + $0x4a0] sm:$0xff]
    %v4391 = vld [vmem:[#allocation6 + $0x4a8] sm:$0xff]
    %v4392 = vld [vmem:[#allocation6 + $0x4b0] sm:$0xff]
    %v4393 = vld [vmem:[#allocation6 + $0x4b8] sm:$0xff]
    %v4394 = vld [vmem:[#allocation6 + $0x4c0] sm:$0xff]
    %v4395 = vld [vmem:[#allocation6 + $0x4c8] sm:$0xff]
    %v4396 = vld [vmem:[#allocation6 + $0x4d0] sm:$0xff]
    %v4397 = vld [vmem:[#allocation6 + $0x4d8] sm:$0xff]
    %v4398 = vld [vmem:[#allocation6 + $0x4e0] sm:$0xff]
    %v4399 = vld [vmem:[#allocation6 + $0x4e8] sm:$0xff]
    %v4400 = vld [vmem:[#allocation6 + $0x4f0] sm:$0xff]
    %v4401 = vld [vmem:[#allocation6 + $0x4f8] sm:$0xff]
    %v4402 = vld [vmem:[#allocation6 + $0x500] sm:$0xff]
    %v4403 = vld [vmem:[#allocation6 + $0x508] sm:$0xff]
    %v4404 = vld [vmem:[#allocation6 + $0x510] sm:$0xff]
    %v4405 = vld [vmem:[#allocation6 + $0x518] sm:$0xff]
    %v4406 = vld [vmem:[#allocation6 + $0x520] sm:$0xff]
    %v4407 = vld [vmem:[#allocation6 + $0x528] sm:$0xff]
    %v4408 = vld [vmem:[#allocation6 + $0x530] sm:$0xff]
    %v4409 = vld [vmem:[#allocation6 + $0x538] sm:$0xff]
    %v4410 = vld [vmem:[#allocation6 + $0x540] sm:$0xff]
    %v4411 = vld [vmem:[#allocation6 + $0x548] sm:$0xff]
    %v4412 = vld [vmem:[#allocation6 + $0x550] sm:$0xff]
    %v4413 = vld [vmem:[#allocation6 + $0x558] sm:$0xff]
    %v4414 = vld [vmem:[#allocation6 + $0x560] sm:$0xff]
    %v4415 = vld [vmem:[#allocation6 + $0x568] sm:$0xff]
    %v4416 = vld [vmem:[#allocation6 + $0x570] sm:$0xff]
    %v4417 = vld [vmem:[#allocation6 + $0x578] sm:$0xff]
    %v4418 = vld [vmem:[#allocation6 + $0x580] sm:$0xff]
    %v4419 = vld [vmem:[#allocation6 + $0x588] sm:$0xff]
    %v4420 = vld [vmem:[#allocation6 + $0x590] sm:$0xff]
    %v4421 = vld [vmem:[#allocation6 + $0x598] sm:$0xff]
    %v4422 = vld [vmem:[#allocation6 + $0x5a0] sm:$0xff]
    %v4423 = vld [vmem:[#allocation6 + $0x5a8] sm:$0xff]
    %v4424 = vld [vmem:[#allocation6 + $0x5b0] sm:$0xff]
    %v4425 = vld [vmem:[#allocation6 + $0x5b8] sm:$0xff]
    %v4426 = vld [vmem:[#allocation6 + $0x5c0] sm:$0xff]
    %v4427 = vld [vmem:[#allocation6 + $0x5c8] sm:$0xff]
    %v4428 = vld [vmem:[#allocation6 + $0x5d0] sm:$0xff]
    %v4429 = vld [vmem:[#allocation6 + $0x5d8] sm:$0xff]
    %v4430 = vld [vmem:[#allocation6 + $0x5e0] sm:$0xff]
    %v4431 = vld [vmem:[#allocation6 + $0x5e8] sm:$0xff]
    %v4432 = vld [vmem:[#allocation6 + $0x5f0] sm:$0xff]
    %v4433 = vld [vmem:[#allocation6 + $0x5f8] sm:$0xff]
    %v4434 = vld [vmem:[#allocation6 + $0x600] sm:$0xff]
    %v4435 = vld [vmem:[#allocation6 + $0x608] sm:$0xff]
    %v4436 = vld [vmem:[#allocation6 + $0x610] sm:$0xff]
    %v4437 = vld [vmem:[#allocation6 + $0x618] sm:$0xff]
    %v4438 = vld [vmem:[#allocation6 + $0x620] sm:$0xff]
    %v4439 = vld [vmem:[#allocation6 + $0x628] sm:$0xff]
    %v4440 = vld [vmem:[#allocation6 + $0x630] sm:$0xff]
    %v4441 = vld [vmem:[#allocation6 + $0x638] sm:$0xff]
    %v4442 = vld [vmem:[#allocation6 + $0x640] sm:$0xff]
    %v4443 = vld [vmem:[#allocation6 + $0x648] sm:$0xff]
    %v4444 = vld [vmem:[#allocation6 + $0x650] sm:$0xff]
    %v4445 = vld [vmem:[#allocation6 + $0x658] sm:$0xff]
    %v4446 = vld [vmem:[#allocation6 + $0x660] sm:$0xff]
    %v4447 = vld [vmem:[#allocation6 + $0x668] sm:$0xff]
    %v4448 = vld [vmem:[#allocation6 + $0x670] sm:$0xff]
    %v4449 = vld [vmem:[#allocation6 + $0x678] sm:$0xff]
    %v4450 = vld [vmem:[#allocation6 + $0x680] sm:$0xff]
    %v4451 = vld [vmem:[#allocation6 + $0x688] sm:$0xff]
    %v4452 = vld [vmem:[#allocation6 + $0x690] sm:$0xff]
    %v4453 = vld [vmem:[#allocation6 + $0x698] sm:$0xff]
    %v4454 = vld [vmem:[#allocation6 + $0x6a0] sm:$0xff]
    %v4455 = vld [vmem:[#allocation6 + $0x6a8] sm:$0xff]
    %v4456 = vld [vmem:[#allocation6 + $0x6b0] sm:$0xff]
    %v4457 = vld [vmem:[#allocation6 + $0x6b8] sm:$0xff]
    %v4458 = vld [vmem:[#allocation6 + $0x6c0] sm:$0xff]
    %v4459 = vld [vmem:[#allocation6 + $0x6c8] sm:$0xff]
    %v4460 = vld [vmem:[#allocation6 + $0x6d0] sm:$0xff]
    %v4461 = vld [vmem:[#allocation6 + $0x6d8] sm:$0xff]
    %v4462 = vld [vmem:[#allocation6 + $0x6e0] sm:$0xff]
    %v4463 = vld [vmem:[#allocation6 + $0x6e8] sm:$0xff]
    %v4464 = vld [vmem:[#allocation6 + $0x6f0] sm:$0xff]
    %v4465 = vld [vmem:[#allocation6 + $0x6f8] sm:$0xff]
    %v4466 = vld [vmem:[#allocation6 + $0x700] sm:$0xff]
    %v4467 = vld [vmem:[#allocation6 + $0x708] sm:$0xff]
    %v4468 = vld [vmem:[#allocation6 + $0x710] sm:$0xff]
    %v4469 = vld [vmem:[#allocation6 + $0x718] sm:$0xff]
    %v4470 = vld [vmem:[#allocation6 + $0x720] sm:$0xff]
    %v4471 = vld [vmem:[#allocation6 + $0x728] sm:$0xff]
    %v4472 = vld [vmem:[#allocation6 + $0x730] sm:$0xff]
    %v4473 = vld [vmem:[#allocation6 + $0x738] sm:$0xff]
    %v4474 = vld [vmem:[#allocation6 + $0x740] sm:$0xff]
    %v4475 = vld [vmem:[#allocation6 + $0x748] sm:$0xff]
    %v4476 = vld [vmem:[#allocation6 + $0x750] sm:$0xff]
    %v4477 = vld [vmem:[#allocation6 + $0x758] sm:$0xff]
    %v4478 = vld [vmem:[#allocation6 + $0x760] sm:$0xff]
    %v4479 = vld [vmem:[#allocation6 + $0x768] sm:$0xff]
    %v4480 = vld [vmem:[#allocation6 + $0x770] sm:$0xff]
    %v4481 = vld [vmem:[#allocation6 + $0x778] sm:$0xff]
    %v4482 = vld [vmem:[#allocation6 + $0x780] sm:$0xff]
    %v4483 = vld [vmem:[#allocation6 + $0x788] sm:$0xff]
    %v4484 = vld [vmem:[#allocation6 + $0x790] sm:$0xff]
    %v4485 = vld [vmem:[#allocation6 + $0x798] sm:$0xff]
    %v4486 = vld [vmem:[#allocation6 + $0x7a0] sm:$0xff]
    %v4487 = vld [vmem:[#allocation6 + $0x7a8] sm:$0xff]
    %v4488 = vld [vmem:[#allocation6 + $0x7b0] sm:$0xff]
    %v4489 = vld [vmem:[#allocation6 + $0x7b8] sm:$0xff]
    %v4490 = vld [vmem:[#allocation6 + $0x7c0] sm:$0xff]
    %v4491 = vld [vmem:[#allocation6 + $0x7c8] sm:$0xff]
    %v4492 = vld [vmem:[#allocation6 + $0x7d0] sm:$0xff]
    %v4493 = vld [vmem:[#allocation6 + $0x7d8] sm:$0xff]
    %v4494 = vld [vmem:[#allocation6 + $0x7e0] sm:$0xff]
    %v4495 = vld [vmem:[#allocation6 + $0x7e8] sm:$0xff]
    %v4496 = vld [vmem:[#allocation6 + $0x7f0] sm:$0xff]
    %v4497 = vld [vmem:[#allocation6 + $0x7f8] sm:$0xff]
    %4498 = vmatpush.msra.mxu0 %v4362
    %4499 = vmatpush.msra.mxu0 %v4354
    %4500 = vmatpush.msra.mxu0 %v4346
    %4501 = vmatpush.msra.mxu0 %v4338
    %4502 = vmatpush.msra.mxu0 %v4330
    %4503 = vmatpush.msra.mxu0 %v4322
    %4504 = vmatpush.msra.mxu0 %v4314
    %4505 = vmatpush.msra.mxu0 %v4306
    %4506 = vmatpush.msra.mxu0 %v4298
    %4507 = vmatpush.msra.mxu0 %v4290
    %4508 = vmatpush.msra.mxu0 %v4282
    %4509 = vmatpush.msra.mxu0 %v4274
    %4510 = vmatpush.msra.mxu0 %v4266
    %4511 = vmatpush.msra.mxu0 %v4258
    %4512 = vmatpush.msra.mxu0 %v4250
    %4513 = vmatpush.msra.mxu0 %v4242
    %4514 = vmatmul.f32.gmra.mxu0 %v4224
    %v4515 = vpop.f32.mrf.mxu0
    %v4516 = vadd.f32 0.0, %v4515
    %4517 = vdwg.mxu0
    %4518 = vmatpush.msra.mxu0 %v4490
    %4519 = vmatpush.msra.mxu0 %v4482
    %4520 = vmatpush.msra.mxu0 %v4474
    %4521 = vmatpush.msra.mxu0 %v4466
    %4522 = vmatpush.msra.mxu0 %v4458
    %4523 = vmatpush.msra.mxu0 %v4450
    %4524 = vmatpush.msra.mxu0 %v4442
    %4525 = vmatpush.msra.mxu0 %v4434
    %4526 = vmatpush.msra.mxu0 %v4426
    %4527 = vmatpush.msra.mxu0 %v4418
    %4528 = vmatpush.msra.mxu0 %v4410
    %4529 = vmatpush.msra.mxu0 %v4402
    %4530 = vmatpush.msra.mxu0 %v4394
    %4531 = vmatpush.msra.mxu0 %v4386
    %4532 = vmatpush.msra.mxu0 %v4378
    %4533 = vmatpush.msra.mxu0 %v4370
    %4534 = vmatmul.f32.gmra.mxu0 %v4225
    %v4535 = vpop.f32.mrf.mxu0
    %v4536 = vadd.f32 %v4516, %v4535
    %4537 = vdwg.mxu0
    %4538 = vmatpush.msra.mxu0 %v4363
    %4539 = vmatpush.msra.mxu0 %v4355
    %4540 = vmatpush.msra.mxu0 %v4347
    %4541 = vmatpush.msra.mxu0 %v4339
    %4542 = vmatpush.msra.mxu0 %v4331
    %4543 = vmatpush.msra.mxu0 %v4323
    %4544 = vmatpush.msra.mxu0 %v4315
    %4545 = vmatpush.msra.mxu0 %v4307
    %4546 = vmatpush.msra.mxu0 %v4299
    %4547 = vmatpush.msra.mxu0 %v4291
    %4548 = vmatpush.msra.mxu0 %v4283
    %4549 = vmatpush.msra.mxu0 %v4275
    %4550 = vmatpush.msra.mxu0 %v4267
    %4551 = vmatpush.msra.mxu0 %v4259
    %4552 = vmatpush.msra.mxu0 %v4251
    %4553 = vmatpush.msra.mxu0 %v4243
    %4554 = vmatmul.f32.gmra.mxu0 %v4224
    %v4555 = vpop.f32.mrf.mxu0
    %v4556 = vadd.f32 0.0, %v4555
    %4557 = vdwg.mxu0
    %4558 = vmatpush.msra.mxu0 %v4491
    %4559 = vmatpush.msra.mxu0 %v4483
    %4560 = vmatpush.msra.mxu0 %v4475
    %4561 = vmatpush.msra.mxu0 %v4467
    %4562 = vmatpush.msra.mxu0 %v4459
    %4563 = vmatpush.msra.mxu0 %v4451
    %4564 = vmatpush.msra.mxu0 %v4443
    %4565 = vmatpush.msra.mxu0 %v4435
    %4566 = vmatpush.msra.mxu0 %v4427
    %4567 = vmatpush.msra.mxu0 %v4419
    %4568 = vmatpush.msra.mxu0 %v4411
    %4569 = vmatpush.msra.mxu0 %v4403
    %4570 = vmatpush.msra.mxu0 %v4395
    %4571 = vmatpush.msra.mxu0 %v4387
    %4572 = vmatpush.msra.mxu0 %v4379
    %4573 = vmatpush.msra.mxu0 %v4371
    %4574 = vmatmul.f32.gmra.mxu0 %v4225
    %v4575 = vpop.f32.mrf.mxu0
    %v4576 = vadd.f32 %v4556, %v4575
    %4577 = vdwg.mxu0
    %4578 = vmatpush.msra.mxu0 %v4364
    %4579 = vmatpush.msra.mxu0 %v4356
    %4580 = vmatpush.msra.mxu0 %v4348
    %4581 = vmatpush.msra.mxu0 %v4340
    %4582 = vmatpush.msra.mxu0 %v4332
    %4583 = vmatpush.msra.mxu0 %v4324
    %4584 = vmatpush.msra.mxu0 %v4316
    %4585 = vmatpush.msra.mxu0 %v4308
    %4586 = vmatpush.msra.mxu0 %v4300
    %4587 = vmatpush.msra.mxu0 %v4292
    %4588 = vmatpush.msra.mxu0 %v4284
    %4589 = vmatpush.msra.mxu0 %v4276
    %4590 = vmatpush.msra.mxu0 %v4268
    %4591 = vmatpush.msra.mxu0 %v4260
    %4592 = vmatpush.msra.mxu0 %v4252
    %4593 = vmatpush.msra.mxu0 %v4244
    %4594 = vmatmul.f32.gmra.mxu0 %v4224
    %v4595 = vpop.f32.mrf.mxu0
    %v4596 = vadd.f32 0.0, %v4595
    %4597 = vdwg.mxu0
    %4598 = vmatpush.msra.mxu0 %v4492
    %4599 = vmatpush.msra.mxu0 %v4484
    %4600 = vmatpush.msra.mxu0 %v4476
    %4601 = vmatpush.msra.mxu0 %v4468
    %4602 = vmatpush.msra.mxu0 %v4460
    %4603 = vmatpush.msra.mxu0 %v4452
    %4604 = vmatpush.msra.mxu0 %v4444
    %4605 = vmatpush.msra.mxu0 %v4436
    %4606 = vmatpush.msra.mxu0 %v4428
    %4607 = vmatpush.msra.mxu0 %v4420
    %4608 = vmatpush.msra.mxu0 %v4412
    %4609 = vmatpush.msra.mxu0 %v4404
    %4610 = vmatpush.msra.mxu0 %v4396
    %4611 = vmatpush.msra.mxu0 %v4388
    %4612 = vmatpush.msra.mxu0 %v4380
    %4613 = vmatpush.msra.mxu0 %v4372
    %4614 = vmatmul.f32.gmra.mxu0 %v4225
    %v4615 = vpop.f32.mrf.mxu0
    %v4616 = vadd.f32 %v4596, %v4615
    %4617 = vdwg.mxu0
    %4618 = vmatpush.msra.mxu0 %v4365
    %4619 = vmatpush.msra.mxu0 %v4357
    %4620 = vmatpush.msra.mxu0 %v4349
    %4621 = vmatpush.msra.mxu0 %v4341
    %4622 = vmatpush.msra.mxu0 %v4333
    %4623 = vmatpush.msra.mxu0 %v4325
    %4624 = vmatpush.msra.mxu0 %v4317
    %4625 = vmatpush.msra.mxu0 %v4309
    %4626 = vmatpush.msra.mxu0 %v4301
    %4627 = vmatpush.msra.mxu0 %v4293
    %4628 = vmatpush.msra.mxu0 %v4285
    %4629 = vmatpush.msra.mxu0 %v4277
    %4630 = vmatpush.msra.mxu0 %v4269
    %4631 = vmatpush.msra.mxu0 %v4261
    %4632 = vmatpush.msra.mxu0 %v4253
    %4633 = vmatpush.msra.mxu0 %v4245
    %4634 = vmatmul.f32.gmra.mxu0 %v4224
    %v4635 = vpop.f32.mrf.mxu0
    %v4636 = vadd.f32 0.0, %v4635
    %4637 = vdwg.mxu0
    %4638 = vmatpush.msra.mxu0 %v4493
    %4639 = vmatpush.msra.mxu0 %v4485
    %4640 = vmatpush.msra.mxu0 %v4477
    %4641 = vmatpush.msra.mxu0 %v4469
    %4642 = vmatpush.msra.mxu0 %v4461
    %4643 = vmatpush.msra.mxu0 %v4453
    %4644 = vmatpush.msra.mxu0 %v4445
    %4645 = vmatpush.msra.mxu0 %v4437
    %4646 = vmatpush.msra.mxu0 %v4429
    %4647 = vmatpush.msra.mxu0 %v4421
    %4648 = vmatpush.msra.mxu0 %v4413
    %4649 = vmatpush.msra.mxu0 %v4405
    %4650 = vmatpush.msra.mxu0 %v4397
    %4651 = vmatpush.msra.mxu0 %v4389
    %4652 = vmatpush.msra.mxu0 %v4381
    %4653 = vmatpush.msra.mxu0 %v4373
    %4654 = vmatmul.f32.gmra.mxu0 %v4225
    %v4655 = vpop.f32.mrf.mxu0
    %v4656 = vadd.f32 %v4636, %v4655
    %4657 = vdwg.mxu0
    %4658 = vmatpush.msra.mxu0 %v4366
    %4659 = vmatpush.msra.mxu0 %v4358
    %4660 = vmatpush.msra.mxu0 %v4350
    %4661 = vmatpush.msra.mxu0 %v4342
    %4662 = vmatpush.msra.mxu0 %v4334
    %4663 = vmatpush.msra.mxu0 %v4326
    %4664 = vmatpush.msra.mxu0 %v4318
    %4665 = vmatpush.msra.mxu0 %v4310
    %4666 = vmatpush.msra.mxu0 %v4302
    %4667 = vmatpush.msra.mxu0 %v4294
    %4668 = vmatpush.msra.mxu0 %v4286
    %4669 = vmatpush.msra.mxu0 %v4278
    %4670 = vmatpush.msra.mxu0 %v4270
    %4671 = vmatpush.msra.mxu0 %v4262
    %4672 = vmatpush.msra.mxu0 %v4254
    %4673 = vmatpush.msra.mxu0 %v4246
    %4674 = vmatmul.f32.gmra.mxu0 %v4224
    %v4675 = vpop.f32.mrf.mxu0
    %v4676 = vadd.f32 0.0, %v4675
    %4677 = vdwg.mxu0
    %4678 = vmatpush.msra.mxu0 %v4494
    %4679 = vmatpush.msra.mxu0 %v4486
    %4680 = vmatpush.msra.mxu0 %v4478
    %4681 = vmatpush.msra.mxu0 %v4470
    %4682 = vmatpush.msra.mxu0 %v4462
    %4683 = vmatpush.msra.mxu0 %v4454
    %4684 = vmatpush.msra.mxu0 %v4446
    %4685 = vmatpush.msra.mxu0 %v4438
    %4686 = vmatpush.msra.mxu0 %v4430
    %4687 = vmatpush.msra.mxu0 %v4422
    %4688 = vmatpush.msra.mxu0 %v4414
    %4689 = vmatpush.msra.mxu0 %v4406
    %4690 = vmatpush.msra.mxu0 %v4398
    %4691 = vmatpush.msra.mxu0 %v4390
    %4692 = vmatpush.msra.mxu0 %v4382
    %4693 = vmatpush.msra.mxu0 %v4374
    %4694 = vmatmul.f32.gmra.mxu0 %v4225
    %v4695 = vpop.f32.mrf.mxu0
    %v4696 = vadd.f32 %v4676, %v4695
    %4697 = vdwg.mxu0
    %4698 = vmatpush.msra.mxu0 %v4367
    %4699 = vmatpush.msra.mxu0 %v4359
    %4700 = vmatpush.msra.mxu0 %v4351
    %4701 = vmatpush.msra.mxu0 %v4343
    %4702 = vmatpush.msra.mxu0 %v4335
    %4703 = vmatpush.msra.mxu0 %v4327
    %4704 = vmatpush.msra.mxu0 %v4319
    %4705 = vmatpush.msra.mxu0 %v4311
    %4706 = vmatpush.msra.mxu0 %v4303
    %4707 = vmatpush.msra.mxu0 %v4295
    %4708 = vmatpush.msra.mxu0 %v4287
    %4709 = vmatpush.msra.mxu0 %v4279
    %4710 = vmatpush.msra.mxu0 %v4271
    %4711 = vmatpush.msra.mxu0 %v4263
    %4712 = vmatpush.msra.mxu0 %v4255
    %4713 = vmatpush.msra.mxu0 %v4247
    %4714 = vmatmul.f32.gmra.mxu0 %v4224
    %v4715 = vpop.f32.mrf.mxu0
    %v4716 = vadd.f32 0.0, %v4715
    %4717 = vdwg.mxu0
    %4718 = vmatpush.msra.mxu0 %v4495
    %4719 = vmatpush.msra.mxu0 %v4487
    %4720 = vmatpush.msra.mxu0 %v4479
    %4721 = vmatpush.msra.mxu0 %v4471
    %4722 = vmatpush.msra.mxu0 %v4463
    %4723 = vmatpush.msra.mxu0 %v4455
    %4724 = vmatpush.msra.mxu0 %v4447
    %4725 = vmatpush.msra.mxu0 %v4439
    %4726 = vmatpush.msra.mxu0 %v4431
    %4727 = vmatpush.msra.mxu0 %v4423
    %4728 = vmatpush.msra.mxu0 %v4415
    %4729 = vmatpush.msra.mxu0 %v4407
    %4730 = vmatpush.msra.mxu0 %v4399
    %4731 = vmatpush.msra.mxu0 %v4391
    %4732 = vmatpush.msra.mxu0 %v4383
    %4733 = vmatpush.msra.mxu0 %v4375
    %4734 = vmatmul.f32.gmra.mxu0 %v4225
    %v4735 = vpop.f32.mrf.mxu0
    %v4736 = vadd.f32 %v4716, %v4735
    %4737 = vdwg.mxu0
    %4738 = vmatpush.msra.mxu0 %v4368
    %4739 = vmatpush.msra.mxu0 %v4360
    %4740 = vmatpush.msra.mxu0 %v4352
    %4741 = vmatpush.msra.mxu0 %v4344
    %4742 = vmatpush.msra.mxu0 %v4336
    %4743 = vmatpush.msra.mxu0 %v4328
    %4744 = vmatpush.msra.mxu0 %v4320
    %4745 = vmatpush.msra.mxu0 %v4312
    %4746 = vmatpush.msra.mxu0 %v4304
    %4747 = vmatpush.msra.mxu0 %v4296
    %4748 = vmatpush.msra.mxu0 %v4288
    %4749 = vmatpush.msra.mxu0 %v4280
    %4750 = vmatpush.msra.mxu0 %v4272
    %4751 = vmatpush.msra.mxu0 %v4264
    %4752 = vmatpush.msra.mxu0 %v4256
    %4753 = vmatpush.msra.mxu0 %v4248
    %4754 = vmatmul.f32.gmra.mxu0 %v4224
    %v4755 = vpop.f32.mrf.mxu0
    %v4756 = vadd.f32 0.0, %v4755
    %4757 = vdwg.mxu0
    %4758 = vmatpush.msra.mxu0 %v4496
    %4759 = vmatpush.msra.mxu0 %v4488
    %4760 = vmatpush.msra.mxu0 %v4480
    %4761 = vmatpush.msra.mxu0 %v4472
    %4762 = vmatpush.msra.mxu0 %v4464
    %4763 = vmatpush.msra.mxu0 %v4456
    %4764 = vmatpush.msra.mxu0 %v4448
    %4765 = vmatpush.msra.mxu0 %v4440
    %4766 = vmatpush.msra.mxu0 %v4432
    %4767 = vmatpush.msra.mxu0 %v4424
    %4768 = vmatpush.msra.mxu0 %v4416
    %4769 = vmatpush.msra.mxu0 %v4408
    %4770 = vmatpush.msra.mxu0 %v4400
    %4771 = vmatpush.msra.mxu0 %v4392
    %4772 = vmatpush.msra.mxu0 %v4384
    %4773 = vmatpush.msra.mxu0 %v4376
    %4774 = vmatmul.f32.gmra.mxu0 %v4225
    %v4775 = vpop.f32.mrf.mxu0
    %v4776 = vadd.f32 %v4756, %v4775
    %4777 = vdwg.mxu0
    %4778 = vmatpush.msra.mxu0 %v4369
    %4779 = vmatpush.msra.mxu0 %v4361
    %4780 = vmatpush.msra.mxu0 %v4353
    %4781 = vmatpush.msra.mxu0 %v4345
    %4782 = vmatpush.msra.mxu0 %v4337
    %4783 = vmatpush.msra.mxu0 %v4329
    %4784 = vmatpush.msra.mxu0 %v4321
    %4785 = vmatpush.msra.mxu0 %v4313
    %4786 = vmatpush.msra.mxu0 %v4305
    %4787 = vmatpush.msra.mxu0 %v4297
    %4788 = vmatpush.msra.mxu0 %v4289
    %4789 = vmatpush.msra.mxu0 %v4281
    %4790 = vmatpush.msra.mxu0 %v4273
    %4791 = vmatpush.msra.mxu0 %v4265
    %4792 = vmatpush.msra.mxu0 %v4257
    %4793 = vmatpush.msra.mxu0 %v4249
    %4794 = vmatmul.f32.gmra.mxu0 %v4224
    %v4795 = vpop.f32.mrf.mxu0
    %v4796 = vadd.f32 0.0, %v4795
    %4797 = vdwg.mxu0
    %4798 = vmatpush.msra.mxu0 %v4497
    %4799 = vmatpush.msra.mxu0 %v4489
    %4800 = vmatpush.msra.mxu0 %v4481
    %4801 = vmatpush.msra.mxu0 %v4473
    %4802 = vmatpush.msra.mxu0 %v4465
    %4803 = vmatpush.msra.mxu0 %v4457
    %4804 = vmatpush.msra.mxu0 %v4449
    %4805 = vmatpush.msra.mxu0 %v4441
    %4806 = vmatpush.msra.mxu0 %v4433
    %4807 = vmatpush.msra.mxu0 %v4425
    %4808 = vmatpush.msra.mxu0 %v4417
    %4809 = vmatpush.msra.mxu0 %v4409
    %4810 = vmatpush.msra.mxu0 %v4401
    %4811 = vmatpush.msra.mxu0 %v4393
    %4812 = vmatpush.msra.mxu0 %v4385
    %4813 = vmatpush.msra.mxu0 %v4377
    %4814 = vmatmul.f32.gmra.mxu0 %v4225
    %v4815 = vpop.f32.mrf.mxu0
    %v4816 = vadd.f32 %v4796, %v4815
    %4817 = vdwg.mxu0
    %v4818 = vadd.f32 %v4234, %v4536
    %v4819 = vadd.f32 %v4235, %v4576
    %v4820 = vadd.f32 %v4236, %v4616
    %v4821 = vadd.f32 %v4237, %v4656
    %v4822 = vadd.f32 %v4238, %v4696
    %v4823 = vadd.f32 %v4239, %v4736
    %v4824 = vadd.f32 %v4240, %v4776
    %v4825 = vadd.f32 %v4241, %v4816
    %v4826 = vxor.u32 %v4818, 2147483648
    %v4827 = vxor.u32 %v4819, 2147483648
    %v4828 = vxor.u32 %v4820, 2147483648
    %v4829 = vxor.u32 %v4821, 2147483648
    %v4830 = vxor.u32 %v4824, 2147483648
    %v4831 = vxor.u32 %v4825, 2147483648
    %v4832 = vmul.f32 %v4826, 1.442695
    %v4833 = vpow.pop %v4832
    %v4834 = vmul.f32 %v4827, 1.442695
    %v4835 = vpow.pop %v4834
    %v4836 = vmul.f32 %v4828, 1.442695
    %v4837 = vpow.pop %v4836
    %v4838 = vmul.f32 %v4829, 1.442695
    %v4839 = vpow.pop %v4838
    %v4840 = vmul.f32 %v4830, 1.442695
    %v4841 = vpow.pop %v4840
    %v4842 = vmul.f32 %v4831, 1.442695
    %v4843 = vpow.pop %v4842
    %v4844 = vadd.f32 %v4833, 1.0
    %v4845 = vadd.f32 %v4835, 1.0
    %v4846 = vadd.f32 %v4837, 1.0
    %v4847 = vadd.f32 %v4839, 1.0
    %v4848 = vadd.f32 %v4841, 1.0
    %v4849 = vadd.f32 %v4843, 1.0
    %v4850 = vrcp.pop %v4844
    %v4851 = vmul.f32 %v4844, %v4850
    %v4852 = vsub.f32 1.0, %v4851
    %v4853 = vmul.f32 %v4850, %v4852
    %v4854 = vadd.f32 %v4850, %v4853
    %vm4855 = vweird.f32 %v4844
    %vm4856 = vweird.f32 %v4850
    %vm4857 = vmor %vm4855, %vm4856
    %v4858 = vsel %vm4857, %v4850, %v4854
    %v4859 = vand.u32 2147483647, %v4844
    %vm4860 = vcmp.eq.f32.partialorder %v4859, 8.507059e+37
    %v4861 = vand.u32 %v4844, 2147483648
    %v4862 = vor.u32 1.1754944e-38, %v4861
    %v4863 = vsel %vm4860, %v4862, %v4858
    %v4864 = vmul.f32 1.0, %v4863
    %v4865 = vrcp.pop %v4845
    %v4866 = vmul.f32 %v4845, %v4865
    %v4867 = vsub.f32 1.0, %v4866
    %v4868 = vmul.f32 %v4865, %v4867
    %v4869 = vadd.f32 %v4865, %v4868
    %vm4870 = vweird.f32 %v4845
    %vm4871 = vweird.f32 %v4865
    %vm4872 = vmor %vm4870, %vm4871
    %v4873 = vsel %vm4872, %v4865, %v4869
    %v4874 = vand.u32 2147483647, %v4845
    %vm4875 = vcmp.eq.f32.partialorder %v4874, 8.507059e+37
    %v4876 = vand.u32 %v4845, 2147483648
    %v4877 = vor.u32 1.1754944e-38, %v4876
    %v4878 = vsel %vm4875, %v4877, %v4873
    %v4879 = vmul.f32 1.0, %v4878
    %v4880 = vrcp.pop %v4846
    %v4881 = vmul.f32 %v4846, %v4880
    %v4882 = vsub.f32 1.0, %v4881
    %v4883 = vmul.f32 %v4880, %v4882
    %v4884 = vadd.f32 %v4880, %v4883
    %vm4885 = vweird.f32 %v4846
    %vm4886 = vweird.f32 %v4880
    %vm4887 = vmor %vm4885, %vm4886
    %v4888 = vsel %vm4887, %v4880, %v4884
    %v4889 = vand.u32 2147483647, %v4846
    %vm4890 = vcmp.eq.f32.partialorder %v4889, 8.507059e+37
    %v4891 = vand.u32 %v4846, 2147483648
    %v4892 = vor.u32 1.1754944e-38, %v4891
    %v4893 = vsel %vm4890, %v4892, %v4888
    %v4894 = vmul.f32 1.0, %v4893
    %v4895 = vrcp.pop %v4847
    %v4896 = vmul.f32 %v4847, %v4895
    %v4897 = vsub.f32 1.0, %v4896
    %v4898 = vmul.f32 %v4895, %v4897
    %v4899 = vadd.f32 %v4895, %v4898
    %vm4900 = vweird.f32 %v4847
    %vm4901 = vweird.f32 %v4895
    %vm4902 = vmor %vm4900, %vm4901
    %v4903 = vsel %vm4902, %v4895, %v4899
    %v4904 = vand.u32 2147483647, %v4847
    %vm4905 = vcmp.eq.f32.partialorder %v4904, 8.507059e+37
    %v4906 = vand.u32 %v4847, 2147483648
    %v4907 = vor.u32 1.1754944e-38, %v4906
    %v4908 = vsel %vm4905, %v4907, %v4903
    %v4909 = vmul.f32 1.0, %v4908
    %v4910 = vrcp.pop %v4848
    %v4911 = vmul.f32 %v4848, %v4910
    %v4912 = vsub.f32 1.0, %v4911
    %v4913 = vmul.f32 %v4910, %v4912
    %v4914 = vadd.f32 %v4910, %v4913
    %vm4915 = vweird.f32 %v4848
    %vm4916 = vweird.f32 %v4910
    %vm4917 = vmor %vm4915, %vm4916
    %v4918 = vsel %vm4917, %v4910, %v4914
    %v4919 = vand.u32 2147483647, %v4848
    %vm4920 = vcmp.eq.f32.partialorder %v4919, 8.507059e+37
    %v4921 = vand.u32 %v4848, 2147483648
    %v4922 = vor.u32 1.1754944e-38, %v4921
    %v4923 = vsel %vm4920, %v4922, %v4918
    %v4924 = vmul.f32 1.0, %v4923
    %v4925 = vrcp.pop %v4849
    %v4926 = vmul.f32 %v4849, %v4925
    %v4927 = vsub.f32 1.0, %v4926
    %v4928 = vmul.f32 %v4925, %v4927
    %v4929 = vadd.f32 %v4925, %v4928
    %vm4930 = vweird.f32 %v4849
    %vm4931 = vweird.f32 %v4925
    %vm4932 = vmor %vm4930, %vm4931
    %v4933 = vsel %vm4932, %v4925, %v4929
    %v4934 = vand.u32 2147483647, %v4849
    %vm4935 = vcmp.eq.f32.partialorder %v4934, 8.507059e+37
    %v4936 = vand.u32 %v4849, 2147483648
    %v4937 = vor.u32 1.1754944e-38, %v4936
    %v4938 = vsel %vm4935, %v4937, %v4933
    %v4939 = vmul.f32 1.0, %v4938
    %v4940 = vtanh.pop %v4822
    %v4941 = vtanh.pop %v4823
    %v4942 = vmul.f32 %v4894, %v4220
    %v4943 = vmul.f32 %v4909, %v4221
    %v4944 = vmul.f32 %v4864, %v4940
    %v4945 = vmul.f32 %v4879, %v4941
    %v4946 = vadd.f32 %v4942, %v4944
    %v4947 = vadd.f32 %v4943, %v4945
    %v4948 = vtanh.pop %v4946
    %v4949 = vtanh.pop %v4947
    %v4950 = vmul.f32 %v4924, %v4948
    %v4951 = vmul.f32 %v4939, %v4949
    %s4952 = smul.u32 5, 2
    %s4953 = smul.addr %s4952, 8
    %s4954 = scalar_lea.vmem [#allocation3], %s4953
    %4955 = vst [vmem:[%s4954] sm:$0xff] %v4950
    %4956 = vst [vmem:[%s4954 + $0x8] sm:$0xff] %v4951
    %s4957 = smul.u32 6, 8
    %s4958 = smul.addr %s4957, 8
    %s4959 = scalar_lea.vmem [#allocation2], %s4958
    %v4960 = vld [vmem:[%s4959] sm:$0xff]
    %v4961 = vld [vmem:[%s4959 + $0x8] sm:$0xff]
    %v4962 = vld [vmem:[%s4959 + $0x10] sm:$0xff]
    %v4963 = vld [vmem:[%s4959 + $0x18] sm:$0xff]
    %v4964 = vld [vmem:[%s4959 + $0x20] sm:$0xff]
    %v4965 = vld [vmem:[%s4959 + $0x28] sm:$0xff]
    %v4966 = vld [vmem:[%s4959 + $0x30] sm:$0xff]
    %v4967 = vld [vmem:[%s4959 + $0x38] sm:$0xff]
    %v4968 = vld [vmem:[#allocation6] sm:$0xff]
    %v4969 = vld [vmem:[#allocation6 + $0x8] sm:$0xff]
    %v4970 = vld [vmem:[#allocation6 + $0x10] sm:$0xff]
    %v4971 = vld [vmem:[#allocation6 + $0x18] sm:$0xff]
    %v4972 = vld [vmem:[#allocation6 + $0x20] sm:$0xff]
    %v4973 = vld [vmem:[#allocation6 + $0x28] sm:$0xff]
    %v4974 = vld [vmem:[#allocation6 + $0x30] sm:$0xff]
    %v4975 = vld [vmem:[#allocation6 + $0x38] sm:$0xff]
    %v4976 = vld [vmem:[#allocation6 + $0x40] sm:$0xff]
    %v4977 = vld [vmem:[#allocation6 + $0x48] sm:$0xff]
    %v4978 = vld [vmem:[#allocation6 + $0x50] sm:$0xff]
    %v4979 = vld [vmem:[#allocation6 + $0x58] sm:$0xff]
    %v4980 = vld [vmem:[#allocation6 + $0x60] sm:$0xff]
    %v4981 = vld [vmem:[#allocation6 + $0x68] sm:$0xff]
    %v4982 = vld [vmem:[#allocation6 + $0x70] sm:$0xff]
    %v4983 = vld [vmem:[#allocation6 + $0x78] sm:$0xff]
    %v4984 = vld [vmem:[#allocation6 + $0x80] sm:$0xff]
    %v4985 = vld [vmem:[#allocation6 + $0x88] sm:$0xff]
    %v4986 = vld [vmem:[#allocation6 + $0x90] sm:$0xff]
    %v4987 = vld [vmem:[#allocation6 + $0x98] sm:$0xff]
    %v4988 = vld [vmem:[#allocation6 + $0xa0] sm:$0xff]
    %v4989 = vld [vmem:[#allocation6 + $0xa8] sm:$0xff]
    %v4990 = vld [vmem:[#allocation6 + $0xb0] sm:$0xff]
    %v4991 = vld [vmem:[#allocation6 + $0xb8] sm:$0xff]
    %v4992 = vld [vmem:[#allocation6 + $0xc0] sm:$0xff]
    %v4993 = vld [vmem:[#allocation6 + $0xc8] sm:$0xff]
    %v4994 = vld [vmem:[#allocation6 + $0xd0] sm:$0xff]
    %v4995 = vld [vmem:[#allocation6 + $0xd8] sm:$0xff]
    %v4996 = vld [vmem:[#allocation6 + $0xe0] sm:$0xff]
    %v4997 = vld [vmem:[#allocation6 + $0xe8] sm:$0xff]
    %v4998 = vld [vmem:[#allocation6 + $0xf0] sm:$0xff]
    %v4999 = vld [vmem:[#allocation6 + $0xf8] sm:$0xff]
    %v5000 = vld [vmem:[#allocation6 + $0x100] sm:$0xff]
    %v5001 = vld [vmem:[#allocation6 + $0x108] sm:$0xff]
    %v5002 = vld [vmem:[#allocation6 + $0x110] sm:$0xff]
    %v5003 = vld [vmem:[#allocation6 + $0x118] sm:$0xff]
    %v5004 = vld [vmem:[#allocation6 + $0x120] sm:$0xff]
    %v5005 = vld [vmem:[#allocation6 + $0x128] sm:$0xff]
    %v5006 = vld [vmem:[#allocation6 + $0x130] sm:$0xff]
    %v5007 = vld [vmem:[#allocation6 + $0x138] sm:$0xff]
    %v5008 = vld [vmem:[#allocation6 + $0x140] sm:$0xff]
    %v5009 = vld [vmem:[#allocation6 + $0x148] sm:$0xff]
    %v5010 = vld [vmem:[#allocation6 + $0x150] sm:$0xff]
    %v5011 = vld [vmem:[#allocation6 + $0x158] sm:$0xff]
    %v5012 = vld [vmem:[#allocation6 + $0x160] sm:$0xff]
    %v5013 = vld [vmem:[#allocation6 + $0x168] sm:$0xff]
    %v5014 = vld [vmem:[#allocation6 + $0x170] sm:$0xff]
    %v5015 = vld [vmem:[#allocation6 + $0x178] sm:$0xff]
    %v5016 = vld [vmem:[#allocation6 + $0x180] sm:$0xff]
    %v5017 = vld [vmem:[#allocation6 + $0x188] sm:$0xff]
    %v5018 = vld [vmem:[#allocation6 + $0x190] sm:$0xff]
    %v5019 = vld [vmem:[#allocation6 + $0x198] sm:$0xff]
    %v5020 = vld [vmem:[#allocation6 + $0x1a0] sm:$0xff]
    %v5021 = vld [vmem:[#allocation6 + $0x1a8] sm:$0xff]
    %v5022 = vld [vmem:[#allocation6 + $0x1b0] sm:$0xff]
    %v5023 = vld [vmem:[#allocation6 + $0x1b8] sm:$0xff]
    %v5024 = vld [vmem:[#allocation6 + $0x1c0] sm:$0xff]
    %v5025 = vld [vmem:[#allocation6 + $0x1c8] sm:$0xff]
    %v5026 = vld [vmem:[#allocation6 + $0x1d0] sm:$0xff]
    %v5027 = vld [vmem:[#allocation6 + $0x1d8] sm:$0xff]
    %v5028 = vld [vmem:[#allocation6 + $0x1e0] sm:$0xff]
    %v5029 = vld [vmem:[#allocation6 + $0x1e8] sm:$0xff]
    %v5030 = vld [vmem:[#allocation6 + $0x1f0] sm:$0xff]
    %v5031 = vld [vmem:[#allocation6 + $0x1f8] sm:$0xff]
    %v5032 = vld [vmem:[#allocation6 + $0x200] sm:$0xff]
    %v5033 = vld [vmem:[#allocation6 + $0x208] sm:$0xff]
    %v5034 = vld [vmem:[#allocation6 + $0x210] sm:$0xff]
    %v5035 = vld [vmem:[#allocation6 + $0x218] sm:$0xff]
    %v5036 = vld [vmem:[#allocation6 + $0x220] sm:$0xff]
    %v5037 = vld [vmem:[#allocation6 + $0x228] sm:$0xff]
    %v5038 = vld [vmem:[#allocation6 + $0x230] sm:$0xff]
    %v5039 = vld [vmem:[#allocation6 + $0x238] sm:$0xff]
    %v5040 = vld [vmem:[#allocation6 + $0x240] sm:$0xff]
    %v5041 = vld [vmem:[#allocation6 + $0x248] sm:$0xff]
    %v5042 = vld [vmem:[#allocation6 + $0x250] sm:$0xff]
    %v5043 = vld [vmem:[#allocation6 + $0x258] sm:$0xff]
    %v5044 = vld [vmem:[#allocation6 + $0x260] sm:$0xff]
    %v5045 = vld [vmem:[#allocation6 + $0x268] sm:$0xff]
    %v5046 = vld [vmem:[#allocation6 + $0x270] sm:$0xff]
    %v5047 = vld [vmem:[#allocation6 + $0x278] sm:$0xff]
    %v5048 = vld [vmem:[#allocation6 + $0x280] sm:$0xff]
    %v5049 = vld [vmem:[#allocation6 + $0x288] sm:$0xff]
    %v5050 = vld [vmem:[#allocation6 + $0x290] sm:$0xff]
    %v5051 = vld [vmem:[#allocation6 + $0x298] sm:$0xff]
    %v5052 = vld [vmem:[#allocation6 + $0x2a0] sm:$0xff]
    %v5053 = vld [vmem:[#allocation6 + $0x2a8] sm:$0xff]
    %v5054 = vld [vmem:[#allocation6 + $0x2b0] sm:$0xff]
    %v5055 = vld [vmem:[#allocation6 + $0x2b8] sm:$0xff]
    %v5056 = vld [vmem:[#allocation6 + $0x2c0] sm:$0xff]
    %v5057 = vld [vmem:[#allocation6 + $0x2c8] sm:$0xff]
    %v5058 = vld [vmem:[#allocation6 + $0x2d0] sm:$0xff]
    %v5059 = vld [vmem:[#allocation6 + $0x2d8] sm:$0xff]
    %v5060 = vld [vmem:[#allocation6 + $0x2e0] sm:$0xff]
    %v5061 = vld [vmem:[#allocation6 + $0x2e8] sm:$0xff]
    %v5062 = vld [vmem:[#allocation6 + $0x2f0] sm:$0xff]
    %v5063 = vld [vmem:[#allocation6 + $0x2f8] sm:$0xff]
    %v5064 = vld [vmem:[#allocation6 + $0x300] sm:$0xff]
    %v5065 = vld [vmem:[#allocation6 + $0x308] sm:$0xff]
    %v5066 = vld [vmem:[#allocation6 + $0x310] sm:$0xff]
    %v5067 = vld [vmem:[#allocation6 + $0x318] sm:$0xff]
    %v5068 = vld [vmem:[#allocation6 + $0x320] sm:$0xff]
    %v5069 = vld [vmem:[#allocation6 + $0x328] sm:$0xff]
    %v5070 = vld [vmem:[#allocation6 + $0x330] sm:$0xff]
    %v5071 = vld [vmem:[#allocation6 + $0x338] sm:$0xff]
    %v5072 = vld [vmem:[#allocation6 + $0x340] sm:$0xff]
    %v5073 = vld [vmem:[#allocation6 + $0x348] sm:$0xff]
    %v5074 = vld [vmem:[#allocation6 + $0x350] sm:$0xff]
    %v5075 = vld [vmem:[#allocation6 + $0x358] sm:$0xff]
    %v5076 = vld [vmem:[#allocation6 + $0x360] sm:$0xff]
    %v5077 = vld [vmem:[#allocation6 + $0x368] sm:$0xff]
    %v5078 = vld [vmem:[#allocation6 + $0x370] sm:$0xff]
    %v5079 = vld [vmem:[#allocation6 + $0x378] sm:$0xff]
    %v5080 = vld [vmem:[#allocation6 + $0x380] sm:$0xff]
    %v5081 = vld [vmem:[#allocation6 + $0x388] sm:$0xff]
    %v5082 = vld [vmem:[#allocation6 + $0x390] sm:$0xff]
    %v5083 = vld [vmem:[#allocation6 + $0x398] sm:$0xff]
    %v5084 = vld [vmem:[#allocation6 + $0x3a0] sm:$0xff]
    %v5085 = vld [vmem:[#allocation6 + $0x3a8] sm:$0xff]
    %v5086 = vld [vmem:[#allocation6 + $0x3b0] sm:$0xff]
    %v5087 = vld [vmem:[#allocation6 + $0x3b8] sm:$0xff]
    %v5088 = vld [vmem:[#allocation6 + $0x3c0] sm:$0xff]
    %v5089 = vld [vmem:[#allocation6 + $0x3c8] sm:$0xff]
    %v5090 = vld [vmem:[#allocation6 + $0x3d0] sm:$0xff]
    %v5091 = vld [vmem:[#allocation6 + $0x3d8] sm:$0xff]
    %v5092 = vld [vmem:[#allocation6 + $0x3e0] sm:$0xff]
    %v5093 = vld [vmem:[#allocation6 + $0x3e8] sm:$0xff]
    %v5094 = vld [vmem:[#allocation6 + $0x3f0] sm:$0xff]
    %v5095 = vld [vmem:[#allocation6 + $0x3f8] sm:$0xff]
    %v5096 = vld [vmem:[#allocation6 + $0x400] sm:$0xff]
    %v5097 = vld [vmem:[#allocation6 + $0x408] sm:$0xff]
    %v5098 = vld [vmem:[#allocation6 + $0x410] sm:$0xff]
    %v5099 = vld [vmem:[#allocation6 + $0x418] sm:$0xff]
    %v5100 = vld [vmem:[#allocation6 + $0x420] sm:$0xff]
    %v5101 = vld [vmem:[#allocation6 + $0x428] sm:$0xff]
    %v5102 = vld [vmem:[#allocation6 + $0x430] sm:$0xff]
    %v5103 = vld [vmem:[#allocation6 + $0x438] sm:$0xff]
    %v5104 = vld [vmem:[#allocation6 + $0x440] sm:$0xff]
    %v5105 = vld [vmem:[#allocation6 + $0x448] sm:$0xff]
    %v5106 = vld [vmem:[#allocation6 + $0x450] sm:$0xff]
    %v5107 = vld [vmem:[#allocation6 + $0x458] sm:$0xff]
    %v5108 = vld [vmem:[#allocation6 + $0x460] sm:$0xff]
    %v5109 = vld [vmem:[#allocation6 + $0x468] sm:$0xff]
    %v5110 = vld [vmem:[#allocation6 + $0x470] sm:$0xff]
    %v5111 = vld [vmem:[#allocation6 + $0x478] sm:$0xff]
    %v5112 = vld [vmem:[#allocation6 + $0x480] sm:$0xff]
    %v5113 = vld [vmem:[#allocation6 + $0x488] sm:$0xff]
    %v5114 = vld [vmem:[#allocation6 + $0x490] sm:$0xff]
    %v5115 = vld [vmem:[#allocation6 + $0x498] sm:$0xff]
    %v5116 = vld [vmem:[#allocation6 + $0x4a0] sm:$0xff]
    %v5117 = vld [vmem:[#allocation6 + $0x4a8] sm:$0xff]
    %v5118 = vld [vmem:[#allocation6 + $0x4b0] sm:$0xff]
    %v5119 = vld [vmem:[#allocation6 + $0x4b8] sm:$0xff]
    %v5120 = vld [vmem:[#allocation6 + $0x4c0] sm:$0xff]
    %v5121 = vld [vmem:[#allocation6 + $0x4c8] sm:$0xff]
    %v5122 = vld [vmem:[#allocation6 + $0x4d0] sm:$0xff]
    %v5123 = vld [vmem:[#allocation6 + $0x4d8] sm:$0xff]
    %v5124 = vld [vmem:[#allocation6 + $0x4e0] sm:$0xff]
    %v5125 = vld [vmem:[#allocation6 + $0x4e8] sm:$0xff]
    %v5126 = vld [vmem:[#allocation6 + $0x4f0] sm:$0xff]
    %v5127 = vld [vmem:[#allocation6 + $0x4f8] sm:$0xff]
    %v5128 = vld [vmem:[#allocation6 + $0x500] sm:$0xff]
    %v5129 = vld [vmem:[#allocation6 + $0x508] sm:$0xff]
    %v5130 = vld [vmem:[#allocation6 + $0x510] sm:$0xff]
    %v5131 = vld [vmem:[#allocation6 + $0x518] sm:$0xff]
    %v5132 = vld [vmem:[#allocation6 + $0x520] sm:$0xff]
    %v5133 = vld [vmem:[#allocation6 + $0x528] sm:$0xff]
    %v5134 = vld [vmem:[#allocation6 + $0x530] sm:$0xff]
    %v5135 = vld [vmem:[#allocation6 + $0x538] sm:$0xff]
    %v5136 = vld [vmem:[#allocation6 + $0x540] sm:$0xff]
    %v5137 = vld [vmem:[#allocation6 + $0x548] sm:$0xff]
    %v5138 = vld [vmem:[#allocation6 + $0x550] sm:$0xff]
    %v5139 = vld [vmem:[#allocation6 + $0x558] sm:$0xff]
    %v5140 = vld [vmem:[#allocation6 + $0x560] sm:$0xff]
    %v5141 = vld [vmem:[#allocation6 + $0x568] sm:$0xff]
    %v5142 = vld [vmem:[#allocation6 + $0x570] sm:$0xff]
    %v5143 = vld [vmem:[#allocation6 + $0x578] sm:$0xff]
    %v5144 = vld [vmem:[#allocation6 + $0x580] sm:$0xff]
    %v5145 = vld [vmem:[#allocation6 + $0x588] sm:$0xff]
    %v5146 = vld [vmem:[#allocation6 + $0x590] sm:$0xff]
    %v5147 = vld [vmem:[#allocation6 + $0x598] sm:$0xff]
    %v5148 = vld [vmem:[#allocation6 + $0x5a0] sm:$0xff]
    %v5149 = vld [vmem:[#allocation6 + $0x5a8] sm:$0xff]
    %v5150 = vld [vmem:[#allocation6 + $0x5b0] sm:$0xff]
    %v5151 = vld [vmem:[#allocation6 + $0x5b8] sm:$0xff]
    %v5152 = vld [vmem:[#allocation6 + $0x5c0] sm:$0xff]
    %v5153 = vld [vmem:[#allocation6 + $0x5c8] sm:$0xff]
    %v5154 = vld [vmem:[#allocation6 + $0x5d0] sm:$0xff]
    %v5155 = vld [vmem:[#allocation6 + $0x5d8] sm:$0xff]
    %v5156 = vld [vmem:[#allocation6 + $0x5e0] sm:$0xff]
    %v5157 = vld [vmem:[#allocation6 + $0x5e8] sm:$0xff]
    %v5158 = vld [vmem:[#allocation6 + $0x5f0] sm:$0xff]
    %v5159 = vld [vmem:[#allocation6 + $0x5f8] sm:$0xff]
    %v5160 = vld [vmem:[#allocation6 + $0x600] sm:$0xff]
    %v5161 = vld [vmem:[#allocation6 + $0x608] sm:$0xff]
    %v5162 = vld [vmem:[#allocation6 + $0x610] sm:$0xff]
    %v5163 = vld [vmem:[#allocation6 + $0x618] sm:$0xff]
    %v5164 = vld [vmem:[#allocation6 + $0x620] sm:$0xff]
    %v5165 = vld [vmem:[#allocation6 + $0x628] sm:$0xff]
    %v5166 = vld [vmem:[#allocation6 + $0x630] sm:$0xff]
    %v5167 = vld [vmem:[#allocation6 + $0x638] sm:$0xff]
    %v5168 = vld [vmem:[#allocation6 + $0x640] sm:$0xff]
    %v5169 = vld [vmem:[#allocation6 + $0x648] sm:$0xff]
    %v5170 = vld [vmem:[#allocation6 + $0x650] sm:$0xff]
    %v5171 = vld [vmem:[#allocation6 + $0x658] sm:$0xff]
    %v5172 = vld [vmem:[#allocation6 + $0x660] sm:$0xff]
    %v5173 = vld [vmem:[#allocation6 + $0x668] sm:$0xff]
    %v5174 = vld [vmem:[#allocation6 + $0x670] sm:$0xff]
    %v5175 = vld [vmem:[#allocation6 + $0x678] sm:$0xff]
    %v5176 = vld [vmem:[#allocation6 + $0x680] sm:$0xff]
    %v5177 = vld [vmem:[#allocation6 + $0x688] sm:$0xff]
    %v5178 = vld [vmem:[#allocation6 + $0x690] sm:$0xff]
    %v5179 = vld [vmem:[#allocation6 + $0x698] sm:$0xff]
    %v5180 = vld [vmem:[#allocation6 + $0x6a0] sm:$0xff]
    %v5181 = vld [vmem:[#allocation6 + $0x6a8] sm:$0xff]
    %v5182 = vld [vmem:[#allocation6 + $0x6b0] sm:$0xff]
    %v5183 = vld [vmem:[#allocation6 + $0x6b8] sm:$0xff]
    %v5184 = vld [vmem:[#allocation6 + $0x6c0] sm:$0xff]
    %v5185 = vld [vmem:[#allocation6 + $0x6c8] sm:$0xff]
    %v5186 = vld [vmem:[#allocation6 + $0x6d0] sm:$0xff]
    %v5187 = vld [vmem:[#allocation6 + $0x6d8] sm:$0xff]
    %v5188 = vld [vmem:[#allocation6 + $0x6e0] sm:$0xff]
    %v5189 = vld [vmem:[#allocation6 + $0x6e8] sm:$0xff]
    %v5190 = vld [vmem:[#allocation6 + $0x6f0] sm:$0xff]
    %v5191 = vld [vmem:[#allocation6 + $0x6f8] sm:$0xff]
    %v5192 = vld [vmem:[#allocation6 + $0x700] sm:$0xff]
    %v5193 = vld [vmem:[#allocation6 + $0x708] sm:$0xff]
    %v5194 = vld [vmem:[#allocation6 + $0x710] sm:$0xff]
    %v5195 = vld [vmem:[#allocation6 + $0x718] sm:$0xff]
    %v5196 = vld [vmem:[#allocation6 + $0x720] sm:$0xff]
    %v5197 = vld [vmem:[#allocation6 + $0x728] sm:$0xff]
    %v5198 = vld [vmem:[#allocation6 + $0x730] sm:$0xff]
    %v5199 = vld [vmem:[#allocation6 + $0x738] sm:$0xff]
    %v5200 = vld [vmem:[#allocation6 + $0x740] sm:$0xff]
    %v5201 = vld [vmem:[#allocation6 + $0x748] sm:$0xff]
    %v5202 = vld [vmem:[#allocation6 + $0x750] sm:$0xff]
    %v5203 = vld [vmem:[#allocation6 + $0x758] sm:$0xff]
    %v5204 = vld [vmem:[#allocation6 + $0x760] sm:$0xff]
    %v5205 = vld [vmem:[#allocation6 + $0x768] sm:$0xff]
    %v5206 = vld [vmem:[#allocation6 + $0x770] sm:$0xff]
    %v5207 = vld [vmem:[#allocation6 + $0x778] sm:$0xff]
    %v5208 = vld [vmem:[#allocation6 + $0x780] sm:$0xff]
    %v5209 = vld [vmem:[#allocation6 + $0x788] sm:$0xff]
    %v5210 = vld [vmem:[#allocation6 + $0x790] sm:$0xff]
    %v5211 = vld [vmem:[#allocation6 + $0x798] sm:$0xff]
    %v5212 = vld [vmem:[#allocation6 + $0x7a0] sm:$0xff]
    %v5213 = vld [vmem:[#allocation6 + $0x7a8] sm:$0xff]
    %v5214 = vld [vmem:[#allocation6 + $0x7b0] sm:$0xff]
    %v5215 = vld [vmem:[#allocation6 + $0x7b8] sm:$0xff]
    %v5216 = vld [vmem:[#allocation6 + $0x7c0] sm:$0xff]
    %v5217 = vld [vmem:[#allocation6 + $0x7c8] sm:$0xff]
    %v5218 = vld [vmem:[#allocation6 + $0x7d0] sm:$0xff]
    %v5219 = vld [vmem:[#allocation6 + $0x7d8] sm:$0xff]
    %v5220 = vld [vmem:[#allocation6 + $0x7e0] sm:$0xff]
    %v5221 = vld [vmem:[#allocation6 + $0x7e8] sm:$0xff]
    %v5222 = vld [vmem:[#allocation6 + $0x7f0] sm:$0xff]
    %v5223 = vld [vmem:[#allocation6 + $0x7f8] sm:$0xff]
    %5224 = vmatpush.msra.mxu0 %v5088
    %5225 = vmatpush.msra.mxu0 %v5080
    %5226 = vmatpush.msra.mxu0 %v5072
    %5227 = vmatpush.msra.mxu0 %v5064
    %5228 = vmatpush.msra.mxu0 %v5056
    %5229 = vmatpush.msra.mxu0 %v5048
    %5230 = vmatpush.msra.mxu0 %v5040
    %5231 = vmatpush.msra.mxu0 %v5032
    %5232 = vmatpush.msra.mxu0 %v5024
    %5233 = vmatpush.msra.mxu0 %v5016
    %5234 = vmatpush.msra.mxu0 %v5008
    %5235 = vmatpush.msra.mxu0 %v5000
    %5236 = vmatpush.msra.mxu0 %v4992
    %5237 = vmatpush.msra.mxu0 %v4984
    %5238 = vmatpush.msra.mxu0 %v4976
    %5239 = vmatpush.msra.mxu0 %v4968
    %5240 = vmatmul.f32.gmra.mxu0 %v4950
    %v5241 = vpop.f32.mrf.mxu0
    %v5242 = vadd.f32 0.0, %v5241
    %5243 = vdwg.mxu0
    %5244 = vmatpush.msra.mxu0 %v5216
    %5245 = vmatpush.msra.mxu0 %v5208
    %5246 = vmatpush.msra.mxu0 %v5200
    %5247 = vmatpush.msra.mxu0 %v5192
    %5248 = vmatpush.msra.mxu0 %v5184
    %5249 = vmatpush.msra.mxu0 %v5176
    %5250 = vmatpush.msra.mxu0 %v5168
    %5251 = vmatpush.msra.mxu0 %v5160
    %5252 = vmatpush.msra.mxu0 %v5152
    %5253 = vmatpush.msra.mxu0 %v5144
    %5254 = vmatpush.msra.mxu0 %v5136
    %5255 = vmatpush.msra.mxu0 %v5128
    %5256 = vmatpush.msra.mxu0 %v5120
    %5257 = vmatpush.msra.mxu0 %v5112
    %5258 = vmatpush.msra.mxu0 %v5104
    %5259 = vmatpush.msra.mxu0 %v5096
    %5260 = vmatmul.f32.gmra.mxu0 %v4951
    %v5261 = vpop.f32.mrf.mxu0
    %v5262 = vadd.f32 %v5242, %v5261
    %5263 = vdwg.mxu0
    %5264 = vmatpush.msra.mxu0 %v5089
    %5265 = vmatpush.msra.mxu0 %v5081
    %5266 = vmatpush.msra.mxu0 %v5073
    %5267 = vmatpush.msra.mxu0 %v5065
    %5268 = vmatpush.msra.mxu0 %v5057
    %5269 = vmatpush.msra.mxu0 %v5049
    %5270 = vmatpush.msra.mxu0 %v5041
    %5271 = vmatpush.msra.mxu0 %v5033
    %5272 = vmatpush.msra.mxu0 %v5025
    %5273 = vmatpush.msra.mxu0 %v5017
    %5274 = vmatpush.msra.mxu0 %v5009
    %5275 = vmatpush.msra.mxu0 %v5001
    %5276 = vmatpush.msra.mxu0 %v4993
    %5277 = vmatpush.msra.mxu0 %v4985
    %5278 = vmatpush.msra.mxu0 %v4977
    %5279 = vmatpush.msra.mxu0 %v4969
    %5280 = vmatmul.f32.gmra.mxu0 %v4950
    %v5281 = vpop.f32.mrf.mxu0
    %v5282 = vadd.f32 0.0, %v5281
    %5283 = vdwg.mxu0
    %5284 = vmatpush.msra.mxu0 %v5217
    %5285 = vmatpush.msra.mxu0 %v5209
    %5286 = vmatpush.msra.mxu0 %v5201
    %5287 = vmatpush.msra.mxu0 %v5193
    %5288 = vmatpush.msra.mxu0 %v5185
    %5289 = vmatpush.msra.mxu0 %v5177
    %5290 = vmatpush.msra.mxu0 %v5169
    %5291 = vmatpush.msra.mxu0 %v5161
    %5292 = vmatpush.msra.mxu0 %v5153
    %5293 = vmatpush.msra.mxu0 %v5145
    %5294 = vmatpush.msra.mxu0 %v5137
    %5295 = vmatpush.msra.mxu0 %v5129
    %5296 = vmatpush.msra.mxu0 %v5121
    %5297 = vmatpush.msra.mxu0 %v5113
    %5298 = vmatpush.msra.mxu0 %v5105
    %5299 = vmatpush.msra.mxu0 %v5097
    %5300 = vmatmul.f32.gmra.mxu0 %v4951
    %v5301 = vpop.f32.mrf.mxu0
    %v5302 = vadd.f32 %v5282, %v5301
    %5303 = vdwg.mxu0
    %5304 = vmatpush.msra.mxu0 %v5090
    %5305 = vmatpush.msra.mxu0 %v5082
    %5306 = vmatpush.msra.mxu0 %v5074
    %5307 = vmatpush.msra.mxu0 %v5066
    %5308 = vmatpush.msra.mxu0 %v5058
    %5309 = vmatpush.msra.mxu0 %v5050
    %5310 = vmatpush.msra.mxu0 %v5042
    %5311 = vmatpush.msra.mxu0 %v5034
    %5312 = vmatpush.msra.mxu0 %v5026
    %5313 = vmatpush.msra.mxu0 %v5018
    %5314 = vmatpush.msra.mxu0 %v5010
    %5315 = vmatpush.msra.mxu0 %v5002
    %5316 = vmatpush.msra.mxu0 %v4994
    %5317 = vmatpush.msra.mxu0 %v4986
    %5318 = vmatpush.msra.mxu0 %v4978
    %5319 = vmatpush.msra.mxu0 %v4970
    %5320 = vmatmul.f32.gmra.mxu0 %v4950
    %v5321 = vpop.f32.mrf.mxu0
    %v5322 = vadd.f32 0.0, %v5321
    %5323 = vdwg.mxu0
    %5324 = vmatpush.msra.mxu0 %v5218
    %5325 = vmatpush.msra.mxu0 %v5210
    %5326 = vmatpush.msra.mxu0 %v5202
    %5327 = vmatpush.msra.mxu0 %v5194
    %5328 = vmatpush.msra.mxu0 %v5186
    %5329 = vmatpush.msra.mxu0 %v5178
    %5330 = vmatpush.msra.mxu0 %v5170
    %5331 = vmatpush.msra.mxu0 %v5162
    %5332 = vmatpush.msra.mxu0 %v5154
    %5333 = vmatpush.msra.mxu0 %v5146
    %5334 = vmatpush.msra.mxu0 %v5138
    %5335 = vmatpush.msra.mxu0 %v5130
    %5336 = vmatpush.msra.mxu0 %v5122
    %5337 = vmatpush.msra.mxu0 %v5114
    %5338 = vmatpush.msra.mxu0 %v5106
    %5339 = vmatpush.msra.mxu0 %v5098
    %5340 = vmatmul.f32.gmra.mxu0 %v4951
    %v5341 = vpop.f32.mrf.mxu0
    %v5342 = vadd.f32 %v5322, %v5341
    %5343 = vdwg.mxu0
    %5344 = vmatpush.msra.mxu0 %v5091
    %5345 = vmatpush.msra.mxu0 %v5083
    %5346 = vmatpush.msra.mxu0 %v5075
    %5347 = vmatpush.msra.mxu0 %v5067
    %5348 = vmatpush.msra.mxu0 %v5059
    %5349 = vmatpush.msra.mxu0 %v5051
    %5350 = vmatpush.msra.mxu0 %v5043
    %5351 = vmatpush.msra.mxu0 %v5035
    %5352 = vmatpush.msra.mxu0 %v5027
    %5353 = vmatpush.msra.mxu0 %v5019
    %5354 = vmatpush.msra.mxu0 %v5011
    %5355 = vmatpush.msra.mxu0 %v5003
    %5356 = vmatpush.msra.mxu0 %v4995
    %5357 = vmatpush.msra.mxu0 %v4987
    %5358 = vmatpush.msra.mxu0 %v4979
    %5359 = vmatpush.msra.mxu0 %v4971
    %5360 = vmatmul.f32.gmra.mxu0 %v4950
    %v5361 = vpop.f32.mrf.mxu0
    %v5362 = vadd.f32 0.0, %v5361
    %5363 = vdwg.mxu0
    %5364 = vmatpush.msra.mxu0 %v5219
    %5365 = vmatpush.msra.mxu0 %v5211
    %5366 = vmatpush.msra.mxu0 %v5203
    %5367 = vmatpush.msra.mxu0 %v5195
    %5368 = vmatpush.msra.mxu0 %v5187
    %5369 = vmatpush.msra.mxu0 %v5179
    %5370 = vmatpush.msra.mxu0 %v5171
    %5371 = vmatpush.msra.mxu0 %v5163
    %5372 = vmatpush.msra.mxu0 %v5155
    %5373 = vmatpush.msra.mxu0 %v5147
    %5374 = vmatpush.msra.mxu0 %v5139
    %5375 = vmatpush.msra.mxu0 %v5131
    %5376 = vmatpush.msra.mxu0 %v5123
    %5377 = vmatpush.msra.mxu0 %v5115
    %5378 = vmatpush.msra.mxu0 %v5107
    %5379 = vmatpush.msra.mxu0 %v5099
    %5380 = vmatmul.f32.gmra.mxu0 %v4951
    %v5381 = vpop.f32.mrf.mxu0
    %v5382 = vadd.f32 %v5362, %v5381
    %5383 = vdwg.mxu0
    %5384 = vmatpush.msra.mxu0 %v5092
    %5385 = vmatpush.msra.mxu0 %v5084
    %5386 = vmatpush.msra.mxu0 %v5076
    %5387 = vmatpush.msra.mxu0 %v5068
    %5388 = vmatpush.msra.mxu0 %v5060
    %5389 = vmatpush.msra.mxu0 %v5052
    %5390 = vmatpush.msra.mxu0 %v5044
    %5391 = vmatpush.msra.mxu0 %v5036
    %5392 = vmatpush.msra.mxu0 %v5028
    %5393 = vmatpush.msra.mxu0 %v5020
    %5394 = vmatpush.msra.mxu0 %v5012
    %5395 = vmatpush.msra.mxu0 %v5004
    %5396 = vmatpush.msra.mxu0 %v4996
    %5397 = vmatpush.msra.mxu0 %v4988
    %5398 = vmatpush.msra.mxu0 %v4980
    %5399 = vmatpush.msra.mxu0 %v4972
    %5400 = vmatmul.f32.gmra.mxu0 %v4950
    %v5401 = vpop.f32.mrf.mxu0
    %v5402 = vadd.f32 0.0, %v5401
    %5403 = vdwg.mxu0
    %5404 = vmatpush.msra.mxu0 %v5220
    %5405 = vmatpush.msra.mxu0 %v5212
    %5406 = vmatpush.msra.mxu0 %v5204
    %5407 = vmatpush.msra.mxu0 %v5196
    %5408 = vmatpush.msra.mxu0 %v5188
    %5409 = vmatpush.msra.mxu0 %v5180
    %5410 = vmatpush.msra.mxu0 %v5172
    %5411 = vmatpush.msra.mxu0 %v5164
    %5412 = vmatpush.msra.mxu0 %v5156
    %5413 = vmatpush.msra.mxu0 %v5148
    %5414 = vmatpush.msra.mxu0 %v5140
    %5415 = vmatpush.msra.mxu0 %v5132
    %5416 = vmatpush.msra.mxu0 %v5124
    %5417 = vmatpush.msra.mxu0 %v5116
    %5418 = vmatpush.msra.mxu0 %v5108
    %5419 = vmatpush.msra.mxu0 %v5100
    %5420 = vmatmul.f32.gmra.mxu0 %v4951
    %v5421 = vpop.f32.mrf.mxu0
    %v5422 = vadd.f32 %v5402, %v5421
    %5423 = vdwg.mxu0
    %5424 = vmatpush.msra.mxu0 %v5093
    %5425 = vmatpush.msra.mxu0 %v5085
    %5426 = vmatpush.msra.mxu0 %v5077
    %5427 = vmatpush.msra.mxu0 %v5069
    %5428 = vmatpush.msra.mxu0 %v5061
    %5429 = vmatpush.msra.mxu0 %v5053
    %5430 = vmatpush.msra.mxu0 %v5045
    %5431 = vmatpush.msra.mxu0 %v5037
    %5432 = vmatpush.msra.mxu0 %v5029
    %5433 = vmatpush.msra.mxu0 %v5021
    %5434 = vmatpush.msra.mxu0 %v5013
    %5435 = vmatpush.msra.mxu0 %v5005
    %5436 = vmatpush.msra.mxu0 %v4997
    %5437 = vmatpush.msra.mxu0 %v4989
    %5438 = vmatpush.msra.mxu0 %v4981
    %5439 = vmatpush.msra.mxu0 %v4973
    %5440 = vmatmul.f32.gmra.mxu0 %v4950
    %v5441 = vpop.f32.mrf.mxu0
    %v5442 = vadd.f32 0.0, %v5441
    %5443 = vdwg.mxu0
    %5444 = vmatpush.msra.mxu0 %v5221
    %5445 = vmatpush.msra.mxu0 %v5213
    %5446 = vmatpush.msra.mxu0 %v5205
    %5447 = vmatpush.msra.mxu0 %v5197
    %5448 = vmatpush.msra.mxu0 %v5189
    %5449 = vmatpush.msra.mxu0 %v5181
    %5450 = vmatpush.msra.mxu0 %v5173
    %5451 = vmatpush.msra.mxu0 %v5165
    %5452 = vmatpush.msra.mxu0 %v5157
    %5453 = vmatpush.msra.mxu0 %v5149
    %5454 = vmatpush.msra.mxu0 %v5141
    %5455 = vmatpush.msra.mxu0 %v5133
    %5456 = vmatpush.msra.mxu0 %v5125
    %5457 = vmatpush.msra.mxu0 %v5117
    %5458 = vmatpush.msra.mxu0 %v5109
    %5459 = vmatpush.msra.mxu0 %v5101
    %5460 = vmatmul.f32.gmra.mxu0 %v4951
    %v5461 = vpop.f32.mrf.mxu0
    %v5462 = vadd.f32 %v5442, %v5461
    %5463 = vdwg.mxu0
    %5464 = vmatpush.msra.mxu0 %v5094
    %5465 = vmatpush.msra.mxu0 %v5086
    %5466 = vmatpush.msra.mxu0 %v5078
    %5467 = vmatpush.msra.mxu0 %v5070
    %5468 = vmatpush.msra.mxu0 %v5062
    %5469 = vmatpush.msra.mxu0 %v5054
    %5470 = vmatpush.msra.mxu0 %v5046
    %5471 = vmatpush.msra.mxu0 %v5038
    %5472 = vmatpush.msra.mxu0 %v5030
    %5473 = vmatpush.msra.mxu0 %v5022
    %5474 = vmatpush.msra.mxu0 %v5014
    %5475 = vmatpush.msra.mxu0 %v5006
    %5476 = vmatpush.msra.mxu0 %v4998
    %5477 = vmatpush.msra.mxu0 %v4990
    %5478 = vmatpush.msra.mxu0 %v4982
    %5479 = vmatpush.msra.mxu0 %v4974
    %5480 = vmatmul.f32.gmra.mxu0 %v4950
    %v5481 = vpop.f32.mrf.mxu0
    %v5482 = vadd.f32 0.0, %v5481
    %5483 = vdwg.mxu0
    %5484 = vmatpush.msra.mxu0 %v5222
    %5485 = vmatpush.msra.mxu0 %v5214
    %5486 = vmatpush.msra.mxu0 %v5206
    %5487 = vmatpush.msra.mxu0 %v5198
    %5488 = vmatpush.msra.mxu0 %v5190
    %5489 = vmatpush.msra.mxu0 %v5182
    %5490 = vmatpush.msra.mxu0 %v5174
    %5491 = vmatpush.msra.mxu0 %v5166
    %5492 = vmatpush.msra.mxu0 %v5158
    %5493 = vmatpush.msra.mxu0 %v5150
    %5494 = vmatpush.msra.mxu0 %v5142
    %5495 = vmatpush.msra.mxu0 %v5134
    %5496 = vmatpush.msra.mxu0 %v5126
    %5497 = vmatpush.msra.mxu0 %v5118
    %5498 = vmatpush.msra.mxu0 %v5110
    %5499 = vmatpush.msra.mxu0 %v5102
    %5500 = vmatmul.f32.gmra.mxu0 %v4951
    %v5501 = vpop.f32.mrf.mxu0
    %v5502 = vadd.f32 %v5482, %v5501
    %5503 = vdwg.mxu0
    %5504 = vmatpush.msra.mxu0 %v5095
    %5505 = vmatpush.msra.mxu0 %v5087
    %5506 = vmatpush.msra.mxu0 %v5079
    %5507 = vmatpush.msra.mxu0 %v5071
    %5508 = vmatpush.msra.mxu0 %v5063
    %5509 = vmatpush.msra.mxu0 %v5055
    %5510 = vmatpush.msra.mxu0 %v5047
    %5511 = vmatpush.msra.mxu0 %v5039
    %5512 = vmatpush.msra.mxu0 %v5031
    %5513 = vmatpush.msra.mxu0 %v5023
    %5514 = vmatpush.msra.mxu0 %v5015
    %5515 = vmatpush.msra.mxu0 %v5007
    %5516 = vmatpush.msra.mxu0 %v4999
    %5517 = vmatpush.msra.mxu0 %v4991
    %5518 = vmatpush.msra.mxu0 %v4983
    %5519 = vmatpush.msra.mxu0 %v4975
    %5520 = vmatmul.f32.gmra.mxu0 %v4950
    %v5521 = vpop.f32.mrf.mxu0
    %v5522 = vadd.f32 0.0, %v5521
    %5523 = vdwg.mxu0
    %5524 = vmatpush.msra.mxu0 %v5223
    %5525 = vmatpush.msra.mxu0 %v5215
    %5526 = vmatpush.msra.mxu0 %v5207
    %5527 = vmatpush.msra.mxu0 %v5199
    %5528 = vmatpush.msra.mxu0 %v5191
    %5529 = vmatpush.msra.mxu0 %v5183
    %5530 = vmatpush.msra.mxu0 %v5175
    %5531 = vmatpush.msra.mxu0 %v5167
    %5532 = vmatpush.msra.mxu0 %v5159
    %5533 = vmatpush.msra.mxu0 %v5151
    %5534 = vmatpush.msra.mxu0 %v5143
    %5535 = vmatpush.msra.mxu0 %v5135
    %5536 = vmatpush.msra.mxu0 %v5127
    %5537 = vmatpush.msra.mxu0 %v5119
    %5538 = vmatpush.msra.mxu0 %v5111
    %5539 = vmatpush.msra.mxu0 %v5103
    %5540 = vmatmul.f32.gmra.mxu0 %v4951
    %v5541 = vpop.f32.mrf.mxu0
    %v5542 = vadd.f32 %v5522, %v5541
    %5543 = vdwg.mxu0
    %v5544 = vadd.f32 %v4960, %v5262
    %v5545 = vadd.f32 %v4961, %v5302
    %v5546 = vadd.f32 %v4962, %v5342
    %v5547 = vadd.f32 %v4963, %v5382
    %v5548 = vadd.f32 %v4964, %v5422
    %v5549 = vadd.f32 %v4965, %v5462
    %v5550 = vadd.f32 %v4966, %v5502
    %v5551 = vadd.f32 %v4967, %v5542
    %v5552 = vxor.u32 %v5544, 2147483648
    %v5553 = vxor.u32 %v5545, 2147483648
    %v5554 = vxor.u32 %v5546, 2147483648
    %v5555 = vxor.u32 %v5547, 2147483648
    %v5556 = vxor.u32 %v5550, 2147483648
    %v5557 = vxor.u32 %v5551, 2147483648
    %v5558 = vmul.f32 %v5552, 1.442695
    %v5559 = vpow.pop %v5558
    %v5560 = vmul.f32 %v5553, 1.442695
    %v5561 = vpow.pop %v5560
    %v5562 = vmul.f32 %v5554, 1.442695
    %v5563 = vpow.pop %v5562
    %v5564 = vmul.f32 %v5555, 1.442695
    %v5565 = vpow.pop %v5564
    %v5566 = vmul.f32 %v5556, 1.442695
    %v5567 = vpow.pop %v5566
    %v5568 = vmul.f32 %v5557, 1.442695
    %v5569 = vpow.pop %v5568
    %v5570 = vadd.f32 %v5559, 1.0
    %v5571 = vadd.f32 %v5561, 1.0
    %v5572 = vadd.f32 %v5563, 1.0
    %v5573 = vadd.f32 %v5565, 1.0
    %v5574 = vadd.f32 %v5567, 1.0
    %v5575 = vadd.f32 %v5569, 1.0
    %v5576 = vrcp.pop %v5570
    %v5577 = vmul.f32 %v5570, %v5576
    %v5578 = vsub.f32 1.0, %v5577
    %v5579 = vmul.f32 %v5576, %v5578
    %v5580 = vadd.f32 %v5576, %v5579
    %vm5581 = vweird.f32 %v5570
    %vm5582 = vweird.f32 %v5576
    %vm5583 = vmor %vm5581, %vm5582
    %v5584 = vsel %vm5583, %v5576, %v5580
    %v5585 = vand.u32 2147483647, %v5570
    %vm5586 = vcmp.eq.f32.partialorder %v5585, 8.507059e+37
    %v5587 = vand.u32 %v5570, 2147483648
    %v5588 = vor.u32 1.1754944e-38, %v5587
    %v5589 = vsel %vm5586, %v5588, %v5584
    %v5590 = vmul.f32 1.0, %v5589
    %v5591 = vrcp.pop %v5571
    %v5592 = vmul.f32 %v5571, %v5591
    %v5593 = vsub.f32 1.0, %v5592
    %v5594 = vmul.f32 %v5591, %v5593
    %v5595 = vadd.f32 %v5591, %v5594
    %vm5596 = vweird.f32 %v5571
    %vm5597 = vweird.f32 %v5591
    %vm5598 = vmor %vm5596, %vm5597
    %v5599 = vsel %vm5598, %v5591, %v5595
    %v5600 = vand.u32 2147483647, %v5571
    %vm5601 = vcmp.eq.f32.partialorder %v5600, 8.507059e+37
    %v5602 = vand.u32 %v5571, 2147483648
    %v5603 = vor.u32 1.1754944e-38, %v5602
    %v5604 = vsel %vm5601, %v5603, %v5599
    %v5605 = vmul.f32 1.0, %v5604
    %v5606 = vrcp.pop %v5572
    %v5607 = vmul.f32 %v5572, %v5606
    %v5608 = vsub.f32 1.0, %v5607
    %v5609 = vmul.f32 %v5606, %v5608
    %v5610 = vadd.f32 %v5606, %v5609
    %vm5611 = vweird.f32 %v5572
    %vm5612 = vweird.f32 %v5606
    %vm5613 = vmor %vm5611, %vm5612
    %v5614 = vsel %vm5613, %v5606, %v5610
    %v5615 = vand.u32 2147483647, %v5572
    %vm5616 = vcmp.eq.f32.partialorder %v5615, 8.507059e+37
    %v5617 = vand.u32 %v5572, 2147483648
    %v5618 = vor.u32 1.1754944e-38, %v5617
    %v5619 = vsel %vm5616, %v5618, %v5614
    %v5620 = vmul.f32 1.0, %v5619
    %v5621 = vrcp.pop %v5573
    %v5622 = vmul.f32 %v5573, %v5621
    %v5623 = vsub.f32 1.0, %v5622
    %v5624 = vmul.f32 %v5621, %v5623
    %v5625 = vadd.f32 %v5621, %v5624
    %vm5626 = vweird.f32 %v5573
    %vm5627 = vweird.f32 %v5621
    %vm5628 = vmor %vm5626, %vm5627
    %v5629 = vsel %vm5628, %v5621, %v5625
    %v5630 = vand.u32 2147483647, %v5573
    %vm5631 = vcmp.eq.f32.partialorder %v5630, 8.507059e+37
    %v5632 = vand.u32 %v5573, 2147483648
    %v5633 = vor.u32 1.1754944e-38, %v5632
    %v5634 = vsel %vm5631, %v5633, %v5629
    %v5635 = vmul.f32 1.0, %v5634
    %v5636 = vrcp.pop %v5574
    %v5637 = vmul.f32 %v5574, %v5636
    %v5638 = vsub.f32 1.0, %v5637
    %v5639 = vmul.f32 %v5636, %v5638
    %v5640 = vadd.f32 %v5636, %v5639
    %vm5641 = vweird.f32 %v5574
    %vm5642 = vweird.f32 %v5636
    %vm5643 = vmor %vm5641, %vm5642
    %v5644 = vsel %vm5643, %v5636, %v5640
    %v5645 = vand.u32 2147483647, %v5574
    %vm5646 = vcmp.eq.f32.partialorder %v5645, 8.507059e+37
    %v5647 = vand.u32 %v5574, 2147483648
    %v5648 = vor.u32 1.1754944e-38, %v5647
    %v5649 = vsel %vm5646, %v5648, %v5644
    %v5650 = vmul.f32 1.0, %v5649
    %v5651 = vrcp.pop %v5575
    %v5652 = vmul.f32 %v5575, %v5651
    %v5653 = vsub.f32 1.0, %v5652
    %v5654 = vmul.f32 %v5651, %v5653
    %v5655 = vadd.f32 %v5651, %v5654
    %vm5656 = vweird.f32 %v5575
    %vm5657 = vweird.f32 %v5651
    %vm5658 = vmor %vm5656, %vm5657
    %v5659 = vsel %vm5658, %v5651, %v5655
    %v5660 = vand.u32 2147483647, %v5575
    %vm5661 = vcmp.eq.f32.partialorder %v5660, 8.507059e+37
    %v5662 = vand.u32 %v5575, 2147483648
    %v5663 = vor.u32 1.1754944e-38, %v5662
    %v5664 = vsel %vm5661, %v5663, %v5659
    %v5665 = vmul.f32 1.0, %v5664
    %v5666 = vtanh.pop %v5548
    %v5667 = vtanh.pop %v5549
    %v5668 = vmul.f32 %v5620, %v4946
    %v5669 = vmul.f32 %v5635, %v4947
    %v5670 = vmul.f32 %v5590, %v5666
    %v5671 = vmul.f32 %v5605, %v5667
    %v5672 = vadd.f32 %v5668, %v5670
    %v5673 = vadd.f32 %v5669, %v5671
    %v5674 = vtanh.pop %v5672
    %v5675 = vtanh.pop %v5673
    %v5676 = vmul.f32 %v5650, %v5674
    %v5677 = vmul.f32 %v5665, %v5675
    %s5678 = smul.u32 6, 2
    %s5679 = smul.addr %s5678, 8
    %s5680 = scalar_lea.vmem [#allocation3], %s5679
    %5681 = vst [vmem:[%s5680] sm:$0xff] %v5676
    %5682 = vst [vmem:[%s5680 + $0x8] sm:$0xff] %v5677
    %s5683 = smul.u32 7, 8
    %s5684 = smul.addr %s5683, 8
    %s5685 = scalar_lea.vmem [#allocation2], %s5684
    %v5686 = vld [vmem:[%s5685] sm:$0xff]
    %v5687 = vld [vmem:[%s5685 + $0x8] sm:$0xff]
    %v5688 = vld [vmem:[%s5685 + $0x10] sm:$0xff]
    %v5689 = vld [vmem:[%s5685 + $0x18] sm:$0xff]
    %v5690 = vld [vmem:[%s5685 + $0x20] sm:$0xff]
    %v5691 = vld [vmem:[%s5685 + $0x28] sm:$0xff]
    %v5692 = vld [vmem:[%s5685 + $0x30] sm:$0xff]
    %v5693 = vld [vmem:[%s5685 + $0x38] sm:$0xff]
    %v5694 = vld [vmem:[#allocation6] sm:$0xff]
    %v5695 = vld [vmem:[#allocation6 + $0x8] sm:$0xff]
    %v5696 = vld [vmem:[#allocation6 + $0x10] sm:$0xff]
    %v5697 = vld [vmem:[#allocation6 + $0x18] sm:$0xff]
    %v5698 = vld [vmem:[#allocation6 + $0x20] sm:$0xff]
    %v5699 = vld [vmem:[#allocation6 + $0x28] sm:$0xff]
    %v5700 = vld [vmem:[#allocation6 + $0x30] sm:$0xff]
    %v5701 = vld [vmem:[#allocation6 + $0x38] sm:$0xff]
    %v5702 = vld [vmem:[#allocation6 + $0x40] sm:$0xff]
    %v5703 = vld [vmem:[#allocation6 + $0x48] sm:$0xff]
    %v5704 = vld [vmem:[#allocation6 + $0x50] sm:$0xff]
    %v5705 = vld [vmem:[#allocation6 + $0x58] sm:$0xff]
    %v5706 = vld [vmem:[#allocation6 + $0x60] sm:$0xff]
    %v5707 = vld [vmem:[#allocation6 + $0x68] sm:$0xff]
    %v5708 = vld [vmem:[#allocation6 + $0x70] sm:$0xff]
    %v5709 = vld [vmem:[#allocation6 + $0x78] sm:$0xff]
    %v5710 = vld [vmem:[#allocation6 + $0x80] sm:$0xff]
    %v5711 = vld [vmem:[#allocation6 + $0x88] sm:$0xff]
    %v5712 = vld [vmem:[#allocation6 + $0x90] sm:$0xff]
    %v5713 = vld [vmem:[#allocation6 + $0x98] sm:$0xff]
    %v5714 = vld [vmem:[#allocation6 + $0xa0] sm:$0xff]
    %v5715 = vld [vmem:[#allocation6 + $0xa8] sm:$0xff]
    %v5716 = vld [vmem:[#allocation6 + $0xb0] sm:$0xff]
    %v5717 = vld [vmem:[#allocation6 + $0xb8] sm:$0xff]
    %v5718 = vld [vmem:[#allocation6 + $0xc0] sm:$0xff]
    %v5719 = vld [vmem:[#allocation6 + $0xc8] sm:$0xff]
    %v5720 = vld [vmem:[#allocation6 + $0xd0] sm:$0xff]
    %v5721 = vld [vmem:[#allocation6 + $0xd8] sm:$0xff]
    %v5722 = vld [vmem:[#allocation6 + $0xe0] sm:$0xff]
    %v5723 = vld [vmem:[#allocation6 + $0xe8] sm:$0xff]
    %v5724 = vld [vmem:[#allocation6 + $0xf0] sm:$0xff]
    %v5725 = vld [vmem:[#allocation6 + $0xf8] sm:$0xff]
    %v5726 = vld [vmem:[#allocation6 + $0x100] sm:$0xff]
    %v5727 = vld [vmem:[#allocation6 + $0x108] sm:$0xff]
    %v5728 = vld [vmem:[#allocation6 + $0x110] sm:$0xff]
    %v5729 = vld [vmem:[#allocation6 + $0x118] sm:$0xff]
    %v5730 = vld [vmem:[#allocation6 + $0x120] sm:$0xff]
    %v5731 = vld [vmem:[#allocation6 + $0x128] sm:$0xff]
    %v5732 = vld [vmem:[#allocation6 + $0x130] sm:$0xff]
    %v5733 = vld [vmem:[#allocation6 + $0x138] sm:$0xff]
    %v5734 = vld [vmem:[#allocation6 + $0x140] sm:$0xff]
    %v5735 = vld [vmem:[#allocation6 + $0x148] sm:$0xff]
    %v5736 = vld [vmem:[#allocation6 + $0x150] sm:$0xff]
    %v5737 = vld [vmem:[#allocation6 + $0x158] sm:$0xff]
    %v5738 = vld [vmem:[#allocation6 + $0x160] sm:$0xff]
    %v5739 = vld [vmem:[#allocation6 + $0x168] sm:$0xff]
    %v5740 = vld [vmem:[#allocation6 + $0x170] sm:$0xff]
    %v5741 = vld [vmem:[#allocation6 + $0x178] sm:$0xff]
    %v5742 = vld [vmem:[#allocation6 + $0x180] sm:$0xff]
    %v5743 = vld [vmem:[#allocation6 + $0x188] sm:$0xff]
    %v5744 = vld [vmem:[#allocation6 + $0x190] sm:$0xff]
    %v5745 = vld [vmem:[#allocation6 + $0x198] sm:$0xff]
    %v5746 = vld [vmem:[#allocation6 + $0x1a0] sm:$0xff]
    %v5747 = vld [vmem:[#allocation6 + $0x1a8] sm:$0xff]
    %v5748 = vld [vmem:[#allocation6 + $0x1b0] sm:$0xff]
    %v5749 = vld [vmem:[#allocation6 + $0x1b8] sm:$0xff]
    %v5750 = vld [vmem:[#allocation6 + $0x1c0] sm:$0xff]
    %v5751 = vld [vmem:[#allocation6 + $0x1c8] sm:$0xff]
    %v5752 = vld [vmem:[#allocation6 + $0x1d0] sm:$0xff]
    %v5753 = vld [vmem:[#allocation6 + $0x1d8] sm:$0xff]
    %v5754 = vld [vmem:[#allocation6 + $0x1e0] sm:$0xff]
    %v5755 = vld [vmem:[#allocation6 + $0x1e8] sm:$0xff]
    %v5756 = vld [vmem:[#allocation6 + $0x1f0] sm:$0xff]
    %v5757 = vld [vmem:[#allocation6 + $0x1f8] sm:$0xff]
    %v5758 = vld [vmem:[#allocation6 + $0x200] sm:$0xff]
    %v5759 = vld [vmem:[#allocation6 + $0x208] sm:$0xff]
    %v5760 = vld [vmem:[#allocation6 + $0x210] sm:$0xff]
    %v5761 = vld [vmem:[#allocation6 + $0x218] sm:$0xff]
    %v5762 = vld [vmem:[#allocation6 + $0x220] sm:$0xff]
    %v5763 = vld [vmem:[#allocation6 + $0x228] sm:$0xff]
    %v5764 = vld [vmem:[#allocation6 + $0x230] sm:$0xff]
    %v5765 = vld [vmem:[#allocation6 + $0x238] sm:$0xff]
    %v5766 = vld [vmem:[#allocation6 + $0x240] sm:$0xff]
    %v5767 = vld [vmem:[#allocation6 + $0x248] sm:$0xff]
    %v5768 = vld [vmem:[#allocation6 + $0x250] sm:$0xff]
    %v5769 = vld [vmem:[#allocation6 + $0x258] sm:$0xff]
    %v5770 = vld [vmem:[#allocation6 + $0x260] sm:$0xff]
    %v5771 = vld [vmem:[#allocation6 + $0x268] sm:$0xff]
    %v5772 = vld [vmem:[#allocation6 + $0x270] sm:$0xff]
    %v5773 = vld [vmem:[#allocation6 + $0x278] sm:$0xff]
    %v5774 = vld [vmem:[#allocation6 + $0x280] sm:$0xff]
    %v5775 = vld [vmem:[#allocation6 + $0x288] sm:$0xff]
    %v5776 = vld [vmem:[#allocation6 + $0x290] sm:$0xff]
    %v5777 = vld [vmem:[#allocation6 + $0x298] sm:$0xff]
    %v5778 = vld [vmem:[#allocation6 + $0x2a0] sm:$0xff]
    %v5779 = vld [vmem:[#allocation6 + $0x2a8] sm:$0xff]
    %v5780 = vld [vmem:[#allocation6 + $0x2b0] sm:$0xff]
    %v5781 = vld [vmem:[#allocation6 + $0x2b8] sm:$0xff]
    %v5782 = vld [vmem:[#allocation6 + $0x2c0] sm:$0xff]
    %v5783 = vld [vmem:[#allocation6 + $0x2c8] sm:$0xff]
    %v5784 = vld [vmem:[#allocation6 + $0x2d0] sm:$0xff]
    %v5785 = vld [vmem:[#allocation6 + $0x2d8] sm:$0xff]
    %v5786 = vld [vmem:[#allocation6 + $0x2e0] sm:$0xff]
    %v5787 = vld [vmem:[#allocation6 + $0x2e8] sm:$0xff]
    %v5788 = vld [vmem:[#allocation6 + $0x2f0] sm:$0xff]
    %v5789 = vld [vmem:[#allocation6 + $0x2f8] sm:$0xff]
    %v5790 = vld [vmem:[#allocation6 + $0x300] sm:$0xff]
    %v5791 = vld [vmem:[#allocation6 + $0x308] sm:$0xff]
    %v5792 = vld [vmem:[#allocation6 + $0x310] sm:$0xff]
    %v5793 = vld [vmem:[#allocation6 + $0x318] sm:$0xff]
    %v5794 = vld [vmem:[#allocation6 + $0x320] sm:$0xff]
    %v5795 = vld [vmem:[#allocation6 + $0x328] sm:$0xff]
    %v5796 = vld [vmem:[#allocation6 + $0x330] sm:$0xff]
    %v5797 = vld [vmem:[#allocation6 + $0x338] sm:$0xff]
    %v5798 = vld [vmem:[#allocation6 + $0x340] sm:$0xff]
    %v5799 = vld [vmem:[#allocation6 + $0x348] sm:$0xff]
    %v5800 = vld [vmem:[#allocation6 + $0x350] sm:$0xff]
    %v5801 = vld [vmem:[#allocation6 + $0x358] sm:$0xff]
    %v5802 = vld [vmem:[#allocation6 + $0x360] sm:$0xff]
    %v5803 = vld [vmem:[#allocation6 + $0x368] sm:$0xff]
    %v5804 = vld [vmem:[#allocation6 + $0x370] sm:$0xff]
    %v5805 = vld [vmem:[#allocation6 + $0x378] sm:$0xff]
    %v5806 = vld [vmem:[#allocation6 + $0x380] sm:$0xff]
    %v5807 = vld [vmem:[#allocation6 + $0x388] sm:$0xff]
    %v5808 = vld [vmem:[#allocation6 + $0x390] sm:$0xff]
    %v5809 = vld [vmem:[#allocation6 + $0x398] sm:$0xff]
    %v5810 = vld [vmem:[#allocation6 + $0x3a0] sm:$0xff]
    %v5811 = vld [vmem:[#allocation6 + $0x3a8] sm:$0xff]
    %v5812 = vld [vmem:[#allocation6 + $0x3b0] sm:$0xff]
    %v5813 = vld [vmem:[#allocation6 + $0x3b8] sm:$0xff]
    %v5814 = vld [vmem:[#allocation6 + $0x3c0] sm:$0xff]
    %v5815 = vld [vmem:[#allocation6 + $0x3c8] sm:$0xff]
    %v5816 = vld [vmem:[#allocation6 + $0x3d0] sm:$0xff]
    %v5817 = vld [vmem:[#allocation6 + $0x3d8] sm:$0xff]
    %v5818 = vld [vmem:[#allocation6 + $0x3e0] sm:$0xff]
    %v5819 = vld [vmem:[#allocation6 + $0x3e8] sm:$0xff]
    %v5820 = vld [vmem:[#allocation6 + $0x3f0] sm:$0xff]
    %v5821 = vld [vmem:[#allocation6 + $0x3f8] sm:$0xff]
    %v5822 = vld [vmem:[#allocation6 + $0x400] sm:$0xff]
    %v5823 = vld [vmem:[#allocation6 + $0x408] sm:$0xff]
    %v5824 = vld [vmem:[#allocation6 + $0x410] sm:$0xff]
    %v5825 = vld [vmem:[#allocation6 + $0x418] sm:$0xff]
    %v5826 = vld [vmem:[#allocation6 + $0x420] sm:$0xff]
    %v5827 = vld [vmem:[#allocation6 + $0x428] sm:$0xff]
    %v5828 = vld [vmem:[#allocation6 + $0x430] sm:$0xff]
    %v5829 = vld [vmem:[#allocation6 + $0x438] sm:$0xff]
    %v5830 = vld [vmem:[#allocation6 + $0x440] sm:$0xff]
    %v5831 = vld [vmem:[#allocation6 + $0x448] sm:$0xff]
    %v5832 = vld [vmem:[#allocation6 + $0x450] sm:$0xff]
    %v5833 = vld [vmem:[#allocation6 + $0x458] sm:$0xff]
    %v5834 = vld [vmem:[#allocation6 + $0x460] sm:$0xff]
    %v5835 = vld [vmem:[#allocation6 + $0x468] sm:$0xff]
    %v5836 = vld [vmem:[#allocation6 + $0x470] sm:$0xff]
    %v5837 = vld [vmem:[#allocation6 + $0x478] sm:$0xff]
    %v5838 = vld [vmem:[#allocation6 + $0x480] sm:$0xff]
    %v5839 = vld [vmem:[#allocation6 + $0x488] sm:$0xff]
    %v5840 = vld [vmem:[#allocation6 + $0x490] sm:$0xff]
    %v5841 = vld [vmem:[#allocation6 + $0x498] sm:$0xff]
    %v5842 = vld [vmem:[#allocation6 + $0x4a0] sm:$0xff]
    %v5843 = vld [vmem:[#allocation6 + $0x4a8] sm:$0xff]
    %v5844 = vld [vmem:[#allocation6 + $0x4b0] sm:$0xff]
    %v5845 = vld [vmem:[#allocation6 + $0x4b8] sm:$0xff]
    %v5846 = vld [vmem:[#allocation6 + $0x4c0] sm:$0xff]
    %v5847 = vld [vmem:[#allocation6 + $0x4c8] sm:$0xff]
    %v5848 = vld [vmem:[#allocation6 + $0x4d0] sm:$0xff]
    %v5849 = vld [vmem:[#allocation6 + $0x4d8] sm:$0xff]
    %v5850 = vld [vmem:[#allocation6 + $0x4e0] sm:$0xff]
    %v5851 = vld [vmem:[#allocation6 + $0x4e8] sm:$0xff]
    %v5852 = vld [vmem:[#allocation6 + $0x4f0] sm:$0xff]
    %v5853 = vld [vmem:[#allocation6 + $0x4f8] sm:$0xff]
    %v5854 = vld [vmem:[#allocation6 + $0x500] sm:$0xff]
    %v5855 = vld [vmem:[#allocation6 + $0x508] sm:$0xff]
    %v5856 = vld [vmem:[#allocation6 + $0x510] sm:$0xff]
    %v5857 = vld [vmem:[#allocation6 + $0x518] sm:$0xff]
    %v5858 = vld [vmem:[#allocation6 + $0x520] sm:$0xff]
    %v5859 = vld [vmem:[#allocation6 + $0x528] sm:$0xff]
    %v5860 = vld [vmem:[#allocation6 + $0x530] sm:$0xff]
    %v5861 = vld [vmem:[#allocation6 + $0x538] sm:$0xff]
    %v5862 = vld [vmem:[#allocation6 + $0x540] sm:$0xff]
    %v5863 = vld [vmem:[#allocation6 + $0x548] sm:$0xff]
    %v5864 = vld [vmem:[#allocation6 + $0x550] sm:$0xff]
    %v5865 = vld [vmem:[#allocation6 + $0x558] sm:$0xff]
    %v5866 = vld [vmem:[#allocation6 + $0x560] sm:$0xff]
    %v5867 = vld [vmem:[#allocation6 + $0x568] sm:$0xff]
    %v5868 = vld [vmem:[#allocation6 + $0x570] sm:$0xff]
    %v5869 = vld [vmem:[#allocation6 + $0x578] sm:$0xff]
    %v5870 = vld [vmem:[#allocation6 + $0x580] sm:$0xff]
    %v5871 = vld [vmem:[#allocation6 + $0x588] sm:$0xff]
    %v5872 = vld [vmem:[#allocation6 + $0x590] sm:$0xff]
    %v5873 = vld [vmem:[#allocation6 + $0x598] sm:$0xff]
    %v5874 = vld [vmem:[#allocation6 + $0x5a0] sm:$0xff]
    %v5875 = vld [vmem:[#allocation6 + $0x5a8] sm:$0xff]
    %v5876 = vld [vmem:[#allocation6 + $0x5b0] sm:$0xff]
    %v5877 = vld [vmem:[#allocation6 + $0x5b8] sm:$0xff]
    %v5878 = vld [vmem:[#allocation6 + $0x5c0] sm:$0xff]
    %v5879 = vld [vmem:[#allocation6 + $0x5c8] sm:$0xff]
    %v5880 = vld [vmem:[#allocation6 + $0x5d0] sm:$0xff]
    %v5881 = vld [vmem:[#allocation6 + $0x5d8] sm:$0xff]
    %v5882 = vld [vmem:[#allocation6 + $0x5e0] sm:$0xff]
    %v5883 = vld [vmem:[#allocation6 + $0x5e8] sm:$0xff]
    %v5884 = vld [vmem:[#allocation6 + $0x5f0] sm:$0xff]
    %v5885 = vld [vmem:[#allocation6 + $0x5f8] sm:$0xff]
    %v5886 = vld [vmem:[#allocation6 + $0x600] sm:$0xff]
    %v5887 = vld [vmem:[#allocation6 + $0x608] sm:$0xff]
    %v5888 = vld [vmem:[#allocation6 + $0x610] sm:$0xff]
    %v5889 = vld [vmem:[#allocation6 + $0x618] sm:$0xff]
    %v5890 = vld [vmem:[#allocation6 + $0x620] sm:$0xff]
    %v5891 = vld [vmem:[#allocation6 + $0x628] sm:$0xff]
    %v5892 = vld [vmem:[#allocation6 + $0x630] sm:$0xff]
    %v5893 = vld [vmem:[#allocation6 + $0x638] sm:$0xff]
    %v5894 = vld [vmem:[#allocation6 + $0x640] sm:$0xff]
    %v5895 = vld [vmem:[#allocation6 + $0x648] sm:$0xff]
    %v5896 = vld [vmem:[#allocation6 + $0x650] sm:$0xff]
    %v5897 = vld [vmem:[#allocation6 + $0x658] sm:$0xff]
    %v5898 = vld [vmem:[#allocation6 + $0x660] sm:$0xff]
    %v5899 = vld [vmem:[#allocation6 + $0x668] sm:$0xff]
    %v5900 = vld [vmem:[#allocation6 + $0x670] sm:$0xff]
    %v5901 = vld [vmem:[#allocation6 + $0x678] sm:$0xff]
    %v5902 = vld [vmem:[#allocation6 + $0x680] sm:$0xff]
    %v5903 = vld [vmem:[#allocation6 + $0x688] sm:$0xff]
    %v5904 = vld [vmem:[#allocation6 + $0x690] sm:$0xff]
    %v5905 = vld [vmem:[#allocation6 + $0x698] sm:$0xff]
    %v5906 = vld [vmem:[#allocation6 + $0x6a0] sm:$0xff]
    %v5907 = vld [vmem:[#allocation6 + $0x6a8] sm:$0xff]
    %v5908 = vld [vmem:[#allocation6 + $0x6b0] sm:$0xff]
    %v5909 = vld [vmem:[#allocation6 + $0x6b8] sm:$0xff]
    %v5910 = vld [vmem:[#allocation6 + $0x6c0] sm:$0xff]
    %v5911 = vld [vmem:[#allocation6 + $0x6c8] sm:$0xff]
    %v5912 = vld [vmem:[#allocation6 + $0x6d0] sm:$0xff]
    %v5913 = vld [vmem:[#allocation6 + $0x6d8] sm:$0xff]
    %v5914 = vld [vmem:[#allocation6 + $0x6e0] sm:$0xff]
    %v5915 = vld [vmem:[#allocation6 + $0x6e8] sm:$0xff]
    %v5916 = vld [vmem:[#allocation6 + $0x6f0] sm:$0xff]
    %v5917 = vld [vmem:[#allocation6 + $0x6f8] sm:$0xff]
    %v5918 = vld [vmem:[#allocation6 + $0x700] sm:$0xff]
    %v5919 = vld [vmem:[#allocation6 + $0x708] sm:$0xff]
    %v5920 = vld [vmem:[#allocation6 + $0x710] sm:$0xff]
    %v5921 = vld [vmem:[#allocation6 + $0x718] sm:$0xff]
    %v5922 = vld [vmem:[#allocation6 + $0x720] sm:$0xff]
    %v5923 = vld [vmem:[#allocation6 + $0x728] sm:$0xff]
    %v5924 = vld [vmem:[#allocation6 + $0x730] sm:$0xff]
    %v5925 = vld [vmem:[#allocation6 + $0x738] sm:$0xff]
    %v5926 = vld [vmem:[#allocation6 + $0x740] sm:$0xff]
    %v5927 = vld [vmem:[#allocation6 + $0x748] sm:$0xff]
    %v5928 = vld [vmem:[#allocation6 + $0x750] sm:$0xff]
    %v5929 = vld [vmem:[#allocation6 + $0x758] sm:$0xff]
    %v5930 = vld [vmem:[#allocation6 + $0x760] sm:$0xff]
    %v5931 = vld [vmem:[#allocation6 + $0x768] sm:$0xff]
    %v5932 = vld [vmem:[#allocation6 + $0x770] sm:$0xff]
    %v5933 = vld [vmem:[#allocation6 + $0x778] sm:$0xff]
    %v5934 = vld [vmem:[#allocation6 + $0x780] sm:$0xff]
    %v5935 = vld [vmem:[#allocation6 + $0x788] sm:$0xff]
    %v5936 = vld [vmem:[#allocation6 + $0x790] sm:$0xff]
    %v5937 = vld [vmem:[#allocation6 + $0x798] sm:$0xff]
    %v5938 = vld [vmem:[#allocation6 + $0x7a0] sm:$0xff]
    %v5939 = vld [vmem:[#allocation6 + $0x7a8] sm:$0xff]
    %v5940 = vld [vmem:[#allocation6 + $0x7b0] sm:$0xff]
    %v5941 = vld [vmem:[#allocation6 + $0x7b8] sm:$0xff]
    %v5942 = vld [vmem:[#allocation6 + $0x7c0] sm:$0xff]
    %v5943 = vld [vmem:[#allocation6 + $0x7c8] sm:$0xff]
    %v5944 = vld [vmem:[#allocation6 + $0x7d0] sm:$0xff]
    %v5945 = vld [vmem:[#allocation6 + $0x7d8] sm:$0xff]
    %v5946 = vld [vmem:[#allocation6 + $0x7e0] sm:$0xff]
    %v5947 = vld [vmem:[#allocation6 + $0x7e8] sm:$0xff]
    %v5948 = vld [vmem:[#allocation6 + $0x7f0] sm:$0xff]
    %v5949 = vld [vmem:[#allocation6 + $0x7f8] sm:$0xff]
    %5950 = vmatpush.msra.mxu0 %v5814
    %5951 = vmatpush.msra.mxu0 %v5806
    %5952 = vmatpush.msra.mxu0 %v5798
    %5953 = vmatpush.msra.mxu0 %v5790
    %5954 = vmatpush.msra.mxu0 %v5782
    %5955 = vmatpush.msra.mxu0 %v5774
    %5956 = vmatpush.msra.mxu0 %v5766
    %5957 = vmatpush.msra.mxu0 %v5758
    %5958 = vmatpush.msra.mxu0 %v5750
    %5959 = vmatpush.msra.mxu0 %v5742
    %5960 = vmatpush.msra.mxu0 %v5734
    %5961 = vmatpush.msra.mxu0 %v5726
    %5962 = vmatpush.msra.mxu0 %v5718
    %5963 = vmatpush.msra.mxu0 %v5710
    %5964 = vmatpush.msra.mxu0 %v5702
    %5965 = vmatpush.msra.mxu0 %v5694
    %5966 = vmatmul.f32.gmra.mxu0 %v5676
    %v5967 = vpop.f32.mrf.mxu0
    %v5968 = vadd.f32 0.0, %v5967
    %5969 = vdwg.mxu0
    %5970 = vmatpush.msra.mxu0 %v5942
    %5971 = vmatpush.msra.mxu0 %v5934
    %5972 = vmatpush.msra.mxu0 %v5926
    %5973 = vmatpush.msra.mxu0 %v5918
    %5974 = vmatpush.msra.mxu0 %v5910
    %5975 = vmatpush.msra.mxu0 %v5902
    %5976 = vmatpush.msra.mxu0 %v5894
    %5977 = vmatpush.msra.mxu0 %v5886
    %5978 = vmatpush.msra.mxu0 %v5878
    %5979 = vmatpush.msra.mxu0 %v5870
    %5980 = vmatpush.msra.mxu0 %v5862
    %5981 = vmatpush.msra.mxu0 %v5854
    %5982 = vmatpush.msra.mxu0 %v5846
    %5983 = vmatpush.msra.mxu0 %v5838
    %5984 = vmatpush.msra.mxu0 %v5830
    %5985 = vmatpush.msra.mxu0 %v5822
    %5986 = vmatmul.f32.gmra.mxu0 %v5677
    %v5987 = vpop.f32.mrf.mxu0
    %v5988 = vadd.f32 %v5968, %v5987
    %5989 = vdwg.mxu0
    %5990 = vmatpush.msra.mxu0 %v5815
    %5991 = vmatpush.msra.mxu0 %v5807
    %5992 = vmatpush.msra.mxu0 %v5799
    %5993 = vmatpush.msra.mxu0 %v5791
    %5994 = vmatpush.msra.mxu0 %v5783
    %5995 = vmatpush.msra.mxu0 %v5775
    %5996 = vmatpush.msra.mxu0 %v5767
    %5997 = vmatpush.msra.mxu0 %v5759
    %5998 = vmatpush.msra.mxu0 %v5751
    %5999 = vmatpush.msra.mxu0 %v5743
    %6000 = vmatpush.msra.mxu0 %v5735
    %6001 = vmatpush.msra.mxu0 %v5727
    %6002 = vmatpush.msra.mxu0 %v5719
    %6003 = vmatpush.msra.mxu0 %v5711
    %6004 = vmatpush.msra.mxu0 %v5703
    %6005 = vmatpush.msra.mxu0 %v5695
    %6006 = vmatmul.f32.gmra.mxu0 %v5676
    %v6007 = vpop.f32.mrf.mxu0
    %v6008 = vadd.f32 0.0, %v6007
    %6009 = vdwg.mxu0
    %6010 = vmatpush.msra.mxu0 %v5943
    %6011 = vmatpush.msra.mxu0 %v5935
    %6012 = vmatpush.msra.mxu0 %v5927
    %6013 = vmatpush.msra.mxu0 %v5919
    %6014 = vmatpush.msra.mxu0 %v5911
    %6015 = vmatpush.msra.mxu0 %v5903
    %6016 = vmatpush.msra.mxu0 %v5895
    %6017 = vmatpush.msra.mxu0 %v5887
    %6018 = vmatpush.msra.mxu0 %v5879
    %6019 = vmatpush.msra.mxu0 %v5871
    %6020 = vmatpush.msra.mxu0 %v5863
    %6021 = vmatpush.msra.mxu0 %v5855
    %6022 = vmatpush.msra.mxu0 %v5847
    %6023 = vmatpush.msra.mxu0 %v5839
    %6024 = vmatpush.msra.mxu0 %v5831
    %6025 = vmatpush.msra.mxu0 %v5823
    %6026 = vmatmul.f32.gmra.mxu0 %v5677
    %v6027 = vpop.f32.mrf.mxu0
    %v6028 = vadd.f32 %v6008, %v6027
    %6029 = vdwg.mxu0
    %6030 = vmatpush.msra.mxu0 %v5816
    %6031 = vmatpush.msra.mxu0 %v5808
    %6032 = vmatpush.msra.mxu0 %v5800
    %6033 = vmatpush.msra.mxu0 %v5792
    %6034 = vmatpush.msra.mxu0 %v5784
    %6035 = vmatpush.msra.mxu0 %v5776
    %6036 = vmatpush.msra.mxu0 %v5768
    %6037 = vmatpush.msra.mxu0 %v5760
    %6038 = vmatpush.msra.mxu0 %v5752
    %6039 = vmatpush.msra.mxu0 %v5744
    %6040 = vmatpush.msra.mxu0 %v5736
    %6041 = vmatpush.msra.mxu0 %v5728
    %6042 = vmatpush.msra.mxu0 %v5720
    %6043 = vmatpush.msra.mxu0 %v5712
    %6044 = vmatpush.msra.mxu0 %v5704
    %6045 = vmatpush.msra.mxu0 %v5696
    %6046 = vmatmul.f32.gmra.mxu0 %v5676
    %v6047 = vpop.f32.mrf.mxu0
    %v6048 = vadd.f32 0.0, %v6047
    %6049 = vdwg.mxu0
    %6050 = vmatpush.msra.mxu0 %v5944
    %6051 = vmatpush.msra.mxu0 %v5936
    %6052 = vmatpush.msra.mxu0 %v5928
    %6053 = vmatpush.msra.mxu0 %v5920
    %6054 = vmatpush.msra.mxu0 %v5912
    %6055 = vmatpush.msra.mxu0 %v5904
    %6056 = vmatpush.msra.mxu0 %v5896
    %6057 = vmatpush.msra.mxu0 %v5888
    %6058 = vmatpush.msra.mxu0 %v5880
    %6059 = vmatpush.msra.mxu0 %v5872
    %6060 = vmatpush.msra.mxu0 %v5864
    %6061 = vmatpush.msra.mxu0 %v5856
    %6062 = vmatpush.msra.mxu0 %v5848
    %6063 = vmatpush.msra.mxu0 %v5840
    %6064 = vmatpush.msra.mxu0 %v5832
    %6065 = vmatpush.msra.mxu0 %v5824
    %6066 = vmatmul.f32.gmra.mxu0 %v5677
    %v6067 = vpop.f32.mrf.mxu0
    %v6068 = vadd.f32 %v6048, %v6067
    %6069 = vdwg.mxu0
    %6070 = vmatpush.msra.mxu0 %v5817
    %6071 = vmatpush.msra.mxu0 %v5809
    %6072 = vmatpush.msra.mxu0 %v5801
    %6073 = vmatpush.msra.mxu0 %v5793
    %6074 = vmatpush.msra.mxu0 %v5785
    %6075 = vmatpush.msra.mxu0 %v5777
    %6076 = vmatpush.msra.mxu0 %v5769
    %6077 = vmatpush.msra.mxu0 %v5761
    %6078 = vmatpush.msra.mxu0 %v5753
    %6079 = vmatpush.msra.mxu0 %v5745
    %6080 = vmatpush.msra.mxu0 %v5737
    %6081 = vmatpush.msra.mxu0 %v5729
    %6082 = vmatpush.msra.mxu0 %v5721
    %6083 = vmatpush.msra.mxu0 %v5713
    %6084 = vmatpush.msra.mxu0 %v5705
    %6085 = vmatpush.msra.mxu0 %v5697
    %6086 = vmatmul.f32.gmra.mxu0 %v5676
    %v6087 = vpop.f32.mrf.mxu0
    %v6088 = vadd.f32 0.0, %v6087
    %6089 = vdwg.mxu0
    %6090 = vmatpush.msra.mxu0 %v5945
    %6091 = vmatpush.msra.mxu0 %v5937
    %6092 = vmatpush.msra.mxu0 %v5929
    %6093 = vmatpush.msra.mxu0 %v5921
    %6094 = vmatpush.msra.mxu0 %v5913
    %6095 = vmatpush.msra.mxu0 %v5905
    %6096 = vmatpush.msra.mxu0 %v5897
    %6097 = vmatpush.msra.mxu0 %v5889
    %6098 = vmatpush.msra.mxu0 %v5881
    %6099 = vmatpush.msra.mxu0 %v5873
    %6100 = vmatpush.msra.mxu0 %v5865
    %6101 = vmatpush.msra.mxu0 %v5857
    %6102 = vmatpush.msra.mxu0 %v5849
    %6103 = vmatpush.msra.mxu0 %v5841
    %6104 = vmatpush.msra.mxu0 %v5833
    %6105 = vmatpush.msra.mxu0 %v5825
    %6106 = vmatmul.f32.gmra.mxu0 %v5677
    %v6107 = vpop.f32.mrf.mxu0
    %v6108 = vadd.f32 %v6088, %v6107
    %6109 = vdwg.mxu0
    %6110 = vmatpush.msra.mxu0 %v5818
    %6111 = vmatpush.msra.mxu0 %v5810
    %6112 = vmatpush.msra.mxu0 %v5802
    %6113 = vmatpush.msra.mxu0 %v5794
    %6114 = vmatpush.msra.mxu0 %v5786
    %6115 = vmatpush.msra.mxu0 %v5778
    %6116 = vmatpush.msra.mxu0 %v5770
    %6117 = vmatpush.msra.mxu0 %v5762
    %6118 = vmatpush.msra.mxu0 %v5754
    %6119 = vmatpush.msra.mxu0 %v5746
    %6120 = vmatpush.msra.mxu0 %v5738
    %6121 = vmatpush.msra.mxu0 %v5730
    %6122 = vmatpush.msra.mxu0 %v5722
    %6123 = vmatpush.msra.mxu0 %v5714
    %6124 = vmatpush.msra.mxu0 %v5706
    %6125 = vmatpush.msra.mxu0 %v5698
    %6126 = vmatmul.f32.gmra.mxu0 %v5676
    %v6127 = vpop.f32.mrf.mxu0
    %v6128 = vadd.f32 0.0, %v6127
    %6129 = vdwg.mxu0
    %6130 = vmatpush.msra.mxu0 %v5946
    %6131 = vmatpush.msra.mxu0 %v5938
    %6132 = vmatpush.msra.mxu0 %v5930
    %6133 = vmatpush.msra.mxu0 %v5922
    %6134 = vmatpush.msra.mxu0 %v5914
    %6135 = vmatpush.msra.mxu0 %v5906
    %6136 = vmatpush.msra.mxu0 %v5898
    %6137 = vmatpush.msra.mxu0 %v5890
    %6138 = vmatpush.msra.mxu0 %v5882
    %6139 = vmatpush.msra.mxu0 %v5874
    %6140 = vmatpush.msra.mxu0 %v5866
    %6141 = vmatpush.msra.mxu0 %v5858
    %6142 = vmatpush.msra.mxu0 %v5850
    %6143 = vmatpush.msra.mxu0 %v5842
    %6144 = vmatpush.msra.mxu0 %v5834
    %6145 = vmatpush.msra.mxu0 %v5826
    %6146 = vmatmul.f32.gmra.mxu0 %v5677
    %v6147 = vpop.f32.mrf.mxu0
    %v6148 = vadd.f32 %v6128, %v6147
    %6149 = vdwg.mxu0
    %6150 = vmatpush.msra.mxu0 %v5819
    %6151 = vmatpush.msra.mxu0 %v5811
    %6152 = vmatpush.msra.mxu0 %v5803
    %6153 = vmatpush.msra.mxu0 %v5795
    %6154 = vmatpush.msra.mxu0 %v5787
    %6155 = vmatpush.msra.mxu0 %v5779
    %6156 = vmatpush.msra.mxu0 %v5771
    %6157 = vmatpush.msra.mxu0 %v5763
    %6158 = vmatpush.msra.mxu0 %v5755
    %6159 = vmatpush.msra.mxu0 %v5747
    %6160 = vmatpush.msra.mxu0 %v5739
    %6161 = vmatpush.msra.mxu0 %v5731
    %6162 = vmatpush.msra.mxu0 %v5723
    %6163 = vmatpush.msra.mxu0 %v5715
    %6164 = vmatpush.msra.mxu0 %v5707
    %6165 = vmatpush.msra.mxu0 %v5699
    %6166 = vmatmul.f32.gmra.mxu0 %v5676
    %v6167 = vpop.f32.mrf.mxu0
    %v6168 = vadd.f32 0.0, %v6167
    %6169 = vdwg.mxu0
    %6170 = vmatpush.msra.mxu0 %v5947
    %6171 = vmatpush.msra.mxu0 %v5939
    %6172 = vmatpush.msra.mxu0 %v5931
    %6173 = vmatpush.msra.mxu0 %v5923
    %6174 = vmatpush.msra.mxu0 %v5915
    %6175 = vmatpush.msra.mxu0 %v5907
    %6176 = vmatpush.msra.mxu0 %v5899
    %6177 = vmatpush.msra.mxu0 %v5891
    %6178 = vmatpush.msra.mxu0 %v5883
    %6179 = vmatpush.msra.mxu0 %v5875
    %6180 = vmatpush.msra.mxu0 %v5867
    %6181 = vmatpush.msra.mxu0 %v5859
    %6182 = vmatpush.msra.mxu0 %v5851
    %6183 = vmatpush.msra.mxu0 %v5843
    %6184 = vmatpush.msra.mxu0 %v5835
    %6185 = vmatpush.msra.mxu0 %v5827
    %6186 = vmatmul.f32.gmra.mxu0 %v5677
    %v6187 = vpop.f32.mrf.mxu0
    %v6188 = vadd.f32 %v6168, %v6187
    %6189 = vdwg.mxu0
    %6190 = vmatpush.msra.mxu0 %v5820
    %6191 = vmatpush.msra.mxu0 %v5812
    %6192 = vmatpush.msra.mxu0 %v5804
    %6193 = vmatpush.msra.mxu0 %v5796
    %6194 = vmatpush.msra.mxu0 %v5788
    %6195 = vmatpush.msra.mxu0 %v5780
    %6196 = vmatpush.msra.mxu0 %v5772
    %6197 = vmatpush.msra.mxu0 %v5764
    %6198 = vmatpush.msra.mxu0 %v5756
    %6199 = vmatpush.msra.mxu0 %v5748
    %6200 = vmatpush.msra.mxu0 %v5740
    %6201 = vmatpush.msra.mxu0 %v5732
    %6202 = vmatpush.msra.mxu0 %v5724
    %6203 = vmatpush.msra.mxu0 %v5716
    %6204 = vmatpush.msra.mxu0 %v5708
    %6205 = vmatpush.msra.mxu0 %v5700
    %6206 = vmatmul.f32.gmra.mxu0 %v5676
    %v6207 = vpop.f32.mrf.mxu0
    %v6208 = vadd.f32 0.0, %v6207
    %6209 = vdwg.mxu0
    %6210 = vmatpush.msra.mxu0 %v5948
    %6211 = vmatpush.msra.mxu0 %v5940
    %6212 = vmatpush.msra.mxu0 %v5932
    %6213 = vmatpush.msra.mxu0 %v5924
    %6214 = vmatpush.msra.mxu0 %v5916
    %6215 = vmatpush.msra.mxu0 %v5908
    %6216 = vmatpush.msra.mxu0 %v5900
    %6217 = vmatpush.msra.mxu0 %v5892
    %6218 = vmatpush.msra.mxu0 %v5884
    %6219 = vmatpush.msra.mxu0 %v5876
    %6220 = vmatpush.msra.mxu0 %v5868
    %6221 = vmatpush.msra.mxu0 %v5860
    %6222 = vmatpush.msra.mxu0 %v5852
    %6223 = vmatpush.msra.mxu0 %v5844
    %6224 = vmatpush.msra.mxu0 %v5836
    %6225 = vmatpush.msra.mxu0 %v5828
    %6226 = vmatmul.f32.gmra.mxu0 %v5677
    %v6227 = vpop.f32.mrf.mxu0
    %v6228 = vadd.f32 %v6208, %v6227
    %6229 = vdwg.mxu0
    %6230 = vmatpush.msra.mxu0 %v5821
    %6231 = vmatpush.msra.mxu0 %v5813
    %6232 = vmatpush.msra.mxu0 %v5805
    %6233 = vmatpush.msra.mxu0 %v5797
    %6234 = vmatpush.msra.mxu0 %v5789
    %6235 = vmatpush.msra.mxu0 %v5781
    %6236 = vmatpush.msra.mxu0 %v5773
    %6237 = vmatpush.msra.mxu0 %v5765
    %6238 = vmatpush.msra.mxu0 %v5757
    %6239 = vmatpush.msra.mxu0 %v5749
    %6240 = vmatpush.msra.mxu0 %v5741
    %6241 = vmatpush.msra.mxu0 %v5733
    %6242 = vmatpush.msra.mxu0 %v5725
    %6243 = vmatpush.msra.mxu0 %v5717
    %6244 = vmatpush.msra.mxu0 %v5709
    %6245 = vmatpush.msra.mxu0 %v5701
    %6246 = vmatmul.f32.gmra.mxu0 %v5676
    %v6247 = vpop.f32.mrf.mxu0
    %v6248 = vadd.f32 0.0, %v6247
    %6249 = vdwg.mxu0
    %6250 = vmatpush.msra.mxu0 %v5949
    %6251 = vmatpush.msra.mxu0 %v5941
    %6252 = vmatpush.msra.mxu0 %v5933
    %6253 = vmatpush.msra.mxu0 %v5925
    %6254 = vmatpush.msra.mxu0 %v5917
    %6255 = vmatpush.msra.mxu0 %v5909
    %6256 = vmatpush.msra.mxu0 %v5901
    %6257 = vmatpush.msra.mxu0 %v5893
    %6258 = vmatpush.msra.mxu0 %v5885
    %6259 = vmatpush.msra.mxu0 %v5877
    %6260 = vmatpush.msra.mxu0 %v5869
    %6261 = vmatpush.msra.mxu0 %v5861
    %6262 = vmatpush.msra.mxu0 %v5853
    %6263 = vmatpush.msra.mxu0 %v5845
    %6264 = vmatpush.msra.mxu0 %v5837
    %6265 = vmatpush.msra.mxu0 %v5829
    %6266 = vmatmul.f32.gmra.mxu0 %v5677
    %v6267 = vpop.f32.mrf.mxu0
    %v6268 = vadd.f32 %v6248, %v6267
    %6269 = vdwg.mxu0
    %v6270 = vadd.f32 %v5686, %v5988
    %v6271 = vadd.f32 %v5687, %v6028
    %v6272 = vadd.f32 %v5688, %v6068
    %v6273 = vadd.f32 %v5689, %v6108
    %v6274 = vadd.f32 %v5690, %v6148
    %v6275 = vadd.f32 %v5691, %v6188
    %v6276 = vadd.f32 %v5692, %v6228
    %v6277 = vadd.f32 %v5693, %v6268
    %v6278 = vxor.u32 %v6270, 2147483648
    %v6279 = vxor.u32 %v6271, 2147483648
    %v6280 = vxor.u32 %v6272, 2147483648
    %v6281 = vxor.u32 %v6273, 2147483648
    %v6282 = vxor.u32 %v6276, 2147483648
    %v6283 = vxor.u32 %v6277, 2147483648
    %v6284 = vmul.f32 %v6278, 1.442695
    %v6285 = vpow.pop %v6284
    %v6286 = vmul.f32 %v6279, 1.442695
    %v6287 = vpow.pop %v6286
    %v6288 = vmul.f32 %v6280, 1.442695
    %v6289 = vpow.pop %v6288
    %v6290 = vmul.f32 %v6281, 1.442695
    %v6291 = vpow.pop %v6290
    %v6292 = vmul.f32 %v6282, 1.442695
    %v6293 = vpow.pop %v6292
    %v6294 = vmul.f32 %v6283, 1.442695
    %v6295 = vpow.pop %v6294
    %v6296 = vadd.f32 %v6285, 1.0
    %v6297 = vadd.f32 %v6287, 1.0
    %v6298 = vadd.f32 %v6289, 1.0
    %v6299 = vadd.f32 %v6291, 1.0
    %v6300 = vadd.f32 %v6293, 1.0
    %v6301 = vadd.f32 %v6295, 1.0
    %v6302 = vrcp.pop %v6296
    %v6303 = vmul.f32 %v6296, %v6302
    %v6304 = vsub.f32 1.0, %v6303
    %v6305 = vmul.f32 %v6302, %v6304
    %v6306 = vadd.f32 %v6302, %v6305
    %vm6307 = vweird.f32 %v6296
    %vm6308 = vweird.f32 %v6302
    %vm6309 = vmor %vm6307, %vm6308
    %v6310 = vsel %vm6309, %v6302, %v6306
    %v6311 = vand.u32 2147483647, %v6296
    %vm6312 = vcmp.eq.f32.partialorder %v6311, 8.507059e+37
    %v6313 = vand.u32 %v6296, 2147483648
    %v6314 = vor.u32 1.1754944e-38, %v6313
    %v6315 = vsel %vm6312, %v6314, %v6310
    %v6316 = vmul.f32 1.0, %v6315
    %v6317 = vrcp.pop %v6297
    %v6318 = vmul.f32 %v6297, %v6317
    %v6319 = vsub.f32 1.0, %v6318
    %v6320 = vmul.f32 %v6317, %v6319
    %v6321 = vadd.f32 %v6317, %v6320
    %vm6322 = vweird.f32 %v6297
    %vm6323 = vweird.f32 %v6317
    %vm6324 = vmor %vm6322, %vm6323
    %v6325 = vsel %vm6324, %v6317, %v6321
    %v6326 = vand.u32 2147483647, %v6297
    %vm6327 = vcmp.eq.f32.partialorder %v6326, 8.507059e+37
    %v6328 = vand.u32 %v6297, 2147483648
    %v6329 = vor.u32 1.1754944e-38, %v6328
    %v6330 = vsel %vm6327, %v6329, %v6325
    %v6331 = vmul.f32 1.0, %v6330
    %v6332 = vrcp.pop %v6298
    %v6333 = vmul.f32 %v6298, %v6332
    %v6334 = vsub.f32 1.0, %v6333
    %v6335 = vmul.f32 %v6332, %v6334
    %v6336 = vadd.f32 %v6332, %v6335
    %vm6337 = vweird.f32 %v6298
    %vm6338 = vweird.f32 %v6332
    %vm6339 = vmor %vm6337, %vm6338
    %v6340 = vsel %vm6339, %v6332, %v6336
    %v6341 = vand.u32 2147483647, %v6298
    %vm6342 = vcmp.eq.f32.partialorder %v6341, 8.507059e+37
    %v6343 = vand.u32 %v6298, 2147483648
    %v6344 = vor.u32 1.1754944e-38, %v6343
    %v6345 = vsel %vm6342, %v6344, %v6340
    %v6346 = vmul.f32 1.0, %v6345
    %v6347 = vrcp.pop %v6299
    %v6348 = vmul.f32 %v6299, %v6347
    %v6349 = vsub.f32 1.0, %v6348
    %v6350 = vmul.f32 %v6347, %v6349
    %v6351 = vadd.f32 %v6347, %v6350
    %vm6352 = vweird.f32 %v6299
    %vm6353 = vweird.f32 %v6347
    %vm6354 = vmor %vm6352, %vm6353
    %v6355 = vsel %vm6354, %v6347, %v6351
    %v6356 = vand.u32 2147483647, %v6299
    %vm6357 = vcmp.eq.f32.partialorder %v6356, 8.507059e+37
    %v6358 = vand.u32 %v6299, 2147483648
    %v6359 = vor.u32 1.1754944e-38, %v6358
    %v6360 = vsel %vm6357, %v6359, %v6355
    %v6361 = vmul.f32 1.0, %v6360
    %v6362 = vrcp.pop %v6300
    %v6363 = vmul.f32 %v6300, %v6362
    %v6364 = vsub.f32 1.0, %v6363
    %v6365 = vmul.f32 %v6362, %v6364
    %v6366 = vadd.f32 %v6362, %v6365
    %vm6367 = vweird.f32 %v6300
    %vm6368 = vweird.f32 %v6362
    %vm6369 = vmor %vm6367, %vm6368
    %v6370 = vsel %vm6369, %v6362, %v6366
    %v6371 = vand.u32 2147483647, %v6300
    %vm6372 = vcmp.eq.f32.partialorder %v6371, 8.507059e+37
    %v6373 = vand.u32 %v6300, 2147483648
    %v6374 = vor.u32 1.1754944e-38, %v6373
    %v6375 = vsel %vm6372, %v6374, %v6370
    %v6376 = vmul.f32 1.0, %v6375
    %v6377 = vrcp.pop %v6301
    %v6378 = vmul.f32 %v6301, %v6377
    %v6379 = vsub.f32 1.0, %v6378
    %v6380 = vmul.f32 %v6377, %v6379
    %v6381 = vadd.f32 %v6377, %v6380
    %vm6382 = vweird.f32 %v6301
    %vm6383 = vweird.f32 %v6377
    %vm6384 = vmor %vm6382, %vm6383
    %v6385 = vsel %vm6384, %v6377, %v6381
    %v6386 = vand.u32 2147483647, %v6301
    %vm6387 = vcmp.eq.f32.partialorder %v6386, 8.507059e+37
    %v6388 = vand.u32 %v6301, 2147483648
    %v6389 = vor.u32 1.1754944e-38, %v6388
    %v6390 = vsel %vm6387, %v6389, %v6385
    %v6391 = vmul.f32 1.0, %v6390
    %v6392 = vtanh.pop %v6274
    %v6393 = vtanh.pop %v6275
    %v6394 = vmul.f32 %v6346, %v5672
    %v6395 = vmul.f32 %v6361, %v5673
    %v6396 = vmul.f32 %v6316, %v6392
    %v6397 = vmul.f32 %v6331, %v6393
    %v6398 = vadd.f32 %v6394, %v6396
    %v6399 = vadd.f32 %v6395, %v6397
    %v6400 = vtanh.pop %v6398
    %v6401 = vtanh.pop %v6399
    %v6402 = vmul.f32 %v6376, %v6400
    %v6403 = vmul.f32 %v6391, %v6401
    %s6404 = smul.u32 7, 2
    %s6405 = smul.addr %s6404, 8
    %s6406 = scalar_lea.vmem [#allocation3], %s6405
    %6407 = vst [vmem:[%s6406] sm:$0xff] %v6402
    %6408 = vst [vmem:[%s6406 + $0x8] sm:$0xff] %v6403
    %v6409 = vld [vmem:[#allocation3] sm:$0xff]
    %v6410 = vld [vmem:[#allocation3 + $0x8] sm:$0xff]
    %v6411 = vld [vmem:[#allocation3 + $0x10] sm:$0xff]
    %v6412 = vld [vmem:[#allocation3 + $0x18] sm:$0xff]
    %v6413 = vld [vmem:[#allocation3 + $0x20] sm:$0xff]
    %v6414 = vld [vmem:[#allocation3 + $0x28] sm:$0xff]
    %v6415 = vld [vmem:[#allocation3 + $0x30] sm:$0xff]
    %v6416 = vld [vmem:[#allocation3 + $0x38] sm:$0xff]
    %v6417 = vld [vmem:[#allocation3 + $0x40] sm:$0xff]
    %v6418 = vld [vmem:[#allocation3 + $0x48] sm:$0xff]
    %v6419 = vld [vmem:[#allocation3 + $0x50] sm:$0xff]
    %v6420 = vld [vmem:[#allocation3 + $0x58] sm:$0xff]
    %v6421 = vld [vmem:[#allocation3 + $0x60] sm:$0xff]
    %v6422 = vld [vmem:[#allocation3 + $0x68] sm:$0xff]
    %v6423 = vld [vmem:[#allocation3 + $0x70] sm:$0xff]
    %v6424 = vld [vmem:[#allocation3 + $0x78] sm:$0xff]
    %v6425 = vld [vmem:[%s4] sm:$0xff]
    %v6426 = vld [vmem:[%s4 + $0x8] sm:$0xff]
    %v6427 = vld [vmem:[%s4 + $0x10] sm:$0xff]
    %v6428 = vld [vmem:[%s4 + $0x18] sm:$0xff]
    %v6429 = vld [vmem:[%s4 + $0x20] sm:$0xff]
    %v6430 = vld [vmem:[%s4 + $0x28] sm:$0xff]
    %v6431 = vld [vmem:[%s4 + $0x30] sm:$0xff]
    %v6432 = vld [vmem:[%s4 + $0x38] sm:$0xff]
    %v6433 = vld [vmem:[%s4 + $0x40] sm:$0xff]
    %v6434 = vld [vmem:[%s4 + $0x48] sm:$0xff]
    %v6435 = vld [vmem:[%s4 + $0x50] sm:$0xff]
    %v6436 = vld [vmem:[%s4 + $0x58] sm:$0xff]
    %v6437 = vld [vmem:[%s4 + $0x60] sm:$0xff]
    %v6438 = vld [vmem:[%s4 + $0x68] sm:$0xff]
    %v6439 = vld [vmem:[%s4 + $0x70] sm:$0xff]
    %v6440 = vld [vmem:[%s4 + $0x78] sm:$0xff]
    %v6441 = vld [vmem:[%s4 + $0x80] sm:$0xff]
    %v6442 = vld [vmem:[%s4 + $0x88] sm:$0xff]
    %v6443 = vld [vmem:[%s4 + $0x90] sm:$0xff]
    %v6444 = vld [vmem:[%s4 + $0x98] sm:$0xff]
    %v6445 = vld [vmem:[%s4 + $0xa0] sm:$0xff]
    %v6446 = vld [vmem:[%s4 + $0xa8] sm:$0xff]
    %v6447 = vld [vmem:[%s4 + $0xb0] sm:$0xff]
    %v6448 = vld [vmem:[%s4 + $0xb8] sm:$0xff]
    %v6449 = vld [vmem:[%s4 + $0xc0] sm:$0xff]
    %v6450 = vld [vmem:[%s4 + $0xc8] sm:$0xff]
    %v6451 = vld [vmem:[%s4 + $0xd0] sm:$0xff]
    %v6452 = vld [vmem:[%s4 + $0xd8] sm:$0xff]
    %v6453 = vld [vmem:[%s4 + $0xe0] sm:$0xff]
    %v6454 = vld [vmem:[%s4 + $0xe8] sm:$0xff]
    %v6455 = vld [vmem:[%s4 + $0xf0] sm:$0xff]
    %v6456 = vld [vmem:[%s4 + $0xf8] sm:$0xff]
    %v6457 = vld [vmem:[%s5] sm:$0x1]
    %v6459 = vperm.slane %v6457, 0
    %6461 = vmatpush.msra.mxu0 %v6440
    %6462 = vmatpush.msra.mxu0 %v6439
    %6463 = vmatpush.msra.mxu0 %v6438
    %6464 = vmatpush.msra.mxu0 %v6437
    %6465 = vmatpush.msra.mxu0 %v6436
    %6466 = vmatpush.msra.mxu0 %v6435
    %6467 = vmatpush.msra.mxu0 %v6434
    %6468 = vmatpush.msra.mxu0 %v6433
    %6469 = vmatpush.msra.mxu0 %v6432
    %6470 = vmatpush.msra.mxu0 %v6431
    %6471 = vmatpush.msra.mxu0 %v6430
    %6472 = vmatpush.msra.mxu0 %v6429
    %6473 = vmatpush.msra.mxu0 %v6428
    %6474 = vmatpush.msra.mxu0 %v6427
    %6475 = vmatpush.msra.mxu0 %v6426
    %6476 = vmatpush.msra.mxu0 %v6425
    %6477 = vmatmul.f32.gmra.mxu0 %v6409
    %v6478 = vpop.f32.mrf.mxu0
    %v6479 = vadd.f32 %v6459, %v6478
    %6480 = vmatmul.f32.gmra.mxu0 %v6411
    %v6481 = vpop.f32.mrf.mxu0
    %v6482 = vadd.f32 %v6459, %v6481
    %6483 = vmatmul.f32.gmra.mxu0 %v6413
    %v6484 = vpop.f32.mrf.mxu0
    %v6485 = vadd.f32 %v6459, %v6484
    %6486 = vmatmul.f32.gmra.mxu0 %v6415
    %v6487 = vpop.f32.mrf.mxu0
    %v6488 = vadd.f32 %v6459, %v6487
    %6489 = vmatmul.f32.gmra.mxu0 %v6417
    %v6490 = vpop.f32.mrf.mxu0
    %v6491 = vadd.f32 %v6459, %v6490
    %6492 = vmatmul.f32.gmra.mxu0 %v6419
    %v6493 = vpop.f32.mrf.mxu0
    %v6494 = vadd.f32 %v6459, %v6493
    %6495 = vmatmul.f32.gmra.mxu0 %v6421
    %v6496 = vpop.f32.mrf.mxu0
    %v6497 = vadd.f32 %v6459, %v6496
    %6498 = vmatmul.f32.gmra.mxu0 %v6423
    %v6499 = vpop.f32.mrf.mxu0
    %v6500 = vadd.f32 %v6459, %v6499
    %6501 = vdwg.mxu0
    %6502 = vmatpush.msra.mxu0 %v6456
    %6503 = vmatpush.msra.mxu0 %v6455
    %6504 = vmatpush.msra.mxu0 %v6454
    %6505 = vmatpush.msra.mxu0 %v6453
    %6506 = vmatpush.msra.mxu0 %v6452
    %6507 = vmatpush.msra.mxu0 %v6451
    %6508 = vmatpush.msra.mxu0 %v6450
    %6509 = vmatpush.msra.mxu0 %v6449
    %6510 = vmatpush.msra.mxu0 %v6448
    %6511 = vmatpush.msra.mxu0 %v6447
    %6512 = vmatpush.msra.mxu0 %v6446
    %6513 = vmatpush.msra.mxu0 %v6445
    %6514 = vmatpush.msra.mxu0 %v6444
    %6515 = vmatpush.msra.mxu0 %v6443
    %6516 = vmatpush.msra.mxu0 %v6442
    %6517 = vmatpush.msra.mxu0 %v6441
    %6518 = vmatmul.f32.gmra.mxu0 %v6410
    %v6519 = vpop.f32.mrf.mxu0
    %v6520 = vadd.f32 %v6479, %v6519
    %6521 = vmatmul.f32.gmra.mxu0 %v6412
    %v6522 = vpop.f32.mrf.mxu0
    %v6523 = vadd.f32 %v6482, %v6522
    %6524 = vmatmul.f32.gmra.mxu0 %v6414
    %v6525 = vpop.f32.mrf.mxu0
    %v6526 = vadd.f32 %v6485, %v6525
    %6527 = vmatmul.f32.gmra.mxu0 %v6416
    %v6528 = vpop.f32.mrf.mxu0
    %v6529 = vadd.f32 %v6488, %v6528
    %6530 = vmatmul.f32.gmra.mxu0 %v6418
    %v6531 = vpop.f32.mrf.mxu0
    %v6532 = vadd.f32 %v6491, %v6531
    %6533 = vmatmul.f32.gmra.mxu0 %v6420
    %v6534 = vpop.f32.mrf.mxu0
    %v6535 = vadd.f32 %v6494, %v6534
    %6536 = vmatmul.f32.gmra.mxu0 %v6422
    %v6537 = vpop.f32.mrf.mxu0
    %v6538 = vadd.f32 %v6497, %v6537
    %6539 = vmatmul.f32.gmra.mxu0 %v6424
    %v6540 = vpop.f32.mrf.mxu0
    %v6541 = vadd.f32 %v6500, %v6540
    %6542 = vdwg.mxu0
    %6543 = vst [vmem:[%s6] sm:$0xff] %v6520
    %6544 = vst [vmem:[%s6 + $0x8] sm:$0xff] %v6523
    %6545 = vst [vmem:[%s6 + $0x10] sm:$0xff] %v6526
    %6546 = vst [vmem:[%s6 + $0x18] sm:$0xff] %v6529
    %6547 = vst [vmem:[%s6 + $0x20] sm:$0xff] %v6532
    %6548 = vst [vmem:[%s6 + $0x28] sm:$0xff] %v6535
    %6549 = vst [vmem:[%s6 + $0x30] sm:$0xff] %v6538
    %6550 = vst [vmem:[%s6 + $0x38] sm:$0xff] %v6541
    // Predicated region
    $region34: #{neural_symbolic_forward.1} parent=1 // pred_check
      _
    $region35: #{neural_symbolic_forward.1} parent=1 // pred_check_branch
      %6552 = sbr.rel (0) target = $region37
    $region36: #{neural_symbolic_forward.1} parent=1 // pred_region
      _
    $region37: #{neural_symbolic_forward.1} parent=1 // pred_fallthru
      _
    // Predicated region
    $region38: #{neural_symbolic_forward.1} parent=1 // pred_check
      _
    $region39: #{neural_symbolic_forward.1} parent=1 // pred_check_branch
      %6554 = sbr.rel (0) target = $region41
    $region40: #{neural_symbolic_forward.1} parent=1 // pred_region
      _
    $region41: #{neural_symbolic_forward.1} parent=1 // pred_fallthru
      _
    %6555 = vsyncpa [#allocation5], 1
    %6556 = vsyncpa [#allocation7], 1

</llo_original>
